<compile_context>
chip_gen: v7x
topology: tpu7x:2x2x1
jax: 0.10.0
libtpu: 0.0.40
codegen_flags: <defaults>
</compile_context>

<pallas_src>
import functools

import jax
import jax.numpy as jnp
from jax.experimental import pallas as pl
from jax.experimental.pallas import tpu as pltpu


_PAD_MODE = {"reflect": "reflect", "replicate": "edge", "zero": "constant"}


# ----------------------------------------------------------------------------
# Fused residual-block kernel (one grid step == one image)
# ----------------------------------------------------------------------------
def _make_block_kernel(H, W, C, padding_type, compute_dtype):
    HW = H * W

    def write_padded(pad_ref, center):
        """center: (H, W, C) value in pad_ref dtype -> fills pad_ref (H+2,W+2,C)."""
        pad_ref[1:H + 1, 1:W + 1, :] = center
        # Rows first...
        if padding_type == "reflect":            # torch ReflectionPad2d(1)
            pad_ref[0:1, 1:W + 1, :] = center[1:2]
            pad_ref[H + 1:H + 2, 1:W + 1, :] = center[H - 2:H - 1]
        elif padding_type == "replicate":        # torch ReplicationPad2d(1)
            pad_ref[0:1, 1:W + 1, :] = center[0:1]
            pad_ref[H + 1:H + 2, 1:W + 1, :] = center[H - 1:H]
        else:                                    # zero padding
            zrow = jnp.zeros((1, W, C), center.dtype)
            pad_ref[0:1, 1:W + 1, :] = zrow
            pad_ref[H + 1:H + 2, 1:W + 1, :] = zrow
        # ...then columns (corners come out right this way).
        if padding_type == "reflect":
            pad_ref[:, 0:1, :] = pad_ref[:, 2:3, :]
            pad_ref[:, W + 1:W + 2, :] = pad_ref[:, W - 1:W, :]
        elif padding_type == "replicate":
            pad_ref[:, 0:1, :] = pad_ref[:, 1:2, :]
            pad_ref[:, W + 1:W + 2, :] = pad_ref[:, W:W + 1, :]
        else:
            zcol = jnp.zeros((H + 2, 1, C), center.dtype)
            pad_ref[:, 0:1, :] = zcol
            pad_ref[:, W + 1:W + 2, :] = zcol

    def conv3x3(pad_ref, w_ref):
        """9 shifted MXU dots against the padded VMEM scratch; f32 (H*W, C)."""
        acc = jnp.zeros((HW, C), jnp.float32)
        for di in range(3):
            for dj in range(3):
                a = pad_ref[di:di + H, dj:dj + W, :].reshape(HW, C)
                acc = acc + jnp.dot(a, w_ref[di * 3 + dj],
                                    preferred_element_type=jnp.float32)
        return acc

    def kernel(x_ref, w1_ref, b1_ref, w2_ref, b2_ref, o_ref,
               xpad_ref, y1pad_ref):
        # conv1: pad(x) -> 9 dots -> bias -> ReLU          (all in VMEM)
        write_padded(xpad_ref, x_ref[0].astype(compute_dtype))
        y1 = conv3x3(xpad_ref, w1_ref) + b1_ref[...]
        y1 = jnp.maximum(y1, 0.0)
        # TODO(synk): Dropout(0.5) would be applied here when use_dropout=True.
        # conv2: pad(y1) -> 9 dots -> bias -> residual add with the x block.
        write_padded(y1pad_ref, y1.reshape(H, W, C).astype(compute_dtype))
        y2 = conv3x3(y1pad_ref, w2_ref) + b2_ref[...]
        o_ref[0] = (y2.reshape(H, W, C) + x_ref[0]).astype(o_ref.dtype)

    return kernel


def _torch_w_to_taps(w):
    """torch (Cout, Cin, 3, 3) -> (9, Cin, Cout), tap order (kh, kw)."""
    return jnp.transpose(w, (2, 3, 1, 0)).reshape(9, w.shape[1], w.shape[0])


# ----------------------------------------------------------------------------
# ResnetBlock_nonorm forward  (x: NCHW at the boundary, like torch)
# ----------------------------------------------------------------------------
def resnet_block_nonorm_forward(params, x, padding_type="reflect",
                                compute_dtype=jnp.bfloat16):
    if padding_type not in _PAD_MODE:
        raise NotImplementedError("padding [%s] is not implemented" % padding_type)
    n, c, h, w = x.shape

    # Single boundary transpose in / out; the kernel is NHWC internally.
    xh = jnp.transpose(x, (0, 2, 3, 1))

    w1 = _torch_w_to_taps(params["w1"]).astype(compute_dtype)
    w2 = _torch_w_to_taps(params["w2"]).astype(compute_dtype)
    b1 = params.get("b1")
    b2 = params.get("b2")
    b1 = (jnp.zeros((c,), jnp.float32) if b1 is None
          else b1.astype(jnp.float32)).reshape(1, c)
    b2 = (jnp.zeros((c,), jnp.float32) if b2 is None
          else b2.astype(jnp.float32)).reshape(1, c)

    kernel = _make_block_kernel(h, w, c, padding_type, compute_dtype)

    # Explicit VMEM budget: double-buffered x/out blocks + weights + the two
    # padded scratches + f32 accumulator headroom.
    cb = jnp.dtype(compute_dtype).itemsize
    est = (2 * 2 * h * w * c * 4                 # x-in + out blocks, 2-buffered
           + 2 * 2 * 9 * c * c * cb              # w1 + w2
           + 2 * (h + 2) * (w + 2) * c * cb      # pad(x), pad(y1) scratches
           + 2 * h * w * c * 4)                  # accumulator headroom
    vmem_limit = int(min(max(2 * est, 32 * 1024 * 1024), 60 * 1024 * 1024))

    cost = pl.CostEstimate(
        flops=int(2 * 2 * 9 * n * h * w * c * c),
        transcendentals=0,
        bytes_accessed=int(2 * x.size * 4 + (w1.size + w2.size) * cb))

    out_nhwc = pl.pallas_call(
        kernel,
        out_shape=jax.ShapeDtypeStruct((n, h, w, c), jnp.float32),
        grid_spec=pltpu.PrefetchScalarGridSpec(
            num_scalar_prefetch=0,
            grid=(n,),
            in_specs=[
                pl.BlockSpec((1, h, w, c), lambda b: (b, 0, 0, 0)),   # x (NHWC)
                pl.BlockSpec((9, c, c), lambda b: (0, 0, 0)),         # w1 taps
                pl.BlockSpec((1, c), lambda b: (0, 0)),               # b1
                pl.BlockSpec((9, c, c), lambda b: (0, 0, 0)),         # w2 taps
                pl.BlockSpec((1, c), lambda b: (0, 0)),               # b2
            ],
            out_specs=pl.BlockSpec((1, h, w, c), lambda b: (b, 0, 0, 0)),
            scratch_shapes=[
                pltpu.VMEM((h + 2, w + 2, c), compute_dtype),         # pad(x)
                pltpu.VMEM((h + 2, w + 2, c), compute_dtype),         # pad(y1)
            ]),
        compiler_params=pltpu.CompilerParams(
            dimension_semantics=("parallel",),
            vmem_limit_bytes=vmem_limit),
        cost_estimate=cost,
    )(xh, w1, b1, w2, b2)

    return jnp.transpose(out_nhwc, (0, 3, 1, 2))


# ----------------------------------------------------------------------------
# Pure-JAX reference (f32) for correctness check
# ----------------------------------------------------------------------------
def _reference(params, x, padding_type="reflect"):
    def conv3x3(xp, w, b):
        y = jax.lax.conv_general_dilated(
            xp, w, window_strides=(1, 1), padding="VALID",
            dimension_numbers=("NCHW", "OIHW", "NCHW"))
        if b is not None:
            y = y + b.reshape(1, -1, 1, 1)
        return y

    mode = _PAD_MODE[padding_type]
    xp = jnp.pad(x, ((0, 0), (0, 0), (1, 1), (1, 1)), mode=mode)
    h = jnp.maximum(conv3x3(xp, params["w1"], params.get("b1")), 0.0)
    hp = jnp.pad(h, ((0, 0), (0, 0), (1, 1), (1, 1)), mode=mode)
    return x + conv3x3(hp, params["w2"], params.get("b2"))


# ----------------------------------------------------------------------------
if __name__ == "__main__":
    # Small, TPU-friendly shapes (dim multiple of 128 -> lane-dense channels).
    dim, batch, H, W = 128, 2, 16, 16
    padding_type = "reflect"
    use_bias = True            # no norm layer inside the block -> bias on

    key = jax.random.PRNGKey(0)
    k1, k2, k3, k4, kx = jax.random.split(key, 5)
    params = {
        "w1": jax.random.normal(k1, (dim, dim, 3, 3), jnp.float32) * 0.02,
        "w2": jax.random.normal(k3, (dim, dim, 3, 3), jnp.float32) * 0.02,
    }
    if use_bias:
        params["b1"] = jax.random.normal(k2, (dim,), jnp.float32) * 0.02
        params["b2"] = jax.random.normal(k4, (dim,), jnp.float32) * 0.02

    x = jax.random.normal(kx, (batch, dim, H, W), jnp.float32)

    fwd = jax.jit(functools.partial(resnet_block_nonorm_forward,
                                    padding_type=padding_type))
    out = fwd(params, x)
    jax.block_until_ready(out)
    assert out.shape == (batch, dim, H, W), out.shape

    ref = _reference(params, x, padding_type)
    err = float(jnp.max(jnp.abs(out - ref)))
    assert err < 5e-2, f"max abs err vs reference: {err}"

    print("KERNEL_OK")
</pallas_src>

<mosaic_0001>
module attributes {stable_mosaic.version = 11 : i64} {
  func.func @kernel(%arg0: i32, %arg1: memref<1x16x16x128xf32, #tpu.memory_space<vmem>>, %arg2: memref<9x128x128xbf16, #tpu.memory_space<vmem>>, %arg3: memref<1x128xf32, #tpu.memory_space<vmem>>, %arg4: memref<9x128x128xbf16, #tpu.memory_space<vmem>>, %arg5: memref<1x128xf32, #tpu.memory_space<vmem>>, %arg6: memref<1x16x16x128xf32, #tpu.memory_space<vmem>>, %arg7: memref<18x18x128xbf16, #tpu.memory_space<vmem>>, %arg8: memref<18x18x128xbf16, #tpu.memory_space<vmem>>) attributes {dimension_semantics = [#tpu.dimension_semantics<parallel>], iteration_bounds = array<i64: 2>, scalar_prefetch = 0 : i64, scratch_operands = 2 : i64, tpu.core_type = #tpu.core_type<tc>, window_params = [{transform_indices = @transform_0, window_bounds = array<i64: 1, 16, 16, 128>}, {pipeline_mode = #tpu.pipeline_mode<synchronous>, transform_indices = @transform_1, window_bounds = array<i64: 9, 128, 128>}, {pipeline_mode = #tpu.pipeline_mode<synchronous>, transform_indices = @transform_2, window_bounds = array<i64: 1, 128>}, {pipeline_mode = #tpu.pipeline_mode<synchronous>, transform_indices = @transform_3, window_bounds = array<i64: 9, 128, 128>}, {pipeline_mode = #tpu.pipeline_mode<synchronous>, transform_indices = @transform_4, window_bounds = array<i64: 1, 128>}, {transform_indices = @transform_5, window_bounds = array<i64: 1, 16, 16, 128>}]} {
    %c0 = arith.constant 0 : index
    %c0_0 = arith.constant 0 : index
    %c0_1 = arith.constant 0 : index
    %c0_2 = arith.constant 0 : index
    %0 = vector.load %arg1[%c0, %c0_0, %c0_1, %c0_2] : memref<1x16x16x128xf32, #tpu.memory_space<vmem>>, vector<1x16x16x128xf32>
    %1 = vector.shape_cast %0 : vector<1x16x16x128xf32> to vector<16x16x128xf32>
    %2 = arith.truncf %1 : vector<16x16x128xf32> to vector<16x16x128xbf16>
    %c1 = arith.constant 1 : index
    %c1_3 = arith.constant 1 : index
    %c0_4 = arith.constant 0 : index
    %3 = vector.load %arg7[%c1, %c1_3, %c0_4] : memref<18x18x128xbf16, #tpu.memory_space<vmem>>, vector<16x16x128xbf16>
    tpu.vector_store %arg7[%c1, %c1_3, %c0_4], %2 {strides = array<i32>} : memref<18x18x128xbf16, #tpu.memory_space<vmem>>, vector<16x16x128xbf16>,
    %4 = vector.extract_strided_slice %2 {offsets = [1, 0, 0], sizes = [1, 16, 128], strides = [1, 1, 1]} : vector<16x16x128xbf16> to vector<1x16x128xbf16>
    %c0_5 = arith.constant 0 : index
    %c1_6 = arith.constant 1 : index
    %c0_7 = arith.constant 0 : index
    %5 = vector.load %arg7[%c0_5, %c1_6, %c0_7] : memref<18x18x128xbf16, #tpu.memory_space<vmem>>, vector<1x16x128xbf16>
    tpu.vector_store %arg7[%c0_5, %c1_6, %c0_7], %4 {strides = array<i32>} : memref<18x18x128xbf16, #tpu.memory_space<vmem>>, vector<1x16x128xbf16>,
    %6 = vector.extract_strided_slice %2 {offsets = [14, 0, 0], sizes = [1, 16, 128], strides = [1, 1, 1]} : vector<16x16x128xbf16> to vector<1x16x128xbf16>
    %c17 = arith.constant 17 : index
    %c1_8 = arith.constant 1 : index
    %c0_9 = arith.constant 0 : index
    %7 = vector.load %arg7[%c17, %c1_8, %c0_9] : memref<18x18x128xbf16, #tpu.memory_space<vmem>>, vector<1x16x128xbf16>
    tpu.vector_store %arg7[%c17, %c1_8, %c0_9], %6 {strides = array<i32>} : memref<18x18x128xbf16, #tpu.memory_space<vmem>>, vector<1x16x128xbf16>,
    %c0_10 = arith.constant 0 : index
    %c2 = arith.constant 2 : index
    %c0_11 = arith.constant 0 : index
    %8 = vector.load %arg7[%c0_10, %c2, %c0_11] : memref<18x18x128xbf16, #tpu.memory_space<vmem>>, vector<18x1x128xbf16>
    %c0_12 = arith.constant 0 : index
    %c0_13 = arith.constant 0 : index
    %c0_14 = arith.constant 0 : index
    %9 = vector.load %arg7[%c0_12, %c0_13, %c0_14] : memref<18x18x128xbf16, #tpu.memory_space<vmem>>, vector<18x1x128xbf16>
    tpu.vector_store %arg7[%c0_12, %c0_13, %c0_14], %8 {strides = array<i32>} : memref<18x18x128xbf16, #tpu.memory_space<vmem>>, vector<18x1x128xbf16>,
    %c0_15 = arith.constant 0 : index
    %c15 = arith.constant 15 : index
    %c0_16 = arith.constant 0 : index
    %10 = vector.load %arg7[%c0_15, %c15, %c0_16] : memref<18x18x128xbf16, #tpu.memory_space<vmem>>, vector<18x1x128xbf16>
    %c0_17 = arith.constant 0 : index
    %c17_18 = arith.constant 17 : index
    %c0_19 = arith.constant 0 : index
    %11 = vector.load %arg7[%c0_17, %c17_18, %c0_19] : memref<18x18x128xbf16, #tpu.memory_space<vmem>>, vector<18x1x128xbf16>
    tpu.vector_store %arg7[%c0_17, %c17_18, %c0_19], %10 {strides = array<i32>} : memref<18x18x128xbf16, #tpu.memory_space<vmem>>, vector<18x1x128xbf16>,
    %cst = arith.constant 0.000000e+00 : f32
    %12 = vector.broadcast %cst : f32 to vector<256x128xf32>
    %c0_20 = arith.constant 0 : index
    %c0_21 = arith.constant 0 : index
    %c0_22 = arith.constant 0 : index
    %13 = vector.load %arg7[%c0_20, %c0_21, %c0_22] : memref<18x18x128xbf16, #tpu.memory_space<vmem>>, vector<16x16x128xbf16>
    %14 = vector.shape_cast %13 : vector<16x16x128xbf16> to vector<256x128xbf16>
    %c0_23 = arith.constant 0 : index
    %c0_24 = arith.constant 0 : index
    %c0_25 = arith.constant 0 : index
    %15 = vector.load %arg2[%c0_23, %c0_24, %c0_25] : memref<9x128x128xbf16, #tpu.memory_space<vmem>>, vector<1x128x128xbf16>
    %16 = vector.shape_cast %15 : vector<1x128x128xbf16> to vector<128x128xbf16>
    %cst_26 = arith.constant dense<0.000000e+00> : vector<256x128xf32>
    %17 = tpu.matmul %14, %16, %cst_26 {dimension_numbers = #tpu.dot_dimension_numbers<[1], [0], [0], [1], [0, 0, 1, 1], [], []>} : vector<256x128xbf16>, vector<128x128xbf16>, vector<256x128xf32> -> vector<256x128xf32>
    %18 = arith.addf %12, %17 : vector<256x128xf32>
    %c0_27 = arith.constant 0 : index
    %c1_28 = arith.constant 1 : index
    %c0_29 = arith.constant 0 : index
    %19 = vector.load %arg7[%c0_27, %c1_28, %c0_29] : memref<18x18x128xbf16, #tpu.memory_space<vmem>>, vector<16x16x128xbf16>
    %20 = vector.shape_cast %19 : vector<16x16x128xbf16> to vector<256x128xbf16>
    %c1_30 = arith.constant 1 : index
    %c0_31 = arith.constant 0 : index
    %c0_32 = arith.constant 0 : index
    %21 = vector.load %arg2[%c1_30, %c0_31, %c0_32] : memref<9x128x128xbf16, #tpu.memory_space<vmem>>, vector<1x128x128xbf16>
    %22 = vector.shape_cast %21 : vector<1x128x128xbf16> to vector<128x128xbf16>
    %cst_33 = arith.constant dense<0.000000e+00> : vector<256x128xf32>
    %23 = tpu.matmul %20, %22, %cst_33 {dimension_numbers = #tpu.dot_dimension_numbers<[1], [0], [0], [1], [0, 0, 1, 1], [], []>} : vector<256x128xbf16>, vector<128x128xbf16>, vector<256x128xf32> -> vector<256x128xf32>
    %24 = arith.addf %18, %23 : vector<256x128xf32>
    %c0_34 = arith.constant 0 : index
    %c2_35 = arith.constant 2 : index
    %c0_36 = arith.constant 0 : index
    %25 = vector.load %arg7[%c0_34, %c2_35, %c0_36] : memref<18x18x128xbf16, #tpu.memory_space<vmem>>, vector<16x16x128xbf16>
    %26 = vector.shape_cast %25 : vector<16x16x128xbf16> to vector<256x128xbf16>
    %c2_37 = arith.constant 2 : index
    %c0_38 = arith.constant 0 : index
    %c0_39 = arith.constant 0 : index
    %27 = vector.load %arg2[%c2_37, %c0_38, %c0_39] : memref<9x128x128xbf16, #tpu.memory_space<vmem>>, vector<1x128x128xbf16>
    %28 = vector.shape_cast %27 : vector<1x128x128xbf16> to vector<128x128xbf16>
    %cst_40 = arith.constant dense<0.000000e+00> : vector<256x128xf32>
    %29 = tpu.matmul %26, %28, %cst_40 {dimension_numbers = #tpu.dot_dimension_numbers<[1], [0], [0], [1], [0, 0, 1, 1], [], []>} : vector<256x128xbf16>, vector<128x128xbf16>, vector<256x128xf32> -> vector<256x128xf32>
    %30 = arith.addf %24, %29 : vector<256x128xf32>
    %c1_41 = arith.constant 1 : index
    %c0_42 = arith.constant 0 : index
    %c0_43 = arith.constant 0 : index
    %31 = vector.load %arg7[%c1_41, %c0_42, %c0_43] : memref<18x18x128xbf16, #tpu.memory_space<vmem>>, vector<16x16x128xbf16>
    %32 = vector.shape_cast %31 : vector<16x16x128xbf16> to vector<256x128xbf16>
    %c3 = arith.constant 3 : index
    %c0_44 = arith.constant 0 : index
    %c0_45 = arith.constant 0 : index
    %33 = vector.load %arg2[%c3, %c0_44, %c0_45] : memref<9x128x128xbf16, #tpu.memory_space<vmem>>, vector<1x128x128xbf16>
    %34 = vector.shape_cast %33 : vector<1x128x128xbf16> to vector<128x128xbf16>
    %cst_46 = arith.constant dense<0.000000e+00> : vector<256x128xf32>
    %35 = tpu.matmul %32, %34, %cst_46 {dimension_numbers = #tpu.dot_dimension_numbers<[1], [0], [0], [1], [0, 0, 1, 1], [], []>} : vector<256x128xbf16>, vector<128x128xbf16>, vector<256x128xf32> -> vector<256x128xf32>
    %36 = arith.addf %30, %35 : vector<256x128xf32>
    %c1_47 = arith.constant 1 : index
    %c1_48 = arith.constant 1 : index
    %c0_49 = arith.constant 0 : index
    %37 = vector.load %arg7[%c1_47, %c1_48, %c0_49] : memref<18x18x128xbf16, #tpu.memory_space<vmem>>, vector<16x16x128xbf16>
    %38 = vector.shape_cast %37 : vector<16x16x128xbf16> to vector<256x128xbf16>
    %c4 = arith.constant 4 : index
    %c0_50 = arith.constant 0 : index
    %c0_51 = arith.constant 0 : index
    %39 = vector.load %arg2[%c4, %c0_50, %c0_51] : memref<9x128x128xbf16, #tpu.memory_space<vmem>>, vector<1x128x128xbf16>
    %40 = vector.shape_cast %39 : vector<1x128x128xbf16> to vector<128x128xbf16>
    %cst_52 = arith.constant dense<0.000000e+00> : vector<256x128xf32>
    %41 = tpu.matmul %38, %40, %cst_52 {dimension_numbers = #tpu.dot_dimension_numbers<[1], [0], [0], [1], [0, 0, 1, 1], [], []>} : vector<256x128xbf16>, vector<128x128xbf16>, vector<256x128xf32> -> vector<256x128xf32>
    %42 = arith.addf %36, %41 : vector<256x128xf32>
    %c1_53 = arith.constant 1 : index
    %c2_54 = arith.constant 2 : index
    %c0_55 = arith.constant 0 : index
    %43 = vector.load %arg7[%c1_53, %c2_54, %c0_55] : memref<18x18x128xbf16, #tpu.memory_space<vmem>>, vector<16x16x128xbf16>
    %44 = vector.shape_cast %43 : vector<16x16x128xbf16> to vector<256x128xbf16>
    %c5 = arith.constant 5 : index
    %c0_56 = arith.constant 0 : index
    %c0_57 = arith.constant 0 : index
    %45 = vector.load %arg2[%c5, %c0_56, %c0_57] : memref<9x128x128xbf16, #tpu.memory_space<vmem>>, vector<1x128x128xbf16>
    %46 = vector.shape_cast %45 : vector<1x128x128xbf16> to vector<128x128xbf16>
    %cst_58 = arith.constant dense<0.000000e+00> : vector<256x128xf32>
    %47 = tpu.matmul %44, %46, %cst_58 {dimension_numbers = #tpu.dot_dimension_numbers<[1], [0], [0], [1], [0, 0, 1, 1], [], []>} : vector<256x128xbf16>, vector<128x128xbf16>, vector<256x128xf32> -> vector<256x128xf32>
    %48 = arith.addf %42, %47 : vector<256x128xf32>
    %c2_59 = arith.constant 2 : index
    %c0_60 = arith.constant 0 : index
    %c0_61 = arith.constant 0 : index
    %49 = vector.load %arg7[%c2_59, %c0_60, %c0_61] : memref<18x18x128xbf16, #tpu.memory_space<vmem>>, vector<16x16x128xbf16>
    %50 = vector.shape_cast %49 : vector<16x16x128xbf16> to vector<256x128xbf16>
    %c6 = arith.constant 6 : index
    %c0_62 = arith.constant 0 : index
    %c0_63 = arith.constant 0 : index
    %51 = vector.load %arg2[%c6, %c0_62, %c0_63] : memref<9x128x128xbf16, #tpu.memory_space<vmem>>, vector<1x128x128xbf16>
    %52 = vector.shape_cast %51 : vector<1x128x128xbf16> to vector<128x128xbf16>
    %cst_64 = arith.constant dense<0.000000e+00> : vector<256x128xf32>
    %53 = tpu.matmul %50, %52, %cst_64 {dimension_numbers = #tpu.dot_dimension_numbers<[1], [0], [0], [1], [0, 0, 1, 1], [], []>} : vector<256x128xbf16>, vector<128x128xbf16>, vector<256x128xf32> -> vector<256x128xf32>
    %54 = arith.addf %48, %53 : vector<256x128xf32>
    %c2_65 = arith.constant 2 : index
    %c1_66 = arith.constant 1 : index
    %c0_67 = arith.constant 0 : index
    %55 = vector.load %arg7[%c2_65, %c1_66, %c0_67] : memref<18x18x128xbf16, #tpu.memory_space<vmem>>, vector<16x16x128xbf16>
    %56 = vector.shape_cast %55 : vector<16x16x128xbf16> to vector<256x128xbf16>
    %c7 = arith.constant 7 : index
    %c0_68 = arith.constant 0 : index
    %c0_69 = arith.constant 0 : index
    %57 = vector.load %arg2[%c7, %c0_68, %c0_69] : memref<9x128x128xbf16, #tpu.memory_space<vmem>>, vector<1x128x128xbf16>
    %58 = vector.shape_cast %57 : vector<1x128x128xbf16> to vector<128x128xbf16>
    %cst_70 = arith.constant dense<0.000000e+00> : vector<256x128xf32>
    %59 = tpu.matmul %56, %58, %cst_70 {dimension_numbers = #tpu.dot_dimension_numbers<[1], [0], [0], [1], [0, 0, 1, 1], [], []>} : vector<256x128xbf16>, vector<128x128xbf16>, vector<256x128xf32> -> vector<256x128xf32>
    %60 = arith.addf %54, %59 : vector<256x128xf32>
    %c2_71 = arith.constant 2 : index
    %c2_72 = arith.constant 2 : index
    %c0_73 = arith.constant 0 : index
    %61 = vector.load %arg7[%c2_71, %c2_72, %c0_73] : memref<18x18x128xbf16, #tpu.memory_space<vmem>>, vector<16x16x128xbf16>
    %62 = vector.shape_cast %61 : vector<16x16x128xbf16> to vector<256x128xbf16>
    %c8 = arith.constant 8 : index
    %c0_74 = arith.constant 0 : index
    %c0_75 = arith.constant 0 : index
    %63 = vector.load %arg2[%c8, %c0_74, %c0_75] : memref<9x128x128xbf16, #tpu.memory_space<vmem>>, vector<1x128x128xbf16>
    %64 = vector.shape_cast %63 : vector<1x128x128xbf16> to vector<128x128xbf16>
    %cst_76 = arith.constant dense<0.000000e+00> : vector<256x128xf32>
    %65 = tpu.matmul %62, %64, %cst_76 {dimension_numbers = #tpu.dot_dimension_numbers<[1], [0], [0], [1], [0, 0, 1, 1], [], []>} : vector<256x128xbf16>, vector<128x128xbf16>, vector<256x128xf32> -> vector<256x128xf32>
    %66 = arith.addf %60, %65 : vector<256x128xf32>
    %c0_77 = arith.constant 0 : index
    %c0_78 = arith.constant 0 : index
    %67 = vector.load %arg3[%c0_77, %c0_78] : memref<1x128xf32, #tpu.memory_space<vmem>>, vector<1x128xf32>
    %68 = vector.broadcast %67 : vector<1x128xf32> to vector<256x128xf32>
    %69 = arith.addf %66, %68 : vector<256x128xf32>
    %cst_79 = arith.constant 0.000000e+00 : f32
    %70 = vector.broadcast %cst_79 : f32 to vector<256x128xf32>
    %71 = arith.maximumf %69, %70 : vector<256x128xf32>
    %72 = vector.shape_cast %71 : vector<256x128xf32> to vector<16x16x128xf32>
    %73 = arith.truncf %72 : vector<16x16x128xf32> to vector<16x16x128xbf16>
    %c1_80 = arith.constant 1 : index
    %c1_81 = arith.constant 1 : index
    %c0_82 = arith.constant 0 : index
    %74 = vector.load %arg8[%c1_80, %c1_81, %c0_82] : memref<18x18x128xbf16, #tpu.memory_space<vmem>>, vector<16x16x128xbf16>
    tpu.vector_store %arg8[%c1_80, %c1_81, %c0_82], %73 {strides = array<i32>} : memref<18x18x128xbf16, #tpu.memory_space<vmem>>, vector<16x16x128xbf16>,
    %75 = vector.extract_strided_slice %73 {offsets = [1, 0, 0], sizes = [1, 16, 128], strides = [1, 1, 1]} : vector<16x16x128xbf16> to vector<1x16x128xbf16>
    %c0_83 = arith.constant 0 : index
    %c1_84 = arith.constant 1 : index
    %c0_85 = arith.constant 0 : index
    %76 = vector.load %arg8[%c0_83, %c1_84, %c0_85] : memref<18x18x128xbf16, #tpu.memory_space<vmem>>, vector<1x16x128xbf16>
    tpu.vector_store %arg8[%c0_83, %c1_84, %c0_85], %75 {strides = array<i32>} : memref<18x18x128xbf16, #tpu.memory_space<vmem>>, vector<1x16x128xbf16>,
    %77 = vector.extract_strided_slice %73 {offsets = [14, 0, 0], sizes = [1, 16, 128], strides = [1, 1, 1]} : vector<16x16x128xbf16> to vector<1x16x128xbf16>
    %c17_86 = arith.constant 17 : index
    %c1_87 = arith.constant 1 : index
    %c0_88 = arith.constant 0 : index
    %78 = vector.load %arg8[%c17_86, %c1_87, %c0_88] : memref<18x18x128xbf16, #tpu.memory_space<vmem>>, vector<1x16x128xbf16>
    tpu.vector_store %arg8[%c17_86, %c1_87, %c0_88], %77 {strides = array<i32>} : memref<18x18x128xbf16, #tpu.memory_space<vmem>>, vector<1x16x128xbf16>,
    %c0_89 = arith.constant 0 : index
    %c2_90 = arith.constant 2 : index
    %c0_91 = arith.constant 0 : index
    %79 = vector.load %arg8[%c0_89, %c2_90, %c0_91] : memref<18x18x128xbf16, #tpu.memory_space<vmem>>, vector<18x1x128xbf16>
    %c0_92 = arith.constant 0 : index
    %c0_93 = arith.constant 0 : index
    %c0_94 = arith.constant 0 : index
    %80 = vector.load %arg8[%c0_92, %c0_93, %c0_94] : memref<18x18x128xbf16, #tpu.memory_space<vmem>>, vector<18x1x128xbf16>
    tpu.vector_store %arg8[%c0_92, %c0_93, %c0_94], %79 {strides = array<i32>} : memref<18x18x128xbf16, #tpu.memory_space<vmem>>, vector<18x1x128xbf16>,
    %c0_95 = arith.constant 0 : index
    %c15_96 = arith.constant 15 : index
    %c0_97 = arith.constant 0 : index
    %81 = vector.load %arg8[%c0_95, %c15_96, %c0_97] : memref<18x18x128xbf16, #tpu.memory_space<vmem>>, vector<18x1x128xbf16>
    %c0_98 = arith.constant 0 : index
    %c17_99 = arith.constant 17 : index
    %c0_100 = arith.constant 0 : index
    %82 = vector.load %arg8[%c0_98, %c17_99, %c0_100] : memref<18x18x128xbf16, #tpu.memory_space<vmem>>, vector<18x1x128xbf16>
    tpu.vector_store %arg8[%c0_98, %c17_99, %c0_100], %81 {strides = array<i32>} : memref<18x18x128xbf16, #tpu.memory_space<vmem>>, vector<18x1x128xbf16>,
    %cst_101 = arith.constant 0.000000e+00 : f32
    %83 = vector.broadcast %cst_101 : f32 to vector<256x128xf32>
    %c0_102 = arith.constant 0 : index
    %c0_103 = arith.constant 0 : index
    %c0_104 = arith.constant 0 : index
    %84 = vector.load %arg8[%c0_102, %c0_103, %c0_104] : memref<18x18x128xbf16, #tpu.memory_space<vmem>>, vector<16x16x128xbf16>
    %85 = vector.shape_cast %84 : vector<16x16x128xbf16> to vector<256x128xbf16>
    %c0_105 = arith.constant 0 : index
    %c0_106 = arith.constant 0 : index
    %c0_107 = arith.constant 0 : index
    %86 = vector.load %arg4[%c0_105, %c0_106, %c0_107] : memref<9x128x128xbf16, #tpu.memory_space<vmem>>, vector<1x128x128xbf16>
    %87 = vector.shape_cast %86 : vector<1x128x128xbf16> to vector<128x128xbf16>
    %cst_108 = arith.constant dense<0.000000e+00> : vector<256x128xf32>
    %88 = tpu.matmul %85, %87, %cst_108 {dimension_numbers = #tpu.dot_dimension_numbers<[1], [0], [0], [1], [0, 0, 1, 1], [], []>} : vector<256x128xbf16>, vector<128x128xbf16>, vector<256x128xf32> -> vector<256x128xf32>
    %89 = arith.addf %83, %88 : vector<256x128xf32>
    %c0_109 = arith.constant 0 : index
    %c1_110 = arith.constant 1 : index
    %c0_111 = arith.constant 0 : index
    %90 = vector.load %arg8[%c0_109, %c1_110, %c0_111] : memref<18x18x128xbf16, #tpu.memory_space<vmem>>, vector<16x16x128xbf16>
    %91 = vector.shape_cast %90 : vector<16x16x128xbf16> to vector<256x128xbf16>
    %c1_112 = arith.constant 1 : index
    %c0_113 = arith.constant 0 : index
    %c0_114 = arith.constant 0 : index
    %92 = vector.load %arg4[%c1_112, %c0_113, %c0_114] : memref<9x128x128xbf16, #tpu.memory_space<vmem>>, vector<1x128x128xbf16>
    %93 = vector.shape_cast %92 : vector<1x128x128xbf16> to vector<128x128xbf16>
    %cst_115 = arith.constant dense<0.000000e+00> : vector<256x128xf32>
    %94 = tpu.matmul %91, %93, %cst_115 {dimension_numbers = #tpu.dot_dimension_numbers<[1], [0], [0], [1], [0, 0, 1, 1], [], []>} : vector<256x128xbf16>, vector<128x128xbf16>, vector<256x128xf32> -> vector<256x128xf32>
    %95 = arith.addf %89, %94 : vector<256x128xf32>
    %c0_116 = arith.constant 0 : index
    %c2_117 = arith.constant 2 : index
    %c0_118 = arith.constant 0 : index
    %96 = vector.load %arg8[%c0_116, %c2_117, %c0_118] : memref<18x18x128xbf16, #tpu.memory_space<vmem>>, vector<16x16x128xbf16>
    %97 = vector.shape_cast %96 : vector<16x16x128xbf16> to vector<256x128xbf16>
    %c2_119 = arith.constant 2 : index
    %c0_120 = arith.constant 0 : index
    %c0_121 = arith.constant 0 : index
    %98 = vector.load %arg4[%c2_119, %c0_120, %c0_121] : memref<9x128x128xbf16, #tpu.memory_space<vmem>>, vector<1x128x128xbf16>
    %99 = vector.shape_cast %98 : vector<1x128x128xbf16> to vector<128x128xbf16>
    %cst_122 = arith.constant dense<0.000000e+00> : vector<256x128xf32>
    %100 = tpu.matmul %97, %99, %cst_122 {dimension_numbers = #tpu.dot_dimension_numbers<[1], [0], [0], [1], [0, 0, 1, 1], [], []>} : vector<256x128xbf16>, vector<128x128xbf16>, vector<256x128xf32> -> vector<256x128xf32>
    %101 = arith.addf %95, %100 : vector<256x128xf32>
    %c1_123 = arith.constant 1 : index
    %c0_124 = arith.constant 0 : index
    %c0_125 = arith.constant 0 : index
    %102 = vector.load %arg8[%c1_123, %c0_124, %c0_125] : memref<18x18x128xbf16, #tpu.memory_space<vmem>>, vector<16x16x128xbf16>
    %103 = vector.shape_cast %102 : vector<16x16x128xbf16> to vector<256x128xbf16>
    %c3_126 = arith.constant 3 : index
    %c0_127 = arith.constant 0 : index
    %c0_128 = arith.constant 0 : index
    %104 = vector.load %arg4[%c3_126, %c0_127, %c0_128] : memref<9x128x128xbf16, #tpu.memory_space<vmem>>, vector<1x128x128xbf16>
    %105 = vector.shape_cast %104 : vector<1x128x128xbf16> to vector<128x128xbf16>
    %cst_129 = arith.constant dense<0.000000e+00> : vector<256x128xf32>
    %106 = tpu.matmul %103, %105, %cst_129 {dimension_numbers = #tpu.dot_dimension_numbers<[1], [0], [0], [1], [0, 0, 1, 1], [], []>} : vector<256x128xbf16>, vector<128x128xbf16>, vector<256x128xf32> -> vector<256x128xf32>
    %107 = arith.addf %101, %106 : vector<256x128xf32>
    %c1_130 = arith.constant 1 : index
    %c1_131 = arith.constant 1 : index
    %c0_132 = arith.constant 0 : index
    %108 = vector.load %arg8[%c1_130, %c1_131, %c0_132] : memref<18x18x128xbf16, #tpu.memory_space<vmem>>, vector<16x16x128xbf16>
    %109 = vector.shape_cast %108 : vector<16x16x128xbf16> to vector<256x128xbf16>
    %c4_133 = arith.constant 4 : index
    %c0_134 = arith.constant 0 : index
    %c0_135 = arith.constant 0 : index
    %110 = vector.load %arg4[%c4_133, %c0_134, %c0_135] : memref<9x128x128xbf16, #tpu.memory_space<vmem>>, vector<1x128x128xbf16>
    %111 = vector.shape_cast %110 : vector<1x128x128xbf16> to vector<128x128xbf16>
    %cst_136 = arith.constant dense<0.000000e+00> : vector<256x128xf32>
    %112 = tpu.matmul %109, %111, %cst_136 {dimension_numbers = #tpu.dot_dimension_numbers<[1], [0], [0], [1], [0, 0, 1, 1], [], []>} : vector<256x128xbf16>, vector<128x128xbf16>, vector<256x128xf32> -> vector<256x128xf32>
    %113 = arith.addf %107, %112 : vector<256x128xf32>
    %c1_137 = arith.constant 1 : index
    %c2_138 = arith.constant 2 : index
    %c0_139 = arith.constant 0 : index
    %114 = vector.load %arg8[%c1_137, %c2_138, %c0_139] : memref<18x18x128xbf16, #tpu.memory_space<vmem>>, vector<16x16x128xbf16>
    %115 = vector.shape_cast %114 : vector<16x16x128xbf16> to vector<256x128xbf16>
    %c5_140 = arith.constant 5 : index
    %c0_141 = arith.constant 0 : index
    %c0_142 = arith.constant 0 : index
    %116 = vector.load %arg4[%c5_140, %c0_141, %c0_142] : memref<9x128x128xbf16, #tpu.memory_space<vmem>>, vector<1x128x128xbf16>
    %117 = vector.shape_cast %116 : vector<1x128x128xbf16> to vector<128x128xbf16>
    %cst_143 = arith.constant dense<0.000000e+00> : vector<256x128xf32>
    %118 = tpu.matmul %115, %117, %cst_143 {dimension_numbers = #tpu.dot_dimension_numbers<[1], [0], [0], [1], [0, 0, 1, 1], [], []>} : vector<256x128xbf16>, vector<128x128xbf16>, vector<256x128xf32> -> vector<256x128xf32>
    %119 = arith.addf %113, %118 : vector<256x128xf32>
    %c2_144 = arith.constant 2 : index
    %c0_145 = arith.constant 0 : index
    %c0_146 = arith.constant 0 : index
    %120 = vector.load %arg8[%c2_144, %c0_145, %c0_146] : memref<18x18x128xbf16, #tpu.memory_space<vmem>>, vector<16x16x128xbf16>
    %121 = vector.shape_cast %120 : vector<16x16x128xbf16> to vector<256x128xbf16>
    %c6_147 = arith.constant 6 : index
    %c0_148 = arith.constant 0 : index
    %c0_149 = arith.constant 0 : index
    %122 = vector.load %arg4[%c6_147, %c0_148, %c0_149] : memref<9x128x128xbf16, #tpu.memory_space<vmem>>, vector<1x128x128xbf16>
    %123 = vector.shape_cast %122 : vector<1x128x128xbf16> to vector<128x128xbf16>
    %cst_150 = arith.constant dense<0.000000e+00> : vector<256x128xf32>
    %124 = tpu.matmul %121, %123, %cst_150 {dimension_numbers = #tpu.dot_dimension_numbers<[1], [0], [0], [1], [0, 0, 1, 1], [], []>} : vector<256x128xbf16>, vector<128x128xbf16>, vector<256x128xf32> -> vector<256x128xf32>
    %125 = arith.addf %119, %124 : vector<256x128xf32>
    %c2_151 = arith.constant 2 : index
    %c1_152 = arith.constant 1 : index
    %c0_153 = arith.constant 0 : index
    %126 = vector.load %arg8[%c2_151, %c1_152, %c0_153] : memref<18x18x128xbf16, #tpu.memory_space<vmem>>, vector<16x16x128xbf16>
    %127 = vector.shape_cast %126 : vector<16x16x128xbf16> to vector<256x128xbf16>
    %c7_154 = arith.constant 7 : index
    %c0_155 = arith.constant 0 : index
    %c0_156 = arith.constant 0 : index
    %128 = vector.load %arg4[%c7_154, %c0_155, %c0_156] : memref<9x128x128xbf16, #tpu.memory_space<vmem>>, vector<1x128x128xbf16>
    %129 = vector.shape_cast %128 : vector<1x128x128xbf16> to vector<128x128xbf16>
    %cst_157 = arith.constant dense<0.000000e+00> : vector<256x128xf32>
    %130 = tpu.matmul %127, %129, %cst_157 {dimension_numbers = #tpu.dot_dimension_numbers<[1], [0], [0], [1], [0, 0, 1, 1], [], []>} : vector<256x128xbf16>, vector<128x128xbf16>, vector<256x128xf32> -> vector<256x128xf32>
    %131 = arith.addf %125, %130 : vector<256x128xf32>
    %c2_158 = arith.constant 2 : index
    %c2_159 = arith.constant 2 : index
    %c0_160 = arith.constant 0 : index
    %132 = vector.load %arg8[%c2_158, %c2_159, %c0_160] : memref<18x18x128xbf16, #tpu.memory_space<vmem>>, vector<16x16x128xbf16>
    %133 = vector.shape_cast %132 : vector<16x16x128xbf16> to vector<256x128xbf16>
    %c8_161 = arith.constant 8 : index
    %c0_162 = arith.constant 0 : index
    %c0_163 = arith.constant 0 : index
    %134 = vector.load %arg4[%c8_161, %c0_162, %c0_163] : memref<9x128x128xbf16, #tpu.memory_space<vmem>>, vector<1x128x128xbf16>
    %135 = vector.shape_cast %134 : vector<1x128x128xbf16> to vector<128x128xbf16>
    %cst_164 = arith.constant dense<0.000000e+00> : vector<256x128xf32>
    %136 = tpu.matmul %133, %135, %cst_164 {dimension_numbers = #tpu.dot_dimension_numbers<[1], [0], [0], [1], [0, 0, 1, 1], [], []>} : vector<256x128xbf16>, vector<128x128xbf16>, vector<256x128xf32> -> vector<256x128xf32>
    %137 = arith.addf %131, %136 : vector<256x128xf32>
    %c0_165 = arith.constant 0 : index
    %c0_166 = arith.constant 0 : index
    %138 = vector.load %arg5[%c0_165, %c0_166] : memref<1x128xf32, #tpu.memory_space<vmem>>, vector<1x128xf32>
    %139 = vector.broadcast %138 : vector<1x128xf32> to vector<256x128xf32>
    %140 = arith.addf %137, %139 : vector<256x128xf32>
    %141 = vector.shape_cast %140 : vector<256x128xf32> to vector<16x16x128xf32>
    %c0_167 = arith.constant 0 : index
    %c0_168 = arith.constant 0 : index
    %c0_169 = arith.constant 0 : index
    %c0_170 = arith.constant 0 : index
    %142 = vector.load %arg1[%c0_167, %c0_168, %c0_169, %c0_170] : memref<1x16x16x128xf32, #tpu.memory_space<vmem>>, vector<1x16x16x128xf32>
    %143 = vector.shape_cast %142 : vector<1x16x16x128xf32> to vector<16x16x128xf32>
    %144 = arith.addf %141, %143 : vector<16x16x128xf32>
    %c0_171 = arith.constant 0 : index
    %c0_172 = arith.constant 0 : index
    %c0_173 = arith.constant 0 : index
    %c0_174 = arith.constant 0 : index
    %145 = vector.load %arg6[%c0_171, %c0_172, %c0_173, %c0_174] : memref<1x16x16x128xf32, #tpu.memory_space<vmem>>, vector<1x16x16x128xf32>
    %146 = vector.shape_cast %145 : vector<1x16x16x128xf32> to vector<16x16x128xf32>
    %147 = vector.shape_cast %144 : vector<16x16x128xf32> to vector<1x16x16x128xf32>
    tpu.vector_store %arg6[%c0_171, %c0_172, %c0_173, %c0_174], %147 {strides = array<i32>} : memref<1x16x16x128xf32, #tpu.memory_space<vmem>>, vector<1x16x16x128xf32>,
    return
  }
  func.func @transform_0(%arg0: i32) -> (i32, i32, i32, i32) {
    %c0_i32 = arith.constant 0 : i32
    %c0_i32_0 = arith.constant 0 : i32
    %c0_i32_1 = arith.constant 0 : i32
    %c0_i32_2 = arith.constant 0 : i32
    return %arg0, %c0_i32, %c0_i32_0, %c0_i32_1 : i32, i32, i32, i32
  }
  func.func @transform_1(%arg0: i32) -> (i32, i32, i32) {
    %c0_i32 = arith.constant 0 : i32
    %c0_i32_0 = arith.constant 0 : i32
    %c0_i32_1 = arith.constant 0 : i32
    %c0_i32_2 = arith.constant 0 : i32
    return %c0_i32, %c0_i32_0, %c0_i32_1 : i32, i32, i32
  }
  func.func @transform_2(%arg0: i32) -> (i32, i32) {
    %c0_i32 = arith.constant 0 : i32
    %c0_i32_0 = arith.constant 0 : i32
    %c0_i32_1 = arith.constant 0 : i32
    return %c0_i32, %c0_i32_0 : i32, i32
  }
  func.func @transform_3(%arg0: i32) -> (i32, i32, i32) {
    %c0_i32 = arith.constant 0 : i32
    %c0_i32_0 = arith.constant 0 : i32
    %c0_i32_1 = arith.constant 0 : i32
    %c0_i32_2 = arith.constant 0 : i32
    return %c0_i32, %c0_i32_0, %c0_i32_1 : i32, i32, i32
  }
  func.func @transform_4(%arg0: i32) -> (i32, i32) {
    %c0_i32 = arith.constant 0 : i32
    %c0_i32_0 = arith.constant 0 : i32
    %c0_i32_1 = arith.constant 0 : i32
    return %c0_i32, %c0_i32_0 : i32, i32
  }
  func.func @transform_5(%arg0: i32) -> (i32, i32, i32, i32) {
    %c0_i32 = arith.constant 0 : i32
    %c0_i32_0 = arith.constant 0 : i32
    %c0_i32_1 = arith.constant 0 : i32
    %c0_i32_2 = arith.constant 0 : i32
    return %arg0, %c0_i32, %c0_i32_0, %c0_i32_1 : i32, i32, i32, i32
  }
}

</mosaic_0001>

<llo_original>
// kernel: resnet_block_nonorm_forward.1
$region0: #{resnet_block_nonorm_forward.1}
  #allocation0 [shape = 'u32[]', space=smem, size = 0x4, offset = 0x4, fixed_abs, tag = 'smem constant byte address 0x4 - core index']
  #allocation1 [shape = 'u32[144,128]{1,0:T(1,128)}', space=vmem, size = 0x12000, scoped, tag = 'internal scratch']
  #allocation2 [shape = 'bf16[18,18,128]{2,1,0:T(8,128)(2,1)}', space=vmem, size = 0x1b000, scoped, tag = 'scratch operand']
  #allocation3 [shape = 'bf16[18,18,128]{2,1,0:T(8,128)(2,1)}', space=vmem, size = 0x1b000, scoped, tag = 'scratch operand']
  %s0 = inlined_call_operand.vmem [shape: f32[2,16,16,128], index: 0, kind: input, shape index: {}]
  %s1 = inlined_call_operand.vmem [shape: bf16[9,128,128], index: 1, kind: input, shape index: {}]
  %s2 = inlined_call_operand.vmem [shape: f32[1,128], index: 2, kind: input, shape index: {}]
  %s3 = inlined_call_operand.vmem [shape: bf16[9,128,128], index: 3, kind: input, shape index: {}]
  %s4 = inlined_call_operand.vmem [shape: f32[1,128], index: 4, kind: input, shape index: {}]
  %s5 = inlined_call_operand.hbm [shape: f32[2,16,16,128], index: 5, kind: output, shape index: {}]
  %s6 = sld [smem:[#allocation0]]
  $region53: #{resnet_block_nonorm_forward.1} parent=0
    _
  %s8 = ssub.s32 1, %s6
  %s9 = scalar_select 0, %s8, %s6
  $region1: #{resnet_block_nonorm_forward.1} parent=0
    #allocation4 [shape = 'u8[262144]{0}', space=vmem, size = 0x40000, scoped, tag = 'output window, operand 0']
    #allocation5 [shape = 's32[2]{0}', space=sflag, size = 0x8, scoped, tag = 'scoped memory for resnet_block_nonorm_forward.1']
    %10 = vsyncpa [#allocation5], 0
    %s11 = scalar_lea.sflag [#allocation5], 1
    %12 = vsyncpa %s11, 0
    loop: start=0, step=1, limit=4
    $region2: #{resnet_block_nonorm_forward.1} parent=1 // loop_pre_header
      _
    $region3: #{resnet_block_nonorm_forward.1} parent=1 // loop_header
      %s14 = sphi 0, %s18
      %p15 = scmp.ge.s32.totalorder %s14, 4
      %s24 = sphi 0, %s26
      %s27 = sphi 0, %s24
      %s28 = sphi 0, %s27
      %s44 = sphi 0, %s28
      %s48 = sphi 0, %s48
      %s50 = sphi 0, %s48
      %s51 = sphi 0, %s50
      %s65 = sphi 0, %s51
      %s69 = sphi 0, %s69
      %s71 = sphi 0, %s69
      %s72 = sphi 0, %s71
      %s86 = sphi 0, %s72
      %s90 = sphi 0, %s90
      %s92 = sphi 0, %s90
      %s93 = sphi 0, %s92
      %s107 = sphi 0, %s93
      %s111 = sphi 0, %s111
      %s113 = sphi 0, %s111
      %s114 = sphi 0, %s113
      %s128 = sphi 0, %s114
      %s134 = sphi 0, %s136
      %s137 = sphi 0, %s134
      %s138 = sphi 0, %s137
      %s154 = sphi 0, %s138
    $region4: #{resnet_block_nonorm_forward.1} parent=1 // loop_header_branch
      %17 = sbr.rel (%p15) target = $region8
    $region5: #{resnet_block_nonorm_forward.1} parent=1 // loop_body
      %s19 = ssub.s32 %s14, 1
      %s20 = ssub.s32 %s14, 2
      %s21 = sadd.s32 %s14, 1
      %s22 = ssub.s32 %s14, %s21
      %p23 = scmp.eq.s32.totalorder %s22, 0
      %s25 = sadd.s32 %s24, 1
      %s26 = scalar_select %p23, %s24, %s25
      %p29 = pneg %p23
      %p30 = scmp.eq.s32.totalorder %s14, 1
      %p31 = por %p29, %p30
      %p32 = scmp.ne.s32.totalorder %s24, %s27
      %p33 = scmp.eq.s32.totalorder %s14, 0
      %p34 = por %p32, %p33
      %p35 = scmp.ne.s32.totalorder %s24, %s27
      %p36 = scmp.eq.s32.totalorder %s19, 1
      %p37 = por %p35, %p36
      %p38 = scmp.ne.s32.totalorder %s27, %s28
      %p39 = scmp.eq.s32.totalorder %s19, 0
      %p40 = por %p38, %p39
      %p41 = scmp.ne.s32.totalorder %s27, %s28
      %p42 = scmp.eq.s32.totalorder %s20, 1
      %p43 = por %p41, %p42
      %p45 = scmp.ne.s32.totalorder %s28, %s44
      %p46 = scmp.eq.s32.totalorder %s20, 0
      %p47 = por %p45, %p46
      %s49 = sadd.s32 %s48, 1
      %p52 = scmp.eq.s32.totalorder %s14, 1
      %p53 = scmp.ne.s32.totalorder %s48, %s50
      %p54 = scmp.eq.s32.totalorder %s14, 0
      %p55 = por %p53, %p54
      %p56 = scmp.ne.s32.totalorder %s48, %s50
      %p57 = scmp.eq.s32.totalorder %s19, 1
      %p58 = por %p56, %p57
      %p59 = scmp.ne.s32.totalorder %s50, %s51
      %p60 = scmp.eq.s32.totalorder %s19, 0
      %p61 = por %p59, %p60
      %p62 = scmp.ne.s32.totalorder %s50, %s51
      %p63 = scmp.eq.s32.totalorder %s20, 1
      %p64 = por %p62, %p63
      %p66 = scmp.ne.s32.totalorder %s51, %s65
      %p67 = scmp.eq.s32.totalorder %s20, 0
      %p68 = por %p66, %p67
      %s70 = sadd.s32 %s69, 1
      %p73 = scmp.eq.s32.totalorder %s14, 1
      %p74 = scmp.ne.s32.totalorder %s69, %s71
      %p75 = scmp.eq.s32.totalorder %s14, 0
      %p76 = por %p74, %p75
      %p77 = scmp.ne.s32.totalorder %s69, %s71
      %p78 = scmp.eq.s32.totalorder %s19, 1
      %p79 = por %p77, %p78
      %p80 = scmp.ne.s32.totalorder %s71, %s72
      %p81 = scmp.eq.s32.totalorder %s19, 0
      %p82 = por %p80, %p81
      %p83 = scmp.ne.s32.totalorder %s71, %s72
      %p84 = scmp.eq.s32.totalorder %s20, 1
      %p85 = por %p83, %p84
      %p87 = scmp.ne.s32.totalorder %s72, %s86
      %p88 = scmp.eq.s32.totalorder %s20, 0
      %p89 = por %p87, %p88
      %s91 = sadd.s32 %s90, 1
      %p94 = scmp.eq.s32.totalorder %s14, 1
      %p95 = scmp.ne.s32.totalorder %s90, %s92
      %p96 = scmp.eq.s32.totalorder %s14, 0
      %p97 = por %p95, %p96
      %p98 = scmp.ne.s32.totalorder %s90, %s92
      %p99 = scmp.eq.s32.totalorder %s19, 1
      %p100 = por %p98, %p99
      %p101 = scmp.ne.s32.totalorder %s92, %s93
      %p102 = scmp.eq.s32.totalorder %s19, 0
      %p103 = por %p101, %p102
      %p104 = scmp.ne.s32.totalorder %s92, %s93
      %p105 = scmp.eq.s32.totalorder %s20, 1
      %p106 = por %p104, %p105
      %p108 = scmp.ne.s32.totalorder %s93, %s107
      %p109 = scmp.eq.s32.totalorder %s20, 0
      %p110 = por %p108, %p109
      %s112 = sadd.s32 %s111, 1
      %p115 = scmp.eq.s32.totalorder %s14, 1
      %p116 = scmp.ne.s32.totalorder %s111, %s113
      %p117 = scmp.eq.s32.totalorder %s14, 0
      %p118 = por %p116, %p117
      %p119 = scmp.ne.s32.totalorder %s111, %s113
      %p120 = scmp.eq.s32.totalorder %s19, 1
      %p121 = por %p119, %p120
      %p122 = scmp.ne.s32.totalorder %s113, %s114
      %p123 = scmp.eq.s32.totalorder %s19, 0
      %p124 = por %p122, %p123
      %p125 = scmp.ne.s32.totalorder %s113, %s114
      %p126 = scmp.eq.s32.totalorder %s20, 1
      %p127 = por %p125, %p126
      %p129 = scmp.ne.s32.totalorder %s114, %s128
      %p130 = scmp.eq.s32.totalorder %s20, 0
      %p131 = por %p129, %p130
      %s132 = ssub.s32 %s14, %s21
      %p133 = scmp.eq.s32.totalorder %s132, 0
      %s135 = sadd.s32 %s134, 1
      %s136 = scalar_select %p133, %s134, %s135
      %p139 = pneg %p133
      %p140 = scmp.eq.s32.totalorder %s14, 1
      %p141 = por %p139, %p140
      %p142 = scmp.ne.s32.totalorder %s134, %s137
      %p143 = scmp.eq.s32.totalorder %s14, 0
      %p144 = por %p142, %p143
      %p145 = scmp.ne.s32.totalorder %s134, %s137
      %p146 = scmp.eq.s32.totalorder %s19, 1
      %p147 = por %p145, %p146
      %p148 = scmp.ne.s32.totalorder %s137, %s138
      %p149 = scmp.eq.s32.totalorder %s19, 0
      %p150 = por %p148, %p149
      %p151 = scmp.ne.s32.totalorder %s137, %s138
      %p152 = scmp.eq.s32.totalorder %s20, 1
      %p153 = por %p151, %p152
      %p155 = scmp.ne.s32.totalorder %s138, %s154
      %p156 = scmp.eq.s32.totalorder %s20, 0
      %p157 = por %p155, %p156
      %p158 = scmp.le.s32.totalorder 1, %s14
      %p159 = scmp.lt.s32.totalorder %s14, 3
      %p160 = pnand %p158, %p159
      %p161 = pneg %p160
      // Predicated region
      $region9: #{resnet_block_nonorm_forward.1} parent=5 // pred_check
        _
      $region10: #{resnet_block_nonorm_forward.1} parent=5 // pred_check_branch
        %163 = sbr.rel (%p160) target = $region12
      $region11: #{resnet_block_nonorm_forward.1} parent=5 // pred_region
        %s164 = ssub.s32 %s14, 1
        // Predicated region
        $region13: #{resnet_block_nonorm_forward.1} parent=11 // pred_check
          %p165 = pneg %p61
        $region14: #{resnet_block_nonorm_forward.1} parent=11 // pred_check_branch
          %167 = sbr.rel (%p165) target = $region16
        $region15: #{resnet_block_nonorm_forward.1} parent=11 // pred_region
          _
        $region16: #{resnet_block_nonorm_forward.1} parent=11 // pred_fallthru
          _
        // Predicated region
        $region17: #{resnet_block_nonorm_forward.1} parent=11 // pred_check
          %p168 = pneg %p82
        $region18: #{resnet_block_nonorm_forward.1} parent=11 // pred_check_branch
          %170 = sbr.rel (%p168) target = $region20
        $region19: #{resnet_block_nonorm_forward.1} parent=11 // pred_region
          _
        $region20: #{resnet_block_nonorm_forward.1} parent=11 // pred_fallthru
          _
        // Predicated region
        $region21: #{resnet_block_nonorm_forward.1} parent=11 // pred_check
          %p171 = pneg %p103
        $region22: #{resnet_block_nonorm_forward.1} parent=11 // pred_check_branch
          %173 = sbr.rel (%p171) target = $region24
        $region23: #{resnet_block_nonorm_forward.1} parent=11 // pred_region
          _
        $region24: #{resnet_block_nonorm_forward.1} parent=11 // pred_fallthru
          _
        // Predicated region
        $region25: #{resnet_block_nonorm_forward.1} parent=11 // pred_check
          %p174 = pneg %p124
        $region26: #{resnet_block_nonorm_forward.1} parent=11 // pred_check_branch
          %176 = sbr.rel (%p174) target = $region28
        $region27: #{resnet_block_nonorm_forward.1} parent=11 // pred_region
          _
        $region28: #{resnet_block_nonorm_forward.1} parent=11 // pred_fallthru
          _
      $region12: #{resnet_block_nonorm_forward.1} parent=5 // pred_fallthru
        _
      %p177 = scmp.lt.s32.totalorder %s14, 2
      // Predicated region
      $region29: #{resnet_block_nonorm_forward.1} parent=5 // pred_check
        %p178 = pneg %p177
      $region30: #{resnet_block_nonorm_forward.1} parent=5 // pred_check_branch
        %180 = sbr.rel (%p178) target = $region32
      $region31: #{resnet_block_nonorm_forward.1} parent=5 // pred_region
        // Predicated region
        $region33: #{resnet_block_nonorm_forward.1} parent=31 // pred_check
          %p181 = pneg %p34
        $region34: #{resnet_block_nonorm_forward.1} parent=31 // pred_check_branch
          %183 = sbr.rel (%p181) target = $region36
        $region35: #{resnet_block_nonorm_forward.1} parent=31 // pred_region
          %p184 = scmp.lt.s32.totalorder %s14, 1
          %s185 = scalar_select %p184, %s14, 1
          %s186 = smul.addr %s185, 32
          %s187 = smul.addr %s186, 8
          %s188 = scalar_lea.vmem %s0, %s187
        $region36: #{resnet_block_nonorm_forward.1} parent=31 // pred_fallthru
          _
      $region32: #{resnet_block_nonorm_forward.1} parent=5 // pred_fallthru
        _
      %p189 = scmp.le.s32.totalorder 1, %s14
      %p190 = scmp.lt.s32.totalorder %s14, 3
      %p191 = pnand %p189, %p190
      %p192 = pneg %p191
      // Predicated region
      $region37: #{resnet_block_nonorm_forward.1} parent=5 // pred_check
        _
      $region38: #{resnet_block_nonorm_forward.1} parent=5 // pred_check_branch
        %194 = sbr.rel (%p191) target = $region40
      $region39: #{resnet_block_nonorm_forward.1} parent=5 // pred_region
        %s195 = ssub.s32 %s14, 1
        %p196 = scmp.lt.s32.totalorder %s19, 1
        %s197 = scalar_select %p196, %s19, 1
        %s198 = smul.addr %s197, 32
        %s199 = smul.addr %s198, 8
        %s200 = scalar_lea.vmem %s0, %s199
        %p201 = pneg %p40
        %p202 = pneg %p37
        %p203 = pneg %p61
        %p204 = pneg %p58
        %p205 = pneg %p82
        %p206 = pneg %p79
        %p207 = pneg %p103
        %p208 = pneg %p100
        %p209 = pneg %p124
        %p210 = pneg %p121
        %p211 = pneg %p150
        %p212 = pneg %p147
        %s213 = sand.u32 %s137, 1
        %s214 = scalar_lea.sflag [#allocation5], %s213
        %s215 = sand.u32 %s137, 1
        %s216 = smul.addr %s215, 256
        %s217 = scalar_lea.vmem [#allocation4], %s216
        %p218 = scmp.lt.s32.totalorder %s19, 1
        %s219 = scalar_select %p218, %s19, 1
        %s220 = smul.addr %s219, 32
        %s221 = smul.addr %s220, 8
        %s222 = scalar_lea.vmem %s0, %s221
        %v224 = vld [vmem:[%s222] sm:$0xff]
        %v225 = vld [vmem:[%s222 + $0x8] sm:$0xff]
        %v226 = vld [vmem:[%s222 + $0x10] sm:$0xff]
        %v227 = vld [vmem:[%s222 + $0x18] sm:$0xff]
        %v228 = vld [vmem:[%s222 + $0x20] sm:$0xff]
        %v229 = vld [vmem:[%s222 + $0x28] sm:$0xff]
        %v230 = vld [vmem:[%s222 + $0x30] sm:$0xff]
        %v231 = vld [vmem:[%s222 + $0x38] sm:$0xff]
        %v232 = vld [vmem:[%s222 + $0x40] sm:$0xff]
        %v233 = vld [vmem:[%s222 + $0x48] sm:$0xff]
        %v234 = vld [vmem:[%s222 + $0x50] sm:$0xff]
        %v235 = vld [vmem:[%s222 + $0x58] sm:$0xff]
        %v236 = vld [vmem:[%s222 + $0x60] sm:$0xff]
        %v237 = vld [vmem:[%s222 + $0x68] sm:$0xff]
        %v238 = vld [vmem:[%s222 + $0x70] sm:$0xff]
        %v239 = vld [vmem:[%s222 + $0x78] sm:$0xff]
        %v240 = vld [vmem:[%s222 + $0x80] sm:$0xff]
        %v241 = vld [vmem:[%s222 + $0x88] sm:$0xff]
        %v242 = vld [vmem:[%s222 + $0x90] sm:$0xff]
        %v243 = vld [vmem:[%s222 + $0x98] sm:$0xff]
        %v244 = vld [vmem:[%s222 + $0xa0] sm:$0xff]
        %v245 = vld [vmem:[%s222 + $0xa8] sm:$0xff]
        %v246 = vld [vmem:[%s222 + $0xb0] sm:$0xff]
        %v247 = vld [vmem:[%s222 + $0xb8] sm:$0xff]
        %v248 = vld [vmem:[%s222 + $0xc0] sm:$0xff]
        %v249 = vld [vmem:[%s222 + $0xc8] sm:$0xff]
        %v250 = vld [vmem:[%s222 + $0xd0] sm:$0xff]
        %v251 = vld [vmem:[%s222 + $0xd8] sm:$0xff]
        %v252 = vld [vmem:[%s222 + $0xe0] sm:$0xff]
        %v253 = vld [vmem:[%s222 + $0xe8] sm:$0xff]
        %v254 = vld [vmem:[%s222 + $0xf0] sm:$0xff]
        %v255 = vld [vmem:[%s222 + $0xf8] sm:$0xff]
        %v256 = vpack.c.bf16 %v225, %v224
        %v257 = vpack.c.bf16 %v227, %v226
        %v258 = vpack.c.bf16 %v229, %v228
        %v259 = vpack.c.bf16 %v231, %v230
        %v260 = vpack.c.bf16 %v233, %v232
        %v261 = vpack.c.bf16 %v235, %v234
        %v262 = vpack.c.bf16 %v237, %v236
        %v263 = vpack.c.bf16 %v239, %v238
        %v264 = vpack.c.bf16 %v241, %v240
        %v265 = vpack.c.bf16 %v243, %v242
        %v266 = vpack.c.bf16 %v245, %v244
        %v267 = vpack.c.bf16 %v247, %v246
        %v268 = vpack.c.bf16 %v249, %v248
        %v269 = vpack.c.bf16 %v251, %v250
        %v270 = vpack.c.bf16 %v253, %v252
        %v271 = vpack.c.bf16 %v255, %v254
        %v288 = vunpack.c.l.b16 %v256
        %v289 = vunpack.c.h.b16 %v256
        %v290 = vunpack.c.l.b16 %v257
        %v291 = vunpack.c.h.b16 %v257
        %v292 = vunpack.c.l.b16 %v258
        %v293 = vunpack.c.h.b16 %v258
        %v294 = vunpack.c.l.b16 %v259
        %v295 = vunpack.c.h.b16 %v259
        %v296 = vunpack.c.l.b16 %v260
        %v297 = vunpack.c.h.b16 %v260
        %v298 = vunpack.c.l.b16 %v261
        %v299 = vunpack.c.h.b16 %v261
        %v300 = vunpack.c.l.b16 %v262
        %v301 = vunpack.c.h.b16 %v262
        %v302 = vunpack.c.l.b16 %v263
        %v303 = vunpack.c.h.b16 %v263
        %v304 = vunpack.c.l.b16 %v264
        %v305 = vunpack.c.h.b16 %v264
        %v306 = vunpack.c.l.b16 %v265
        %v307 = vunpack.c.h.b16 %v265
        %v308 = vunpack.c.l.b16 %v266
        %v309 = vunpack.c.h.b16 %v266
        %v310 = vunpack.c.l.b16 %v267
        %v311 = vunpack.c.h.b16 %v267
        %v312 = vunpack.c.l.b16 %v268
        %v313 = vunpack.c.h.b16 %v268
        %v314 = vunpack.c.l.b16 %v269
        %v315 = vunpack.c.h.b16 %v269
        %v316 = vunpack.c.l.b16 %v270
        %v317 = vunpack.c.h.b16 %v270
        %v318 = vunpack.c.l.b16 %v271
        %v319 = vunpack.c.h.b16 %v271
        %v320 = vpack.c.b16 %v288, %v288
        %v321 = vpack.c.b16 %v289, %v289
        %v322 = vpack.c.b16 %v290, %v290
        %v323 = vpack.c.b16 %v291, %v291
        %v324 = vpack.c.b16 %v292, %v292
        %v325 = vpack.c.b16 %v293, %v293
        %v326 = vpack.c.b16 %v294, %v294
        %v327 = vpack.c.b16 %v295, %v295
        %v328 = vpack.c.b16 %v296, %v296
        %v329 = vpack.c.b16 %v297, %v297
        %v330 = vpack.c.b16 %v298, %v298
        %v331 = vpack.c.b16 %v299, %v299
        %v332 = vpack.c.b16 %v300, %v300
        %v333 = vpack.c.b16 %v301, %v301
        %v334 = vpack.c.b16 %v302, %v302
        %v335 = vpack.c.b16 %v303, %v303
        %v336 = vpack.c.b16 %v304, %v304
        %v337 = vpack.c.b16 %v305, %v305
        %v338 = vpack.c.b16 %v306, %v306
        %v339 = vpack.c.b16 %v307, %v307
        %v340 = vpack.c.b16 %v308, %v308
        %v341 = vpack.c.b16 %v309, %v309
        %v342 = vpack.c.b16 %v310, %v310
        %v343 = vpack.c.b16 %v311, %v311
        %v344 = vpack.c.b16 %v312, %v312
        %v345 = vpack.c.b16 %v313, %v313
        %v346 = vpack.c.b16 %v314, %v314
        %v347 = vpack.c.b16 %v315, %v315
        %v348 = vpack.c.b16 %v316, %v316
        %v349 = vpack.c.b16 %v317, %v317
        %v350 = vpack.c.b16 %v318, %v318
        %v351 = vpack.c.b16 %v319, %v319
        %vm352 = vsmask.f32 256
        %vm353 = vsmask.f32 4368
        %vm354 = vmor %vm352, %vm353
        %v356 = vshrl.u32 %v320, 16
        %v358 = vrot.slane %v356, 7
        %v359 = vshll.u32 %v320, 16
        %v361 = vor.u32 %v358, %v359
        %v362 = vrot.slane %v358, 4
        %v364 = vshrl.u32 %v321, 16
        %v366 = vrot.slane %v364, 7
        %v367 = vshll.u32 %v321, 16
        %v369 = vor.u32 %v366, %v367
        %v370 = vsel %vm354, %v362, %v369
        %v371 = vrot.slane %v366, 4
        %v373 = vshrl.u32 %v322, 16
        %v375 = vrot.slane %v373, 7
        %v376 = vshll.u32 %v322, 16
        %v378 = vor.u32 %v375, %v376
        %v379 = vrot.slane %v375, 4
        %v381 = vshrl.u32 %v323, 16
        %v383 = vrot.slane %v381, 7
        %v384 = vshll.u32 %v323, 16
        %v386 = vor.u32 %v383, %v384
        %v387 = vsel %vm354, %v379, %v386
        %v388 = vrot.slane %v383, 4
        %v390 = vshrl.u32 %v324, 16
        %v392 = vrot.slane %v390, 7
        %v393 = vshll.u32 %v324, 16
        %v395 = vor.u32 %v392, %v393
        %v396 = vrot.slane %v392, 4
        %v398 = vshrl.u32 %v325, 16
        %v400 = vrot.slane %v398, 7
        %v401 = vshll.u32 %v325, 16
        %v403 = vor.u32 %v400, %v401
        %v404 = vsel %vm354, %v396, %v403
        %v405 = vrot.slane %v400, 4
        %v407 = vshrl.u32 %v326, 16
        %v409 = vrot.slane %v407, 7
        %v410 = vshll.u32 %v326, 16
        %v412 = vor.u32 %v409, %v410
        %v413 = vrot.slane %v409, 4
        %v415 = vshrl.u32 %v327, 16
        %v417 = vrot.slane %v415, 7
        %v418 = vshll.u32 %v327, 16
        %v420 = vor.u32 %v417, %v418
        %v421 = vsel %vm354, %v413, %v420
        %v422 = vrot.slane %v417, 4
        %v424 = vshrl.u32 %v328, 16
        %v426 = vrot.slane %v424, 7
        %v427 = vshll.u32 %v328, 16
        %v429 = vor.u32 %v426, %v427
        %v430 = vrot.slane %v426, 4
        %v432 = vshrl.u32 %v329, 16
        %v434 = vrot.slane %v432, 7
        %v435 = vshll.u32 %v329, 16
        %v437 = vor.u32 %v434, %v435
        %v438 = vsel %vm354, %v430, %v437
        %v439 = vrot.slane %v434, 4
        %v441 = vshrl.u32 %v330, 16
        %v443 = vrot.slane %v441, 7
        %v444 = vshll.u32 %v330, 16
        %v446 = vor.u32 %v443, %v444
        %v447 = vrot.slane %v443, 4
        %v449 = vshrl.u32 %v331, 16
        %v451 = vrot.slane %v449, 7
        %v452 = vshll.u32 %v331, 16
        %v454 = vor.u32 %v451, %v452
        %v455 = vsel %vm354, %v447, %v454
        %v456 = vrot.slane %v451, 4
        %v458 = vshrl.u32 %v332, 16
        %v460 = vrot.slane %v458, 7
        %v461 = vshll.u32 %v332, 16
        %v463 = vor.u32 %v460, %v461
        %v464 = vrot.slane %v460, 4
        %v466 = vshrl.u32 %v333, 16
        %v468 = vrot.slane %v466, 7
        %v469 = vshll.u32 %v333, 16
        %v471 = vor.u32 %v468, %v469
        %v472 = vsel %vm354, %v464, %v471
        %v473 = vrot.slane %v468, 4
        %v475 = vshrl.u32 %v334, 16
        %v477 = vrot.slane %v475, 7
        %v478 = vshll.u32 %v334, 16
        %v480 = vor.u32 %v477, %v478
        %v481 = vrot.slane %v477, 4
        %v483 = vshrl.u32 %v335, 16
        %v485 = vrot.slane %v483, 7
        %v486 = vshll.u32 %v335, 16
        %v488 = vor.u32 %v485, %v486
        %v489 = vsel %vm354, %v481, %v488
        %v490 = vrot.slane %v485, 4
        %v492 = vshrl.u32 %v336, 16
        %v494 = vrot.slane %v492, 7
        %v495 = vshll.u32 %v336, 16
        %v497 = vor.u32 %v494, %v495
        %v498 = vrot.slane %v494, 4
        %v500 = vshrl.u32 %v337, 16
        %v502 = vrot.slane %v500, 7
        %v503 = vshll.u32 %v337, 16
        %v505 = vor.u32 %v502, %v503
        %v506 = vsel %vm354, %v498, %v505
        %v507 = vrot.slane %v502, 4
        %v509 = vshrl.u32 %v338, 16
        %v511 = vrot.slane %v509, 7
        %v512 = vshll.u32 %v338, 16
        %v514 = vor.u32 %v511, %v512
        %v515 = vrot.slane %v511, 4
        %v517 = vshrl.u32 %v339, 16
        %v519 = vrot.slane %v517, 7
        %v520 = vshll.u32 %v339, 16
        %v522 = vor.u32 %v519, %v520
        %v523 = vsel %vm354, %v515, %v522
        %v524 = vrot.slane %v519, 4
        %v526 = vshrl.u32 %v340, 16
        %v528 = vrot.slane %v526, 7
        %v529 = vshll.u32 %v340, 16
        %v531 = vor.u32 %v528, %v529
        %v532 = vrot.slane %v528, 4
        %v534 = vshrl.u32 %v341, 16
        %v536 = vrot.slane %v534, 7
        %v537 = vshll.u32 %v341, 16
        %v539 = vor.u32 %v536, %v537
        %v540 = vsel %vm354, %v532, %v539
        %v541 = vrot.slane %v536, 4
        %v543 = vshrl.u32 %v342, 16
        %v545 = vrot.slane %v543, 7
        %v546 = vshll.u32 %v342, 16
        %v548 = vor.u32 %v545, %v546
        %v549 = vrot.slane %v545, 4
        %v551 = vshrl.u32 %v343, 16
        %v553 = vrot.slane %v551, 7
        %v554 = vshll.u32 %v343, 16
        %v556 = vor.u32 %v553, %v554
        %v557 = vsel %vm354, %v549, %v556
        %v558 = vrot.slane %v553, 4
        %v560 = vshrl.u32 %v344, 16
        %v562 = vrot.slane %v560, 7
        %v563 = vshll.u32 %v344, 16
        %v565 = vor.u32 %v562, %v563
        %v566 = vrot.slane %v562, 4
        %v568 = vshrl.u32 %v345, 16
        %v570 = vrot.slane %v568, 7
        %v571 = vshll.u32 %v345, 16
        %v573 = vor.u32 %v570, %v571
        %v574 = vsel %vm354, %v566, %v573
        %v575 = vrot.slane %v570, 4
        %v577 = vshrl.u32 %v346, 16
        %v579 = vrot.slane %v577, 7
        %v580 = vshll.u32 %v346, 16
        %v582 = vor.u32 %v579, %v580
        %v583 = vrot.slane %v579, 4
        %v585 = vshrl.u32 %v347, 16
        %v587 = vrot.slane %v585, 7
        %v588 = vshll.u32 %v347, 16
        %v590 = vor.u32 %v587, %v588
        %v591 = vsel %vm354, %v583, %v590
        %v592 = vrot.slane %v587, 4
        %v594 = vshrl.u32 %v348, 16
        %v596 = vrot.slane %v594, 7
        %v597 = vshll.u32 %v348, 16
        %v599 = vor.u32 %v596, %v597
        %v600 = vrot.slane %v596, 4
        %v602 = vshrl.u32 %v349, 16
        %v604 = vrot.slane %v602, 7
        %v605 = vshll.u32 %v349, 16
        %v607 = vor.u32 %v604, %v605
        %v608 = vsel %vm354, %v600, %v607
        %v609 = vrot.slane %v604, 4
        %v611 = vshrl.u32 %v350, 16
        %v613 = vrot.slane %v611, 7
        %v614 = vshll.u32 %v350, 16
        %v616 = vor.u32 %v613, %v614
        %v617 = vrot.slane %v613, 4
        %v619 = vshrl.u32 %v351, 16
        %v621 = vrot.slane %v619, 7
        %v622 = vshll.u32 %v351, 16
        %v624 = vor.u32 %v621, %v622
        %v625 = vsel %vm354, %v617, %v624
        %v626 = vrot.slane %v621, 4
        %s675 = scalar_lea.vmem [#allocation2], 12
        %vm676 = vcmask 1043456
        %vm677 = vsmask.f32 7938
        %vm678 = vmand %vm676, %vm677
        %v679 = vld [vmem:[%s675] sm:$0xf]
        %v680 = vsel %vm678, %v361, %v679
        %681 = vst [vmem:[%s675] sm:$0xf] %v680
        %682 = vst [vmem:[%s675 + $0x4] sm:$0xf] %v370
        %vm683 = vcmask 1040384
        %vm684 = vmand %vm683, %vm352
        %v685 = vld [vmem:[%s675 + $0x8] sm:$0x1]
        %v686 = vsel %vm684, %v371, %v685
        %687 = vst [vmem:[%s675 + $0x8] sm:$0x1] %v686
        %v688 = vld [vmem:[%s675 + $0xc] sm:$0xf]
        %v689 = vsel %vm678, %v378, %v688
        %690 = vst [vmem:[%s675 + $0xc] sm:$0xf] %v689
        %691 = vst [vmem:[%s675 + $0x10] sm:$0xf] %v387
        %v692 = vld [vmem:[%s675 + $0x14] sm:$0x1]
        %v693 = vsel %vm684, %v388, %v692
        %694 = vst [vmem:[%s675 + $0x14] sm:$0x1] %v693
        %v695 = vld [vmem:[%s675 + $0x18] sm:$0xf]
        %v696 = vsel %vm678, %v395, %v695
        %697 = vst [vmem:[%s675 + $0x18] sm:$0xf] %v696
        %698 = vst [vmem:[%s675 + $0x1c] sm:$0xf] %v404
        %v699 = vld [vmem:[%s675 + $0x20] sm:$0x1]
        %v700 = vsel %vm684, %v405, %v699
        %701 = vst [vmem:[%s675 + $0x20] sm:$0x1] %v700
        %v702 = vld [vmem:[%s675 + $0x24] sm:$0xf]
        %v703 = vsel %vm678, %v412, %v702
        %704 = vst [vmem:[%s675 + $0x24] sm:$0xf] %v703
        %705 = vst [vmem:[%s675 + $0x28] sm:$0xf] %v421
        %v706 = vld [vmem:[%s675 + $0x2c] sm:$0x1]
        %v707 = vsel %vm684, %v422, %v706
        %708 = vst [vmem:[%s675 + $0x2c] sm:$0x1] %v707
        %v709 = vld [vmem:[%s675 + $0x30] sm:$0xf]
        %v710 = vsel %vm678, %v429, %v709
        %711 = vst [vmem:[%s675 + $0x30] sm:$0xf] %v710
        %712 = vst [vmem:[%s675 + $0x34] sm:$0xf] %v438
        %v713 = vld [vmem:[%s675 + $0x38] sm:$0x1]
        %v714 = vsel %vm684, %v439, %v713
        %715 = vst [vmem:[%s675 + $0x38] sm:$0x1] %v714
        %v716 = vld [vmem:[%s675 + $0x3c] sm:$0xf]
        %v717 = vsel %vm678, %v446, %v716
        %718 = vst [vmem:[%s675 + $0x3c] sm:$0xf] %v717
        %719 = vst [vmem:[%s675 + $0x40] sm:$0xf] %v455
        %v720 = vld [vmem:[%s675 + $0x44] sm:$0x1]
        %v721 = vsel %vm684, %v456, %v720
        %722 = vst [vmem:[%s675 + $0x44] sm:$0x1] %v721
        %v723 = vld [vmem:[%s675 + $0x48] sm:$0xf]
        %v724 = vsel %vm678, %v463, %v723
        %725 = vst [vmem:[%s675 + $0x48] sm:$0xf] %v724
        %726 = vst [vmem:[%s675 + $0x4c] sm:$0xf] %v472
        %v727 = vld [vmem:[%s675 + $0x50] sm:$0x1]
        %v728 = vsel %vm684, %v473, %v727
        %729 = vst [vmem:[%s675 + $0x50] sm:$0x1] %v728
        %v730 = vld [vmem:[%s675 + $0x54] sm:$0xf]
        %v731 = vsel %vm678, %v480, %v730
        %732 = vst [vmem:[%s675 + $0x54] sm:$0xf] %v731
        %733 = vst [vmem:[%s675 + $0x58] sm:$0xf] %v489
        %v734 = vld [vmem:[%s675 + $0x5c] sm:$0x1]
        %v735 = vsel %vm684, %v490, %v734
        %736 = vst [vmem:[%s675 + $0x5c] sm:$0x1] %v735
        %v737 = vld [vmem:[%s675 + $0x60] sm:$0xf]
        %v738 = vsel %vm678, %v497, %v737
        %739 = vst [vmem:[%s675 + $0x60] sm:$0xf] %v738
        %740 = vst [vmem:[%s675 + $0x64] sm:$0xf] %v506
        %v741 = vld [vmem:[%s675 + $0x68] sm:$0x1]
        %v742 = vsel %vm684, %v507, %v741
        %743 = vst [vmem:[%s675 + $0x68] sm:$0x1] %v742
        %v744 = vld [vmem:[%s675 + $0x6c] sm:$0xf]
        %v745 = vsel %vm678, %v514, %v744
        %746 = vst [vmem:[%s675 + $0x6c] sm:$0xf] %v745
        %747 = vst [vmem:[%s675 + $0x70] sm:$0xf] %v523
        %v748 = vld [vmem:[%s675 + $0x74] sm:$0x1]
        %v749 = vsel %vm684, %v524, %v748
        %750 = vst [vmem:[%s675 + $0x74] sm:$0x1] %v749
        %v751 = vld [vmem:[%s675 + $0x78] sm:$0xf]
        %v752 = vsel %vm678, %v531, %v751
        %753 = vst [vmem:[%s675 + $0x78] sm:$0xf] %v752
        %754 = vst [vmem:[%s675 + $0x7c] sm:$0xf] %v540
        %v755 = vld [vmem:[%s675 + $0x80] sm:$0x1]
        %v756 = vsel %vm684, %v541, %v755
        %757 = vst [vmem:[%s675 + $0x80] sm:$0x1] %v756
        %v758 = vld [vmem:[%s675 + $0x84] sm:$0xf]
        %v759 = vsel %vm678, %v548, %v758
        %760 = vst [vmem:[%s675 + $0x84] sm:$0xf] %v759
        %761 = vst [vmem:[%s675 + $0x88] sm:$0xf] %v557
        %v762 = vld [vmem:[%s675 + $0x8c] sm:$0x1]
        %v763 = vsel %vm684, %v558, %v762
        %764 = vst [vmem:[%s675 + $0x8c] sm:$0x1] %v763
        %v765 = vld [vmem:[%s675 + $0x90] sm:$0xf]
        %v766 = vsel %vm678, %v565, %v765
        %767 = vst [vmem:[%s675 + $0x90] sm:$0xf] %v766
        %768 = vst [vmem:[%s675 + $0x94] sm:$0xf] %v574
        %v769 = vld [vmem:[%s675 + $0x98] sm:$0x1]
        %v770 = vsel %vm684, %v575, %v769
        %771 = vst [vmem:[%s675 + $0x98] sm:$0x1] %v770
        %v772 = vld [vmem:[%s675 + $0x9c] sm:$0xf]
        %v773 = vsel %vm678, %v582, %v772
        %774 = vst [vmem:[%s675 + $0x9c] sm:$0xf] %v773
        %775 = vst [vmem:[%s675 + $0xa0] sm:$0xf] %v591
        %v776 = vld [vmem:[%s675 + $0xa4] sm:$0x1]
        %v777 = vsel %vm684, %v592, %v776
        %778 = vst [vmem:[%s675 + $0xa4] sm:$0x1] %v777
        %v779 = vld [vmem:[%s675 + $0xa8] sm:$0xf]
        %v780 = vsel %vm678, %v599, %v779
        %781 = vst [vmem:[%s675 + $0xa8] sm:$0xf] %v780
        %782 = vst [vmem:[%s675 + $0xac] sm:$0xf] %v608
        %v783 = vld [vmem:[%s675 + $0xb0] sm:$0x1]
        %v784 = vsel %vm684, %v609, %v783
        %785 = vst [vmem:[%s675 + $0xb0] sm:$0x1] %v784
        %v786 = vld [vmem:[%s675 + $0xb4] sm:$0xf]
        %v787 = vsel %vm678, %v616, %v786
        %788 = vst [vmem:[%s675 + $0xb4] sm:$0xf] %v787
        %789 = vst [vmem:[%s675 + $0xb8] sm:$0xf] %v625
        %v790 = vld [vmem:[%s675 + $0xbc] sm:$0x1]
        %v791 = vsel %vm684, %v626, %v790
        %792 = vst [vmem:[%s675 + $0xbc] sm:$0x1] %v791
        %v793 = vld [vmem:[#allocation2] sm:$0xf]
        %v794 = vsel %vm678, %v378, %v793
        %795 = vst [vmem:[#allocation2] sm:$0xf] %v794
        %796 = vst [vmem:[#allocation2 + $0x4] sm:$0xf] %v387
        %v797 = vld [vmem:[#allocation2 + $0x8] sm:$0x1]
        %v798 = vsel %vm684, %v388, %v797
        %799 = vst [vmem:[#allocation2 + $0x8] sm:$0x1] %v798
        %s800 = scalar_lea.vmem [#allocation2], 204
        %v801 = vld [vmem:[%s800] sm:$0xf]
        %v802 = vsel %vm678, %v599, %v801
        %803 = vst [vmem:[%s800] sm:$0xf] %v802
        %804 = vst [vmem:[%s800 + $0x4] sm:$0xf] %v608
        %v805 = vld [vmem:[%s800 + $0x8] sm:$0x1]
        %v806 = vsel %vm684, %v609, %v805
        %807 = vst [vmem:[%s800 + $0x8] sm:$0x1] %v806
        %v808 = vld [vmem:[#allocation2] sm:$0x2]
        %v809 = vld [vmem:[#allocation2 + $0xc] sm:$0x2]
        %v810 = vld [vmem:[#allocation2 + $0x18] sm:$0x2]
        %v811 = vld [vmem:[#allocation2 + $0x24] sm:$0x2]
        %v812 = vld [vmem:[#allocation2 + $0x30] sm:$0x2]
        %v813 = vld [vmem:[#allocation2 + $0x3c] sm:$0x2]
        %v814 = vld [vmem:[#allocation2 + $0x48] sm:$0x2]
        %v815 = vld [vmem:[#allocation2 + $0x54] sm:$0x2]
        %v816 = vld [vmem:[#allocation2 + $0x60] sm:$0x2]
        %v817 = vld [vmem:[#allocation2 + $0x6c] sm:$0x2]
        %v818 = vld [vmem:[#allocation2 + $0x78] sm:$0x2]
        %v819 = vld [vmem:[#allocation2 + $0x84] sm:$0x2]
        %v820 = vld [vmem:[#allocation2 + $0x90] sm:$0x2]
        %v821 = vld [vmem:[#allocation2 + $0x9c] sm:$0x2]
        %v822 = vld [vmem:[#allocation2 + $0xa8] sm:$0x2]
        %v823 = vld [vmem:[#allocation2 + $0xb4] sm:$0x2]
        %v824 = vld [vmem:[#allocation2 + $0xc0] sm:$0x2]
        %v825 = vld [vmem:[#allocation2 + $0xcc] sm:$0x2]
        %v844 = vrot.slane %v808, 5
        %v845 = vrot.slane %v844, 4
        %v846 = vrot.slane %v809, 5
        %v847 = vrot.slane %v846, 4
        %v848 = vrot.slane %v810, 5
        %v849 = vrot.slane %v848, 4
        %v850 = vrot.slane %v811, 5
        %v851 = vrot.slane %v850, 4
        %v852 = vrot.slane %v812, 5
        %v853 = vrot.slane %v852, 4
        %v854 = vrot.slane %v813, 5
        %v855 = vrot.slane %v854, 4
        %v856 = vrot.slane %v814, 5
        %v857 = vrot.slane %v856, 4
        %v858 = vrot.slane %v815, 5
        %v859 = vrot.slane %v858, 4
        %v860 = vrot.slane %v816, 5
        %v861 = vrot.slane %v860, 4
        %v862 = vrot.slane %v817, 5
        %v863 = vrot.slane %v862, 4
        %v864 = vrot.slane %v818, 5
        %v865 = vrot.slane %v864, 4
        %v866 = vrot.slane %v819, 5
        %v867 = vrot.slane %v866, 4
        %v868 = vrot.slane %v820, 5
        %v869 = vrot.slane %v868, 4
        %v870 = vrot.slane %v821, 5
        %v871 = vrot.slane %v870, 4
        %v872 = vrot.slane %v822, 5
        %v873 = vrot.slane %v872, 4
        %v874 = vrot.slane %v823, 5
        %v875 = vrot.slane %v874, 4
        %v876 = vrot.slane %v824, 5
        %v877 = vrot.slane %v876, 4
        %v878 = vrot.slane %v825, 5
        %v879 = vrot.slane %v878, 4
        %v898 = vld [vmem:[#allocation2] sm:$0x1]
        %v899 = vsel %vm684, %v845, %v898
        %900 = vst [vmem:[#allocation2] sm:$0x1] %v899
        %v901 = vld [vmem:[#allocation2 + $0xc] sm:$0x1]
        %v902 = vsel %vm684, %v847, %v901
        %903 = vst [vmem:[#allocation2 + $0xc] sm:$0x1] %v902
        %v904 = vld [vmem:[#allocation2 + $0x18] sm:$0x1]
        %v905 = vsel %vm684, %v849, %v904
        %906 = vst [vmem:[#allocation2 + $0x18] sm:$0x1] %v905
        %v907 = vld [vmem:[#allocation2 + $0x24] sm:$0x1]
        %v908 = vsel %vm684, %v851, %v907
        %909 = vst [vmem:[#allocation2 + $0x24] sm:$0x1] %v908
        %v910 = vld [vmem:[#allocation2 + $0x30] sm:$0x1]
        %v911 = vsel %vm684, %v853, %v910
        %912 = vst [vmem:[#allocation2 + $0x30] sm:$0x1] %v911
        %v913 = vld [vmem:[#allocation2 + $0x3c] sm:$0x1]
        %v914 = vsel %vm684, %v855, %v913
        %915 = vst [vmem:[#allocation2 + $0x3c] sm:$0x1] %v914
        %v916 = vld [vmem:[#allocation2 + $0x48] sm:$0x1]
        %v917 = vsel %vm684, %v857, %v916
        %918 = vst [vmem:[#allocation2 + $0x48] sm:$0x1] %v917
        %v919 = vld [vmem:[#allocation2 + $0x54] sm:$0x1]
        %v920 = vsel %vm684, %v859, %v919
        %921 = vst [vmem:[#allocation2 + $0x54] sm:$0x1] %v920
        %v922 = vld [vmem:[#allocation2 + $0x60] sm:$0x1]
        %v923 = vsel %vm684, %v861, %v922
        %924 = vst [vmem:[#allocation2 + $0x60] sm:$0x1] %v923
        %v925 = vld [vmem:[#allocation2 + $0x6c] sm:$0x1]
        %v926 = vsel %vm684, %v863, %v925
        %927 = vst [vmem:[#allocation2 + $0x6c] sm:$0x1] %v926
        %v928 = vld [vmem:[#allocation2 + $0x78] sm:$0x1]
        %v929 = vsel %vm684, %v865, %v928
        %930 = vst [vmem:[#allocation2 + $0x78] sm:$0x1] %v929
        %v931 = vld [vmem:[#allocation2 + $0x84] sm:$0x1]
        %v932 = vsel %vm684, %v867, %v931
        %933 = vst [vmem:[#allocation2 + $0x84] sm:$0x1] %v932
        %v934 = vld [vmem:[#allocation2 + $0x90] sm:$0x1]
        %v935 = vsel %vm684, %v869, %v934
        %936 = vst [vmem:[#allocation2 + $0x90] sm:$0x1] %v935
        %v937 = vld [vmem:[#allocation2 + $0x9c] sm:$0x1]
        %v938 = vsel %vm684, %v871, %v937
        %939 = vst [vmem:[#allocation2 + $0x9c] sm:$0x1] %v938
        %v940 = vld [vmem:[#allocation2 + $0xa8] sm:$0x1]
        %v941 = vsel %vm684, %v873, %v940
        %942 = vst [vmem:[#allocation2 + $0xa8] sm:$0x1] %v941
        %v943 = vld [vmem:[#allocation2 + $0xb4] sm:$0x1]
        %v944 = vsel %vm684, %v875, %v943
        %945 = vst [vmem:[#allocation2 + $0xb4] sm:$0x1] %v944
        %v946 = vld [vmem:[#allocation2 + $0xc0] sm:$0x1]
        %v947 = vsel %vm684, %v877, %v946
        %948 = vst [vmem:[#allocation2 + $0xc0] sm:$0x1] %v947
        %v949 = vld [vmem:[#allocation2 + $0xcc] sm:$0x1]
        %v950 = vsel %vm684, %v879, %v949
        %951 = vst [vmem:[#allocation2 + $0xcc] sm:$0x1] %v950
        %v952 = vld [vmem:[#allocation2 + $0x4] sm:$0x8]
        %v953 = vld [vmem:[#allocation2 + $0x10] sm:$0x8]
        %v954 = vld [vmem:[#allocation2 + $0x1c] sm:$0x8]
        %v955 = vld [vmem:[#allocation2 + $0x28] sm:$0x8]
        %v956 = vld [vmem:[#allocation2 + $0x34] sm:$0x8]
        %v957 = vld [vmem:[#allocation2 + $0x40] sm:$0x8]
        %v958 = vld [vmem:[#allocation2 + $0x4c] sm:$0x8]
        %v959 = vld [vmem:[#allocation2 + $0x58] sm:$0x8]
        %v960 = vld [vmem:[#allocation2 + $0x64] sm:$0x8]
        %v961 = vld [vmem:[#allocation2 + $0x70] sm:$0x8]
        %v962 = vld [vmem:[#allocation2 + $0x7c] sm:$0x8]
        %v963 = vld [vmem:[#allocation2 + $0x88] sm:$0x8]
        %v964 = vld [vmem:[#allocation2 + $0x94] sm:$0x8]
        %v965 = vld [vmem:[#allocation2 + $0xa0] sm:$0x8]
        %v966 = vld [vmem:[#allocation2 + $0xac] sm:$0x8]
        %v967 = vld [vmem:[#allocation2 + $0xb8] sm:$0x8]
        %v968 = vld [vmem:[#allocation2 + $0xc4] sm:$0x8]
        %v969 = vld [vmem:[#allocation2 + $0xd0] sm:$0x8]
        %v988 = vrot.slane %v952, 7
        %v989 = vrot.slane %v988, 4
        %v990 = vrot.slane %v953, 7
        %v991 = vrot.slane %v990, 4
        %v992 = vrot.slane %v954, 7
        %v993 = vrot.slane %v992, 4
        %v994 = vrot.slane %v955, 7
        %v995 = vrot.slane %v994, 4
        %v996 = vrot.slane %v956, 7
        %v997 = vrot.slane %v996, 4
        %v998 = vrot.slane %v957, 7
        %v999 = vrot.slane %v998, 4
        %v1000 = vrot.slane %v958, 7
        %v1001 = vrot.slane %v1000, 4
        %v1002 = vrot.slane %v959, 7
        %v1003 = vrot.slane %v1002, 4
        %v1004 = vrot.slane %v960, 7
        %v1005 = vrot.slane %v1004, 4
        %v1006 = vrot.slane %v961, 7
        %v1007 = vrot.slane %v1006, 4
        %v1008 = vrot.slane %v962, 7
        %v1009 = vrot.slane %v1008, 4
        %v1010 = vrot.slane %v963, 7
        %v1011 = vrot.slane %v1010, 4
        %v1012 = vrot.slane %v964, 7
        %v1013 = vrot.slane %v1012, 4
        %v1014 = vrot.slane %v965, 7
        %v1015 = vrot.slane %v1014, 4
        %v1016 = vrot.slane %v966, 7
        %v1017 = vrot.slane %v1016, 4
        %v1018 = vrot.slane %v967, 7
        %v1019 = vrot.slane %v1018, 4
        %v1020 = vrot.slane %v968, 7
        %v1021 = vrot.slane %v1020, 4
        %v1022 = vrot.slane %v969, 7
        %v1023 = vrot.slane %v1022, 4
        %vm1042 = vmand %vm683, %vm677
        %v1043 = vld [vmem:[#allocation2 + $0x8] sm:$0x1]
        %v1044 = vsel %vm1042, %v989, %v1043
        %1045 = vst [vmem:[#allocation2 + $0x8] sm:$0x1] %v1044
        %v1046 = vld [vmem:[#allocation2 + $0x14] sm:$0x1]
        %v1047 = vsel %vm1042, %v991, %v1046
        %1048 = vst [vmem:[#allocation2 + $0x14] sm:$0x1] %v1047
        %v1049 = vld [vmem:[#allocation2 + $0x20] sm:$0x1]
        %v1050 = vsel %vm1042, %v993, %v1049
        %1051 = vst [vmem:[#allocation2 + $0x20] sm:$0x1] %v1050
        %v1052 = vld [vmem:[#allocation2 + $0x2c] sm:$0x1]
        %v1053 = vsel %vm1042, %v995, %v1052
        %1054 = vst [vmem:[#allocation2 + $0x2c] sm:$0x1] %v1053
        %v1055 = vld [vmem:[#allocation2 + $0x38] sm:$0x1]
        %v1056 = vsel %vm1042, %v997, %v1055
        %1057 = vst [vmem:[#allocation2 + $0x38] sm:$0x1] %v1056
        %v1058 = vld [vmem:[#allocation2 + $0x44] sm:$0x1]
        %v1059 = vsel %vm1042, %v999, %v1058
        %1060 = vst [vmem:[#allocation2 + $0x44] sm:$0x1] %v1059
        %v1061 = vld [vmem:[#allocation2 + $0x50] sm:$0x1]
        %v1062 = vsel %vm1042, %v1001, %v1061
        %1063 = vst [vmem:[#allocation2 + $0x50] sm:$0x1] %v1062
        %v1064 = vld [vmem:[#allocation2 + $0x5c] sm:$0x1]
        %v1065 = vsel %vm1042, %v1003, %v1064
        %1066 = vst [vmem:[#allocation2 + $0x5c] sm:$0x1] %v1065
        %v1067 = vld [vmem:[#allocation2 + $0x68] sm:$0x1]
        %v1068 = vsel %vm1042, %v1005, %v1067
        %1069 = vst [vmem:[#allocation2 + $0x68] sm:$0x1] %v1068
        %v1070 = vld [vmem:[#allocation2 + $0x74] sm:$0x1]
        %v1071 = vsel %vm1042, %v1007, %v1070
        %1072 = vst [vmem:[#allocation2 + $0x74] sm:$0x1] %v1071
        %v1073 = vld [vmem:[#allocation2 + $0x80] sm:$0x1]
        %v1074 = vsel %vm1042, %v1009, %v1073
        %1075 = vst [vmem:[#allocation2 + $0x80] sm:$0x1] %v1074
        %v1076 = vld [vmem:[#allocation2 + $0x8c] sm:$0x1]
        %v1077 = vsel %vm1042, %v1011, %v1076
        %1078 = vst [vmem:[#allocation2 + $0x8c] sm:$0x1] %v1077
        %v1079 = vld [vmem:[#allocation2 + $0x98] sm:$0x1]
        %v1080 = vsel %vm1042, %v1013, %v1079
        %1081 = vst [vmem:[#allocation2 + $0x98] sm:$0x1] %v1080
        %v1082 = vld [vmem:[#allocation2 + $0xa4] sm:$0x1]
        %v1083 = vsel %vm1042, %v1015, %v1082
        %1084 = vst [vmem:[#allocation2 + $0xa4] sm:$0x1] %v1083
        %v1085 = vld [vmem:[#allocation2 + $0xb0] sm:$0x1]
        %v1086 = vsel %vm1042, %v1017, %v1085
        %1087 = vst [vmem:[#allocation2 + $0xb0] sm:$0x1] %v1086
        %v1088 = vld [vmem:[#allocation2 + $0xbc] sm:$0x1]
        %v1089 = vsel %vm1042, %v1019, %v1088
        %1090 = vst [vmem:[#allocation2 + $0xbc] sm:$0x1] %v1089
        %v1091 = vld [vmem:[#allocation2 + $0xc8] sm:$0x1]
        %v1092 = vsel %vm1042, %v1021, %v1091
        %1093 = vst [vmem:[#allocation2 + $0xc8] sm:$0x1] %v1092
        %v1094 = vld [vmem:[#allocation2 + $0xd4] sm:$0x1]
        %v1095 = vsel %vm1042, %v1023, %v1094
        %1096 = vst [vmem:[#allocation2 + $0xd4] sm:$0x1] %v1095
        %v1097 = vld [vmem:[#allocation2] sm:$0xf]
        %v1098 = vld [vmem:[#allocation2 + $0x4] sm:$0xf]
        %v1099 = vld [vmem:[#allocation2 + $0xc] sm:$0xf]
        %v1100 = vld [vmem:[#allocation2 + $0x10] sm:$0xf]
        %v1101 = vld [vmem:[#allocation2 + $0x18] sm:$0xf]
        %v1102 = vld [vmem:[#allocation2 + $0x1c] sm:$0xf]
        %v1103 = vld [vmem:[#allocation2 + $0x24] sm:$0xf]
        %v1104 = vld [vmem:[#allocation2 + $0x28] sm:$0xf]
        %v1105 = vld [vmem:[#allocation2 + $0x30] sm:$0xf]
        %v1106 = vld [vmem:[#allocation2 + $0x34] sm:$0xf]
        %v1107 = vld [vmem:[#allocation2 + $0x3c] sm:$0xf]
        %v1108 = vld [vmem:[#allocation2 + $0x40] sm:$0xf]
        %v1109 = vld [vmem:[#allocation2 + $0x48] sm:$0xf]
        %v1110 = vld [vmem:[#allocation2 + $0x4c] sm:$0xf]
        %v1111 = vld [vmem:[#allocation2 + $0x54] sm:$0xf]
        %v1112 = vld [vmem:[#allocation2 + $0x58] sm:$0xf]
        %v1113 = vld [vmem:[#allocation2 + $0x60] sm:$0xf]
        %v1114 = vld [vmem:[#allocation2 + $0x64] sm:$0xf]
        %v1115 = vld [vmem:[#allocation2 + $0x6c] sm:$0xf]
        %v1116 = vld [vmem:[#allocation2 + $0x70] sm:$0xf]
        %v1117 = vld [vmem:[#allocation2 + $0x78] sm:$0xf]
        %v1118 = vld [vmem:[#allocation2 + $0x7c] sm:$0xf]
        %v1119 = vld [vmem:[#allocation2 + $0x84] sm:$0xf]
        %v1120 = vld [vmem:[#allocation2 + $0x88] sm:$0xf]
        %v1121 = vld [vmem:[#allocation2 + $0x90] sm:$0xf]
        %v1122 = vld [vmem:[#allocation2 + $0x94] sm:$0xf]
        %v1123 = vld [vmem:[#allocation2 + $0x9c] sm:$0xf]
        %v1124 = vld [vmem:[#allocation2 + $0xa0] sm:$0xf]
        %v1125 = vld [vmem:[#allocation2 + $0xa8] sm:$0xf]
        %v1126 = vld [vmem:[#allocation2 + $0xac] sm:$0xf]
        %v1127 = vld [vmem:[#allocation2 + $0xb4] sm:$0xf]
        %v1128 = vld [vmem:[#allocation2 + $0xb8] sm:$0xf]
        %v1129 = vld [vmem:[%s1] sm:$0xf]
        %v1130 = vld [vmem:[%s1 + $0x4] sm:$0xf]
        %v1131 = vld [vmem:[%s1 + $0x8] sm:$0xf]
        %v1132 = vld [vmem:[%s1 + $0xc] sm:$0xf]
        %v1133 = vld [vmem:[%s1 + $0x10] sm:$0xf]
        %v1134 = vld [vmem:[%s1 + $0x14] sm:$0xf]
        %v1135 = vld [vmem:[%s1 + $0x18] sm:$0xf]
        %v1136 = vld [vmem:[%s1 + $0x1c] sm:$0xf]
        %v1137 = vld [vmem:[%s1 + $0x20] sm:$0xf]
        %v1138 = vld [vmem:[%s1 + $0x24] sm:$0xf]
        %v1139 = vld [vmem:[%s1 + $0x28] sm:$0xf]
        %v1140 = vld [vmem:[%s1 + $0x2c] sm:$0xf]
        %v1141 = vld [vmem:[%s1 + $0x30] sm:$0xf]
        %v1142 = vld [vmem:[%s1 + $0x34] sm:$0xf]
        %v1143 = vld [vmem:[%s1 + $0x38] sm:$0xf]
        %v1144 = vld [vmem:[%s1 + $0x3c] sm:$0xf]
        %v1145 = vld [vmem:[#allocation2 + $0x8] sm:$0x1]
        %v1146 = vld [vmem:[#allocation2 + $0x14] sm:$0x1]
        %v1147 = vld [vmem:[#allocation2 + $0x20] sm:$0x1]
        %v1148 = vld [vmem:[#allocation2 + $0x2c] sm:$0x1]
        %v1149 = vld [vmem:[#allocation2 + $0x38] sm:$0x1]
        %v1150 = vld [vmem:[#allocation2 + $0x44] sm:$0x1]
        %v1151 = vld [vmem:[#allocation2 + $0x50] sm:$0x1]
        %v1152 = vld [vmem:[#allocation2 + $0x5c] sm:$0x1]
        %v1153 = vld [vmem:[#allocation2 + $0x68] sm:$0x1]
        %v1154 = vld [vmem:[#allocation2 + $0x74] sm:$0x1]
        %v1155 = vld [vmem:[#allocation2 + $0x80] sm:$0x1]
        %v1156 = vld [vmem:[#allocation2 + $0x8c] sm:$0x1]
        %v1157 = vld [vmem:[#allocation2 + $0x98] sm:$0x1]
        %v1158 = vld [vmem:[#allocation2 + $0xa4] sm:$0x1]
        %v1159 = vld [vmem:[#allocation2 + $0xb0] sm:$0x1]
        %v1160 = vld [vmem:[#allocation2 + $0xbc] sm:$0x1]
        %vm1161 = vsmask.f32 3328
        %vm1162 = vsmask.f32 7440
        %vm1163 = vmor %vm1161, %vm1162
        %v1165 = vshrl.u32 %v1097, 16
        %v1167 = vrot.slane %v1165, 4
        %v1168 = vshll.u32 %v1097, 16
        %v1170 = vrot.slane %v1168, 5
        %v1171 = vor.u32 %v1167, %v1170
        %v1172 = vrot.slane %v1171, 4
        %v1174 = vshll.u32 %v1098, 16
        %v1176 = vrot.slane %v1174, 5
        %v1177 = vsel %vm1163, %v1172, %v1176
        %v1178 = vshrl.u32 %v1098, 16
        %v1180 = vrot.slane %v1178, 4
        %v1181 = vor.u32 %v1180, %v1176
        %v1182 = vrot.slane %v1181, 4
        %v1184 = vshll.u32 %v1145, 16
        %v1186 = vrot.slane %v1184, 5
        %v1187 = vsel %vm1163, %v1182, %v1186
        %v1189 = vshrl.u32 %v1099, 16
        %v1191 = vrot.slane %v1189, 4
        %v1192 = vshll.u32 %v1099, 16
        %v1194 = vrot.slane %v1192, 5
        %v1195 = vor.u32 %v1191, %v1194
        %v1196 = vrot.slane %v1195, 4
        %v1198 = vshll.u32 %v1100, 16
        %v1200 = vrot.slane %v1198, 5
        %v1201 = vsel %vm1163, %v1196, %v1200
        %v1202 = vshrl.u32 %v1100, 16
        %v1204 = vrot.slane %v1202, 4
        %v1205 = vor.u32 %v1204, %v1200
        %v1206 = vrot.slane %v1205, 4
        %v1208 = vshll.u32 %v1146, 16
        %v1210 = vrot.slane %v1208, 5
        %v1211 = vsel %vm1163, %v1206, %v1210
        %v1213 = vshrl.u32 %v1101, 16
        %v1215 = vrot.slane %v1213, 4
        %v1216 = vshll.u32 %v1101, 16
        %v1218 = vrot.slane %v1216, 5
        %v1219 = vor.u32 %v1215, %v1218
        %v1220 = vrot.slane %v1219, 4
        %v1222 = vshll.u32 %v1102, 16
        %v1224 = vrot.slane %v1222, 5
        %v1225 = vsel %vm1163, %v1220, %v1224
        %v1226 = vshrl.u32 %v1102, 16
        %v1228 = vrot.slane %v1226, 4
        %v1229 = vor.u32 %v1228, %v1224
        %v1230 = vrot.slane %v1229, 4
        %v1232 = vshll.u32 %v1147, 16
        %v1234 = vrot.slane %v1232, 5
        %v1235 = vsel %vm1163, %v1230, %v1234
        %v1237 = vshrl.u32 %v1103, 16
        %v1239 = vrot.slane %v1237, 4
        %v1240 = vshll.u32 %v1103, 16
        %v1242 = vrot.slane %v1240, 5
        %v1243 = vor.u32 %v1239, %v1242
        %v1244 = vrot.slane %v1243, 4
        %v1246 = vshll.u32 %v1104, 16
        %v1248 = vrot.slane %v1246, 5
        %v1249 = vsel %vm1163, %v1244, %v1248
        %v1250 = vshrl.u32 %v1104, 16
        %v1252 = vrot.slane %v1250, 4
        %v1253 = vor.u32 %v1252, %v1248
        %v1254 = vrot.slane %v1253, 4
        %v1256 = vshll.u32 %v1148, 16
        %v1258 = vrot.slane %v1256, 5
        %v1259 = vsel %vm1163, %v1254, %v1258
        %v1261 = vshrl.u32 %v1105, 16
        %v1263 = vrot.slane %v1261, 4
        %v1264 = vshll.u32 %v1105, 16
        %v1266 = vrot.slane %v1264, 5
        %v1267 = vor.u32 %v1263, %v1266
        %v1268 = vrot.slane %v1267, 4
        %v1270 = vshll.u32 %v1106, 16
        %v1272 = vrot.slane %v1270, 5
        %v1273 = vsel %vm1163, %v1268, %v1272
        %v1274 = vshrl.u32 %v1106, 16
        %v1276 = vrot.slane %v1274, 4
        %v1277 = vor.u32 %v1276, %v1272
        %v1278 = vrot.slane %v1277, 4
        %v1280 = vshll.u32 %v1149, 16
        %v1282 = vrot.slane %v1280, 5
        %v1283 = vsel %vm1163, %v1278, %v1282
        %v1285 = vshrl.u32 %v1107, 16
        %v1287 = vrot.slane %v1285, 4
        %v1288 = vshll.u32 %v1107, 16
        %v1290 = vrot.slane %v1288, 5
        %v1291 = vor.u32 %v1287, %v1290
        %v1292 = vrot.slane %v1291, 4
        %v1294 = vshll.u32 %v1108, 16
        %v1296 = vrot.slane %v1294, 5
        %v1297 = vsel %vm1163, %v1292, %v1296
        %v1298 = vshrl.u32 %v1108, 16
        %v1300 = vrot.slane %v1298, 4
        %v1301 = vor.u32 %v1300, %v1296
        %v1302 = vrot.slane %v1301, 4
        %v1304 = vshll.u32 %v1150, 16
        %v1306 = vrot.slane %v1304, 5
        %v1307 = vsel %vm1163, %v1302, %v1306
        %v1309 = vshrl.u32 %v1109, 16
        %v1311 = vrot.slane %v1309, 4
        %v1312 = vshll.u32 %v1109, 16
        %v1314 = vrot.slane %v1312, 5
        %v1315 = vor.u32 %v1311, %v1314
        %v1316 = vrot.slane %v1315, 4
        %v1318 = vshll.u32 %v1110, 16
        %v1320 = vrot.slane %v1318, 5
        %v1321 = vsel %vm1163, %v1316, %v1320
        %v1322 = vshrl.u32 %v1110, 16
        %v1324 = vrot.slane %v1322, 4
        %v1325 = vor.u32 %v1324, %v1320
        %v1326 = vrot.slane %v1325, 4
        %v1328 = vshll.u32 %v1151, 16
        %v1330 = vrot.slane %v1328, 5
        %v1331 = vsel %vm1163, %v1326, %v1330
        %v1333 = vshrl.u32 %v1111, 16
        %v1335 = vrot.slane %v1333, 4
        %v1336 = vshll.u32 %v1111, 16
        %v1338 = vrot.slane %v1336, 5
        %v1339 = vor.u32 %v1335, %v1338
        %v1340 = vrot.slane %v1339, 4
        %v1342 = vshll.u32 %v1112, 16
        %v1344 = vrot.slane %v1342, 5
        %v1345 = vsel %vm1163, %v1340, %v1344
        %v1346 = vshrl.u32 %v1112, 16
        %v1348 = vrot.slane %v1346, 4
        %v1349 = vor.u32 %v1348, %v1344
        %v1350 = vrot.slane %v1349, 4
        %v1352 = vshll.u32 %v1152, 16
        %v1354 = vrot.slane %v1352, 5
        %v1355 = vsel %vm1163, %v1350, %v1354
        %v1357 = vshrl.u32 %v1113, 16
        %v1359 = vrot.slane %v1357, 4
        %v1360 = vshll.u32 %v1113, 16
        %v1362 = vrot.slane %v1360, 5
        %v1363 = vor.u32 %v1359, %v1362
        %v1364 = vrot.slane %v1363, 4
        %v1366 = vshll.u32 %v1114, 16
        %v1368 = vrot.slane %v1366, 5
        %v1369 = vsel %vm1163, %v1364, %v1368
        %v1370 = vshrl.u32 %v1114, 16
        %v1372 = vrot.slane %v1370, 4
        %v1373 = vor.u32 %v1372, %v1368
        %v1374 = vrot.slane %v1373, 4
        %v1376 = vshll.u32 %v1153, 16
        %v1378 = vrot.slane %v1376, 5
        %v1379 = vsel %vm1163, %v1374, %v1378
        %v1381 = vshrl.u32 %v1115, 16
        %v1383 = vrot.slane %v1381, 4
        %v1384 = vshll.u32 %v1115, 16
        %v1386 = vrot.slane %v1384, 5
        %v1387 = vor.u32 %v1383, %v1386
        %v1388 = vrot.slane %v1387, 4
        %v1390 = vshll.u32 %v1116, 16
        %v1392 = vrot.slane %v1390, 5
        %v1393 = vsel %vm1163, %v1388, %v1392
        %v1394 = vshrl.u32 %v1116, 16
        %v1396 = vrot.slane %v1394, 4
        %v1397 = vor.u32 %v1396, %v1392
        %v1398 = vrot.slane %v1397, 4
        %v1400 = vshll.u32 %v1154, 16
        %v1402 = vrot.slane %v1400, 5
        %v1403 = vsel %vm1163, %v1398, %v1402
        %v1405 = vshrl.u32 %v1117, 16
        %v1407 = vrot.slane %v1405, 4
        %v1408 = vshll.u32 %v1117, 16
        %v1410 = vrot.slane %v1408, 5
        %v1411 = vor.u32 %v1407, %v1410
        %v1412 = vrot.slane %v1411, 4
        %v1414 = vshll.u32 %v1118, 16
        %v1416 = vrot.slane %v1414, 5
        %v1417 = vsel %vm1163, %v1412, %v1416
        %v1418 = vshrl.u32 %v1118, 16
        %v1420 = vrot.slane %v1418, 4
        %v1421 = vor.u32 %v1420, %v1416
        %v1422 = vrot.slane %v1421, 4
        %v1424 = vshll.u32 %v1155, 16
        %v1426 = vrot.slane %v1424, 5
        %v1427 = vsel %vm1163, %v1422, %v1426
        %v1429 = vshrl.u32 %v1119, 16
        %v1431 = vrot.slane %v1429, 4
        %v1432 = vshll.u32 %v1119, 16
        %v1434 = vrot.slane %v1432, 5
        %v1435 = vor.u32 %v1431, %v1434
        %v1436 = vrot.slane %v1435, 4
        %v1438 = vshll.u32 %v1120, 16
        %v1440 = vrot.slane %v1438, 5
        %v1441 = vsel %vm1163, %v1436, %v1440
        %v1442 = vshrl.u32 %v1120, 16
        %v1444 = vrot.slane %v1442, 4
        %v1445 = vor.u32 %v1444, %v1440
        %v1446 = vrot.slane %v1445, 4
        %v1448 = vshll.u32 %v1156, 16
        %v1450 = vrot.slane %v1448, 5
        %v1451 = vsel %vm1163, %v1446, %v1450
        %v1453 = vshrl.u32 %v1121, 16
        %v1455 = vrot.slane %v1453, 4
        %v1456 = vshll.u32 %v1121, 16
        %v1458 = vrot.slane %v1456, 5
        %v1459 = vor.u32 %v1455, %v1458
        %v1460 = vrot.slane %v1459, 4
        %v1462 = vshll.u32 %v1122, 16
        %v1464 = vrot.slane %v1462, 5
        %v1465 = vsel %vm1163, %v1460, %v1464
        %v1466 = vshrl.u32 %v1122, 16
        %v1468 = vrot.slane %v1466, 4
        %v1469 = vor.u32 %v1468, %v1464
        %v1470 = vrot.slane %v1469, 4
        %v1472 = vshll.u32 %v1157, 16
        %v1474 = vrot.slane %v1472, 5
        %v1475 = vsel %vm1163, %v1470, %v1474
        %v1477 = vshrl.u32 %v1123, 16
        %v1479 = vrot.slane %v1477, 4
        %v1480 = vshll.u32 %v1123, 16
        %v1482 = vrot.slane %v1480, 5
        %v1483 = vor.u32 %v1479, %v1482
        %v1484 = vrot.slane %v1483, 4
        %v1486 = vshll.u32 %v1124, 16
        %v1488 = vrot.slane %v1486, 5
        %v1489 = vsel %vm1163, %v1484, %v1488
        %v1490 = vshrl.u32 %v1124, 16
        %v1492 = vrot.slane %v1490, 4
        %v1493 = vor.u32 %v1492, %v1488
        %v1494 = vrot.slane %v1493, 4
        %v1496 = vshll.u32 %v1158, 16
        %v1498 = vrot.slane %v1496, 5
        %v1499 = vsel %vm1163, %v1494, %v1498
        %v1501 = vshrl.u32 %v1125, 16
        %v1503 = vrot.slane %v1501, 4
        %v1504 = vshll.u32 %v1125, 16
        %v1506 = vrot.slane %v1504, 5
        %v1507 = vor.u32 %v1503, %v1506
        %v1508 = vrot.slane %v1507, 4
        %v1510 = vshll.u32 %v1126, 16
        %v1512 = vrot.slane %v1510, 5
        %v1513 = vsel %vm1163, %v1508, %v1512
        %v1514 = vshrl.u32 %v1126, 16
        %v1516 = vrot.slane %v1514, 4
        %v1517 = vor.u32 %v1516, %v1512
        %v1518 = vrot.slane %v1517, 4
        %v1520 = vshll.u32 %v1159, 16
        %v1522 = vrot.slane %v1520, 5
        %v1523 = vsel %vm1163, %v1518, %v1522
        %v1525 = vshrl.u32 %v1127, 16
        %v1527 = vrot.slane %v1525, 4
        %v1528 = vshll.u32 %v1127, 16
        %v1530 = vrot.slane %v1528, 5
        %v1531 = vor.u32 %v1527, %v1530
        %v1532 = vrot.slane %v1531, 4
        %v1534 = vshll.u32 %v1128, 16
        %v1536 = vrot.slane %v1534, 5
        %v1537 = vsel %vm1163, %v1532, %v1536
        %v1538 = vshrl.u32 %v1128, 16
        %v1540 = vrot.slane %v1538, 4
        %v1541 = vor.u32 %v1540, %v1536
        %v1542 = vrot.slane %v1541, 4
        %v1544 = vshll.u32 %v1160, 16
        %v1546 = vrot.slane %v1544, 5
        %v1547 = vsel %vm1163, %v1542, %v1546
        %s1548 = scalar_lea.vmem %s1, 64
        %v1549 = vld [vmem:[%s1548] sm:$0xf]
        %v1550 = vld [vmem:[%s1548 + $0x4] sm:$0xf]
        %v1551 = vld [vmem:[%s1548 + $0x8] sm:$0xf]
        %v1552 = vld [vmem:[%s1548 + $0xc] sm:$0xf]
        %v1553 = vld [vmem:[%s1548 + $0x10] sm:$0xf]
        %v1554 = vld [vmem:[%s1548 + $0x14] sm:$0xf]
        %v1555 = vld [vmem:[%s1548 + $0x18] sm:$0xf]
        %v1556 = vld [vmem:[%s1548 + $0x1c] sm:$0xf]
        %v1557 = vld [vmem:[%s1548 + $0x20] sm:$0xf]
        %v1558 = vld [vmem:[%s1548 + $0x24] sm:$0xf]
        %v1559 = vld [vmem:[%s1548 + $0x28] sm:$0xf]
        %v1560 = vld [vmem:[%s1548 + $0x2c] sm:$0xf]
        %v1561 = vld [vmem:[%s1548 + $0x30] sm:$0xf]
        %v1562 = vld [vmem:[%s1548 + $0x34] sm:$0xf]
        %v1563 = vld [vmem:[%s1548 + $0x38] sm:$0xf]
        %v1564 = vld [vmem:[%s1548 + $0x3c] sm:$0xf]
        %v1565 = vunpack.c.l.b16 %v1177
        %v1566 = vunpack.c.l.b16 %v1187
        %v1567 = vunpack.c.l.b16 %v1201
        %v1568 = vunpack.c.l.b16 %v1211
        %v1569 = vunpack.c.l.b16 %v1225
        %v1570 = vunpack.c.l.b16 %v1235
        %v1571 = vunpack.c.l.b16 %v1249
        %v1572 = vunpack.c.l.b16 %v1259
        %v1573 = vunpack.c.l.b16 %v1273
        %v1574 = vunpack.c.l.b16 %v1283
        %v1575 = vunpack.c.l.b16 %v1297
        %v1576 = vunpack.c.l.b16 %v1307
        %v1577 = vunpack.c.l.b16 %v1321
        %v1578 = vunpack.c.l.b16 %v1331
        %v1579 = vunpack.c.l.b16 %v1345
        %v1580 = vunpack.c.l.b16 %v1355
        %v1581 = vunpack.c.l.b16 %v1369
        %v1582 = vunpack.c.l.b16 %v1379
        %v1583 = vunpack.c.l.b16 %v1393
        %v1584 = vunpack.c.l.b16 %v1403
        %v1585 = vunpack.c.l.b16 %v1417
        %v1586 = vunpack.c.l.b16 %v1427
        %v1587 = vunpack.c.l.b16 %v1441
        %v1588 = vunpack.c.l.b16 %v1451
        %v1589 = vunpack.c.l.b16 %v1465
        %v1590 = vunpack.c.l.b16 %v1475
        %v1591 = vunpack.c.l.b16 %v1489
        %v1592 = vunpack.c.l.b16 %v1499
        %v1593 = vunpack.c.l.b16 %v1513
        %v1594 = vunpack.c.l.b16 %v1523
        %v1595 = vunpack.c.l.b16 %v1537
        %v1596 = vunpack.c.l.b16 %v1547
        %v1597 = vpack.c.b16 %v1566, %v1565
        %v1598 = vpack.c.b16 %v1568, %v1567
        %v1599 = vpack.c.b16 %v1570, %v1569
        %v1600 = vpack.c.b16 %v1572, %v1571
        %v1601 = vpack.c.b16 %v1574, %v1573
        %v1602 = vpack.c.b16 %v1576, %v1575
        %v1603 = vpack.c.b16 %v1578, %v1577
        %v1604 = vpack.c.b16 %v1580, %v1579
        %v1605 = vpack.c.b16 %v1582, %v1581
        %v1606 = vpack.c.b16 %v1584, %v1583
        %v1607 = vpack.c.b16 %v1586, %v1585
        %v1608 = vpack.c.b16 %v1588, %v1587
        %v1609 = vpack.c.b16 %v1590, %v1589
        %v1610 = vpack.c.b16 %v1592, %v1591
        %v1611 = vpack.c.b16 %v1594, %v1593
        %v1612 = vpack.c.b16 %v1596, %v1595
        %v1645 = vunpack.c.l.b16 %v1549
        %v1646 = vunpack.c.l.b16 %v1550
        %v1647 = vunpack.c.l.b16 %v1551
        %v1648 = vunpack.c.l.b16 %v1552
        %v1649 = vunpack.c.l.b16 %v1553
        %v1650 = vunpack.c.l.b16 %v1554
        %v1651 = vunpack.c.l.b16 %v1555
        %v1652 = vunpack.c.l.b16 %v1556
        %v1653 = vunpack.c.l.b16 %v1557
        %v1654 = vunpack.c.l.b16 %v1558
        %v1655 = vunpack.c.l.b16 %v1559
        %v1656 = vunpack.c.l.b16 %v1560
        %v1657 = vunpack.c.l.b16 %v1561
        %v1658 = vunpack.c.l.b16 %v1562
        %v1659 = vunpack.c.l.b16 %v1563
        %v1660 = vunpack.c.l.b16 %v1564
        %v1661 = vpack.c.b16 %v1646, %v1645
        %v1662 = vpack.c.b16 %v1648, %v1647
        %v1663 = vpack.c.b16 %v1650, %v1649
        %v1664 = vpack.c.b16 %v1652, %v1651
        %v1665 = vpack.c.b16 %v1654, %v1653
        %v1666 = vpack.c.b16 %v1656, %v1655
        %v1667 = vpack.c.b16 %v1658, %v1657
        %v1668 = vpack.c.b16 %v1660, %v1659
        %1677 = vmatprep.subr.bf16.mxu0 0
        %1678 = vmatpush1.bf16.msra.mxu0 %v1661
        %1679 = vmatprep.subr.bf16.mxu0 0
        %1680 = vmatpush1.bf16.msra.mxu0 %v1662
        %1681 = vmatprep.subr.bf16.mxu0 0
        %1682 = vmatpush1.bf16.msra.mxu0 %v1663
        %1683 = vmatprep.subr.bf16.mxu0 0
        %1684 = vmatpush1.bf16.msra.mxu0 %v1664
        %1685 = vmatprep.subr.bf16.mxu0 0
        %1686 = vmatpush1.bf16.msra.mxu0 %v1665
        %1687 = vmatprep.subr.bf16.mxu0 0
        %1688 = vmatpush1.bf16.msra.mxu0 %v1666
        %1689 = vmatprep.subr.bf16.mxu0 0
        %1690 = vmatpush1.bf16.msra.mxu0 %v1667
        %1691 = vmatprep.subr.bf16.mxu0 0
        %1692 = vmatpush1.bf16.msra.mxu0 %v1668
        %1693 = vmatprep.subr.bf16.mxu0 0
        %1694 = vmatpush1.bf16.msra.mxu0 0
        %1695 = vmatprep.subr.bf16.mxu0 0
        %1696 = vmatpush1.bf16.msra.mxu0 0
        %1697 = vmatprep.subr.bf16.mxu0 0
        %1698 = vmatpush1.bf16.msra.mxu0 0
        %1699 = vmatprep.subr.bf16.mxu0 0
        %1700 = vmatpush1.bf16.msra.mxu0 0
        %1701 = vmatprep.subr.bf16.mxu0 0
        %1702 = vmatpush1.bf16.msra.mxu0 0
        %1703 = vmatprep.subr.bf16.mxu0 0
        %1704 = vmatpush1.bf16.msra.mxu0 0
        %1705 = vmatprep.subr.bf16.mxu0 0
        %1706 = vmatpush1.bf16.msra.mxu0 0
        %1707 = vmatprep.subr.bf16.mxu0 0
        %1708 = vmatpush1.bf16.msra.mxu0 0
        %1709 = vmatprep.mubr.bf16.mxu0 0
        %1710 = vmatmul.mubr.bf16.gmra.mrb[0].mxu0 %v1597
        %v1711 = vpop.f32.mrb[0].mxu0
        %v1712 = vadd.f32 0.0, %v1711
        %v1713 = vpop.f32.mrb[0].mxu0
        %v1714 = vpop.f32.mrb[0].mxu0
        %v1715 = vadd.f32 0.0, %v1714
        %v1716 = vpop.f32.mrb[0].mxu0
        %1717 = vmatprep.mubr.bf16.mxu0 0
        %1718 = vmatmul.mubr.bf16.gmra.mrb[0].mxu0 %v1598
        %v1719 = vpop.f32.mrb[0].mxu0
        %v1720 = vadd.f32 0.0, %v1719
        %v1721 = vpop.f32.mrb[0].mxu0
        %v1722 = vpop.f32.mrb[0].mxu0
        %v1723 = vadd.f32 0.0, %v1722
        %v1724 = vpop.f32.mrb[0].mxu0
        %1725 = vmatprep.mubr.bf16.mxu0 0
        %1726 = vmatmul.mubr.bf16.gmra.mrb[0].mxu0 %v1599
        %v1727 = vpop.f32.mrb[0].mxu0
        %v1728 = vadd.f32 0.0, %v1727
        %v1729 = vpop.f32.mrb[0].mxu0
        %v1730 = vpop.f32.mrb[0].mxu0
        %v1731 = vadd.f32 0.0, %v1730
        %v1732 = vpop.f32.mrb[0].mxu0
        %1733 = vmatprep.mubr.bf16.mxu0 0
        %1734 = vmatmul.mubr.bf16.gmra.mrb[0].mxu0 %v1600
        %v1735 = vpop.f32.mrb[0].mxu0
        %v1736 = vadd.f32 0.0, %v1735
        %v1737 = vpop.f32.mrb[0].mxu0
        %v1738 = vpop.f32.mrb[0].mxu0
        %v1739 = vadd.f32 0.0, %v1738
        %v1740 = vpop.f32.mrb[0].mxu0
        %1741 = vmatprep.mubr.bf16.mxu0 0
        %1742 = vmatmul.mubr.bf16.gmra.mrb[0].mxu0 %v1601
        %v1743 = vpop.f32.mrb[0].mxu0
        %v1744 = vadd.f32 0.0, %v1743
        %v1745 = vpop.f32.mrb[0].mxu0
        %v1746 = vpop.f32.mrb[0].mxu0
        %v1747 = vadd.f32 0.0, %v1746
        %v1748 = vpop.f32.mrb[0].mxu0
        %1749 = vmatprep.mubr.bf16.mxu0 0
        %1750 = vmatmul.mubr.bf16.gmra.mrb[0].mxu0 %v1602
        %v1751 = vpop.f32.mrb[0].mxu0
        %v1752 = vadd.f32 0.0, %v1751
        %v1753 = vpop.f32.mrb[0].mxu0
        %v1754 = vpop.f32.mrb[0].mxu0
        %v1755 = vadd.f32 0.0, %v1754
        %v1756 = vpop.f32.mrb[0].mxu0
        %1757 = vmatprep.mubr.bf16.mxu0 0
        %1758 = vmatmul.mubr.bf16.gmra.mrb[0].mxu0 %v1603
        %v1759 = vpop.f32.mrb[0].mxu0
        %v1760 = vadd.f32 0.0, %v1759
        %v1761 = vpop.f32.mrb[0].mxu0
        %v1762 = vpop.f32.mrb[0].mxu0
        %v1763 = vadd.f32 0.0, %v1762
        %v1764 = vpop.f32.mrb[0].mxu0
        %1765 = vmatprep.mubr.bf16.mxu0 0
        %1766 = vmatmul.mubr.bf16.gmra.mrb[0].mxu0 %v1604
        %v1767 = vpop.f32.mrb[0].mxu0
        %v1768 = vadd.f32 0.0, %v1767
        %v1769 = vpop.f32.mrb[0].mxu0
        %v1770 = vpop.f32.mrb[0].mxu0
        %v1771 = vadd.f32 0.0, %v1770
        %v1772 = vpop.f32.mrb[0].mxu0
        %1773 = vmatprep.mubr.bf16.mxu0 0
        %1774 = vmatmul.mubr.bf16.gmra.mrb[0].mxu0 %v1605
        %v1775 = vpop.f32.mrb[0].mxu0
        %v1776 = vadd.f32 0.0, %v1775
        %v1777 = vpop.f32.mrb[0].mxu0
        %v1778 = vpop.f32.mrb[0].mxu0
        %v1779 = vadd.f32 0.0, %v1778
        %v1780 = vpop.f32.mrb[0].mxu0
        %1781 = vmatprep.mubr.bf16.mxu0 0
        %1782 = vmatmul.mubr.bf16.gmra.mrb[0].mxu0 %v1606
        %v1783 = vpop.f32.mrb[0].mxu0
        %v1784 = vadd.f32 0.0, %v1783
        %v1785 = vpop.f32.mrb[0].mxu0
        %v1786 = vpop.f32.mrb[0].mxu0
        %v1787 = vadd.f32 0.0, %v1786
        %v1788 = vpop.f32.mrb[0].mxu0
        %1789 = vmatprep.mubr.bf16.mxu0 0
        %1790 = vmatmul.mubr.bf16.gmra.mrb[0].mxu0 %v1607
        %v1791 = vpop.f32.mrb[0].mxu0
        %v1792 = vadd.f32 0.0, %v1791
        %v1793 = vpop.f32.mrb[0].mxu0
        %v1794 = vpop.f32.mrb[0].mxu0
        %v1795 = vadd.f32 0.0, %v1794
        %v1796 = vpop.f32.mrb[0].mxu0
        %1797 = vmatprep.mubr.bf16.mxu0 0
        %1798 = vmatmul.mubr.bf16.gmra.mrb[0].mxu0 %v1608
        %v1799 = vpop.f32.mrb[0].mxu0
        %v1800 = vadd.f32 0.0, %v1799
        %v1801 = vpop.f32.mrb[0].mxu0
        %v1802 = vpop.f32.mrb[0].mxu0
        %v1803 = vadd.f32 0.0, %v1802
        %v1804 = vpop.f32.mrb[0].mxu0
        %1805 = vmatprep.mubr.bf16.mxu0 0
        %1806 = vmatmul.mubr.bf16.gmra.mrb[0].mxu0 %v1609
        %v1807 = vpop.f32.mrb[0].mxu0
        %v1808 = vadd.f32 0.0, %v1807
        %v1809 = vpop.f32.mrb[0].mxu0
        %v1810 = vpop.f32.mrb[0].mxu0
        %v1811 = vadd.f32 0.0, %v1810
        %v1812 = vpop.f32.mrb[0].mxu0
        %1813 = vmatprep.mubr.bf16.mxu0 0
        %1814 = vmatmul.mubr.bf16.gmra.mrb[0].mxu0 %v1610
        %v1815 = vpop.f32.mrb[0].mxu0
        %v1816 = vadd.f32 0.0, %v1815
        %v1817 = vpop.f32.mrb[0].mxu0
        %v1818 = vpop.f32.mrb[0].mxu0
        %v1819 = vadd.f32 0.0, %v1818
        %v1820 = vpop.f32.mrb[0].mxu0
        %1821 = vmatprep.mubr.bf16.mxu0 0
        %1822 = vmatmul.mubr.bf16.gmra.mrb[0].mxu0 %v1611
        %v1823 = vpop.f32.mrb[0].mxu0
        %v1824 = vadd.f32 0.0, %v1823
        %v1825 = vpop.f32.mrb[0].mxu0
        %v1826 = vpop.f32.mrb[0].mxu0
        %v1827 = vadd.f32 0.0, %v1826
        %v1828 = vpop.f32.mrb[0].mxu0
        %1829 = vmatprep.mubr.bf16.mxu0 0
        %1830 = vmatmul.mubr.bf16.gmra.mrb[0].mxu0 %v1612
        %v1831 = vpop.f32.mrb[0].mxu0
        %v1832 = vadd.f32 0.0, %v1831
        %v1833 = vpop.f32.mrb[0].mxu0
        %v1834 = vpop.f32.mrb[0].mxu0
        %v1835 = vadd.f32 0.0, %v1834
        %v1836 = vpop.f32.mrb[0].mxu0
        %1837 = vdwg.mxu0
        %v1870 = vunpack.c.l.b16 %v1097
        %v1871 = vunpack.c.l.b16 %v1098
        %v1872 = vunpack.c.l.b16 %v1099
        %v1873 = vunpack.c.l.b16 %v1100
        %v1874 = vunpack.c.l.b16 %v1101
        %v1875 = vunpack.c.l.b16 %v1102
        %v1876 = vunpack.c.l.b16 %v1103
        %v1877 = vunpack.c.l.b16 %v1104
        %v1878 = vunpack.c.l.b16 %v1105
        %v1879 = vunpack.c.l.b16 %v1106
        %v1880 = vunpack.c.l.b16 %v1107
        %v1881 = vunpack.c.l.b16 %v1108
        %v1882 = vunpack.c.l.b16 %v1109
        %v1883 = vunpack.c.l.b16 %v1110
        %v1884 = vunpack.c.l.b16 %v1111
        %v1885 = vunpack.c.l.b16 %v1112
        %v1886 = vunpack.c.l.b16 %v1113
        %v1887 = vunpack.c.l.b16 %v1114
        %v1888 = vunpack.c.l.b16 %v1115
        %v1889 = vunpack.c.l.b16 %v1116
        %v1890 = vunpack.c.l.b16 %v1117
        %v1891 = vunpack.c.l.b16 %v1118
        %v1892 = vunpack.c.l.b16 %v1119
        %v1893 = vunpack.c.l.b16 %v1120
        %v1894 = vunpack.c.l.b16 %v1121
        %v1895 = vunpack.c.l.b16 %v1122
        %v1896 = vunpack.c.l.b16 %v1123
        %v1897 = vunpack.c.l.b16 %v1124
        %v1898 = vunpack.c.l.b16 %v1125
        %v1899 = vunpack.c.l.b16 %v1126
        %v1900 = vunpack.c.l.b16 %v1127
        %v1901 = vunpack.c.l.b16 %v1128
        %v1902 = vpack.c.b16 %v1871, %v1870
        %v1903 = vpack.c.b16 %v1873, %v1872
        %v1904 = vpack.c.b16 %v1875, %v1874
        %v1905 = vpack.c.b16 %v1877, %v1876
        %v1906 = vpack.c.b16 %v1879, %v1878
        %v1907 = vpack.c.b16 %v1881, %v1880
        %v1908 = vpack.c.b16 %v1883, %v1882
        %v1909 = vpack.c.b16 %v1885, %v1884
        %v1910 = vpack.c.b16 %v1887, %v1886
        %v1911 = vpack.c.b16 %v1889, %v1888
        %v1912 = vpack.c.b16 %v1891, %v1890
        %v1913 = vpack.c.b16 %v1893, %v1892
        %v1914 = vpack.c.b16 %v1895, %v1894
        %v1915 = vpack.c.b16 %v1897, %v1896
        %v1916 = vpack.c.b16 %v1899, %v1898
        %v1917 = vpack.c.b16 %v1901, %v1900
        %v1950 = vunpack.c.l.b16 %v1129
        %v1951 = vunpack.c.l.b16 %v1130
        %v1952 = vunpack.c.l.b16 %v1131
        %v1953 = vunpack.c.l.b16 %v1132
        %v1954 = vunpack.c.l.b16 %v1133
        %v1955 = vunpack.c.l.b16 %v1134
        %v1956 = vunpack.c.l.b16 %v1135
        %v1957 = vunpack.c.l.b16 %v1136
        %v1958 = vunpack.c.l.b16 %v1137
        %v1959 = vunpack.c.l.b16 %v1138
        %v1960 = vunpack.c.l.b16 %v1139
        %v1961 = vunpack.c.l.b16 %v1140
        %v1962 = vunpack.c.l.b16 %v1141
        %v1963 = vunpack.c.l.b16 %v1142
        %v1964 = vunpack.c.l.b16 %v1143
        %v1965 = vunpack.c.l.b16 %v1144
        %v1966 = vpack.c.b16 %v1951, %v1950
        %v1967 = vpack.c.b16 %v1953, %v1952
        %v1968 = vpack.c.b16 %v1955, %v1954
        %v1969 = vpack.c.b16 %v1957, %v1956
        %v1970 = vpack.c.b16 %v1959, %v1958
        %v1971 = vpack.c.b16 %v1961, %v1960
        %v1972 = vpack.c.b16 %v1963, %v1962
        %v1973 = vpack.c.b16 %v1965, %v1964
        %1982 = vmatprep.subr.bf16.mxu0 0
        %1983 = vmatpush1.bf16.msra.mxu0 %v1966
        %1984 = vmatprep.subr.bf16.mxu0 0
        %1985 = vmatpush1.bf16.msra.mxu0 %v1967
        %1986 = vmatprep.subr.bf16.mxu0 0
        %1987 = vmatpush1.bf16.msra.mxu0 %v1968
        %1988 = vmatprep.subr.bf16.mxu0 0
        %1989 = vmatpush1.bf16.msra.mxu0 %v1969
        %1990 = vmatprep.subr.bf16.mxu0 0
        %1991 = vmatpush1.bf16.msra.mxu0 %v1970
        %1992 = vmatprep.subr.bf16.mxu0 0
        %1993 = vmatpush1.bf16.msra.mxu0 %v1971
        %1994 = vmatprep.subr.bf16.mxu0 0
        %1995 = vmatpush1.bf16.msra.mxu0 %v1972
        %1996 = vmatprep.subr.bf16.mxu0 0
        %1997 = vmatpush1.bf16.msra.mxu0 %v1973
        %1998 = vmatprep.subr.bf16.mxu0 0
        %1999 = vmatpush1.bf16.msra.mxu0 0
        %2000 = vmatprep.subr.bf16.mxu0 0
        %2001 = vmatpush1.bf16.msra.mxu0 0
        %2002 = vmatprep.subr.bf16.mxu0 0
        %2003 = vmatpush1.bf16.msra.mxu0 0
        %2004 = vmatprep.subr.bf16.mxu0 0
        %2005 = vmatpush1.bf16.msra.mxu0 0
        %2006 = vmatprep.subr.bf16.mxu0 0
        %2007 = vmatpush1.bf16.msra.mxu0 0
        %2008 = vmatprep.subr.bf16.mxu0 0
        %2009 = vmatpush1.bf16.msra.mxu0 0
        %2010 = vmatprep.subr.bf16.mxu0 0
        %2011 = vmatpush1.bf16.msra.mxu0 0
        %2012 = vmatprep.subr.bf16.mxu0 0
        %2013 = vmatpush1.bf16.msra.mxu0 0
        %2014 = vmatprep.mubr.bf16.mxu0 0
        %2015 = vmatmul.mubr.bf16.gmra.mrb[0].mxu0 %v1902
        %v2016 = vpop.f32.mrb[0].mxu0
        %v2017 = vadd.f32 %v1712, %v2016
        %v2018 = vpop.f32.mrb[0].mxu0
        %v2019 = vpop.f32.mrb[0].mxu0
        %v2020 = vadd.f32 %v1715, %v2019
        %v2021 = vpop.f32.mrb[0].mxu0
        %2022 = vmatprep.mubr.bf16.mxu0 0
        %2023 = vmatmul.mubr.bf16.gmra.mrb[0].mxu0 %v1903
        %v2024 = vpop.f32.mrb[0].mxu0
        %v2025 = vadd.f32 %v1720, %v2024
        %v2026 = vpop.f32.mrb[0].mxu0
        %v2027 = vpop.f32.mrb[0].mxu0
        %v2028 = vadd.f32 %v1723, %v2027
        %v2029 = vpop.f32.mrb[0].mxu0
        %2030 = vmatprep.mubr.bf16.mxu0 0
        %2031 = vmatmul.mubr.bf16.gmra.mrb[0].mxu0 %v1904
        %v2032 = vpop.f32.mrb[0].mxu0
        %v2033 = vadd.f32 %v1728, %v2032
        %v2034 = vpop.f32.mrb[0].mxu0
        %v2035 = vpop.f32.mrb[0].mxu0
        %v2036 = vadd.f32 %v1731, %v2035
        %v2037 = vpop.f32.mrb[0].mxu0
        %2038 = vmatprep.mubr.bf16.mxu0 0
        %2039 = vmatmul.mubr.bf16.gmra.mrb[0].mxu0 %v1905
        %v2040 = vpop.f32.mrb[0].mxu0
        %v2041 = vadd.f32 %v1736, %v2040
        %v2042 = vpop.f32.mrb[0].mxu0
        %v2043 = vpop.f32.mrb[0].mxu0
        %v2044 = vadd.f32 %v1739, %v2043
        %v2045 = vpop.f32.mrb[0].mxu0
        %2046 = vmatprep.mubr.bf16.mxu0 0
        %2047 = vmatmul.mubr.bf16.gmra.mrb[0].mxu0 %v1906
        %v2048 = vpop.f32.mrb[0].mxu0
        %v2049 = vadd.f32 %v1744, %v2048
        %v2050 = vpop.f32.mrb[0].mxu0
        %v2051 = vpop.f32.mrb[0].mxu0
        %v2052 = vadd.f32 %v1747, %v2051
        %v2053 = vpop.f32.mrb[0].mxu0
        %2054 = vmatprep.mubr.bf16.mxu0 0
        %2055 = vmatmul.mubr.bf16.gmra.mrb[0].mxu0 %v1907
        %v2056 = vpop.f32.mrb[0].mxu0
        %v2057 = vadd.f32 %v1752, %v2056
        %v2058 = vpop.f32.mrb[0].mxu0
        %v2059 = vpop.f32.mrb[0].mxu0
        %v2060 = vadd.f32 %v1755, %v2059
        %v2061 = vpop.f32.mrb[0].mxu0
        %2062 = vmatprep.mubr.bf16.mxu0 0
        %2063 = vmatmul.mubr.bf16.gmra.mrb[0].mxu0 %v1908
        %v2064 = vpop.f32.mrb[0].mxu0
        %v2065 = vadd.f32 %v1760, %v2064
        %v2066 = vpop.f32.mrb[0].mxu0
        %v2067 = vpop.f32.mrb[0].mxu0
        %v2068 = vadd.f32 %v1763, %v2067
        %v2069 = vpop.f32.mrb[0].mxu0
        %2070 = vmatprep.mubr.bf16.mxu0 0
        %2071 = vmatmul.mubr.bf16.gmra.mrb[0].mxu0 %v1909
        %v2072 = vpop.f32.mrb[0].mxu0
        %v2073 = vadd.f32 %v1768, %v2072
        %v2074 = vpop.f32.mrb[0].mxu0
        %v2075 = vpop.f32.mrb[0].mxu0
        %v2076 = vadd.f32 %v1771, %v2075
        %v2077 = vpop.f32.mrb[0].mxu0
        %2078 = vmatprep.mubr.bf16.mxu0 0
        %2079 = vmatmul.mubr.bf16.gmra.mrb[0].mxu0 %v1910
        %v2080 = vpop.f32.mrb[0].mxu0
        %v2081 = vadd.f32 %v1776, %v2080
        %v2082 = vpop.f32.mrb[0].mxu0
        %v2083 = vpop.f32.mrb[0].mxu0
        %v2084 = vadd.f32 %v1779, %v2083
        %v2085 = vpop.f32.mrb[0].mxu0
        %2086 = vmatprep.mubr.bf16.mxu0 0
        %2087 = vmatmul.mubr.bf16.gmra.mrb[0].mxu0 %v1911
        %v2088 = vpop.f32.mrb[0].mxu0
        %v2089 = vadd.f32 %v1784, %v2088
        %v2090 = vpop.f32.mrb[0].mxu0
        %v2091 = vpop.f32.mrb[0].mxu0
        %v2092 = vadd.f32 %v1787, %v2091
        %v2093 = vpop.f32.mrb[0].mxu0
        %2094 = vmatprep.mubr.bf16.mxu0 0
        %2095 = vmatmul.mubr.bf16.gmra.mrb[0].mxu0 %v1912
        %v2096 = vpop.f32.mrb[0].mxu0
        %v2097 = vadd.f32 %v1792, %v2096
        %v2098 = vpop.f32.mrb[0].mxu0
        %v2099 = vpop.f32.mrb[0].mxu0
        %v2100 = vadd.f32 %v1795, %v2099
        %v2101 = vpop.f32.mrb[0].mxu0
        %2102 = vmatprep.mubr.bf16.mxu0 0
        %2103 = vmatmul.mubr.bf16.gmra.mrb[0].mxu0 %v1913
        %v2104 = vpop.f32.mrb[0].mxu0
        %v2105 = vadd.f32 %v1800, %v2104
        %v2106 = vpop.f32.mrb[0].mxu0
        %v2107 = vpop.f32.mrb[0].mxu0
        %v2108 = vadd.f32 %v1803, %v2107
        %v2109 = vpop.f32.mrb[0].mxu0
        %2110 = vmatprep.mubr.bf16.mxu0 0
        %2111 = vmatmul.mubr.bf16.gmra.mrb[0].mxu0 %v1914
        %v2112 = vpop.f32.mrb[0].mxu0
        %v2113 = vadd.f32 %v1808, %v2112
        %v2114 = vpop.f32.mrb[0].mxu0
        %v2115 = vpop.f32.mrb[0].mxu0
        %v2116 = vadd.f32 %v1811, %v2115
        %v2117 = vpop.f32.mrb[0].mxu0
        %2118 = vmatprep.mubr.bf16.mxu0 0
        %2119 = vmatmul.mubr.bf16.gmra.mrb[0].mxu0 %v1915
        %v2120 = vpop.f32.mrb[0].mxu0
        %v2121 = vadd.f32 %v1816, %v2120
        %v2122 = vpop.f32.mrb[0].mxu0
        %v2123 = vpop.f32.mrb[0].mxu0
        %v2124 = vadd.f32 %v1819, %v2123
        %v2125 = vpop.f32.mrb[0].mxu0
        %2126 = vmatprep.mubr.bf16.mxu0 0
        %2127 = vmatmul.mubr.bf16.gmra.mrb[0].mxu0 %v1916
        %v2128 = vpop.f32.mrb[0].mxu0
        %v2129 = vadd.f32 %v1824, %v2128
        %v2130 = vpop.f32.mrb[0].mxu0
        %v2131 = vpop.f32.mrb[0].mxu0
        %v2132 = vadd.f32 %v1827, %v2131
        %v2133 = vpop.f32.mrb[0].mxu0
        %2134 = vmatprep.mubr.bf16.mxu0 0
        %2135 = vmatmul.mubr.bf16.gmra.mrb[0].mxu0 %v1917
        %v2136 = vpop.f32.mrb[0].mxu0
        %v2137 = vadd.f32 %v1832, %v2136
        %v2138 = vpop.f32.mrb[0].mxu0
        %v2139 = vpop.f32.mrb[0].mxu0
        %v2140 = vadd.f32 %v1835, %v2139
        %v2141 = vpop.f32.mrb[0].mxu0
        %2142 = vdwg.mxu0
        %v2143 = vld [vmem:[#allocation2] sm:$0xe]
        %v2144 = vld [vmem:[#allocation2 + $0xc] sm:$0xe]
        %v2145 = vld [vmem:[#allocation2 + $0x18] sm:$0xe]
        %v2146 = vld [vmem:[#allocation2 + $0x24] sm:$0xe]
        %v2147 = vld [vmem:[#allocation2 + $0x30] sm:$0xe]
        %v2148 = vld [vmem:[#allocation2 + $0x3c] sm:$0xe]
        %v2149 = vld [vmem:[#allocation2 + $0x48] sm:$0xe]
        %v2150 = vld [vmem:[#allocation2 + $0x54] sm:$0xe]
        %v2151 = vld [vmem:[#allocation2 + $0x60] sm:$0xe]
        %v2152 = vld [vmem:[#allocation2 + $0x6c] sm:$0xe]
        %v2153 = vld [vmem:[#allocation2 + $0x78] sm:$0xe]
        %v2154 = vld [vmem:[#allocation2 + $0x84] sm:$0xe]
        %v2155 = vld [vmem:[#allocation2 + $0x90] sm:$0xe]
        %v2156 = vld [vmem:[#allocation2 + $0x9c] sm:$0xe]
        %v2157 = vld [vmem:[#allocation2 + $0xa8] sm:$0xe]
        %v2158 = vld [vmem:[#allocation2 + $0xb4] sm:$0xe]
        %vm2191 = vcmask 1042432
        %vm2192 = vcmask 1046532
        %vm2193 = vmor %vm2191, %vm2192
        %v2194 = vrot.slane %v2143, 5
        %v2195 = vrot.slane %v2194, 4
        %v2196 = vrot.slane %v1098, 5
        %v2197 = vsel %vm2193, %v2195, %v2196
        %v2198 = vrot.slane %v2196, 4
        %v2199 = vrot.slane %v1145, 5
        %v2200 = vsel %vm2193, %v2198, %v2199
        %v2201 = vrot.slane %v2144, 5
        %v2202 = vrot.slane %v2201, 4
        %v2203 = vrot.slane %v1100, 5
        %v2204 = vsel %vm2193, %v2202, %v2203
        %v2205 = vrot.slane %v2203, 4
        %v2206 = vrot.slane %v1146, 5
        %v2207 = vsel %vm2193, %v2205, %v2206
        %v2208 = vrot.slane %v2145, 5
        %v2209 = vrot.slane %v2208, 4
        %v2210 = vrot.slane %v1102, 5
        %v2211 = vsel %vm2193, %v2209, %v2210
        %v2212 = vrot.slane %v2210, 4
        %v2213 = vrot.slane %v1147, 5
        %v2214 = vsel %vm2193, %v2212, %v2213
        %v2215 = vrot.slane %v2146, 5
        %v2216 = vrot.slane %v2215, 4
        %v2217 = vrot.slane %v1104, 5
        %v2218 = vsel %vm2193, %v2216, %v2217
        %v2219 = vrot.slane %v2217, 4
        %v2220 = vrot.slane %v1148, 5
        %v2221 = vsel %vm2193, %v2219, %v2220
        %v2222 = vrot.slane %v2147, 5
        %v2223 = vrot.slane %v2222, 4
        %v2224 = vrot.slane %v1106, 5
        %v2225 = vsel %vm2193, %v2223, %v2224
        %v2226 = vrot.slane %v2224, 4
        %v2227 = vrot.slane %v1149, 5
        %v2228 = vsel %vm2193, %v2226, %v2227
        %v2229 = vrot.slane %v2148, 5
        %v2230 = vrot.slane %v2229, 4
        %v2231 = vrot.slane %v1108, 5
        %v2232 = vsel %vm2193, %v2230, %v2231
        %v2233 = vrot.slane %v2231, 4
        %v2234 = vrot.slane %v1150, 5
        %v2235 = vsel %vm2193, %v2233, %v2234
        %v2236 = vrot.slane %v2149, 5
        %v2237 = vrot.slane %v2236, 4
        %v2238 = vrot.slane %v1110, 5
        %v2239 = vsel %vm2193, %v2237, %v2238
        %v2240 = vrot.slane %v2238, 4
        %v2241 = vrot.slane %v1151, 5
        %v2242 = vsel %vm2193, %v2240, %v2241
        %v2243 = vrot.slane %v2150, 5
        %v2244 = vrot.slane %v2243, 4
        %v2245 = vrot.slane %v1112, 5
        %v2246 = vsel %vm2193, %v2244, %v2245
        %v2247 = vrot.slane %v2245, 4
        %v2248 = vrot.slane %v1152, 5
        %v2249 = vsel %vm2193, %v2247, %v2248
        %v2250 = vrot.slane %v2151, 5
        %v2251 = vrot.slane %v2250, 4
        %v2252 = vrot.slane %v1114, 5
        %v2253 = vsel %vm2193, %v2251, %v2252
        %v2254 = vrot.slane %v2252, 4
        %v2255 = vrot.slane %v1153, 5
        %v2256 = vsel %vm2193, %v2254, %v2255
        %v2257 = vrot.slane %v2152, 5
        %v2258 = vrot.slane %v2257, 4
        %v2259 = vrot.slane %v1116, 5
        %v2260 = vsel %vm2193, %v2258, %v2259
        %v2261 = vrot.slane %v2259, 4
        %v2262 = vrot.slane %v1154, 5
        %v2263 = vsel %vm2193, %v2261, %v2262
        %v2264 = vrot.slane %v2153, 5
        %v2265 = vrot.slane %v2264, 4
        %v2266 = vrot.slane %v1118, 5
        %v2267 = vsel %vm2193, %v2265, %v2266
        %v2268 = vrot.slane %v2266, 4
        %v2269 = vrot.slane %v1155, 5
        %v2270 = vsel %vm2193, %v2268, %v2269
        %v2271 = vrot.slane %v2154, 5
        %v2272 = vrot.slane %v2271, 4
        %v2273 = vrot.slane %v1120, 5
        %v2274 = vsel %vm2193, %v2272, %v2273
        %v2275 = vrot.slane %v2273, 4
        %v2276 = vrot.slane %v1156, 5
        %v2277 = vsel %vm2193, %v2275, %v2276
        %v2278 = vrot.slane %v2155, 5
        %v2279 = vrot.slane %v2278, 4
        %v2280 = vrot.slane %v1122, 5
        %v2281 = vsel %vm2193, %v2279, %v2280
        %v2282 = vrot.slane %v2280, 4
        %v2283 = vrot.slane %v1157, 5
        %v2284 = vsel %vm2193, %v2282, %v2283
        %v2285 = vrot.slane %v2156, 5
        %v2286 = vrot.slane %v2285, 4
        %v2287 = vrot.slane %v1124, 5
        %v2288 = vsel %vm2193, %v2286, %v2287
        %v2289 = vrot.slane %v2287, 4
        %v2290 = vrot.slane %v1158, 5
        %v2291 = vsel %vm2193, %v2289, %v2290
        %v2292 = vrot.slane %v2157, 5
        %v2293 = vrot.slane %v2292, 4
        %v2294 = vrot.slane %v1126, 5
        %v2295 = vsel %vm2193, %v2293, %v2294
        %v2296 = vrot.slane %v2294, 4
        %v2297 = vrot.slane %v1159, 5
        %v2298 = vsel %vm2193, %v2296, %v2297
        %v2299 = vrot.slane %v2158, 5
        %v2300 = vrot.slane %v2299, 4
        %v2301 = vrot.slane %v1128, 5
        %v2302 = vsel %vm2193, %v2300, %v2301
        %v2303 = vrot.slane %v2301, 4
        %v2304 = vrot.slane %v1160, 5
        %v2305 = vsel %vm2193, %v2303, %v2304
        %s2306 = scalar_lea.vmem %s1, 128
        %v2307 = vld [vmem:[%s2306] sm:$0xf]
        %v2308 = vld [vmem:[%s2306 + $0x4] sm:$0xf]
        %v2309 = vld [vmem:[%s2306 + $0x8] sm:$0xf]
        %v2310 = vld [vmem:[%s2306 + $0xc] sm:$0xf]
        %v2311 = vld [vmem:[%s2306 + $0x10] sm:$0xf]
        %v2312 = vld [vmem:[%s2306 + $0x14] sm:$0xf]
        %v2313 = vld [vmem:[%s2306 + $0x18] sm:$0xf]
        %v2314 = vld [vmem:[%s2306 + $0x1c] sm:$0xf]
        %v2315 = vld [vmem:[%s2306 + $0x20] sm:$0xf]
        %v2316 = vld [vmem:[%s2306 + $0x24] sm:$0xf]
        %v2317 = vld [vmem:[%s2306 + $0x28] sm:$0xf]
        %v2318 = vld [vmem:[%s2306 + $0x2c] sm:$0xf]
        %v2319 = vld [vmem:[%s2306 + $0x30] sm:$0xf]
        %v2320 = vld [vmem:[%s2306 + $0x34] sm:$0xf]
        %v2321 = vld [vmem:[%s2306 + $0x38] sm:$0xf]
        %v2322 = vld [vmem:[%s2306 + $0x3c] sm:$0xf]
        %v2323 = vunpack.c.l.b16 %v2197
        %v2324 = vunpack.c.l.b16 %v2200
        %v2325 = vunpack.c.l.b16 %v2204
        %v2326 = vunpack.c.l.b16 %v2207
        %v2327 = vunpack.c.l.b16 %v2211
        %v2328 = vunpack.c.l.b16 %v2214
        %v2329 = vunpack.c.l.b16 %v2218
        %v2330 = vunpack.c.l.b16 %v2221
        %v2331 = vunpack.c.l.b16 %v2225
        %v2332 = vunpack.c.l.b16 %v2228
        %v2333 = vunpack.c.l.b16 %v2232
        %v2334 = vunpack.c.l.b16 %v2235
        %v2335 = vunpack.c.l.b16 %v2239
        %v2336 = vunpack.c.l.b16 %v2242
        %v2337 = vunpack.c.l.b16 %v2246
        %v2338 = vunpack.c.l.b16 %v2249
        %v2339 = vunpack.c.l.b16 %v2253
        %v2340 = vunpack.c.l.b16 %v2256
        %v2341 = vunpack.c.l.b16 %v2260
        %v2342 = vunpack.c.l.b16 %v2263
        %v2343 = vunpack.c.l.b16 %v2267
        %v2344 = vunpack.c.l.b16 %v2270
        %v2345 = vunpack.c.l.b16 %v2274
        %v2346 = vunpack.c.l.b16 %v2277
        %v2347 = vunpack.c.l.b16 %v2281
        %v2348 = vunpack.c.l.b16 %v2284
        %v2349 = vunpack.c.l.b16 %v2288
        %v2350 = vunpack.c.l.b16 %v2291
        %v2351 = vunpack.c.l.b16 %v2295
        %v2352 = vunpack.c.l.b16 %v2298
        %v2353 = vunpack.c.l.b16 %v2302
        %v2354 = vunpack.c.l.b16 %v2305
        %v2355 = vpack.c.b16 %v2324, %v2323
        %v2356 = vpack.c.b16 %v2326, %v2325
        %v2357 = vpack.c.b16 %v2328, %v2327
        %v2358 = vpack.c.b16 %v2330, %v2329
        %v2359 = vpack.c.b16 %v2332, %v2331
        %v2360 = vpack.c.b16 %v2334, %v2333
        %v2361 = vpack.c.b16 %v2336, %v2335
        %v2362 = vpack.c.b16 %v2338, %v2337
        %v2363 = vpack.c.b16 %v2340, %v2339
        %v2364 = vpack.c.b16 %v2342, %v2341
        %v2365 = vpack.c.b16 %v2344, %v2343
        %v2366 = vpack.c.b16 %v2346, %v2345
        %v2367 = vpack.c.b16 %v2348, %v2347
        %v2368 = vpack.c.b16 %v2350, %v2349
        %v2369 = vpack.c.b16 %v2352, %v2351
        %v2370 = vpack.c.b16 %v2354, %v2353
        %v2403 = vunpack.c.l.b16 %v2307
        %v2404 = vunpack.c.l.b16 %v2308
        %v2405 = vunpack.c.l.b16 %v2309
        %v2406 = vunpack.c.l.b16 %v2310
        %v2407 = vunpack.c.l.b16 %v2311
        %v2408 = vunpack.c.l.b16 %v2312
        %v2409 = vunpack.c.l.b16 %v2313
        %v2410 = vunpack.c.l.b16 %v2314
        %v2411 = vunpack.c.l.b16 %v2315
        %v2412 = vunpack.c.l.b16 %v2316
        %v2413 = vunpack.c.l.b16 %v2317
        %v2414 = vunpack.c.l.b16 %v2318
        %v2415 = vunpack.c.l.b16 %v2319
        %v2416 = vunpack.c.l.b16 %v2320
        %v2417 = vunpack.c.l.b16 %v2321
        %v2418 = vunpack.c.l.b16 %v2322
        %v2419 = vpack.c.b16 %v2404, %v2403
        %v2420 = vpack.c.b16 %v2406, %v2405
        %v2421 = vpack.c.b16 %v2408, %v2407
        %v2422 = vpack.c.b16 %v2410, %v2409
        %v2423 = vpack.c.b16 %v2412, %v2411
        %v2424 = vpack.c.b16 %v2414, %v2413
        %v2425 = vpack.c.b16 %v2416, %v2415
        %v2426 = vpack.c.b16 %v2418, %v2417
        %2435 = vmatprep.subr.bf16.mxu0 0
        %2436 = vmatpush1.bf16.msra.mxu0 %v2419
        %2437 = vmatprep.subr.bf16.mxu0 0
        %2438 = vmatpush1.bf16.msra.mxu0 %v2420
        %2439 = vmatprep.subr.bf16.mxu0 0
        %2440 = vmatpush1.bf16.msra.mxu0 %v2421
        %2441 = vmatprep.subr.bf16.mxu0 0
        %2442 = vmatpush1.bf16.msra.mxu0 %v2422
        %2443 = vmatprep.subr.bf16.mxu0 0
        %2444 = vmatpush1.bf16.msra.mxu0 %v2423
        %2445 = vmatprep.subr.bf16.mxu0 0
        %2446 = vmatpush1.bf16.msra.mxu0 %v2424
        %2447 = vmatprep.subr.bf16.mxu0 0
        %2448 = vmatpush1.bf16.msra.mxu0 %v2425
        %2449 = vmatprep.subr.bf16.mxu0 0
        %2450 = vmatpush1.bf16.msra.mxu0 %v2426
        %2451 = vmatprep.subr.bf16.mxu0 0
        %2452 = vmatpush1.bf16.msra.mxu0 0
        %2453 = vmatprep.subr.bf16.mxu0 0
        %2454 = vmatpush1.bf16.msra.mxu0 0
        %2455 = vmatprep.subr.bf16.mxu0 0
        %2456 = vmatpush1.bf16.msra.mxu0 0
        %2457 = vmatprep.subr.bf16.mxu0 0
        %2458 = vmatpush1.bf16.msra.mxu0 0
        %2459 = vmatprep.subr.bf16.mxu0 0
        %2460 = vmatpush1.bf16.msra.mxu0 0
        %2461 = vmatprep.subr.bf16.mxu0 0
        %2462 = vmatpush1.bf16.msra.mxu0 0
        %2463 = vmatprep.subr.bf16.mxu0 0
        %2464 = vmatpush1.bf16.msra.mxu0 0
        %2465 = vmatprep.subr.bf16.mxu0 0
        %2466 = vmatpush1.bf16.msra.mxu0 0
        %2467 = vmatprep.mubr.bf16.mxu0 0
        %2468 = vmatmul.mubr.bf16.gmra.mrb[0].mxu0 %v2355
        %v2469 = vpop.f32.mrb[0].mxu0
        %v2470 = vadd.f32 0.0, %v2469
        %v2471 = vpop.f32.mrb[0].mxu0
        %v2472 = vpop.f32.mrb[0].mxu0
        %v2473 = vadd.f32 0.0, %v2472
        %v2474 = vpop.f32.mrb[0].mxu0
        %2475 = vmatprep.mubr.bf16.mxu0 0
        %2476 = vmatmul.mubr.bf16.gmra.mrb[0].mxu0 %v2356
        %v2477 = vpop.f32.mrb[0].mxu0
        %v2478 = vadd.f32 0.0, %v2477
        %v2479 = vpop.f32.mrb[0].mxu0
        %v2480 = vpop.f32.mrb[0].mxu0
        %v2481 = vadd.f32 0.0, %v2480
        %v2482 = vpop.f32.mrb[0].mxu0
        %2483 = vmatprep.mubr.bf16.mxu0 0
        %2484 = vmatmul.mubr.bf16.gmra.mrb[0].mxu0 %v2357
        %v2485 = vpop.f32.mrb[0].mxu0
        %v2486 = vadd.f32 0.0, %v2485
        %v2487 = vpop.f32.mrb[0].mxu0
        %v2488 = vpop.f32.mrb[0].mxu0
        %v2489 = vadd.f32 0.0, %v2488
        %v2490 = vpop.f32.mrb[0].mxu0
        %2491 = vmatprep.mubr.bf16.mxu0 0
        %2492 = vmatmul.mubr.bf16.gmra.mrb[0].mxu0 %v2358
        %v2493 = vpop.f32.mrb[0].mxu0
        %v2494 = vadd.f32 0.0, %v2493
        %v2495 = vpop.f32.mrb[0].mxu0
        %v2496 = vpop.f32.mrb[0].mxu0
        %v2497 = vadd.f32 0.0, %v2496
        %v2498 = vpop.f32.mrb[0].mxu0
        %2499 = vmatprep.mubr.bf16.mxu0 0
        %2500 = vmatmul.mubr.bf16.gmra.mrb[0].mxu0 %v2359
        %v2501 = vpop.f32.mrb[0].mxu0
        %v2502 = vadd.f32 0.0, %v2501
        %v2503 = vpop.f32.mrb[0].mxu0
        %v2504 = vpop.f32.mrb[0].mxu0
        %v2505 = vadd.f32 0.0, %v2504
        %v2506 = vpop.f32.mrb[0].mxu0
        %2507 = vmatprep.mubr.bf16.mxu0 0
        %2508 = vmatmul.mubr.bf16.gmra.mrb[0].mxu0 %v2360
        %v2509 = vpop.f32.mrb[0].mxu0
        %v2510 = vadd.f32 0.0, %v2509
        %v2511 = vpop.f32.mrb[0].mxu0
        %v2512 = vpop.f32.mrb[0].mxu0
        %v2513 = vadd.f32 0.0, %v2512
        %v2514 = vpop.f32.mrb[0].mxu0
        %2515 = vmatprep.mubr.bf16.mxu0 0
        %2516 = vmatmul.mubr.bf16.gmra.mrb[0].mxu0 %v2361
        %v2517 = vpop.f32.mrb[0].mxu0
        %v2518 = vadd.f32 0.0, %v2517
        %v2519 = vpop.f32.mrb[0].mxu0
        %v2520 = vpop.f32.mrb[0].mxu0
        %v2521 = vadd.f32 0.0, %v2520
        %v2522 = vpop.f32.mrb[0].mxu0
        %2523 = vmatprep.mubr.bf16.mxu0 0
        %2524 = vmatmul.mubr.bf16.gmra.mrb[0].mxu0 %v2362
        %v2525 = vpop.f32.mrb[0].mxu0
        %v2526 = vadd.f32 0.0, %v2525
        %v2527 = vpop.f32.mrb[0].mxu0
        %v2528 = vpop.f32.mrb[0].mxu0
        %v2529 = vadd.f32 0.0, %v2528
        %v2530 = vpop.f32.mrb[0].mxu0
        %2531 = vmatprep.mubr.bf16.mxu0 0
        %2532 = vmatmul.mubr.bf16.gmra.mrb[0].mxu0 %v2363
        %v2533 = vpop.f32.mrb[0].mxu0
        %v2534 = vadd.f32 0.0, %v2533
        %v2535 = vpop.f32.mrb[0].mxu0
        %v2536 = vpop.f32.mrb[0].mxu0
        %v2537 = vadd.f32 0.0, %v2536
        %v2538 = vpop.f32.mrb[0].mxu0
        %2539 = vmatprep.mubr.bf16.mxu0 0
        %2540 = vmatmul.mubr.bf16.gmra.mrb[0].mxu0 %v2364
        %v2541 = vpop.f32.mrb[0].mxu0
        %v2542 = vadd.f32 0.0, %v2541
        %v2543 = vpop.f32.mrb[0].mxu0
        %v2544 = vpop.f32.mrb[0].mxu0
        %v2545 = vadd.f32 0.0, %v2544
        %v2546 = vpop.f32.mrb[0].mxu0
        %2547 = vmatprep.mubr.bf16.mxu0 0
        %2548 = vmatmul.mubr.bf16.gmra.mrb[0].mxu0 %v2365
        %v2549 = vpop.f32.mrb[0].mxu0
        %v2550 = vadd.f32 0.0, %v2549
        %v2551 = vpop.f32.mrb[0].mxu0
        %v2552 = vpop.f32.mrb[0].mxu0
        %v2553 = vadd.f32 0.0, %v2552
        %v2554 = vpop.f32.mrb[0].mxu0
        %2555 = vmatprep.mubr.bf16.mxu0 0
        %2556 = vmatmul.mubr.bf16.gmra.mrb[0].mxu0 %v2366
        %v2557 = vpop.f32.mrb[0].mxu0
        %v2558 = vadd.f32 0.0, %v2557
        %v2559 = vpop.f32.mrb[0].mxu0
        %v2560 = vpop.f32.mrb[0].mxu0
        %v2561 = vadd.f32 0.0, %v2560
        %v2562 = vpop.f32.mrb[0].mxu0
        %2563 = vmatprep.mubr.bf16.mxu0 0
        %2564 = vmatmul.mubr.bf16.gmra.mrb[0].mxu0 %v2367
        %v2565 = vpop.f32.mrb[0].mxu0
        %v2566 = vadd.f32 0.0, %v2565
        %v2567 = vpop.f32.mrb[0].mxu0
        %v2568 = vpop.f32.mrb[0].mxu0
        %v2569 = vadd.f32 0.0, %v2568
        %v2570 = vpop.f32.mrb[0].mxu0
        %2571 = vmatprep.mubr.bf16.mxu0 0
        %2572 = vmatmul.mubr.bf16.gmra.mrb[0].mxu0 %v2368
        %v2573 = vpop.f32.mrb[0].mxu0
        %v2574 = vadd.f32 0.0, %v2573
        %v2575 = vpop.f32.mrb[0].mxu0
        %v2576 = vpop.f32.mrb[0].mxu0
        %v2577 = vadd.f32 0.0, %v2576
        %v2578 = vpop.f32.mrb[0].mxu0
        %2579 = vmatprep.mubr.bf16.mxu0 0
        %2580 = vmatmul.mubr.bf16.gmra.mrb[0].mxu0 %v2369
        %v2581 = vpop.f32.mrb[0].mxu0
        %v2582 = vadd.f32 0.0, %v2581
        %v2583 = vpop.f32.mrb[0].mxu0
        %v2584 = vpop.f32.mrb[0].mxu0
        %v2585 = vadd.f32 0.0, %v2584
        %v2586 = vpop.f32.mrb[0].mxu0
        %2587 = vmatprep.mubr.bf16.mxu0 0
        %2588 = vmatmul.mubr.bf16.gmra.mrb[0].mxu0 %v2370
        %v2589 = vpop.f32.mrb[0].mxu0
        %v2590 = vadd.f32 0.0, %v2589
        %v2591 = vpop.f32.mrb[0].mxu0
        %v2592 = vpop.f32.mrb[0].mxu0
        %v2593 = vadd.f32 0.0, %v2592
        %v2594 = vpop.f32.mrb[0].mxu0
        %2595 = vdwg.mxu0
        %v2596 = vadd.f32 %v2017, %v2470
        %v2597 = vadd.f32 %v2020, %v2473
        %v2598 = vadd.f32 %v2025, %v2478
        %v2599 = vadd.f32 %v2028, %v2481
        %v2600 = vadd.f32 %v2033, %v2486
        %v2601 = vadd.f32 %v2036, %v2489
        %v2602 = vadd.f32 %v2041, %v2494
        %v2603 = vadd.f32 %v2044, %v2497
        %v2604 = vadd.f32 %v2049, %v2502
        %v2605 = vadd.f32 %v2052, %v2505
        %v2606 = vadd.f32 %v2057, %v2510
        %v2607 = vadd.f32 %v2060, %v2513
        %v2608 = vadd.f32 %v2065, %v2518
        %v2609 = vadd.f32 %v2068, %v2521
        %v2610 = vadd.f32 %v2073, %v2526
        %v2611 = vadd.f32 %v2076, %v2529
        %v2612 = vadd.f32 %v2081, %v2534
        %v2613 = vadd.f32 %v2084, %v2537
        %v2614 = vadd.f32 %v2089, %v2542
        %v2615 = vadd.f32 %v2092, %v2545
        %v2616 = vadd.f32 %v2097, %v2550
        %v2617 = vadd.f32 %v2100, %v2553
        %v2618 = vadd.f32 %v2105, %v2558
        %v2619 = vadd.f32 %v2108, %v2561
        %v2620 = vadd.f32 %v2113, %v2566
        %v2621 = vadd.f32 %v2116, %v2569
        %v2622 = vadd.f32 %v2121, %v2574
        %v2623 = vadd.f32 %v2124, %v2577
        %v2624 = vadd.f32 %v2129, %v2582
        %v2625 = vadd.f32 %v2132, %v2585
        %v2626 = vadd.f32 %v2137, %v2590
        %v2627 = vadd.f32 %v2140, %v2593
        %v2628 = vld [vmem:[%s675] sm:$0xf]
        %v2629 = vld [vmem:[%s675 + $0x4] sm:$0xf]
        %v2630 = vld [vmem:[%s675 + $0xc] sm:$0xf]
        %v2631 = vld [vmem:[%s675 + $0x10] sm:$0xf]
        %v2632 = vld [vmem:[%s675 + $0x18] sm:$0xf]
        %v2633 = vld [vmem:[%s675 + $0x1c] sm:$0xf]
        %v2634 = vld [vmem:[%s675 + $0x24] sm:$0xf]
        %v2635 = vld [vmem:[%s675 + $0x28] sm:$0xf]
        %v2636 = vld [vmem:[%s675 + $0x30] sm:$0xf]
        %v2637 = vld [vmem:[%s675 + $0x34] sm:$0xf]
        %v2638 = vld [vmem:[%s675 + $0x3c] sm:$0xf]
        %v2639 = vld [vmem:[%s675 + $0x40] sm:$0xf]
        %v2640 = vld [vmem:[%s675 + $0x48] sm:$0xf]
        %v2641 = vld [vmem:[%s675 + $0x4c] sm:$0xf]
        %v2642 = vld [vmem:[%s675 + $0x54] sm:$0xf]
        %v2643 = vld [vmem:[%s675 + $0x58] sm:$0xf]
        %v2644 = vld [vmem:[%s675 + $0x60] sm:$0xf]
        %v2645 = vld [vmem:[%s675 + $0x64] sm:$0xf]
        %v2646 = vld [vmem:[%s675 + $0x6c] sm:$0xf]
        %v2647 = vld [vmem:[%s675 + $0x70] sm:$0xf]
        %v2648 = vld [vmem:[%s675 + $0x78] sm:$0xf]
        %v2649 = vld [vmem:[%s675 + $0x7c] sm:$0xf]
        %v2650 = vld [vmem:[%s675 + $0x84] sm:$0xf]
        %v2651 = vld [vmem:[%s675 + $0x88] sm:$0xf]
        %v2652 = vld [vmem:[%s675 + $0x90] sm:$0xf]
        %v2653 = vld [vmem:[%s675 + $0x94] sm:$0xf]
        %v2654 = vld [vmem:[%s675 + $0x9c] sm:$0xf]
        %v2655 = vld [vmem:[%s675 + $0xa0] sm:$0xf]
        %v2656 = vld [vmem:[%s675 + $0xa8] sm:$0xf]
        %v2657 = vld [vmem:[%s675 + $0xac] sm:$0xf]
        %v2658 = vld [vmem:[%s675 + $0xb4] sm:$0xf]
        %v2659 = vld [vmem:[%s675 + $0xb8] sm:$0xf]
        %s2660 = scalar_lea.vmem %s1, 192
        %v2661 = vld [vmem:[%s2660] sm:$0xf]
        %v2662 = vld [vmem:[%s2660 + $0x4] sm:$0xf]
        %v2663 = vld [vmem:[%s2660 + $0x8] sm:$0xf]
        %v2664 = vld [vmem:[%s2660 + $0xc] sm:$0xf]
        %v2665 = vld [vmem:[%s2660 + $0x10] sm:$0xf]
        %v2666 = vld [vmem:[%s2660 + $0x14] sm:$0xf]
        %v2667 = vld [vmem:[%s2660 + $0x18] sm:$0xf]
        %v2668 = vld [vmem:[%s2660 + $0x1c] sm:$0xf]
        %v2669 = vld [vmem:[%s2660 + $0x20] sm:$0xf]
        %v2670 = vld [vmem:[%s2660 + $0x24] sm:$0xf]
        %v2671 = vld [vmem:[%s2660 + $0x28] sm:$0xf]
        %v2672 = vld [vmem:[%s2660 + $0x2c] sm:$0xf]
        %v2673 = vld [vmem:[%s2660 + $0x30] sm:$0xf]
        %v2674 = vld [vmem:[%s2660 + $0x34] sm:$0xf]
        %v2675 = vld [vmem:[%s2660 + $0x38] sm:$0xf]
        %v2676 = vld [vmem:[%s2660 + $0x3c] sm:$0xf]
        %v2709 = vunpack.c.l.b16 %v2628
        %v2710 = vunpack.c.l.b16 %v2629
        %v2711 = vunpack.c.l.b16 %v2630
        %v2712 = vunpack.c.l.b16 %v2631
        %v2713 = vunpack.c.l.b16 %v2632
        %v2714 = vunpack.c.l.b16 %v2633
        %v2715 = vunpack.c.l.b16 %v2634
        %v2716 = vunpack.c.l.b16 %v2635
        %v2717 = vunpack.c.l.b16 %v2636
        %v2718 = vunpack.c.l.b16 %v2637
        %v2719 = vunpack.c.l.b16 %v2638
        %v2720 = vunpack.c.l.b16 %v2639
        %v2721 = vunpack.c.l.b16 %v2640
        %v2722 = vunpack.c.l.b16 %v2641
        %v2723 = vunpack.c.l.b16 %v2642
        %v2724 = vunpack.c.l.b16 %v2643
        %v2725 = vunpack.c.l.b16 %v2644
        %v2726 = vunpack.c.l.b16 %v2645
        %v2727 = vunpack.c.l.b16 %v2646
        %v2728 = vunpack.c.l.b16 %v2647
        %v2729 = vunpack.c.l.b16 %v2648
        %v2730 = vunpack.c.l.b16 %v2649
        %v2731 = vunpack.c.l.b16 %v2650
        %v2732 = vunpack.c.l.b16 %v2651
        %v2733 = vunpack.c.l.b16 %v2652
        %v2734 = vunpack.c.l.b16 %v2653
        %v2735 = vunpack.c.l.b16 %v2654
        %v2736 = vunpack.c.l.b16 %v2655
        %v2737 = vunpack.c.l.b16 %v2656
        %v2738 = vunpack.c.l.b16 %v2657
        %v2739 = vunpack.c.l.b16 %v2658
        %v2740 = vunpack.c.l.b16 %v2659
        %v2741 = vpack.c.b16 %v2710, %v2709
        %v2742 = vpack.c.b16 %v2712, %v2711
        %v2743 = vpack.c.b16 %v2714, %v2713
        %v2744 = vpack.c.b16 %v2716, %v2715
        %v2745 = vpack.c.b16 %v2718, %v2717
        %v2746 = vpack.c.b16 %v2720, %v2719
        %v2747 = vpack.c.b16 %v2722, %v2721
        %v2748 = vpack.c.b16 %v2724, %v2723
        %v2749 = vpack.c.b16 %v2726, %v2725
        %v2750 = vpack.c.b16 %v2728, %v2727
        %v2751 = vpack.c.b16 %v2730, %v2729
        %v2752 = vpack.c.b16 %v2732, %v2731
        %v2753 = vpack.c.b16 %v2734, %v2733
        %v2754 = vpack.c.b16 %v2736, %v2735
        %v2755 = vpack.c.b16 %v2738, %v2737
        %v2756 = vpack.c.b16 %v2740, %v2739
        %v2789 = vunpack.c.l.b16 %v2661
        %v2790 = vunpack.c.l.b16 %v2662
        %v2791 = vunpack.c.l.b16 %v2663
        %v2792 = vunpack.c.l.b16 %v2664
        %v2793 = vunpack.c.l.b16 %v2665
        %v2794 = vunpack.c.l.b16 %v2666
        %v2795 = vunpack.c.l.b16 %v2667
        %v2796 = vunpack.c.l.b16 %v2668
        %v2797 = vunpack.c.l.b16 %v2669
        %v2798 = vunpack.c.l.b16 %v2670
        %v2799 = vunpack.c.l.b16 %v2671
        %v2800 = vunpack.c.l.b16 %v2672
        %v2801 = vunpack.c.l.b16 %v2673
        %v2802 = vunpack.c.l.b16 %v2674
        %v2803 = vunpack.c.l.b16 %v2675
        %v2804 = vunpack.c.l.b16 %v2676
        %v2805 = vpack.c.b16 %v2790, %v2789
        %v2806 = vpack.c.b16 %v2792, %v2791
        %v2807 = vpack.c.b16 %v2794, %v2793
        %v2808 = vpack.c.b16 %v2796, %v2795
        %v2809 = vpack.c.b16 %v2798, %v2797
        %v2810 = vpack.c.b16 %v2800, %v2799
        %v2811 = vpack.c.b16 %v2802, %v2801
        %v2812 = vpack.c.b16 %v2804, %v2803
        %2821 = vmatprep.subr.bf16.mxu0 0
        %2822 = vmatpush1.bf16.msra.mxu0 %v2805
        %2823 = vmatprep.subr.bf16.mxu0 0
        %2824 = vmatpush1.bf16.msra.mxu0 %v2806
        %2825 = vmatprep.subr.bf16.mxu0 0
        %2826 = vmatpush1.bf16.msra.mxu0 %v2807
        %2827 = vmatprep.subr.bf16.mxu0 0
        %2828 = vmatpush1.bf16.msra.mxu0 %v2808
        %2829 = vmatprep.subr.bf16.mxu0 0
        %2830 = vmatpush1.bf16.msra.mxu0 %v2809
        %2831 = vmatprep.subr.bf16.mxu0 0
        %2832 = vmatpush1.bf16.msra.mxu0 %v2810
        %2833 = vmatprep.subr.bf16.mxu0 0
        %2834 = vmatpush1.bf16.msra.mxu0 %v2811
        %2835 = vmatprep.subr.bf16.mxu0 0
        %2836 = vmatpush1.bf16.msra.mxu0 %v2812
        %2837 = vmatprep.subr.bf16.mxu0 0
        %2838 = vmatpush1.bf16.msra.mxu0 0
        %2839 = vmatprep.subr.bf16.mxu0 0
        %2840 = vmatpush1.bf16.msra.mxu0 0
        %2841 = vmatprep.subr.bf16.mxu0 0
        %2842 = vmatpush1.bf16.msra.mxu0 0
        %2843 = vmatprep.subr.bf16.mxu0 0
        %2844 = vmatpush1.bf16.msra.mxu0 0
        %2845 = vmatprep.subr.bf16.mxu0 0
        %2846 = vmatpush1.bf16.msra.mxu0 0
        %2847 = vmatprep.subr.bf16.mxu0 0
        %2848 = vmatpush1.bf16.msra.mxu0 0
        %2849 = vmatprep.subr.bf16.mxu0 0
        %2850 = vmatpush1.bf16.msra.mxu0 0
        %2851 = vmatprep.subr.bf16.mxu0 0
        %2852 = vmatpush1.bf16.msra.mxu0 0
        %2853 = vmatprep.mubr.bf16.mxu0 0
        %2854 = vmatmul.mubr.bf16.gmra.mrb[0].mxu0 %v2741
        %v2855 = vpop.f32.mrb[0].mxu0
        %v2856 = vadd.f32 0.0, %v2855
        %v2857 = vpop.f32.mrb[0].mxu0
        %v2858 = vpop.f32.mrb[0].mxu0
        %v2859 = vadd.f32 0.0, %v2858
        %v2860 = vpop.f32.mrb[0].mxu0
        %2861 = vmatprep.mubr.bf16.mxu0 0
        %2862 = vmatmul.mubr.bf16.gmra.mrb[0].mxu0 %v2742
        %v2863 = vpop.f32.mrb[0].mxu0
        %v2864 = vadd.f32 0.0, %v2863
        %v2865 = vpop.f32.mrb[0].mxu0
        %v2866 = vpop.f32.mrb[0].mxu0
        %v2867 = vadd.f32 0.0, %v2866
        %v2868 = vpop.f32.mrb[0].mxu0
        %2869 = vmatprep.mubr.bf16.mxu0 0
        %2870 = vmatmul.mubr.bf16.gmra.mrb[0].mxu0 %v2743
        %v2871 = vpop.f32.mrb[0].mxu0
        %v2872 = vadd.f32 0.0, %v2871
        %v2873 = vpop.f32.mrb[0].mxu0
        %v2874 = vpop.f32.mrb[0].mxu0
        %v2875 = vadd.f32 0.0, %v2874
        %v2876 = vpop.f32.mrb[0].mxu0
        %2877 = vmatprep.mubr.bf16.mxu0 0
        %2878 = vmatmul.mubr.bf16.gmra.mrb[0].mxu0 %v2744
        %v2879 = vpop.f32.mrb[0].mxu0
        %v2880 = vadd.f32 0.0, %v2879
        %v2881 = vpop.f32.mrb[0].mxu0
        %v2882 = vpop.f32.mrb[0].mxu0
        %v2883 = vadd.f32 0.0, %v2882
        %v2884 = vpop.f32.mrb[0].mxu0
        %2885 = vmatprep.mubr.bf16.mxu0 0
        %2886 = vmatmul.mubr.bf16.gmra.mrb[0].mxu0 %v2745
        %v2887 = vpop.f32.mrb[0].mxu0
        %v2888 = vadd.f32 0.0, %v2887
        %v2889 = vpop.f32.mrb[0].mxu0
        %v2890 = vpop.f32.mrb[0].mxu0
        %v2891 = vadd.f32 0.0, %v2890
        %v2892 = vpop.f32.mrb[0].mxu0
        %2893 = vmatprep.mubr.bf16.mxu0 0
        %2894 = vmatmul.mubr.bf16.gmra.mrb[0].mxu0 %v2746
        %v2895 = vpop.f32.mrb[0].mxu0
        %v2896 = vadd.f32 0.0, %v2895
        %v2897 = vpop.f32.mrb[0].mxu0
        %v2898 = vpop.f32.mrb[0].mxu0
        %v2899 = vadd.f32 0.0, %v2898
        %v2900 = vpop.f32.mrb[0].mxu0
        %2901 = vmatprep.mubr.bf16.mxu0 0
        %2902 = vmatmul.mubr.bf16.gmra.mrb[0].mxu0 %v2747
        %v2903 = vpop.f32.mrb[0].mxu0
        %v2904 = vadd.f32 0.0, %v2903
        %v2905 = vpop.f32.mrb[0].mxu0
        %v2906 = vpop.f32.mrb[0].mxu0
        %v2907 = vadd.f32 0.0, %v2906
        %v2908 = vpop.f32.mrb[0].mxu0
        %2909 = vmatprep.mubr.bf16.mxu0 0
        %2910 = vmatmul.mubr.bf16.gmra.mrb[0].mxu0 %v2748
        %v2911 = vpop.f32.mrb[0].mxu0
        %v2912 = vadd.f32 0.0, %v2911
        %v2913 = vpop.f32.mrb[0].mxu0
        %v2914 = vpop.f32.mrb[0].mxu0
        %v2915 = vadd.f32 0.0, %v2914
        %v2916 = vpop.f32.mrb[0].mxu0
        %2917 = vmatprep.mubr.bf16.mxu0 0
        %2918 = vmatmul.mubr.bf16.gmra.mrb[0].mxu0 %v2749
        %v2919 = vpop.f32.mrb[0].mxu0
        %v2920 = vadd.f32 0.0, %v2919
        %v2921 = vpop.f32.mrb[0].mxu0
        %v2922 = vpop.f32.mrb[0].mxu0
        %v2923 = vadd.f32 0.0, %v2922
        %v2924 = vpop.f32.mrb[0].mxu0
        %2925 = vmatprep.mubr.bf16.mxu0 0
        %2926 = vmatmul.mubr.bf16.gmra.mrb[0].mxu0 %v2750
        %v2927 = vpop.f32.mrb[0].mxu0
        %v2928 = vadd.f32 0.0, %v2927
        %v2929 = vpop.f32.mrb[0].mxu0
        %v2930 = vpop.f32.mrb[0].mxu0
        %v2931 = vadd.f32 0.0, %v2930
        %v2932 = vpop.f32.mrb[0].mxu0
        %2933 = vmatprep.mubr.bf16.mxu0 0
        %2934 = vmatmul.mubr.bf16.gmra.mrb[0].mxu0 %v2751
        %v2935 = vpop.f32.mrb[0].mxu0
        %v2936 = vadd.f32 0.0, %v2935
        %v2937 = vpop.f32.mrb[0].mxu0
        %v2938 = vpop.f32.mrb[0].mxu0
        %v2939 = vadd.f32 0.0, %v2938
        %v2940 = vpop.f32.mrb[0].mxu0
        %2941 = vmatprep.mubr.bf16.mxu0 0
        %2942 = vmatmul.mubr.bf16.gmra.mrb[0].mxu0 %v2752
        %v2943 = vpop.f32.mrb[0].mxu0
        %v2944 = vadd.f32 0.0, %v2943
        %v2945 = vpop.f32.mrb[0].mxu0
        %v2946 = vpop.f32.mrb[0].mxu0
        %v2947 = vadd.f32 0.0, %v2946
        %v2948 = vpop.f32.mrb[0].mxu0
        %2949 = vmatprep.mubr.bf16.mxu0 0
        %2950 = vmatmul.mubr.bf16.gmra.mrb[0].mxu0 %v2753
        %v2951 = vpop.f32.mrb[0].mxu0
        %v2952 = vadd.f32 0.0, %v2951
        %v2953 = vpop.f32.mrb[0].mxu0
        %v2954 = vpop.f32.mrb[0].mxu0
        %v2955 = vadd.f32 0.0, %v2954
        %v2956 = vpop.f32.mrb[0].mxu0
        %2957 = vmatprep.mubr.bf16.mxu0 0
        %2958 = vmatmul.mubr.bf16.gmra.mrb[0].mxu0 %v2754
        %v2959 = vpop.f32.mrb[0].mxu0
        %v2960 = vadd.f32 0.0, %v2959
        %v2961 = vpop.f32.mrb[0].mxu0
        %v2962 = vpop.f32.mrb[0].mxu0
        %v2963 = vadd.f32 0.0, %v2962
        %v2964 = vpop.f32.mrb[0].mxu0
        %2965 = vmatprep.mubr.bf16.mxu0 0
        %2966 = vmatmul.mubr.bf16.gmra.mrb[0].mxu0 %v2755
        %v2967 = vpop.f32.mrb[0].mxu0
        %v2968 = vadd.f32 0.0, %v2967
        %v2969 = vpop.f32.mrb[0].mxu0
        %v2970 = vpop.f32.mrb[0].mxu0
        %v2971 = vadd.f32 0.0, %v2970
        %v2972 = vpop.f32.mrb[0].mxu0
        %2973 = vmatprep.mubr.bf16.mxu0 0
        %2974 = vmatmul.mubr.bf16.gmra.mrb[0].mxu0 %v2756
        %v2975 = vpop.f32.mrb[0].mxu0
        %v2976 = vadd.f32 0.0, %v2975
        %v2977 = vpop.f32.mrb[0].mxu0
        %v2978 = vpop.f32.mrb[0].mxu0
        %v2979 = vadd.f32 0.0, %v2978
        %v2980 = vpop.f32.mrb[0].mxu0
        %2981 = vdwg.mxu0
        %v2982 = vadd.f32 %v2596, %v2856
        %v2983 = vadd.f32 %v2597, %v2859
        %v2984 = vadd.f32 %v2598, %v2864
        %v2985 = vadd.f32 %v2599, %v2867
        %v2986 = vadd.f32 %v2600, %v2872
        %v2987 = vadd.f32 %v2601, %v2875
        %v2988 = vadd.f32 %v2602, %v2880
        %v2989 = vadd.f32 %v2603, %v2883
        %v2990 = vadd.f32 %v2604, %v2888
        %v2991 = vadd.f32 %v2605, %v2891
        %v2992 = vadd.f32 %v2606, %v2896
        %v2993 = vadd.f32 %v2607, %v2899
        %v2994 = vadd.f32 %v2608, %v2904
        %v2995 = vadd.f32 %v2609, %v2907
        %v2996 = vadd.f32 %v2610, %v2912
        %v2997 = vadd.f32 %v2611, %v2915
        %v2998 = vadd.f32 %v2612, %v2920
        %v2999 = vadd.f32 %v2613, %v2923
        %v3000 = vadd.f32 %v2614, %v2928
        %v3001 = vadd.f32 %v2615, %v2931
        %v3002 = vadd.f32 %v2616, %v2936
        %v3003 = vadd.f32 %v2617, %v2939
        %v3004 = vadd.f32 %v2618, %v2944
        %v3005 = vadd.f32 %v2619, %v2947
        %v3006 = vadd.f32 %v2620, %v2952
        %v3007 = vadd.f32 %v2621, %v2955
        %v3008 = vadd.f32 %v2622, %v2960
        %v3009 = vadd.f32 %v2623, %v2963
        %v3010 = vadd.f32 %v2624, %v2968
        %v3011 = vadd.f32 %v2625, %v2971
        %v3012 = vadd.f32 %v2626, %v2976
        %v3013 = vadd.f32 %v2627, %v2979
        %v3014 = vld [vmem:[%s675] sm:$0xf]
        %v3015 = vld [vmem:[%s675 + $0x4] sm:$0xf]
        %v3016 = vld [vmem:[%s675 + $0x8] sm:$0x1]
        %v3017 = vld [vmem:[%s675 + $0xc] sm:$0xf]
        %v3018 = vld [vmem:[%s675 + $0x10] sm:$0xf]
        %v3019 = vld [vmem:[%s675 + $0x14] sm:$0x1]
        %v3020 = vld [vmem:[%s675 + $0x18] sm:$0xf]
        %v3021 = vld [vmem:[%s675 + $0x1c] sm:$0xf]
        %v3022 = vld [vmem:[%s675 + $0x20] sm:$0x1]
        %v3023 = vld [vmem:[%s675 + $0x24] sm:$0xf]
        %v3024 = vld [vmem:[%s675 + $0x28] sm:$0xf]
        %v3025 = vld [vmem:[%s675 + $0x2c] sm:$0x1]
        %v3026 = vld [vmem:[%s675 + $0x30] sm:$0xf]
        %v3027 = vld [vmem:[%s675 + $0x34] sm:$0xf]
        %v3028 = vld [vmem:[%s675 + $0x38] sm:$0x1]
        %v3029 = vld [vmem:[%s675 + $0x3c] sm:$0xf]
        %v3030 = vld [vmem:[%s675 + $0x40] sm:$0xf]
        %v3031 = vld [vmem:[%s675 + $0x44] sm:$0x1]
        %v3032 = vld [vmem:[%s675 + $0x48] sm:$0xf]
        %v3033 = vld [vmem:[%s675 + $0x4c] sm:$0xf]
        %v3034 = vld [vmem:[%s675 + $0x50] sm:$0x1]
        %v3035 = vld [vmem:[%s675 + $0x54] sm:$0xf]
        %v3036 = vld [vmem:[%s675 + $0x58] sm:$0xf]
        %v3037 = vld [vmem:[%s675 + $0x5c] sm:$0x1]
        %v3038 = vld [vmem:[%s675 + $0x60] sm:$0xf]
        %v3039 = vld [vmem:[%s675 + $0x64] sm:$0xf]
        %v3040 = vld [vmem:[%s675 + $0x68] sm:$0x1]
        %v3041 = vld [vmem:[%s675 + $0x6c] sm:$0xf]
        %v3042 = vld [vmem:[%s675 + $0x70] sm:$0xf]
        %v3043 = vld [vmem:[%s675 + $0x74] sm:$0x1]
        %v3044 = vld [vmem:[%s675 + $0x78] sm:$0xf]
        %v3045 = vld [vmem:[%s675 + $0x7c] sm:$0xf]
        %v3046 = vld [vmem:[%s675 + $0x80] sm:$0x1]
        %v3047 = vld [vmem:[%s675 + $0x84] sm:$0xf]
        %v3048 = vld [vmem:[%s675 + $0x88] sm:$0xf]
        %v3049 = vld [vmem:[%s675 + $0x8c] sm:$0x1]
        %v3050 = vld [vmem:[%s675 + $0x90] sm:$0xf]
        %v3051 = vld [vmem:[%s675 + $0x94] sm:$0xf]
        %v3052 = vld [vmem:[%s675 + $0x98] sm:$0x1]
        %v3053 = vld [vmem:[%s675 + $0x9c] sm:$0xf]
        %v3054 = vld [vmem:[%s675 + $0xa0] sm:$0xf]
        %v3055 = vld [vmem:[%s675 + $0xa4] sm:$0x1]
        %v3056 = vld [vmem:[%s675 + $0xa8] sm:$0xf]
        %v3057 = vld [vmem:[%s675 + $0xac] sm:$0xf]
        %v3058 = vld [vmem:[%s675 + $0xb0] sm:$0x1]
        %v3059 = vld [vmem:[%s675 + $0xb4] sm:$0xf]
        %v3060 = vld [vmem:[%s675 + $0xb8] sm:$0xf]
        %v3061 = vld [vmem:[%s675 + $0xbc] sm:$0x1]
        %v3063 = vshrl.u32 %v3014, 16
        %v3065 = vrot.slane %v3063, 4
        %v3066 = vshll.u32 %v3014, 16
        %v3068 = vrot.slane %v3066, 5
        %v3069 = vor.u32 %v3065, %v3068
        %v3070 = vrot.slane %v3069, 4
        %v3072 = vshll.u32 %v3015, 16
        %v3074 = vrot.slane %v3072, 5
        %v3075 = vsel %vm1163, %v3070, %v3074
        %v3076 = vshrl.u32 %v3015, 16
        %v3078 = vrot.slane %v3076, 4
        %v3079 = vor.u32 %v3078, %v3074
        %v3080 = vrot.slane %v3079, 4
        %v3082 = vshll.u32 %v3016, 16
        %v3084 = vrot.slane %v3082, 5
        %v3085 = vsel %vm1163, %v3080, %v3084
        %v3087 = vshrl.u32 %v3017, 16
        %v3089 = vrot.slane %v3087, 4
        %v3090 = vshll.u32 %v3017, 16
        %v3092 = vrot.slane %v3090, 5
        %v3093 = vor.u32 %v3089, %v3092
        %v3094 = vrot.slane %v3093, 4
        %v3096 = vshll.u32 %v3018, 16
        %v3098 = vrot.slane %v3096, 5
        %v3099 = vsel %vm1163, %v3094, %v3098
        %v3100 = vshrl.u32 %v3018, 16
        %v3102 = vrot.slane %v3100, 4
        %v3103 = vor.u32 %v3102, %v3098
        %v3104 = vrot.slane %v3103, 4
        %v3106 = vshll.u32 %v3019, 16
        %v3108 = vrot.slane %v3106, 5
        %v3109 = vsel %vm1163, %v3104, %v3108
        %v3111 = vshrl.u32 %v3020, 16
        %v3113 = vrot.slane %v3111, 4
        %v3114 = vshll.u32 %v3020, 16
        %v3116 = vrot.slane %v3114, 5
        %v3117 = vor.u32 %v3113, %v3116
        %v3118 = vrot.slane %v3117, 4
        %v3120 = vshll.u32 %v3021, 16
        %v3122 = vrot.slane %v3120, 5
        %v3123 = vsel %vm1163, %v3118, %v3122
        %v3124 = vshrl.u32 %v3021, 16
        %v3126 = vrot.slane %v3124, 4
        %v3127 = vor.u32 %v3126, %v3122
        %v3128 = vrot.slane %v3127, 4
        %v3130 = vshll.u32 %v3022, 16
        %v3132 = vrot.slane %v3130, 5
        %v3133 = vsel %vm1163, %v3128, %v3132
        %v3135 = vshrl.u32 %v3023, 16
        %v3137 = vrot.slane %v3135, 4
        %v3138 = vshll.u32 %v3023, 16
        %v3140 = vrot.slane %v3138, 5
        %v3141 = vor.u32 %v3137, %v3140
        %v3142 = vrot.slane %v3141, 4
        %v3144 = vshll.u32 %v3024, 16
        %v3146 = vrot.slane %v3144, 5
        %v3147 = vsel %vm1163, %v3142, %v3146
        %v3148 = vshrl.u32 %v3024, 16
        %v3150 = vrot.slane %v3148, 4
        %v3151 = vor.u32 %v3150, %v3146
        %v3152 = vrot.slane %v3151, 4
        %v3154 = vshll.u32 %v3025, 16
        %v3156 = vrot.slane %v3154, 5
        %v3157 = vsel %vm1163, %v3152, %v3156
        %v3159 = vshrl.u32 %v3026, 16
        %v3161 = vrot.slane %v3159, 4
        %v3162 = vshll.u32 %v3026, 16
        %v3164 = vrot.slane %v3162, 5
        %v3165 = vor.u32 %v3161, %v3164
        %v3166 = vrot.slane %v3165, 4
        %v3168 = vshll.u32 %v3027, 16
        %v3170 = vrot.slane %v3168, 5
        %v3171 = vsel %vm1163, %v3166, %v3170
        %v3172 = vshrl.u32 %v3027, 16
        %v3174 = vrot.slane %v3172, 4
        %v3175 = vor.u32 %v3174, %v3170
        %v3176 = vrot.slane %v3175, 4
        %v3178 = vshll.u32 %v3028, 16
        %v3180 = vrot.slane %v3178, 5
        %v3181 = vsel %vm1163, %v3176, %v3180
        %v3183 = vshrl.u32 %v3029, 16
        %v3185 = vrot.slane %v3183, 4
        %v3186 = vshll.u32 %v3029, 16
        %v3188 = vrot.slane %v3186, 5
        %v3189 = vor.u32 %v3185, %v3188
        %v3190 = vrot.slane %v3189, 4
        %v3192 = vshll.u32 %v3030, 16
        %v3194 = vrot.slane %v3192, 5
        %v3195 = vsel %vm1163, %v3190, %v3194
        %v3196 = vshrl.u32 %v3030, 16
        %v3198 = vrot.slane %v3196, 4
        %v3199 = vor.u32 %v3198, %v3194
        %v3200 = vrot.slane %v3199, 4
        %v3202 = vshll.u32 %v3031, 16
        %v3204 = vrot.slane %v3202, 5
        %v3205 = vsel %vm1163, %v3200, %v3204
        %v3207 = vshrl.u32 %v3032, 16
        %v3209 = vrot.slane %v3207, 4
        %v3210 = vshll.u32 %v3032, 16
        %v3212 = vrot.slane %v3210, 5
        %v3213 = vor.u32 %v3209, %v3212
        %v3214 = vrot.slane %v3213, 4
        %v3216 = vshll.u32 %v3033, 16
        %v3218 = vrot.slane %v3216, 5
        %v3219 = vsel %vm1163, %v3214, %v3218
        %v3220 = vshrl.u32 %v3033, 16
        %v3222 = vrot.slane %v3220, 4
        %v3223 = vor.u32 %v3222, %v3218
        %v3224 = vrot.slane %v3223, 4
        %v3226 = vshll.u32 %v3034, 16
        %v3228 = vrot.slane %v3226, 5
        %v3229 = vsel %vm1163, %v3224, %v3228
        %v3231 = vshrl.u32 %v3035, 16
        %v3233 = vrot.slane %v3231, 4
        %v3234 = vshll.u32 %v3035, 16
        %v3236 = vrot.slane %v3234, 5
        %v3237 = vor.u32 %v3233, %v3236
        %v3238 = vrot.slane %v3237, 4
        %v3240 = vshll.u32 %v3036, 16
        %v3242 = vrot.slane %v3240, 5
        %v3243 = vsel %vm1163, %v3238, %v3242
        %v3244 = vshrl.u32 %v3036, 16
        %v3246 = vrot.slane %v3244, 4
        %v3247 = vor.u32 %v3246, %v3242
        %v3248 = vrot.slane %v3247, 4
        %v3250 = vshll.u32 %v3037, 16
        %v3252 = vrot.slane %v3250, 5
        %v3253 = vsel %vm1163, %v3248, %v3252
        %v3255 = vshrl.u32 %v3038, 16
        %v3257 = vrot.slane %v3255, 4
        %v3258 = vshll.u32 %v3038, 16
        %v3260 = vrot.slane %v3258, 5
        %v3261 = vor.u32 %v3257, %v3260
        %v3262 = vrot.slane %v3261, 4
        %v3264 = vshll.u32 %v3039, 16
        %v3266 = vrot.slane %v3264, 5
        %v3267 = vsel %vm1163, %v3262, %v3266
        %v3268 = vshrl.u32 %v3039, 16
        %v3270 = vrot.slane %v3268, 4
        %v3271 = vor.u32 %v3270, %v3266
        %v3272 = vrot.slane %v3271, 4
        %v3274 = vshll.u32 %v3040, 16
        %v3276 = vrot.slane %v3274, 5
        %v3277 = vsel %vm1163, %v3272, %v3276
        %v3279 = vshrl.u32 %v3041, 16
        %v3281 = vrot.slane %v3279, 4
        %v3282 = vshll.u32 %v3041, 16
        %v3284 = vrot.slane %v3282, 5
        %v3285 = vor.u32 %v3281, %v3284
        %v3286 = vrot.slane %v3285, 4
        %v3288 = vshll.u32 %v3042, 16
        %v3290 = vrot.slane %v3288, 5
        %v3291 = vsel %vm1163, %v3286, %v3290
        %v3292 = vshrl.u32 %v3042, 16
        %v3294 = vrot.slane %v3292, 4
        %v3295 = vor.u32 %v3294, %v3290
        %v3296 = vrot.slane %v3295, 4
        %v3298 = vshll.u32 %v3043, 16
        %v3300 = vrot.slane %v3298, 5
        %v3301 = vsel %vm1163, %v3296, %v3300
        %v3303 = vshrl.u32 %v3044, 16
        %v3305 = vrot.slane %v3303, 4
        %v3306 = vshll.u32 %v3044, 16
        %v3308 = vrot.slane %v3306, 5
        %v3309 = vor.u32 %v3305, %v3308
        %v3310 = vrot.slane %v3309, 4
        %v3312 = vshll.u32 %v3045, 16
        %v3314 = vrot.slane %v3312, 5
        %v3315 = vsel %vm1163, %v3310, %v3314
        %v3316 = vshrl.u32 %v3045, 16
        %v3318 = vrot.slane %v3316, 4
        %v3319 = vor.u32 %v3318, %v3314
        %v3320 = vrot.slane %v3319, 4
        %v3322 = vshll.u32 %v3046, 16
        %v3324 = vrot.slane %v3322, 5
        %v3325 = vsel %vm1163, %v3320, %v3324
        %v3327 = vshrl.u32 %v3047, 16
        %v3329 = vrot.slane %v3327, 4
        %v3330 = vshll.u32 %v3047, 16
        %v3332 = vrot.slane %v3330, 5
        %v3333 = vor.u32 %v3329, %v3332
        %v3334 = vrot.slane %v3333, 4
        %v3336 = vshll.u32 %v3048, 16
        %v3338 = vrot.slane %v3336, 5
        %v3339 = vsel %vm1163, %v3334, %v3338
        %v3340 = vshrl.u32 %v3048, 16
        %v3342 = vrot.slane %v3340, 4
        %v3343 = vor.u32 %v3342, %v3338
        %v3344 = vrot.slane %v3343, 4
        %v3346 = vshll.u32 %v3049, 16
        %v3348 = vrot.slane %v3346, 5
        %v3349 = vsel %vm1163, %v3344, %v3348
        %v3351 = vshrl.u32 %v3050, 16
        %v3353 = vrot.slane %v3351, 4
        %v3354 = vshll.u32 %v3050, 16
        %v3356 = vrot.slane %v3354, 5
        %v3357 = vor.u32 %v3353, %v3356
        %v3358 = vrot.slane %v3357, 4
        %v3360 = vshll.u32 %v3051, 16
        %v3362 = vrot.slane %v3360, 5
        %v3363 = vsel %vm1163, %v3358, %v3362
        %v3364 = vshrl.u32 %v3051, 16
        %v3366 = vrot.slane %v3364, 4
        %v3367 = vor.u32 %v3366, %v3362
        %v3368 = vrot.slane %v3367, 4
        %v3370 = vshll.u32 %v3052, 16
        %v3372 = vrot.slane %v3370, 5
        %v3373 = vsel %vm1163, %v3368, %v3372
        %v3375 = vshrl.u32 %v3053, 16
        %v3377 = vrot.slane %v3375, 4
        %v3378 = vshll.u32 %v3053, 16
        %v3380 = vrot.slane %v3378, 5
        %v3381 = vor.u32 %v3377, %v3380
        %v3382 = vrot.slane %v3381, 4
        %v3384 = vshll.u32 %v3054, 16
        %v3386 = vrot.slane %v3384, 5
        %v3387 = vsel %vm1163, %v3382, %v3386
        %v3388 = vshrl.u32 %v3054, 16
        %v3390 = vrot.slane %v3388, 4
        %v3391 = vor.u32 %v3390, %v3386
        %v3392 = vrot.slane %v3391, 4
        %v3394 = vshll.u32 %v3055, 16
        %v3396 = vrot.slane %v3394, 5
        %v3397 = vsel %vm1163, %v3392, %v3396
        %v3399 = vshrl.u32 %v3056, 16
        %v3401 = vrot.slane %v3399, 4
        %v3402 = vshll.u32 %v3056, 16
        %v3404 = vrot.slane %v3402, 5
        %v3405 = vor.u32 %v3401, %v3404
        %v3406 = vrot.slane %v3405, 4
        %v3408 = vshll.u32 %v3057, 16
        %v3410 = vrot.slane %v3408, 5
        %v3411 = vsel %vm1163, %v3406, %v3410
        %v3412 = vshrl.u32 %v3057, 16
        %v3414 = vrot.slane %v3412, 4
        %v3415 = vor.u32 %v3414, %v3410
        %v3416 = vrot.slane %v3415, 4
        %v3418 = vshll.u32 %v3058, 16
        %v3420 = vrot.slane %v3418, 5
        %v3421 = vsel %vm1163, %v3416, %v3420
        %v3423 = vshrl.u32 %v3059, 16
        %v3425 = vrot.slane %v3423, 4
        %v3426 = vshll.u32 %v3059, 16
        %v3428 = vrot.slane %v3426, 5
        %v3429 = vor.u32 %v3425, %v3428
        %v3430 = vrot.slane %v3429, 4
        %v3432 = vshll.u32 %v3060, 16
        %v3434 = vrot.slane %v3432, 5
        %v3435 = vsel %vm1163, %v3430, %v3434
        %v3436 = vshrl.u32 %v3060, 16
        %v3438 = vrot.slane %v3436, 4
        %v3439 = vor.u32 %v3438, %v3434
        %v3440 = vrot.slane %v3439, 4
        %v3442 = vshll.u32 %v3061, 16
        %v3444 = vrot.slane %v3442, 5
        %v3445 = vsel %vm1163, %v3440, %v3444
        %s3446 = scalar_lea.vmem %s1, 256
        %v3447 = vld [vmem:[%s3446] sm:$0xf]
        %v3448 = vld [vmem:[%s3446 + $0x4] sm:$0xf]
        %v3449 = vld [vmem:[%s3446 + $0x8] sm:$0xf]
        %v3450 = vld [vmem:[%s3446 + $0xc] sm:$0xf]
        %v3451 = vld [vmem:[%s3446 + $0x10] sm:$0xf]
        %v3452 = vld [vmem:[%s3446 + $0x14] sm:$0xf]
        %v3453 = vld [vmem:[%s3446 + $0x18] sm:$0xf]
        %v3454 = vld [vmem:[%s3446 + $0x1c] sm:$0xf]
        %v3455 = vld [vmem:[%s3446 + $0x20] sm:$0xf]
        %v3456 = vld [vmem:[%s3446 + $0x24] sm:$0xf]
        %v3457 = vld [vmem:[%s3446 + $0x28] sm:$0xf]
        %v3458 = vld [vmem:[%s3446 + $0x2c] sm:$0xf]
        %v3459 = vld [vmem:[%s3446 + $0x30] sm:$0xf]
        %v3460 = vld [vmem:[%s3446 + $0x34] sm:$0xf]
        %v3461 = vld [vmem:[%s3446 + $0x38] sm:$0xf]
        %v3462 = vld [vmem:[%s3446 + $0x3c] sm:$0xf]
        %v3463 = vunpack.c.l.b16 %v3075
        %v3464 = vunpack.c.l.b16 %v3085
        %v3465 = vunpack.c.l.b16 %v3099
        %v3466 = vunpack.c.l.b16 %v3109
        %v3467 = vunpack.c.l.b16 %v3123
        %v3468 = vunpack.c.l.b16 %v3133
        %v3469 = vunpack.c.l.b16 %v3147
        %v3470 = vunpack.c.l.b16 %v3157
        %v3471 = vunpack.c.l.b16 %v3171
        %v3472 = vunpack.c.l.b16 %v3181
        %v3473 = vunpack.c.l.b16 %v3195
        %v3474 = vunpack.c.l.b16 %v3205
        %v3475 = vunpack.c.l.b16 %v3219
        %v3476 = vunpack.c.l.b16 %v3229
        %v3477 = vunpack.c.l.b16 %v3243
        %v3478 = vunpack.c.l.b16 %v3253
        %v3479 = vunpack.c.l.b16 %v3267
        %v3480 = vunpack.c.l.b16 %v3277
        %v3481 = vunpack.c.l.b16 %v3291
        %v3482 = vunpack.c.l.b16 %v3301
        %v3483 = vunpack.c.l.b16 %v3315
        %v3484 = vunpack.c.l.b16 %v3325
        %v3485 = vunpack.c.l.b16 %v3339
        %v3486 = vunpack.c.l.b16 %v3349
        %v3487 = vunpack.c.l.b16 %v3363
        %v3488 = vunpack.c.l.b16 %v3373
        %v3489 = vunpack.c.l.b16 %v3387
        %v3490 = vunpack.c.l.b16 %v3397
        %v3491 = vunpack.c.l.b16 %v3411
        %v3492 = vunpack.c.l.b16 %v3421
        %v3493 = vunpack.c.l.b16 %v3435
        %v3494 = vunpack.c.l.b16 %v3445
        %v3495 = vpack.c.b16 %v3464, %v3463
        %v3496 = vpack.c.b16 %v3466, %v3465
        %v3497 = vpack.c.b16 %v3468, %v3467
        %v3498 = vpack.c.b16 %v3470, %v3469
        %v3499 = vpack.c.b16 %v3472, %v3471
        %v3500 = vpack.c.b16 %v3474, %v3473
        %v3501 = vpack.c.b16 %v3476, %v3475
        %v3502 = vpack.c.b16 %v3478, %v3477
        %v3503 = vpack.c.b16 %v3480, %v3479
        %v3504 = vpack.c.b16 %v3482, %v3481
        %v3505 = vpack.c.b16 %v3484, %v3483
        %v3506 = vpack.c.b16 %v3486, %v3485
        %v3507 = vpack.c.b16 %v3488, %v3487
        %v3508 = vpack.c.b16 %v3490, %v3489
        %v3509 = vpack.c.b16 %v3492, %v3491
        %v3510 = vpack.c.b16 %v3494, %v3493
        %v3543 = vunpack.c.l.b16 %v3447
        %v3544 = vunpack.c.l.b16 %v3448
        %v3545 = vunpack.c.l.b16 %v3449
        %v3546 = vunpack.c.l.b16 %v3450
        %v3547 = vunpack.c.l.b16 %v3451
        %v3548 = vunpack.c.l.b16 %v3452
        %v3549 = vunpack.c.l.b16 %v3453
        %v3550 = vunpack.c.l.b16 %v3454
        %v3551 = vunpack.c.l.b16 %v3455
        %v3552 = vunpack.c.l.b16 %v3456
        %v3553 = vunpack.c.l.b16 %v3457
        %v3554 = vunpack.c.l.b16 %v3458
        %v3555 = vunpack.c.l.b16 %v3459
        %v3556 = vunpack.c.l.b16 %v3460
        %v3557 = vunpack.c.l.b16 %v3461
        %v3558 = vunpack.c.l.b16 %v3462
        %v3559 = vpack.c.b16 %v3544, %v3543
        %v3560 = vpack.c.b16 %v3546, %v3545
        %v3561 = vpack.c.b16 %v3548, %v3547
        %v3562 = vpack.c.b16 %v3550, %v3549
        %v3563 = vpack.c.b16 %v3552, %v3551
        %v3564 = vpack.c.b16 %v3554, %v3553
        %v3565 = vpack.c.b16 %v3556, %v3555
        %v3566 = vpack.c.b16 %v3558, %v3557
        %3575 = vmatprep.subr.bf16.mxu0 0
        %3576 = vmatpush1.bf16.msra.mxu0 %v3559
        %3577 = vmatprep.subr.bf16.mxu0 0
        %3578 = vmatpush1.bf16.msra.mxu0 %v3560
        %3579 = vmatprep.subr.bf16.mxu0 0
        %3580 = vmatpush1.bf16.msra.mxu0 %v3561
        %3581 = vmatprep.subr.bf16.mxu0 0
        %3582 = vmatpush1.bf16.msra.mxu0 %v3562
        %3583 = vmatprep.subr.bf16.mxu0 0
        %3584 = vmatpush1.bf16.msra.mxu0 %v3563
        %3585 = vmatprep.subr.bf16.mxu0 0
        %3586 = vmatpush1.bf16.msra.mxu0 %v3564
        %3587 = vmatprep.subr.bf16.mxu0 0
        %3588 = vmatpush1.bf16.msra.mxu0 %v3565
        %3589 = vmatprep.subr.bf16.mxu0 0
        %3590 = vmatpush1.bf16.msra.mxu0 %v3566
        %3591 = vmatprep.subr.bf16.mxu0 0
        %3592 = vmatpush1.bf16.msra.mxu0 0
        %3593 = vmatprep.subr.bf16.mxu0 0
        %3594 = vmatpush1.bf16.msra.mxu0 0
        %3595 = vmatprep.subr.bf16.mxu0 0
        %3596 = vmatpush1.bf16.msra.mxu0 0
        %3597 = vmatprep.subr.bf16.mxu0 0
        %3598 = vmatpush1.bf16.msra.mxu0 0
        %3599 = vmatprep.subr.bf16.mxu0 0
        %3600 = vmatpush1.bf16.msra.mxu0 0
        %3601 = vmatprep.subr.bf16.mxu0 0
        %3602 = vmatpush1.bf16.msra.mxu0 0
        %3603 = vmatprep.subr.bf16.mxu0 0
        %3604 = vmatpush1.bf16.msra.mxu0 0
        %3605 = vmatprep.subr.bf16.mxu0 0
        %3606 = vmatpush1.bf16.msra.mxu0 0
        %3607 = vmatprep.mubr.bf16.mxu0 0
        %3608 = vmatmul.mubr.bf16.gmra.mrb[0].mxu0 %v3495
        %v3609 = vpop.f32.mrb[0].mxu0
        %v3610 = vadd.f32 0.0, %v3609
        %v3611 = vpop.f32.mrb[0].mxu0
        %v3612 = vpop.f32.mrb[0].mxu0
        %v3613 = vadd.f32 0.0, %v3612
        %v3614 = vpop.f32.mrb[0].mxu0
        %3615 = vmatprep.mubr.bf16.mxu0 0
        %3616 = vmatmul.mubr.bf16.gmra.mrb[0].mxu0 %v3496
        %v3617 = vpop.f32.mrb[0].mxu0
        %v3618 = vadd.f32 0.0, %v3617
        %v3619 = vpop.f32.mrb[0].mxu0
        %v3620 = vpop.f32.mrb[0].mxu0
        %v3621 = vadd.f32 0.0, %v3620
        %v3622 = vpop.f32.mrb[0].mxu0
        %3623 = vmatprep.mubr.bf16.mxu0 0
        %3624 = vmatmul.mubr.bf16.gmra.mrb[0].mxu0 %v3497
        %v3625 = vpop.f32.mrb[0].mxu0
        %v3626 = vadd.f32 0.0, %v3625
        %v3627 = vpop.f32.mrb[0].mxu0
        %v3628 = vpop.f32.mrb[0].mxu0
        %v3629 = vadd.f32 0.0, %v3628
        %v3630 = vpop.f32.mrb[0].mxu0
        %3631 = vmatprep.mubr.bf16.mxu0 0
        %3632 = vmatmul.mubr.bf16.gmra.mrb[0].mxu0 %v3498
        %v3633 = vpop.f32.mrb[0].mxu0
        %v3634 = vadd.f32 0.0, %v3633
        %v3635 = vpop.f32.mrb[0].mxu0
        %v3636 = vpop.f32.mrb[0].mxu0
        %v3637 = vadd.f32 0.0, %v3636
        %v3638 = vpop.f32.mrb[0].mxu0
        %3639 = vmatprep.mubr.bf16.mxu0 0
        %3640 = vmatmul.mubr.bf16.gmra.mrb[0].mxu0 %v3499
        %v3641 = vpop.f32.mrb[0].mxu0
        %v3642 = vadd.f32 0.0, %v3641
        %v3643 = vpop.f32.mrb[0].mxu0
        %v3644 = vpop.f32.mrb[0].mxu0
        %v3645 = vadd.f32 0.0, %v3644
        %v3646 = vpop.f32.mrb[0].mxu0
        %3647 = vmatprep.mubr.bf16.mxu0 0
        %3648 = vmatmul.mubr.bf16.gmra.mrb[0].mxu0 %v3500
        %v3649 = vpop.f32.mrb[0].mxu0
        %v3650 = vadd.f32 0.0, %v3649
        %v3651 = vpop.f32.mrb[0].mxu0
        %v3652 = vpop.f32.mrb[0].mxu0
        %v3653 = vadd.f32 0.0, %v3652
        %v3654 = vpop.f32.mrb[0].mxu0
        %3655 = vmatprep.mubr.bf16.mxu0 0
        %3656 = vmatmul.mubr.bf16.gmra.mrb[0].mxu0 %v3501
        %v3657 = vpop.f32.mrb[0].mxu0
        %v3658 = vadd.f32 0.0, %v3657
        %v3659 = vpop.f32.mrb[0].mxu0
        %v3660 = vpop.f32.mrb[0].mxu0
        %v3661 = vadd.f32 0.0, %v3660
        %v3662 = vpop.f32.mrb[0].mxu0
        %3663 = vmatprep.mubr.bf16.mxu0 0
        %3664 = vmatmul.mubr.bf16.gmra.mrb[0].mxu0 %v3502
        %v3665 = vpop.f32.mrb[0].mxu0
        %v3666 = vadd.f32 0.0, %v3665
        %v3667 = vpop.f32.mrb[0].mxu0
        %v3668 = vpop.f32.mrb[0].mxu0
        %v3669 = vadd.f32 0.0, %v3668
        %v3670 = vpop.f32.mrb[0].mxu0
        %3671 = vmatprep.mubr.bf16.mxu0 0
        %3672 = vmatmul.mubr.bf16.gmra.mrb[0].mxu0 %v3503
        %v3673 = vpop.f32.mrb[0].mxu0
        %v3674 = vadd.f32 0.0, %v3673
        %v3675 = vpop.f32.mrb[0].mxu0
        %v3676 = vpop.f32.mrb[0].mxu0
        %v3677 = vadd.f32 0.0, %v3676
        %v3678 = vpop.f32.mrb[0].mxu0
        %3679 = vmatprep.mubr.bf16.mxu0 0
        %3680 = vmatmul.mubr.bf16.gmra.mrb[0].mxu0 %v3504
        %v3681 = vpop.f32.mrb[0].mxu0
        %v3682 = vadd.f32 0.0, %v3681
        %v3683 = vpop.f32.mrb[0].mxu0
        %v3684 = vpop.f32.mrb[0].mxu0
        %v3685 = vadd.f32 0.0, %v3684
        %v3686 = vpop.f32.mrb[0].mxu0
        %3687 = vmatprep.mubr.bf16.mxu0 0
        %3688 = vmatmul.mubr.bf16.gmra.mrb[0].mxu0 %v3505
        %v3689 = vpop.f32.mrb[0].mxu0
        %v3690 = vadd.f32 0.0, %v3689
        %v3691 = vpop.f32.mrb[0].mxu0
        %v3692 = vpop.f32.mrb[0].mxu0
        %v3693 = vadd.f32 0.0, %v3692
        %v3694 = vpop.f32.mrb[0].mxu0
        %3695 = vmatprep.mubr.bf16.mxu0 0
        %3696 = vmatmul.mubr.bf16.gmra.mrb[0].mxu0 %v3506
        %v3697 = vpop.f32.mrb[0].mxu0
        %v3698 = vadd.f32 0.0, %v3697
        %v3699 = vpop.f32.mrb[0].mxu0
        %v3700 = vpop.f32.mrb[0].mxu0
        %v3701 = vadd.f32 0.0, %v3700
        %v3702 = vpop.f32.mrb[0].mxu0
        %3703 = vmatprep.mubr.bf16.mxu0 0
        %3704 = vmatmul.mubr.bf16.gmra.mrb[0].mxu0 %v3507
        %v3705 = vpop.f32.mrb[0].mxu0
        %v3706 = vadd.f32 0.0, %v3705
        %v3707 = vpop.f32.mrb[0].mxu0
        %v3708 = vpop.f32.mrb[0].mxu0
        %v3709 = vadd.f32 0.0, %v3708
        %v3710 = vpop.f32.mrb[0].mxu0
        %3711 = vmatprep.mubr.bf16.mxu0 0
        %3712 = vmatmul.mubr.bf16.gmra.mrb[0].mxu0 %v3508
        %v3713 = vpop.f32.mrb[0].mxu0
        %v3714 = vadd.f32 0.0, %v3713
        %v3715 = vpop.f32.mrb[0].mxu0
        %v3716 = vpop.f32.mrb[0].mxu0
        %v3717 = vadd.f32 0.0, %v3716
        %v3718 = vpop.f32.mrb[0].mxu0
        %3719 = vmatprep.mubr.bf16.mxu0 0
        %3720 = vmatmul.mubr.bf16.gmra.mrb[0].mxu0 %v3509
        %v3721 = vpop.f32.mrb[0].mxu0
        %v3722 = vadd.f32 0.0, %v3721
        %v3723 = vpop.f32.mrb[0].mxu0
        %v3724 = vpop.f32.mrb[0].mxu0
        %v3725 = vadd.f32 0.0, %v3724
        %v3726 = vpop.f32.mrb[0].mxu0
        %3727 = vmatprep.mubr.bf16.mxu0 0
        %3728 = vmatmul.mubr.bf16.gmra.mrb[0].mxu0 %v3510
        %v3729 = vpop.f32.mrb[0].mxu0
        %v3730 = vadd.f32 0.0, %v3729
        %v3731 = vpop.f32.mrb[0].mxu0
        %v3732 = vpop.f32.mrb[0].mxu0
        %v3733 = vadd.f32 0.0, %v3732
        %v3734 = vpop.f32.mrb[0].mxu0
        %3735 = vdwg.mxu0
        %v3736 = vadd.f32 %v2982, %v3610
        %v3737 = vadd.f32 %v2983, %v3613
        %v3738 = vadd.f32 %v2984, %v3618
        %v3739 = vadd.f32 %v2985, %v3621
        %v3740 = vadd.f32 %v2986, %v3626
        %v3741 = vadd.f32 %v2987, %v3629
        %v3742 = vadd.f32 %v2988, %v3634
        %v3743 = vadd.f32 %v2989, %v3637
        %v3744 = vadd.f32 %v2990, %v3642
        %v3745 = vadd.f32 %v2991, %v3645
        %v3746 = vadd.f32 %v2992, %v3650
        %v3747 = vadd.f32 %v2993, %v3653
        %v3748 = vadd.f32 %v2994, %v3658
        %v3749 = vadd.f32 %v2995, %v3661
        %v3750 = vadd.f32 %v2996, %v3666
        %v3751 = vadd.f32 %v2997, %v3669
        %v3752 = vadd.f32 %v2998, %v3674
        %v3753 = vadd.f32 %v2999, %v3677
        %v3754 = vadd.f32 %v3000, %v3682
        %v3755 = vadd.f32 %v3001, %v3685
        %v3756 = vadd.f32 %v3002, %v3690
        %v3757 = vadd.f32 %v3003, %v3693
        %v3758 = vadd.f32 %v3004, %v3698
        %v3759 = vadd.f32 %v3005, %v3701
        %v3760 = vadd.f32 %v3006, %v3706
        %v3761 = vadd.f32 %v3007, %v3709
        %v3762 = vadd.f32 %v3008, %v3714
        %v3763 = vadd.f32 %v3009, %v3717
        %v3764 = vadd.f32 %v3010, %v3722
        %v3765 = vadd.f32 %v3011, %v3725
        %v3766 = vadd.f32 %v3012, %v3730
        %v3767 = vadd.f32 %v3013, %v3733
        %v3768 = vld [vmem:[%s675] sm:$0xe]
        %v3769 = vld [vmem:[%s675 + $0xc] sm:$0xe]
        %v3770 = vld [vmem:[%s675 + $0x18] sm:$0xe]
        %v3771 = vld [vmem:[%s675 + $0x24] sm:$0xe]
        %v3772 = vld [vmem:[%s675 + $0x30] sm:$0xe]
        %v3773 = vld [vmem:[%s675 + $0x3c] sm:$0xe]
        %v3774 = vld [vmem:[%s675 + $0x48] sm:$0xe]
        %v3775 = vld [vmem:[%s675 + $0x54] sm:$0xe]
        %v3776 = vld [vmem:[%s675 + $0x60] sm:$0xe]
        %v3777 = vld [vmem:[%s675 + $0x6c] sm:$0xe]
        %v3778 = vld [vmem:[%s675 + $0x78] sm:$0xe]
        %v3779 = vld [vmem:[%s675 + $0x84] sm:$0xe]
        %v3780 = vld [vmem:[%s675 + $0x90] sm:$0xe]
        %v3781 = vld [vmem:[%s675 + $0x9c] sm:$0xe]
        %v3782 = vld [vmem:[%s675 + $0xa8] sm:$0xe]
        %v3783 = vld [vmem:[%s675 + $0xb4] sm:$0xe]
        %v3832 = vrot.slane %v3768, 5
        %v3833 = vrot.slane %v3832, 4
        %v3834 = vrot.slane %v3015, 5
        %v3835 = vsel %vm2193, %v3833, %v3834
        %v3836 = vrot.slane %v3834, 4
        %v3837 = vrot.slane %v3016, 5
        %v3838 = vsel %vm2193, %v3836, %v3837
        %v3839 = vrot.slane %v3769, 5
        %v3840 = vrot.slane %v3839, 4
        %v3841 = vrot.slane %v3018, 5
        %v3842 = vsel %vm2193, %v3840, %v3841
        %v3843 = vrot.slane %v3841, 4
        %v3844 = vrot.slane %v3019, 5
        %v3845 = vsel %vm2193, %v3843, %v3844
        %v3846 = vrot.slane %v3770, 5
        %v3847 = vrot.slane %v3846, 4
        %v3848 = vrot.slane %v3021, 5
        %v3849 = vsel %vm2193, %v3847, %v3848
        %v3850 = vrot.slane %v3848, 4
        %v3851 = vrot.slane %v3022, 5
        %v3852 = vsel %vm2193, %v3850, %v3851
        %v3853 = vrot.slane %v3771, 5
        %v3854 = vrot.slane %v3853, 4
        %v3855 = vrot.slane %v3024, 5
        %v3856 = vsel %vm2193, %v3854, %v3855
        %v3857 = vrot.slane %v3855, 4
        %v3858 = vrot.slane %v3025, 5
        %v3859 = vsel %vm2193, %v3857, %v3858
        %v3860 = vrot.slane %v3772, 5
        %v3861 = vrot.slane %v3860, 4
        %v3862 = vrot.slane %v3027, 5
        %v3863 = vsel %vm2193, %v3861, %v3862
        %v3864 = vrot.slane %v3862, 4
        %v3865 = vrot.slane %v3028, 5
        %v3866 = vsel %vm2193, %v3864, %v3865
        %v3867 = vrot.slane %v3773, 5
        %v3868 = vrot.slane %v3867, 4
        %v3869 = vrot.slane %v3030, 5
        %v3870 = vsel %vm2193, %v3868, %v3869
        %v3871 = vrot.slane %v3869, 4
        %v3872 = vrot.slane %v3031, 5
        %v3873 = vsel %vm2193, %v3871, %v3872
        %v3874 = vrot.slane %v3774, 5
        %v3875 = vrot.slane %v3874, 4
        %v3876 = vrot.slane %v3033, 5
        %v3877 = vsel %vm2193, %v3875, %v3876
        %v3878 = vrot.slane %v3876, 4
        %v3879 = vrot.slane %v3034, 5
        %v3880 = vsel %vm2193, %v3878, %v3879
        %v3881 = vrot.slane %v3775, 5
        %v3882 = vrot.slane %v3881, 4
        %v3883 = vrot.slane %v3036, 5
        %v3884 = vsel %vm2193, %v3882, %v3883
        %v3885 = vrot.slane %v3883, 4
        %v3886 = vrot.slane %v3037, 5
        %v3887 = vsel %vm2193, %v3885, %v3886
        %v3888 = vrot.slane %v3776, 5
        %v3889 = vrot.slane %v3888, 4
        %v3890 = vrot.slane %v3039, 5
        %v3891 = vsel %vm2193, %v3889, %v3890
        %v3892 = vrot.slane %v3890, 4
        %v3893 = vrot.slane %v3040, 5
        %v3894 = vsel %vm2193, %v3892, %v3893
        %v3895 = vrot.slane %v3777, 5
        %v3896 = vrot.slane %v3895, 4
        %v3897 = vrot.slane %v3042, 5
        %v3898 = vsel %vm2193, %v3896, %v3897
        %v3899 = vrot.slane %v3897, 4
        %v3900 = vrot.slane %v3043, 5
        %v3901 = vsel %vm2193, %v3899, %v3900
        %v3902 = vrot.slane %v3778, 5
        %v3903 = vrot.slane %v3902, 4
        %v3904 = vrot.slane %v3045, 5
        %v3905 = vsel %vm2193, %v3903, %v3904
        %v3906 = vrot.slane %v3904, 4
        %v3907 = vrot.slane %v3046, 5
        %v3908 = vsel %vm2193, %v3906, %v3907
        %v3909 = vrot.slane %v3779, 5
        %v3910 = vrot.slane %v3909, 4
        %v3911 = vrot.slane %v3048, 5
        %v3912 = vsel %vm2193, %v3910, %v3911
        %v3913 = vrot.slane %v3911, 4
        %v3914 = vrot.slane %v3049, 5
        %v3915 = vsel %vm2193, %v3913, %v3914
        %v3916 = vrot.slane %v3780, 5
        %v3917 = vrot.slane %v3916, 4
        %v3918 = vrot.slane %v3051, 5
        %v3919 = vsel %vm2193, %v3917, %v3918
        %v3920 = vrot.slane %v3918, 4
        %v3921 = vrot.slane %v3052, 5
        %v3922 = vsel %vm2193, %v3920, %v3921
        %v3923 = vrot.slane %v3781, 5
        %v3924 = vrot.slane %v3923, 4
        %v3925 = vrot.slane %v3054, 5
        %v3926 = vsel %vm2193, %v3924, %v3925
        %v3927 = vrot.slane %v3925, 4
        %v3928 = vrot.slane %v3055, 5
        %v3929 = vsel %vm2193, %v3927, %v3928
        %v3930 = vrot.slane %v3782, 5
        %v3931 = vrot.slane %v3930, 4
        %v3932 = vrot.slane %v3057, 5
        %v3933 = vsel %vm2193, %v3931, %v3932
        %v3934 = vrot.slane %v3932, 4
        %v3935 = vrot.slane %v3058, 5
        %v3936 = vsel %vm2193, %v3934, %v3935
        %v3937 = vrot.slane %v3783, 5
        %v3938 = vrot.slane %v3937, 4
        %v3939 = vrot.slane %v3060, 5
        %v3940 = vsel %vm2193, %v3938, %v3939
        %v3941 = vrot.slane %v3939, 4
        %v3942 = vrot.slane %v3061, 5
        %v3943 = vsel %vm2193, %v3941, %v3942
        %s3944 = scalar_lea.vmem %s1, 320
        %v3945 = vld [vmem:[%s3944] sm:$0xf]
        %v3946 = vld [vmem:[%s3944 + $0x4] sm:$0xf]
        %v3947 = vld [vmem:[%s3944 + $0x8] sm:$0xf]
        %v3948 = vld [vmem:[%s3944 + $0xc] sm:$0xf]
        %v3949 = vld [vmem:[%s3944 + $0x10] sm:$0xf]
        %v3950 = vld [vmem:[%s3944 + $0x14] sm:$0xf]
        %v3951 = vld [vmem:[%s3944 + $0x18] sm:$0xf]
        %v3952 = vld [vmem:[%s3944 + $0x1c] sm:$0xf]
        %v3953 = vld [vmem:[%s3944 + $0x20] sm:$0xf]
        %v3954 = vld [vmem:[%s3944 + $0x24] sm:$0xf]
        %v3955 = vld [vmem:[%s3944 + $0x28] sm:$0xf]
        %v3956 = vld [vmem:[%s3944 + $0x2c] sm:$0xf]
        %v3957 = vld [vmem:[%s3944 + $0x30] sm:$0xf]
        %v3958 = vld [vmem:[%s3944 + $0x34] sm:$0xf]
        %v3959 = vld [vmem:[%s3944 + $0x38] sm:$0xf]
        %v3960 = vld [vmem:[%s3944 + $0x3c] sm:$0xf]
        %v3961 = vunpack.c.l.b16 %v3835
        %v3962 = vunpack.c.l.b16 %v3838
        %v3963 = vunpack.c.l.b16 %v3842
        %v3964 = vunpack.c.l.b16 %v3845
        %v3965 = vunpack.c.l.b16 %v3849
        %v3966 = vunpack.c.l.b16 %v3852
        %v3967 = vunpack.c.l.b16 %v3856
        %v3968 = vunpack.c.l.b16 %v3859
        %v3969 = vunpack.c.l.b16 %v3863
        %v3970 = vunpack.c.l.b16 %v3866
        %v3971 = vunpack.c.l.b16 %v3870
        %v3972 = vunpack.c.l.b16 %v3873
        %v3973 = vunpack.c.l.b16 %v3877
        %v3974 = vunpack.c.l.b16 %v3880
        %v3975 = vunpack.c.l.b16 %v3884
        %v3976 = vunpack.c.l.b16 %v3887
        %v3977 = vunpack.c.l.b16 %v3891
        %v3978 = vunpack.c.l.b16 %v3894
        %v3979 = vunpack.c.l.b16 %v3898
        %v3980 = vunpack.c.l.b16 %v3901
        %v3981 = vunpack.c.l.b16 %v3905
        %v3982 = vunpack.c.l.b16 %v3908
        %v3983 = vunpack.c.l.b16 %v3912
        %v3984 = vunpack.c.l.b16 %v3915
        %v3985 = vunpack.c.l.b16 %v3919
        %v3986 = vunpack.c.l.b16 %v3922
        %v3987 = vunpack.c.l.b16 %v3926
        %v3988 = vunpack.c.l.b16 %v3929
        %v3989 = vunpack.c.l.b16 %v3933
        %v3990 = vunpack.c.l.b16 %v3936
        %v3991 = vunpack.c.l.b16 %v3940
        %v3992 = vunpack.c.l.b16 %v3943
        %v3993 = vpack.c.b16 %v3962, %v3961
        %v3994 = vpack.c.b16 %v3964, %v3963
        %v3995 = vpack.c.b16 %v3966, %v3965
        %v3996 = vpack.c.b16 %v3968, %v3967
        %v3997 = vpack.c.b16 %v3970, %v3969
        %v3998 = vpack.c.b16 %v3972, %v3971
        %v3999 = vpack.c.b16 %v3974, %v3973
        %v4000 = vpack.c.b16 %v3976, %v3975
        %v4001 = vpack.c.b16 %v3978, %v3977
        %v4002 = vpack.c.b16 %v3980, %v3979
        %v4003 = vpack.c.b16 %v3982, %v3981
        %v4004 = vpack.c.b16 %v3984, %v3983
        %v4005 = vpack.c.b16 %v3986, %v3985
        %v4006 = vpack.c.b16 %v3988, %v3987
        %v4007 = vpack.c.b16 %v3990, %v3989
        %v4008 = vpack.c.b16 %v3992, %v3991
        %v4041 = vunpack.c.l.b16 %v3945
        %v4042 = vunpack.c.l.b16 %v3946
        %v4043 = vunpack.c.l.b16 %v3947
        %v4044 = vunpack.c.l.b16 %v3948
        %v4045 = vunpack.c.l.b16 %v3949
        %v4046 = vunpack.c.l.b16 %v3950
        %v4047 = vunpack.c.l.b16 %v3951
        %v4048 = vunpack.c.l.b16 %v3952
        %v4049 = vunpack.c.l.b16 %v3953
        %v4050 = vunpack.c.l.b16 %v3954
        %v4051 = vunpack.c.l.b16 %v3955
        %v4052 = vunpack.c.l.b16 %v3956
        %v4053 = vunpack.c.l.b16 %v3957
        %v4054 = vunpack.c.l.b16 %v3958
        %v4055 = vunpack.c.l.b16 %v3959
        %v4056 = vunpack.c.l.b16 %v3960
        %v4057 = vpack.c.b16 %v4042, %v4041
        %v4058 = vpack.c.b16 %v4044, %v4043
        %v4059 = vpack.c.b16 %v4046, %v4045
        %v4060 = vpack.c.b16 %v4048, %v4047
        %v4061 = vpack.c.b16 %v4050, %v4049
        %v4062 = vpack.c.b16 %v4052, %v4051
        %v4063 = vpack.c.b16 %v4054, %v4053
        %v4064 = vpack.c.b16 %v4056, %v4055
        %4073 = vmatprep.subr.bf16.mxu0 0
        %4074 = vmatpush1.bf16.msra.mxu0 %v4057
        %4075 = vmatprep.subr.bf16.mxu0 0
        %4076 = vmatpush1.bf16.msra.mxu0 %v4058
        %4077 = vmatprep.subr.bf16.mxu0 0
        %4078 = vmatpush1.bf16.msra.mxu0 %v4059
        %4079 = vmatprep.subr.bf16.mxu0 0
        %4080 = vmatpush1.bf16.msra.mxu0 %v4060
        %4081 = vmatprep.subr.bf16.mxu0 0
        %4082 = vmatpush1.bf16.msra.mxu0 %v4061
        %4083 = vmatprep.subr.bf16.mxu0 0
        %4084 = vmatpush1.bf16.msra.mxu0 %v4062
        %4085 = vmatprep.subr.bf16.mxu0 0
        %4086 = vmatpush1.bf16.msra.mxu0 %v4063
        %4087 = vmatprep.subr.bf16.mxu0 0
        %4088 = vmatpush1.bf16.msra.mxu0 %v4064
        %4089 = vmatprep.subr.bf16.mxu0 0
        %4090 = vmatpush1.bf16.msra.mxu0 0
        %4091 = vmatprep.subr.bf16.mxu0 0
        %4092 = vmatpush1.bf16.msra.mxu0 0
        %4093 = vmatprep.subr.bf16.mxu0 0
        %4094 = vmatpush1.bf16.msra.mxu0 0
        %4095 = vmatprep.subr.bf16.mxu0 0
        %4096 = vmatpush1.bf16.msra.mxu0 0
        %4097 = vmatprep.subr.bf16.mxu0 0
        %4098 = vmatpush1.bf16.msra.mxu0 0
        %4099 = vmatprep.subr.bf16.mxu0 0
        %4100 = vmatpush1.bf16.msra.mxu0 0
        %4101 = vmatprep.subr.bf16.mxu0 0
        %4102 = vmatpush1.bf16.msra.mxu0 0
        %4103 = vmatprep.subr.bf16.mxu0 0
        %4104 = vmatpush1.bf16.msra.mxu0 0
        %4105 = vmatprep.mubr.bf16.mxu0 0
        %4106 = vmatmul.mubr.bf16.gmra.mrb[0].mxu0 %v3993
        %v4107 = vpop.f32.mrb[0].mxu0
        %v4108 = vadd.f32 0.0, %v4107
        %v4109 = vpop.f32.mrb[0].mxu0
        %v4110 = vpop.f32.mrb[0].mxu0
        %v4111 = vadd.f32 0.0, %v4110
        %v4112 = vpop.f32.mrb[0].mxu0
        %4113 = vmatprep.mubr.bf16.mxu0 0
        %4114 = vmatmul.mubr.bf16.gmra.mrb[0].mxu0 %v3994
        %v4115 = vpop.f32.mrb[0].mxu0
        %v4116 = vadd.f32 0.0, %v4115
        %v4117 = vpop.f32.mrb[0].mxu0
        %v4118 = vpop.f32.mrb[0].mxu0
        %v4119 = vadd.f32 0.0, %v4118
        %v4120 = vpop.f32.mrb[0].mxu0
        %4121 = vmatprep.mubr.bf16.mxu0 0
        %4122 = vmatmul.mubr.bf16.gmra.mrb[0].mxu0 %v3995
        %v4123 = vpop.f32.mrb[0].mxu0
        %v4124 = vadd.f32 0.0, %v4123
        %v4125 = vpop.f32.mrb[0].mxu0
        %v4126 = vpop.f32.mrb[0].mxu0
        %v4127 = vadd.f32 0.0, %v4126
        %v4128 = vpop.f32.mrb[0].mxu0
        %4129 = vmatprep.mubr.bf16.mxu0 0
        %4130 = vmatmul.mubr.bf16.gmra.mrb[0].mxu0 %v3996
        %v4131 = vpop.f32.mrb[0].mxu0
        %v4132 = vadd.f32 0.0, %v4131
        %v4133 = vpop.f32.mrb[0].mxu0
        %v4134 = vpop.f32.mrb[0].mxu0
        %v4135 = vadd.f32 0.0, %v4134
        %v4136 = vpop.f32.mrb[0].mxu0
        %4137 = vmatprep.mubr.bf16.mxu0 0
        %4138 = vmatmul.mubr.bf16.gmra.mrb[0].mxu0 %v3997
        %v4139 = vpop.f32.mrb[0].mxu0
        %v4140 = vadd.f32 0.0, %v4139
        %v4141 = vpop.f32.mrb[0].mxu0
        %v4142 = vpop.f32.mrb[0].mxu0
        %v4143 = vadd.f32 0.0, %v4142
        %v4144 = vpop.f32.mrb[0].mxu0
        %4145 = vmatprep.mubr.bf16.mxu0 0
        %4146 = vmatmul.mubr.bf16.gmra.mrb[0].mxu0 %v3998
        %v4147 = vpop.f32.mrb[0].mxu0
        %v4148 = vadd.f32 0.0, %v4147
        %v4149 = vpop.f32.mrb[0].mxu0
        %v4150 = vpop.f32.mrb[0].mxu0
        %v4151 = vadd.f32 0.0, %v4150
        %v4152 = vpop.f32.mrb[0].mxu0
        %4153 = vmatprep.mubr.bf16.mxu0 0
        %4154 = vmatmul.mubr.bf16.gmra.mrb[0].mxu0 %v3999
        %v4155 = vpop.f32.mrb[0].mxu0
        %v4156 = vadd.f32 0.0, %v4155
        %v4157 = vpop.f32.mrb[0].mxu0
        %v4158 = vpop.f32.mrb[0].mxu0
        %v4159 = vadd.f32 0.0, %v4158
        %v4160 = vpop.f32.mrb[0].mxu0
        %4161 = vmatprep.mubr.bf16.mxu0 0
        %4162 = vmatmul.mubr.bf16.gmra.mrb[0].mxu0 %v4000
        %v4163 = vpop.f32.mrb[0].mxu0
        %v4164 = vadd.f32 0.0, %v4163
        %v4165 = vpop.f32.mrb[0].mxu0
        %v4166 = vpop.f32.mrb[0].mxu0
        %v4167 = vadd.f32 0.0, %v4166
        %v4168 = vpop.f32.mrb[0].mxu0
        %4169 = vmatprep.mubr.bf16.mxu0 0
        %4170 = vmatmul.mubr.bf16.gmra.mrb[0].mxu0 %v4001
        %v4171 = vpop.f32.mrb[0].mxu0
        %v4172 = vadd.f32 0.0, %v4171
        %v4173 = vpop.f32.mrb[0].mxu0
        %v4174 = vpop.f32.mrb[0].mxu0
        %v4175 = vadd.f32 0.0, %v4174
        %v4176 = vpop.f32.mrb[0].mxu0
        %4177 = vmatprep.mubr.bf16.mxu0 0
        %4178 = vmatmul.mubr.bf16.gmra.mrb[0].mxu0 %v4002
        %v4179 = vpop.f32.mrb[0].mxu0
        %v4180 = vadd.f32 0.0, %v4179
        %v4181 = vpop.f32.mrb[0].mxu0
        %v4182 = vpop.f32.mrb[0].mxu0
        %v4183 = vadd.f32 0.0, %v4182
        %v4184 = vpop.f32.mrb[0].mxu0
        %4185 = vmatprep.mubr.bf16.mxu0 0
        %4186 = vmatmul.mubr.bf16.gmra.mrb[0].mxu0 %v4003
        %v4187 = vpop.f32.mrb[0].mxu0
        %v4188 = vadd.f32 0.0, %v4187
        %v4189 = vpop.f32.mrb[0].mxu0
        %v4190 = vpop.f32.mrb[0].mxu0
        %v4191 = vadd.f32 0.0, %v4190
        %v4192 = vpop.f32.mrb[0].mxu0
        %4193 = vmatprep.mubr.bf16.mxu0 0
        %4194 = vmatmul.mubr.bf16.gmra.mrb[0].mxu0 %v4004
        %v4195 = vpop.f32.mrb[0].mxu0
        %v4196 = vadd.f32 0.0, %v4195
        %v4197 = vpop.f32.mrb[0].mxu0
        %v4198 = vpop.f32.mrb[0].mxu0
        %v4199 = vadd.f32 0.0, %v4198
        %v4200 = vpop.f32.mrb[0].mxu0
        %4201 = vmatprep.mubr.bf16.mxu0 0
        %4202 = vmatmul.mubr.bf16.gmra.mrb[0].mxu0 %v4005
        %v4203 = vpop.f32.mrb[0].mxu0
        %v4204 = vadd.f32 0.0, %v4203
        %v4205 = vpop.f32.mrb[0].mxu0
        %v4206 = vpop.f32.mrb[0].mxu0
        %v4207 = vadd.f32 0.0, %v4206
        %v4208 = vpop.f32.mrb[0].mxu0
        %4209 = vmatprep.mubr.bf16.mxu0 0
        %4210 = vmatmul.mubr.bf16.gmra.mrb[0].mxu0 %v4006
        %v4211 = vpop.f32.mrb[0].mxu0
        %v4212 = vadd.f32 0.0, %v4211
        %v4213 = vpop.f32.mrb[0].mxu0
        %v4214 = vpop.f32.mrb[0].mxu0
        %v4215 = vadd.f32 0.0, %v4214
        %v4216 = vpop.f32.mrb[0].mxu0
        %4217 = vmatprep.mubr.bf16.mxu0 0
        %4218 = vmatmul.mubr.bf16.gmra.mrb[0].mxu0 %v4007
        %v4219 = vpop.f32.mrb[0].mxu0
        %v4220 = vadd.f32 0.0, %v4219
        %v4221 = vpop.f32.mrb[0].mxu0
        %v4222 = vpop.f32.mrb[0].mxu0
        %v4223 = vadd.f32 0.0, %v4222
        %v4224 = vpop.f32.mrb[0].mxu0
        %4225 = vmatprep.mubr.bf16.mxu0 0
        %4226 = vmatmul.mubr.bf16.gmra.mrb[0].mxu0 %v4008
        %v4227 = vpop.f32.mrb[0].mxu0
        %v4228 = vadd.f32 0.0, %v4227
        %v4229 = vpop.f32.mrb[0].mxu0
        %v4230 = vpop.f32.mrb[0].mxu0
        %v4231 = vadd.f32 0.0, %v4230
        %v4232 = vpop.f32.mrb[0].mxu0
        %4233 = vdwg.mxu0
        %v4234 = vadd.f32 %v3736, %v4108
        %v4235 = vadd.f32 %v3737, %v4111
        %v4236 = vadd.f32 %v3738, %v4116
        %v4237 = vadd.f32 %v3739, %v4119
        %v4238 = vadd.f32 %v3740, %v4124
        %v4239 = vadd.f32 %v3741, %v4127
        %v4240 = vadd.f32 %v3742, %v4132
        %v4241 = vadd.f32 %v3743, %v4135
        %v4242 = vadd.f32 %v3744, %v4140
        %v4243 = vadd.f32 %v3745, %v4143
        %v4244 = vadd.f32 %v3746, %v4148
        %v4245 = vadd.f32 %v3747, %v4151
        %v4246 = vadd.f32 %v3748, %v4156
        %v4247 = vadd.f32 %v3749, %v4159
        %v4248 = vadd.f32 %v3750, %v4164
        %v4249 = vadd.f32 %v3751, %v4167
        %v4250 = vadd.f32 %v3752, %v4172
        %v4251 = vadd.f32 %v3753, %v4175
        %v4252 = vadd.f32 %v3754, %v4180
        %v4253 = vadd.f32 %v3755, %v4183
        %v4254 = vadd.f32 %v3756, %v4188
        %v4255 = vadd.f32 %v3757, %v4191
        %v4256 = vadd.f32 %v3758, %v4196
        %v4257 = vadd.f32 %v3759, %v4199
        %v4258 = vadd.f32 %v3760, %v4204
        %v4259 = vadd.f32 %v3761, %v4207
        %v4260 = vadd.f32 %v3762, %v4212
        %v4261 = vadd.f32 %v3763, %v4215
        %v4262 = vadd.f32 %v3764, %v4220
        %v4263 = vadd.f32 %v3765, %v4223
        %v4264 = vadd.f32 %v3766, %v4228
        %v4265 = vadd.f32 %v3767, %v4231
        %s4266 = scalar_lea.vmem [#allocation2], 24
        %v4267 = vld [vmem:[%s4266] sm:$0xf]
        %v4268 = vld [vmem:[%s4266 + $0x4] sm:$0xf]
        %v4269 = vld [vmem:[%s4266 + $0xc] sm:$0xf]
        %v4270 = vld [vmem:[%s4266 + $0x10] sm:$0xf]
        %v4271 = vld [vmem:[%s4266 + $0x18] sm:$0xf]
        %v4272 = vld [vmem:[%s4266 + $0x1c] sm:$0xf]
        %v4273 = vld [vmem:[%s4266 + $0x24] sm:$0xf]
        %v4274 = vld [vmem:[%s4266 + $0x28] sm:$0xf]
        %v4275 = vld [vmem:[%s4266 + $0x30] sm:$0xf]
        %v4276 = vld [vmem:[%s4266 + $0x34] sm:$0xf]
        %v4277 = vld [vmem:[%s4266 + $0x3c] sm:$0xf]
        %v4278 = vld [vmem:[%s4266 + $0x40] sm:$0xf]
        %v4279 = vld [vmem:[%s4266 + $0x48] sm:$0xf]
        %v4280 = vld [vmem:[%s4266 + $0x4c] sm:$0xf]
        %v4281 = vld [vmem:[%s4266 + $0x54] sm:$0xf]
        %v4282 = vld [vmem:[%s4266 + $0x58] sm:$0xf]
        %v4283 = vld [vmem:[%s4266 + $0x60] sm:$0xf]
        %v4284 = vld [vmem:[%s4266 + $0x64] sm:$0xf]
        %v4285 = vld [vmem:[%s4266 + $0x6c] sm:$0xf]
        %v4286 = vld [vmem:[%s4266 + $0x70] sm:$0xf]
        %v4287 = vld [vmem:[%s4266 + $0x78] sm:$0xf]
        %v4288 = vld [vmem:[%s4266 + $0x7c] sm:$0xf]
        %v4289 = vld [vmem:[%s4266 + $0x84] sm:$0xf]
        %v4290 = vld [vmem:[%s4266 + $0x88] sm:$0xf]
        %v4291 = vld [vmem:[%s4266 + $0x90] sm:$0xf]
        %v4292 = vld [vmem:[%s4266 + $0x94] sm:$0xf]
        %v4293 = vld [vmem:[%s4266 + $0x9c] sm:$0xf]
        %v4294 = vld [vmem:[%s4266 + $0xa0] sm:$0xf]
        %v4295 = vld [vmem:[%s4266 + $0xa8] sm:$0xf]
        %v4296 = vld [vmem:[%s4266 + $0xac] sm:$0xf]
        %v4297 = vld [vmem:[%s4266 + $0xb4] sm:$0xf]
        %v4298 = vld [vmem:[%s4266 + $0xb8] sm:$0xf]
        %s4299 = scalar_lea.vmem %s1, 384
        %v4300 = vld [vmem:[%s4299] sm:$0xf]
        %v4301 = vld [vmem:[%s4299 + $0x4] sm:$0xf]
        %v4302 = vld [vmem:[%s4299 + $0x8] sm:$0xf]
        %v4303 = vld [vmem:[%s4299 + $0xc] sm:$0xf]
        %v4304 = vld [vmem:[%s4299 + $0x10] sm:$0xf]
        %v4305 = vld [vmem:[%s4299 + $0x14] sm:$0xf]
        %v4306 = vld [vmem:[%s4299 + $0x18] sm:$0xf]
        %v4307 = vld [vmem:[%s4299 + $0x1c] sm:$0xf]
        %v4308 = vld [vmem:[%s4299 + $0x20] sm:$0xf]
        %v4309 = vld [vmem:[%s4299 + $0x24] sm:$0xf]
        %v4310 = vld [vmem:[%s4299 + $0x28] sm:$0xf]
        %v4311 = vld [vmem:[%s4299 + $0x2c] sm:$0xf]
        %v4312 = vld [vmem:[%s4299 + $0x30] sm:$0xf]
        %v4313 = vld [vmem:[%s4299 + $0x34] sm:$0xf]
        %v4314 = vld [vmem:[%s4299 + $0x38] sm:$0xf]
        %v4315 = vld [vmem:[%s4299 + $0x3c] sm:$0xf]
        %v4348 = vunpack.c.l.b16 %v4267
        %v4349 = vunpack.c.l.b16 %v4268
        %v4350 = vunpack.c.l.b16 %v4269
        %v4351 = vunpack.c.l.b16 %v4270
        %v4352 = vunpack.c.l.b16 %v4271
        %v4353 = vunpack.c.l.b16 %v4272
        %v4354 = vunpack.c.l.b16 %v4273
        %v4355 = vunpack.c.l.b16 %v4274
        %v4356 = vunpack.c.l.b16 %v4275
        %v4357 = vunpack.c.l.b16 %v4276
        %v4358 = vunpack.c.l.b16 %v4277
        %v4359 = vunpack.c.l.b16 %v4278
        %v4360 = vunpack.c.l.b16 %v4279
        %v4361 = vunpack.c.l.b16 %v4280
        %v4362 = vunpack.c.l.b16 %v4281
        %v4363 = vunpack.c.l.b16 %v4282
        %v4364 = vunpack.c.l.b16 %v4283
        %v4365 = vunpack.c.l.b16 %v4284
        %v4366 = vunpack.c.l.b16 %v4285
        %v4367 = vunpack.c.l.b16 %v4286
        %v4368 = vunpack.c.l.b16 %v4287
        %v4369 = vunpack.c.l.b16 %v4288
        %v4370 = vunpack.c.l.b16 %v4289
        %v4371 = vunpack.c.l.b16 %v4290
        %v4372 = vunpack.c.l.b16 %v4291
        %v4373 = vunpack.c.l.b16 %v4292
        %v4374 = vunpack.c.l.b16 %v4293
        %v4375 = vunpack.c.l.b16 %v4294
        %v4376 = vunpack.c.l.b16 %v4295
        %v4377 = vunpack.c.l.b16 %v4296
        %v4378 = vunpack.c.l.b16 %v4297
        %v4379 = vunpack.c.l.b16 %v4298
        %v4380 = vpack.c.b16 %v4349, %v4348
        %v4381 = vpack.c.b16 %v4351, %v4350
        %v4382 = vpack.c.b16 %v4353, %v4352
        %v4383 = vpack.c.b16 %v4355, %v4354
        %v4384 = vpack.c.b16 %v4357, %v4356
        %v4385 = vpack.c.b16 %v4359, %v4358
        %v4386 = vpack.c.b16 %v4361, %v4360
        %v4387 = vpack.c.b16 %v4363, %v4362
        %v4388 = vpack.c.b16 %v4365, %v4364
        %v4389 = vpack.c.b16 %v4367, %v4366
        %v4390 = vpack.c.b16 %v4369, %v4368
        %v4391 = vpack.c.b16 %v4371, %v4370
        %v4392 = vpack.c.b16 %v4373, %v4372
        %v4393 = vpack.c.b16 %v4375, %v4374
        %v4394 = vpack.c.b16 %v4377, %v4376
        %v4395 = vpack.c.b16 %v4379, %v4378
        %v4428 = vunpack.c.l.b16 %v4300
        %v4429 = vunpack.c.l.b16 %v4301
        %v4430 = vunpack.c.l.b16 %v4302
        %v4431 = vunpack.c.l.b16 %v4303
        %v4432 = vunpack.c.l.b16 %v4304
        %v4433 = vunpack.c.l.b16 %v4305
        %v4434 = vunpack.c.l.b16 %v4306
        %v4435 = vunpack.c.l.b16 %v4307
        %v4436 = vunpack.c.l.b16 %v4308
        %v4437 = vunpack.c.l.b16 %v4309
        %v4438 = vunpack.c.l.b16 %v4310
        %v4439 = vunpack.c.l.b16 %v4311
        %v4440 = vunpack.c.l.b16 %v4312
        %v4441 = vunpack.c.l.b16 %v4313
        %v4442 = vunpack.c.l.b16 %v4314
        %v4443 = vunpack.c.l.b16 %v4315
        %v4444 = vpack.c.b16 %v4429, %v4428
        %v4445 = vpack.c.b16 %v4431, %v4430
        %v4446 = vpack.c.b16 %v4433, %v4432
        %v4447 = vpack.c.b16 %v4435, %v4434
        %v4448 = vpack.c.b16 %v4437, %v4436
        %v4449 = vpack.c.b16 %v4439, %v4438
        %v4450 = vpack.c.b16 %v4441, %v4440
        %v4451 = vpack.c.b16 %v4443, %v4442
        %4460 = vmatprep.subr.bf16.mxu0 0
        %4461 = vmatpush1.bf16.msra.mxu0 %v4444
        %4462 = vmatprep.subr.bf16.mxu0 0
        %4463 = vmatpush1.bf16.msra.mxu0 %v4445
        %4464 = vmatprep.subr.bf16.mxu0 0
        %4465 = vmatpush1.bf16.msra.mxu0 %v4446
        %4466 = vmatprep.subr.bf16.mxu0 0
        %4467 = vmatpush1.bf16.msra.mxu0 %v4447
        %4468 = vmatprep.subr.bf16.mxu0 0
        %4469 = vmatpush1.bf16.msra.mxu0 %v4448
        %4470 = vmatprep.subr.bf16.mxu0 0
        %4471 = vmatpush1.bf16.msra.mxu0 %v4449
        %4472 = vmatprep.subr.bf16.mxu0 0
        %4473 = vmatpush1.bf16.msra.mxu0 %v4450
        %4474 = vmatprep.subr.bf16.mxu0 0
        %4475 = vmatpush1.bf16.msra.mxu0 %v4451
        %4476 = vmatprep.subr.bf16.mxu0 0
        %4477 = vmatpush1.bf16.msra.mxu0 0
        %4478 = vmatprep.subr.bf16.mxu0 0
        %4479 = vmatpush1.bf16.msra.mxu0 0
        %4480 = vmatprep.subr.bf16.mxu0 0
        %4481 = vmatpush1.bf16.msra.mxu0 0
        %4482 = vmatprep.subr.bf16.mxu0 0
        %4483 = vmatpush1.bf16.msra.mxu0 0
        %4484 = vmatprep.subr.bf16.mxu0 0
        %4485 = vmatpush1.bf16.msra.mxu0 0
        %4486 = vmatprep.subr.bf16.mxu0 0
        %4487 = vmatpush1.bf16.msra.mxu0 0
        %4488 = vmatprep.subr.bf16.mxu0 0
        %4489 = vmatpush1.bf16.msra.mxu0 0
        %4490 = vmatprep.subr.bf16.mxu0 0
        %4491 = vmatpush1.bf16.msra.mxu0 0
        %4492 = vmatprep.mubr.bf16.mxu0 0
        %4493 = vmatmul.mubr.bf16.gmra.mrb[0].mxu0 %v4380
        %v4494 = vpop.f32.mrb[0].mxu0
        %v4495 = vadd.f32 0.0, %v4494
        %v4496 = vpop.f32.mrb[0].mxu0
        %v4497 = vpop.f32.mrb[0].mxu0
        %v4498 = vadd.f32 0.0, %v4497
        %v4499 = vpop.f32.mrb[0].mxu0
        %4500 = vmatprep.mubr.bf16.mxu0 0
        %4501 = vmatmul.mubr.bf16.gmra.mrb[0].mxu0 %v4381
        %v4502 = vpop.f32.mrb[0].mxu0
        %v4503 = vadd.f32 0.0, %v4502
        %v4504 = vpop.f32.mrb[0].mxu0
        %v4505 = vpop.f32.mrb[0].mxu0
        %v4506 = vadd.f32 0.0, %v4505
        %v4507 = vpop.f32.mrb[0].mxu0
        %4508 = vmatprep.mubr.bf16.mxu0 0
        %4509 = vmatmul.mubr.bf16.gmra.mrb[0].mxu0 %v4382
        %v4510 = vpop.f32.mrb[0].mxu0
        %v4511 = vadd.f32 0.0, %v4510
        %v4512 = vpop.f32.mrb[0].mxu0
        %v4513 = vpop.f32.mrb[0].mxu0
        %v4514 = vadd.f32 0.0, %v4513
        %v4515 = vpop.f32.mrb[0].mxu0
        %4516 = vmatprep.mubr.bf16.mxu0 0
        %4517 = vmatmul.mubr.bf16.gmra.mrb[0].mxu0 %v4383
        %v4518 = vpop.f32.mrb[0].mxu0
        %v4519 = vadd.f32 0.0, %v4518
        %v4520 = vpop.f32.mrb[0].mxu0
        %v4521 = vpop.f32.mrb[0].mxu0
        %v4522 = vadd.f32 0.0, %v4521
        %v4523 = vpop.f32.mrb[0].mxu0
        %4524 = vmatprep.mubr.bf16.mxu0 0
        %4525 = vmatmul.mubr.bf16.gmra.mrb[0].mxu0 %v4384
        %v4526 = vpop.f32.mrb[0].mxu0
        %v4527 = vadd.f32 0.0, %v4526
        %v4528 = vpop.f32.mrb[0].mxu0
        %v4529 = vpop.f32.mrb[0].mxu0
        %v4530 = vadd.f32 0.0, %v4529
        %v4531 = vpop.f32.mrb[0].mxu0
        %4532 = vmatprep.mubr.bf16.mxu0 0
        %4533 = vmatmul.mubr.bf16.gmra.mrb[0].mxu0 %v4385
        %v4534 = vpop.f32.mrb[0].mxu0
        %v4535 = vadd.f32 0.0, %v4534
        %v4536 = vpop.f32.mrb[0].mxu0
        %v4537 = vpop.f32.mrb[0].mxu0
        %v4538 = vadd.f32 0.0, %v4537
        %v4539 = vpop.f32.mrb[0].mxu0
        %4540 = vmatprep.mubr.bf16.mxu0 0
        %4541 = vmatmul.mubr.bf16.gmra.mrb[0].mxu0 %v4386
        %v4542 = vpop.f32.mrb[0].mxu0
        %v4543 = vadd.f32 0.0, %v4542
        %v4544 = vpop.f32.mrb[0].mxu0
        %v4545 = vpop.f32.mrb[0].mxu0
        %v4546 = vadd.f32 0.0, %v4545
        %v4547 = vpop.f32.mrb[0].mxu0
        %4548 = vmatprep.mubr.bf16.mxu0 0
        %4549 = vmatmul.mubr.bf16.gmra.mrb[0].mxu0 %v4387
        %v4550 = vpop.f32.mrb[0].mxu0
        %v4551 = vadd.f32 0.0, %v4550
        %v4552 = vpop.f32.mrb[0].mxu0
        %v4553 = vpop.f32.mrb[0].mxu0
        %v4554 = vadd.f32 0.0, %v4553
        %v4555 = vpop.f32.mrb[0].mxu0
        %4556 = vmatprep.mubr.bf16.mxu0 0
        %4557 = vmatmul.mubr.bf16.gmra.mrb[0].mxu0 %v4388
        %v4558 = vpop.f32.mrb[0].mxu0
        %v4559 = vadd.f32 0.0, %v4558
        %v4560 = vpop.f32.mrb[0].mxu0
        %v4561 = vpop.f32.mrb[0].mxu0
        %v4562 = vadd.f32 0.0, %v4561
        %v4563 = vpop.f32.mrb[0].mxu0
        %4564 = vmatprep.mubr.bf16.mxu0 0
        %4565 = vmatmul.mubr.bf16.gmra.mrb[0].mxu0 %v4389
        %v4566 = vpop.f32.mrb[0].mxu0
        %v4567 = vadd.f32 0.0, %v4566
        %v4568 = vpop.f32.mrb[0].mxu0
        %v4569 = vpop.f32.mrb[0].mxu0
        %v4570 = vadd.f32 0.0, %v4569
        %v4571 = vpop.f32.mrb[0].mxu0
        %4572 = vmatprep.mubr.bf16.mxu0 0
        %4573 = vmatmul.mubr.bf16.gmra.mrb[0].mxu0 %v4390
        %v4574 = vpop.f32.mrb[0].mxu0
        %v4575 = vadd.f32 0.0, %v4574
        %v4576 = vpop.f32.mrb[0].mxu0
        %v4577 = vpop.f32.mrb[0].mxu0
        %v4578 = vadd.f32 0.0, %v4577
        %v4579 = vpop.f32.mrb[0].mxu0
        %4580 = vmatprep.mubr.bf16.mxu0 0
        %4581 = vmatmul.mubr.bf16.gmra.mrb[0].mxu0 %v4391
        %v4582 = vpop.f32.mrb[0].mxu0
        %v4583 = vadd.f32 0.0, %v4582
        %v4584 = vpop.f32.mrb[0].mxu0
        %v4585 = vpop.f32.mrb[0].mxu0
        %v4586 = vadd.f32 0.0, %v4585
        %v4587 = vpop.f32.mrb[0].mxu0
        %4588 = vmatprep.mubr.bf16.mxu0 0
        %4589 = vmatmul.mubr.bf16.gmra.mrb[0].mxu0 %v4392
        %v4590 = vpop.f32.mrb[0].mxu0
        %v4591 = vadd.f32 0.0, %v4590
        %v4592 = vpop.f32.mrb[0].mxu0
        %v4593 = vpop.f32.mrb[0].mxu0
        %v4594 = vadd.f32 0.0, %v4593
        %v4595 = vpop.f32.mrb[0].mxu0
        %4596 = vmatprep.mubr.bf16.mxu0 0
        %4597 = vmatmul.mubr.bf16.gmra.mrb[0].mxu0 %v4393
        %v4598 = vpop.f32.mrb[0].mxu0
        %v4599 = vadd.f32 0.0, %v4598
        %v4600 = vpop.f32.mrb[0].mxu0
        %v4601 = vpop.f32.mrb[0].mxu0
        %v4602 = vadd.f32 0.0, %v4601
        %v4603 = vpop.f32.mrb[0].mxu0
        %4604 = vmatprep.mubr.bf16.mxu0 0
        %4605 = vmatmul.mubr.bf16.gmra.mrb[0].mxu0 %v4394
        %v4606 = vpop.f32.mrb[0].mxu0
        %v4607 = vadd.f32 0.0, %v4606
        %v4608 = vpop.f32.mrb[0].mxu0
        %v4609 = vpop.f32.mrb[0].mxu0
        %v4610 = vadd.f32 0.0, %v4609
        %v4611 = vpop.f32.mrb[0].mxu0
        %4612 = vmatprep.mubr.bf16.mxu0 0
        %4613 = vmatmul.mubr.bf16.gmra.mrb[0].mxu0 %v4395
        %v4614 = vpop.f32.mrb[0].mxu0
        %v4615 = vadd.f32 0.0, %v4614
        %v4616 = vpop.f32.mrb[0].mxu0
        %v4617 = vpop.f32.mrb[0].mxu0
        %v4618 = vadd.f32 0.0, %v4617
        %v4619 = vpop.f32.mrb[0].mxu0
        %4620 = vdwg.mxu0
        %v4621 = vadd.f32 %v4234, %v4495
        %v4622 = vadd.f32 %v4235, %v4498
        %v4623 = vadd.f32 %v4236, %v4503
        %v4624 = vadd.f32 %v4237, %v4506
        %v4625 = vadd.f32 %v4238, %v4511
        %v4626 = vadd.f32 %v4239, %v4514
        %v4627 = vadd.f32 %v4240, %v4519
        %v4628 = vadd.f32 %v4241, %v4522
        %v4629 = vadd.f32 %v4242, %v4527
        %v4630 = vadd.f32 %v4243, %v4530
        %v4631 = vadd.f32 %v4244, %v4535
        %v4632 = vadd.f32 %v4245, %v4538
        %v4633 = vadd.f32 %v4246, %v4543
        %v4634 = vadd.f32 %v4247, %v4546
        %v4635 = vadd.f32 %v4248, %v4551
        %v4636 = vadd.f32 %v4249, %v4554
        %v4637 = vadd.f32 %v4250, %v4559
        %v4638 = vadd.f32 %v4251, %v4562
        %v4639 = vadd.f32 %v4252, %v4567
        %v4640 = vadd.f32 %v4253, %v4570
        %v4641 = vadd.f32 %v4254, %v4575
        %v4642 = vadd.f32 %v4255, %v4578
        %v4643 = vadd.f32 %v4256, %v4583
        %v4644 = vadd.f32 %v4257, %v4586
        %v4645 = vadd.f32 %v4258, %v4591
        %v4646 = vadd.f32 %v4259, %v4594
        %v4647 = vadd.f32 %v4260, %v4599
        %v4648 = vadd.f32 %v4261, %v4602
        %v4649 = vadd.f32 %v4262, %v4607
        %v4650 = vadd.f32 %v4263, %v4610
        %v4651 = vadd.f32 %v4264, %v4615
        %v4652 = vadd.f32 %v4265, %v4618
        %v4653 = vld [vmem:[%s4266] sm:$0xf]
        %v4654 = vld [vmem:[%s4266 + $0x4] sm:$0xf]
        %v4655 = vld [vmem:[%s4266 + $0x8] sm:$0x1]
        %v4656 = vld [vmem:[%s4266 + $0xc] sm:$0xf]
        %v4657 = vld [vmem:[%s4266 + $0x10] sm:$0xf]
        %v4658 = vld [vmem:[%s4266 + $0x14] sm:$0x1]
        %v4659 = vld [vmem:[%s4266 + $0x18] sm:$0xf]
        %v4660 = vld [vmem:[%s4266 + $0x1c] sm:$0xf]
        %v4661 = vld [vmem:[%s4266 + $0x20] sm:$0x1]
        %v4662 = vld [vmem:[%s4266 + $0x24] sm:$0xf]
        %v4663 = vld [vmem:[%s4266 + $0x28] sm:$0xf]
        %v4664 = vld [vmem:[%s4266 + $0x2c] sm:$0x1]
        %v4665 = vld [vmem:[%s4266 + $0x30] sm:$0xf]
        %v4666 = vld [vmem:[%s4266 + $0x34] sm:$0xf]
        %v4667 = vld [vmem:[%s4266 + $0x38] sm:$0x1]
        %v4668 = vld [vmem:[%s4266 + $0x3c] sm:$0xf]
        %v4669 = vld [vmem:[%s4266 + $0x40] sm:$0xf]
        %v4670 = vld [vmem:[%s4266 + $0x44] sm:$0x1]
        %v4671 = vld [vmem:[%s4266 + $0x48] sm:$0xf]
        %v4672 = vld [vmem:[%s4266 + $0x4c] sm:$0xf]
        %v4673 = vld [vmem:[%s4266 + $0x50] sm:$0x1]
        %v4674 = vld [vmem:[%s4266 + $0x54] sm:$0xf]
        %v4675 = vld [vmem:[%s4266 + $0x58] sm:$0xf]
        %v4676 = vld [vmem:[%s4266 + $0x5c] sm:$0x1]
        %v4677 = vld [vmem:[%s4266 + $0x60] sm:$0xf]
        %v4678 = vld [vmem:[%s4266 + $0x64] sm:$0xf]
        %v4679 = vld [vmem:[%s4266 + $0x68] sm:$0x1]
        %v4680 = vld [vmem:[%s4266 + $0x6c] sm:$0xf]
        %v4681 = vld [vmem:[%s4266 + $0x70] sm:$0xf]
        %v4682 = vld [vmem:[%s4266 + $0x74] sm:$0x1]
        %v4683 = vld [vmem:[%s4266 + $0x78] sm:$0xf]
        %v4684 = vld [vmem:[%s4266 + $0x7c] sm:$0xf]
        %v4685 = vld [vmem:[%s4266 + $0x80] sm:$0x1]
        %v4686 = vld [vmem:[%s4266 + $0x84] sm:$0xf]
        %v4687 = vld [vmem:[%s4266 + $0x88] sm:$0xf]
        %v4688 = vld [vmem:[%s4266 + $0x8c] sm:$0x1]
        %v4689 = vld [vmem:[%s4266 + $0x90] sm:$0xf]
        %v4690 = vld [vmem:[%s4266 + $0x94] sm:$0xf]
        %v4691 = vld [vmem:[%s4266 + $0x98] sm:$0x1]
        %v4692 = vld [vmem:[%s4266 + $0x9c] sm:$0xf]
        %v4693 = vld [vmem:[%s4266 + $0xa0] sm:$0xf]
        %v4694 = vld [vmem:[%s4266 + $0xa4] sm:$0x1]
        %v4695 = vld [vmem:[%s4266 + $0xa8] sm:$0xf]
        %v4696 = vld [vmem:[%s4266 + $0xac] sm:$0xf]
        %v4697 = vld [vmem:[%s4266 + $0xb0] sm:$0x1]
        %v4698 = vld [vmem:[%s4266 + $0xb4] sm:$0xf]
        %v4699 = vld [vmem:[%s4266 + $0xb8] sm:$0xf]
        %v4700 = vld [vmem:[%s4266 + $0xbc] sm:$0x1]
        %v4702 = vshrl.u32 %v4653, 16
        %v4704 = vrot.slane %v4702, 4
        %v4705 = vshll.u32 %v4653, 16
        %v4707 = vrot.slane %v4705, 5
        %v4708 = vor.u32 %v4704, %v4707
        %v4709 = vrot.slane %v4708, 4
        %v4711 = vshll.u32 %v4654, 16
        %v4713 = vrot.slane %v4711, 5
        %v4714 = vsel %vm1163, %v4709, %v4713
        %v4715 = vshrl.u32 %v4654, 16
        %v4717 = vrot.slane %v4715, 4
        %v4718 = vor.u32 %v4717, %v4713
        %v4719 = vrot.slane %v4718, 4
        %v4721 = vshll.u32 %v4655, 16
        %v4723 = vrot.slane %v4721, 5
        %v4724 = vsel %vm1163, %v4719, %v4723
        %v4726 = vshrl.u32 %v4656, 16
        %v4728 = vrot.slane %v4726, 4
        %v4729 = vshll.u32 %v4656, 16
        %v4731 = vrot.slane %v4729, 5
        %v4732 = vor.u32 %v4728, %v4731
        %v4733 = vrot.slane %v4732, 4
        %v4735 = vshll.u32 %v4657, 16
        %v4737 = vrot.slane %v4735, 5
        %v4738 = vsel %vm1163, %v4733, %v4737
        %v4739 = vshrl.u32 %v4657, 16
        %v4741 = vrot.slane %v4739, 4
        %v4742 = vor.u32 %v4741, %v4737
        %v4743 = vrot.slane %v4742, 4
        %v4745 = vshll.u32 %v4658, 16
        %v4747 = vrot.slane %v4745, 5
        %v4748 = vsel %vm1163, %v4743, %v4747
        %v4750 = vshrl.u32 %v4659, 16
        %v4752 = vrot.slane %v4750, 4
        %v4753 = vshll.u32 %v4659, 16
        %v4755 = vrot.slane %v4753, 5
        %v4756 = vor.u32 %v4752, %v4755
        %v4757 = vrot.slane %v4756, 4
        %v4759 = vshll.u32 %v4660, 16
        %v4761 = vrot.slane %v4759, 5
        %v4762 = vsel %vm1163, %v4757, %v4761
        %v4763 = vshrl.u32 %v4660, 16
        %v4765 = vrot.slane %v4763, 4
        %v4766 = vor.u32 %v4765, %v4761
        %v4767 = vrot.slane %v4766, 4
        %v4769 = vshll.u32 %v4661, 16
        %v4771 = vrot.slane %v4769, 5
        %v4772 = vsel %vm1163, %v4767, %v4771
        %v4774 = vshrl.u32 %v4662, 16
        %v4776 = vrot.slane %v4774, 4
        %v4777 = vshll.u32 %v4662, 16
        %v4779 = vrot.slane %v4777, 5
        %v4780 = vor.u32 %v4776, %v4779
        %v4781 = vrot.slane %v4780, 4
        %v4783 = vshll.u32 %v4663, 16
        %v4785 = vrot.slane %v4783, 5
        %v4786 = vsel %vm1163, %v4781, %v4785
        %v4787 = vshrl.u32 %v4663, 16
        %v4789 = vrot.slane %v4787, 4
        %v4790 = vor.u32 %v4789, %v4785
        %v4791 = vrot.slane %v4790, 4
        %v4793 = vshll.u32 %v4664, 16
        %v4795 = vrot.slane %v4793, 5
        %v4796 = vsel %vm1163, %v4791, %v4795
        %v4798 = vshrl.u32 %v4665, 16
        %v4800 = vrot.slane %v4798, 4
        %v4801 = vshll.u32 %v4665, 16
        %v4803 = vrot.slane %v4801, 5
        %v4804 = vor.u32 %v4800, %v4803
        %v4805 = vrot.slane %v4804, 4
        %v4807 = vshll.u32 %v4666, 16
        %v4809 = vrot.slane %v4807, 5
        %v4810 = vsel %vm1163, %v4805, %v4809
        %v4811 = vshrl.u32 %v4666, 16
        %v4813 = vrot.slane %v4811, 4
        %v4814 = vor.u32 %v4813, %v4809
        %v4815 = vrot.slane %v4814, 4
        %v4817 = vshll.u32 %v4667, 16
        %v4819 = vrot.slane %v4817, 5
        %v4820 = vsel %vm1163, %v4815, %v4819
        %v4822 = vshrl.u32 %v4668, 16
        %v4824 = vrot.slane %v4822, 4
        %v4825 = vshll.u32 %v4668, 16
        %v4827 = vrot.slane %v4825, 5
        %v4828 = vor.u32 %v4824, %v4827
        %v4829 = vrot.slane %v4828, 4
        %v4831 = vshll.u32 %v4669, 16
        %v4833 = vrot.slane %v4831, 5
        %v4834 = vsel %vm1163, %v4829, %v4833
        %v4835 = vshrl.u32 %v4669, 16
        %v4837 = vrot.slane %v4835, 4
        %v4838 = vor.u32 %v4837, %v4833
        %v4839 = vrot.slane %v4838, 4
        %v4841 = vshll.u32 %v4670, 16
        %v4843 = vrot.slane %v4841, 5
        %v4844 = vsel %vm1163, %v4839, %v4843
        %v4846 = vshrl.u32 %v4671, 16
        %v4848 = vrot.slane %v4846, 4
        %v4849 = vshll.u32 %v4671, 16
        %v4851 = vrot.slane %v4849, 5
        %v4852 = vor.u32 %v4848, %v4851
        %v4853 = vrot.slane %v4852, 4
        %v4855 = vshll.u32 %v4672, 16
        %v4857 = vrot.slane %v4855, 5
        %v4858 = vsel %vm1163, %v4853, %v4857
        %v4859 = vshrl.u32 %v4672, 16
        %v4861 = vrot.slane %v4859, 4
        %v4862 = vor.u32 %v4861, %v4857
        %v4863 = vrot.slane %v4862, 4
        %v4865 = vshll.u32 %v4673, 16
        %v4867 = vrot.slane %v4865, 5
        %v4868 = vsel %vm1163, %v4863, %v4867
        %v4870 = vshrl.u32 %v4674, 16
        %v4872 = vrot.slane %v4870, 4
        %v4873 = vshll.u32 %v4674, 16
        %v4875 = vrot.slane %v4873, 5
        %v4876 = vor.u32 %v4872, %v4875
        %v4877 = vrot.slane %v4876, 4
        %v4879 = vshll.u32 %v4675, 16
        %v4881 = vrot.slane %v4879, 5
        %v4882 = vsel %vm1163, %v4877, %v4881
        %v4883 = vshrl.u32 %v4675, 16
        %v4885 = vrot.slane %v4883, 4
        %v4886 = vor.u32 %v4885, %v4881
        %v4887 = vrot.slane %v4886, 4
        %v4889 = vshll.u32 %v4676, 16
        %v4891 = vrot.slane %v4889, 5
        %v4892 = vsel %vm1163, %v4887, %v4891
        %v4894 = vshrl.u32 %v4677, 16
        %v4896 = vrot.slane %v4894, 4
        %v4897 = vshll.u32 %v4677, 16
        %v4899 = vrot.slane %v4897, 5
        %v4900 = vor.u32 %v4896, %v4899
        %v4901 = vrot.slane %v4900, 4
        %v4903 = vshll.u32 %v4678, 16
        %v4905 = vrot.slane %v4903, 5
        %v4906 = vsel %vm1163, %v4901, %v4905
        %v4907 = vshrl.u32 %v4678, 16
        %v4909 = vrot.slane %v4907, 4
        %v4910 = vor.u32 %v4909, %v4905
        %v4911 = vrot.slane %v4910, 4
        %v4913 = vshll.u32 %v4679, 16
        %v4915 = vrot.slane %v4913, 5
        %v4916 = vsel %vm1163, %v4911, %v4915
        %v4918 = vshrl.u32 %v4680, 16
        %v4920 = vrot.slane %v4918, 4
        %v4921 = vshll.u32 %v4680, 16
        %v4923 = vrot.slane %v4921, 5
        %v4924 = vor.u32 %v4920, %v4923
        %v4925 = vrot.slane %v4924, 4
        %v4927 = vshll.u32 %v4681, 16
        %v4929 = vrot.slane %v4927, 5
        %v4930 = vsel %vm1163, %v4925, %v4929
        %v4931 = vshrl.u32 %v4681, 16
        %v4933 = vrot.slane %v4931, 4
        %v4934 = vor.u32 %v4933, %v4929
        %v4935 = vrot.slane %v4934, 4
        %v4937 = vshll.u32 %v4682, 16
        %v4939 = vrot.slane %v4937, 5
        %v4940 = vsel %vm1163, %v4935, %v4939
        %v4942 = vshrl.u32 %v4683, 16
        %v4944 = vrot.slane %v4942, 4
        %v4945 = vshll.u32 %v4683, 16
        %v4947 = vrot.slane %v4945, 5
        %v4948 = vor.u32 %v4944, %v4947
        %v4949 = vrot.slane %v4948, 4
        %v4951 = vshll.u32 %v4684, 16
        %v4953 = vrot.slane %v4951, 5
        %v4954 = vsel %vm1163, %v4949, %v4953
        %v4955 = vshrl.u32 %v4684, 16
        %v4957 = vrot.slane %v4955, 4
        %v4958 = vor.u32 %v4957, %v4953
        %v4959 = vrot.slane %v4958, 4
        %v4961 = vshll.u32 %v4685, 16
        %v4963 = vrot.slane %v4961, 5
        %v4964 = vsel %vm1163, %v4959, %v4963
        %v4966 = vshrl.u32 %v4686, 16
        %v4968 = vrot.slane %v4966, 4
        %v4969 = vshll.u32 %v4686, 16
        %v4971 = vrot.slane %v4969, 5
        %v4972 = vor.u32 %v4968, %v4971
        %v4973 = vrot.slane %v4972, 4
        %v4975 = vshll.u32 %v4687, 16
        %v4977 = vrot.slane %v4975, 5
        %v4978 = vsel %vm1163, %v4973, %v4977
        %v4979 = vshrl.u32 %v4687, 16
        %v4981 = vrot.slane %v4979, 4
        %v4982 = vor.u32 %v4981, %v4977
        %v4983 = vrot.slane %v4982, 4
        %v4985 = vshll.u32 %v4688, 16
        %v4987 = vrot.slane %v4985, 5
        %v4988 = vsel %vm1163, %v4983, %v4987
        %v4990 = vshrl.u32 %v4689, 16
        %v4992 = vrot.slane %v4990, 4
        %v4993 = vshll.u32 %v4689, 16
        %v4995 = vrot.slane %v4993, 5
        %v4996 = vor.u32 %v4992, %v4995
        %v4997 = vrot.slane %v4996, 4
        %v4999 = vshll.u32 %v4690, 16
        %v5001 = vrot.slane %v4999, 5
        %v5002 = vsel %vm1163, %v4997, %v5001
        %v5003 = vshrl.u32 %v4690, 16
        %v5005 = vrot.slane %v5003, 4
        %v5006 = vor.u32 %v5005, %v5001
        %v5007 = vrot.slane %v5006, 4
        %v5009 = vshll.u32 %v4691, 16
        %v5011 = vrot.slane %v5009, 5
        %v5012 = vsel %vm1163, %v5007, %v5011
        %v5014 = vshrl.u32 %v4692, 16
        %v5016 = vrot.slane %v5014, 4
        %v5017 = vshll.u32 %v4692, 16
        %v5019 = vrot.slane %v5017, 5
        %v5020 = vor.u32 %v5016, %v5019
        %v5021 = vrot.slane %v5020, 4
        %v5023 = vshll.u32 %v4693, 16
        %v5025 = vrot.slane %v5023, 5
        %v5026 = vsel %vm1163, %v5021, %v5025
        %v5027 = vshrl.u32 %v4693, 16
        %v5029 = vrot.slane %v5027, 4
        %v5030 = vor.u32 %v5029, %v5025
        %v5031 = vrot.slane %v5030, 4
        %v5033 = vshll.u32 %v4694, 16
        %v5035 = vrot.slane %v5033, 5
        %v5036 = vsel %vm1163, %v5031, %v5035
        %v5038 = vshrl.u32 %v4695, 16
        %v5040 = vrot.slane %v5038, 4
        %v5041 = vshll.u32 %v4695, 16
        %v5043 = vrot.slane %v5041, 5
        %v5044 = vor.u32 %v5040, %v5043
        %v5045 = vrot.slane %v5044, 4
        %v5047 = vshll.u32 %v4696, 16
        %v5049 = vrot.slane %v5047, 5
        %v5050 = vsel %vm1163, %v5045, %v5049
        %v5051 = vshrl.u32 %v4696, 16
        %v5053 = vrot.slane %v5051, 4
        %v5054 = vor.u32 %v5053, %v5049
        %v5055 = vrot.slane %v5054, 4
        %v5057 = vshll.u32 %v4697, 16
        %v5059 = vrot.slane %v5057, 5
        %v5060 = vsel %vm1163, %v5055, %v5059
        %v5062 = vshrl.u32 %v4698, 16
        %v5064 = vrot.slane %v5062, 4
        %v5065 = vshll.u32 %v4698, 16
        %v5067 = vrot.slane %v5065, 5
        %v5068 = vor.u32 %v5064, %v5067
        %v5069 = vrot.slane %v5068, 4
        %v5071 = vshll.u32 %v4699, 16
        %v5073 = vrot.slane %v5071, 5
        %v5074 = vsel %vm1163, %v5069, %v5073
        %v5075 = vshrl.u32 %v4699, 16
        %v5077 = vrot.slane %v5075, 4
        %v5078 = vor.u32 %v5077, %v5073
        %v5079 = vrot.slane %v5078, 4
        %v5081 = vshll.u32 %v4700, 16
        %v5083 = vrot.slane %v5081, 5
        %v5084 = vsel %vm1163, %v5079, %v5083
        %s5085 = scalar_lea.vmem %s1, 448
        %v5086 = vld [vmem:[%s5085] sm:$0xf]
        %v5087 = vld [vmem:[%s5085 + $0x4] sm:$0xf]
        %v5088 = vld [vmem:[%s5085 + $0x8] sm:$0xf]
        %v5089 = vld [vmem:[%s5085 + $0xc] sm:$0xf]
        %v5090 = vld [vmem:[%s5085 + $0x10] sm:$0xf]
        %v5091 = vld [vmem:[%s5085 + $0x14] sm:$0xf]
        %v5092 = vld [vmem:[%s5085 + $0x18] sm:$0xf]
        %v5093 = vld [vmem:[%s5085 + $0x1c] sm:$0xf]
        %v5094 = vld [vmem:[%s5085 + $0x20] sm:$0xf]
        %v5095 = vld [vmem:[%s5085 + $0x24] sm:$0xf]
        %v5096 = vld [vmem:[%s5085 + $0x28] sm:$0xf]
        %v5097 = vld [vmem:[%s5085 + $0x2c] sm:$0xf]
        %v5098 = vld [vmem:[%s5085 + $0x30] sm:$0xf]
        %v5099 = vld [vmem:[%s5085 + $0x34] sm:$0xf]
        %v5100 = vld [vmem:[%s5085 + $0x38] sm:$0xf]
        %v5101 = vld [vmem:[%s5085 + $0x3c] sm:$0xf]
        %v5102 = vunpack.c.l.b16 %v4714
        %v5103 = vunpack.c.l.b16 %v4724
        %v5104 = vunpack.c.l.b16 %v4738
        %v5105 = vunpack.c.l.b16 %v4748
        %v5106 = vunpack.c.l.b16 %v4762
        %v5107 = vunpack.c.l.b16 %v4772
        %v5108 = vunpack.c.l.b16 %v4786
        %v5109 = vunpack.c.l.b16 %v4796
        %v5110 = vunpack.c.l.b16 %v4810
        %v5111 = vunpack.c.l.b16 %v4820
        %v5112 = vunpack.c.l.b16 %v4834
        %v5113 = vunpack.c.l.b16 %v4844
        %v5114 = vunpack.c.l.b16 %v4858
        %v5115 = vunpack.c.l.b16 %v4868
        %v5116 = vunpack.c.l.b16 %v4882
        %v5117 = vunpack.c.l.b16 %v4892
        %v5118 = vunpack.c.l.b16 %v4906
        %v5119 = vunpack.c.l.b16 %v4916
        %v5120 = vunpack.c.l.b16 %v4930
        %v5121 = vunpack.c.l.b16 %v4940
        %v5122 = vunpack.c.l.b16 %v4954
        %v5123 = vunpack.c.l.b16 %v4964
        %v5124 = vunpack.c.l.b16 %v4978
        %v5125 = vunpack.c.l.b16 %v4988
        %v5126 = vunpack.c.l.b16 %v5002
        %v5127 = vunpack.c.l.b16 %v5012
        %v5128 = vunpack.c.l.b16 %v5026
        %v5129 = vunpack.c.l.b16 %v5036
        %v5130 = vunpack.c.l.b16 %v5050
        %v5131 = vunpack.c.l.b16 %v5060
        %v5132 = vunpack.c.l.b16 %v5074
        %v5133 = vunpack.c.l.b16 %v5084
        %v5134 = vpack.c.b16 %v5103, %v5102
        %v5135 = vpack.c.b16 %v5105, %v5104
        %v5136 = vpack.c.b16 %v5107, %v5106
        %v5137 = vpack.c.b16 %v5109, %v5108
        %v5138 = vpack.c.b16 %v5111, %v5110
        %v5139 = vpack.c.b16 %v5113, %v5112
        %v5140 = vpack.c.b16 %v5115, %v5114
        %v5141 = vpack.c.b16 %v5117, %v5116
        %v5142 = vpack.c.b16 %v5119, %v5118
        %v5143 = vpack.c.b16 %v5121, %v5120
        %v5144 = vpack.c.b16 %v5123, %v5122
        %v5145 = vpack.c.b16 %v5125, %v5124
        %v5146 = vpack.c.b16 %v5127, %v5126
        %v5147 = vpack.c.b16 %v5129, %v5128
        %v5148 = vpack.c.b16 %v5131, %v5130
        %v5149 = vpack.c.b16 %v5133, %v5132
        %v5182 = vunpack.c.l.b16 %v5086
        %v5183 = vunpack.c.l.b16 %v5087
        %v5184 = vunpack.c.l.b16 %v5088
        %v5185 = vunpack.c.l.b16 %v5089
        %v5186 = vunpack.c.l.b16 %v5090
        %v5187 = vunpack.c.l.b16 %v5091
        %v5188 = vunpack.c.l.b16 %v5092
        %v5189 = vunpack.c.l.b16 %v5093
        %v5190 = vunpack.c.l.b16 %v5094
        %v5191 = vunpack.c.l.b16 %v5095
        %v5192 = vunpack.c.l.b16 %v5096
        %v5193 = vunpack.c.l.b16 %v5097
        %v5194 = vunpack.c.l.b16 %v5098
        %v5195 = vunpack.c.l.b16 %v5099
        %v5196 = vunpack.c.l.b16 %v5100
        %v5197 = vunpack.c.l.b16 %v5101
        %v5198 = vpack.c.b16 %v5183, %v5182
        %v5199 = vpack.c.b16 %v5185, %v5184
        %v5200 = vpack.c.b16 %v5187, %v5186
        %v5201 = vpack.c.b16 %v5189, %v5188
        %v5202 = vpack.c.b16 %v5191, %v5190
        %v5203 = vpack.c.b16 %v5193, %v5192
        %v5204 = vpack.c.b16 %v5195, %v5194
        %v5205 = vpack.c.b16 %v5197, %v5196
        %5214 = vmatprep.subr.bf16.mxu0 0
        %5215 = vmatpush1.bf16.msra.mxu0 %v5198
        %5216 = vmatprep.subr.bf16.mxu0 0
        %5217 = vmatpush1.bf16.msra.mxu0 %v5199
        %5218 = vmatprep.subr.bf16.mxu0 0
        %5219 = vmatpush1.bf16.msra.mxu0 %v5200
        %5220 = vmatprep.subr.bf16.mxu0 0
        %5221 = vmatpush1.bf16.msra.mxu0 %v5201
        %5222 = vmatprep.subr.bf16.mxu0 0
        %5223 = vmatpush1.bf16.msra.mxu0 %v5202
        %5224 = vmatprep.subr.bf16.mxu0 0
        %5225 = vmatpush1.bf16.msra.mxu0 %v5203
        %5226 = vmatprep.subr.bf16.mxu0 0
        %5227 = vmatpush1.bf16.msra.mxu0 %v5204
        %5228 = vmatprep.subr.bf16.mxu0 0
        %5229 = vmatpush1.bf16.msra.mxu0 %v5205
        %5230 = vmatprep.subr.bf16.mxu0 0
        %5231 = vmatpush1.bf16.msra.mxu0 0
        %5232 = vmatprep.subr.bf16.mxu0 0
        %5233 = vmatpush1.bf16.msra.mxu0 0
        %5234 = vmatprep.subr.bf16.mxu0 0
        %5235 = vmatpush1.bf16.msra.mxu0 0
        %5236 = vmatprep.subr.bf16.mxu0 0
        %5237 = vmatpush1.bf16.msra.mxu0 0
        %5238 = vmatprep.subr.bf16.mxu0 0
        %5239 = vmatpush1.bf16.msra.mxu0 0
        %5240 = vmatprep.subr.bf16.mxu0 0
        %5241 = vmatpush1.bf16.msra.mxu0 0
        %5242 = vmatprep.subr.bf16.mxu0 0
        %5243 = vmatpush1.bf16.msra.mxu0 0
        %5244 = vmatprep.subr.bf16.mxu0 0
        %5245 = vmatpush1.bf16.msra.mxu0 0
        %5246 = vmatprep.mubr.bf16.mxu0 0
        %5247 = vmatmul.mubr.bf16.gmra.mrb[0].mxu0 %v5134
        %v5248 = vpop.f32.mrb[0].mxu0
        %v5249 = vadd.f32 0.0, %v5248
        %v5250 = vpop.f32.mrb[0].mxu0
        %v5251 = vpop.f32.mrb[0].mxu0
        %v5252 = vadd.f32 0.0, %v5251
        %v5253 = vpop.f32.mrb[0].mxu0
        %5254 = vmatprep.mubr.bf16.mxu0 0
        %5255 = vmatmul.mubr.bf16.gmra.mrb[0].mxu0 %v5135
        %v5256 = vpop.f32.mrb[0].mxu0
        %v5257 = vadd.f32 0.0, %v5256
        %v5258 = vpop.f32.mrb[0].mxu0
        %v5259 = vpop.f32.mrb[0].mxu0
        %v5260 = vadd.f32 0.0, %v5259
        %v5261 = vpop.f32.mrb[0].mxu0
        %5262 = vmatprep.mubr.bf16.mxu0 0
        %5263 = vmatmul.mubr.bf16.gmra.mrb[0].mxu0 %v5136
        %v5264 = vpop.f32.mrb[0].mxu0
        %v5265 = vadd.f32 0.0, %v5264
        %v5266 = vpop.f32.mrb[0].mxu0
        %v5267 = vpop.f32.mrb[0].mxu0
        %v5268 = vadd.f32 0.0, %v5267
        %v5269 = vpop.f32.mrb[0].mxu0
        %5270 = vmatprep.mubr.bf16.mxu0 0
        %5271 = vmatmul.mubr.bf16.gmra.mrb[0].mxu0 %v5137
        %v5272 = vpop.f32.mrb[0].mxu0
        %v5273 = vadd.f32 0.0, %v5272
        %v5274 = vpop.f32.mrb[0].mxu0
        %v5275 = vpop.f32.mrb[0].mxu0
        %v5276 = vadd.f32 0.0, %v5275
        %v5277 = vpop.f32.mrb[0].mxu0
        %5278 = vmatprep.mubr.bf16.mxu0 0
        %5279 = vmatmul.mubr.bf16.gmra.mrb[0].mxu0 %v5138
        %v5280 = vpop.f32.mrb[0].mxu0
        %v5281 = vadd.f32 0.0, %v5280
        %v5282 = vpop.f32.mrb[0].mxu0
        %v5283 = vpop.f32.mrb[0].mxu0
        %v5284 = vadd.f32 0.0, %v5283
        %v5285 = vpop.f32.mrb[0].mxu0
        %5286 = vmatprep.mubr.bf16.mxu0 0
        %5287 = vmatmul.mubr.bf16.gmra.mrb[0].mxu0 %v5139
        %v5288 = vpop.f32.mrb[0].mxu0
        %v5289 = vadd.f32 0.0, %v5288
        %v5290 = vpop.f32.mrb[0].mxu0
        %v5291 = vpop.f32.mrb[0].mxu0
        %v5292 = vadd.f32 0.0, %v5291
        %v5293 = vpop.f32.mrb[0].mxu0
        %5294 = vmatprep.mubr.bf16.mxu0 0
        %5295 = vmatmul.mubr.bf16.gmra.mrb[0].mxu0 %v5140
        %v5296 = vpop.f32.mrb[0].mxu0
        %v5297 = vadd.f32 0.0, %v5296
        %v5298 = vpop.f32.mrb[0].mxu0
        %v5299 = vpop.f32.mrb[0].mxu0
        %v5300 = vadd.f32 0.0, %v5299
        %v5301 = vpop.f32.mrb[0].mxu0
        %5302 = vmatprep.mubr.bf16.mxu0 0
        %5303 = vmatmul.mubr.bf16.gmra.mrb[0].mxu0 %v5141
        %v5304 = vpop.f32.mrb[0].mxu0
        %v5305 = vadd.f32 0.0, %v5304
        %v5306 = vpop.f32.mrb[0].mxu0
        %v5307 = vpop.f32.mrb[0].mxu0
        %v5308 = vadd.f32 0.0, %v5307
        %v5309 = vpop.f32.mrb[0].mxu0
        %5310 = vmatprep.mubr.bf16.mxu0 0
        %5311 = vmatmul.mubr.bf16.gmra.mrb[0].mxu0 %v5142
        %v5312 = vpop.f32.mrb[0].mxu0
        %v5313 = vadd.f32 0.0, %v5312
        %v5314 = vpop.f32.mrb[0].mxu0
        %v5315 = vpop.f32.mrb[0].mxu0
        %v5316 = vadd.f32 0.0, %v5315
        %v5317 = vpop.f32.mrb[0].mxu0
        %5318 = vmatprep.mubr.bf16.mxu0 0
        %5319 = vmatmul.mubr.bf16.gmra.mrb[0].mxu0 %v5143
        %v5320 = vpop.f32.mrb[0].mxu0
        %v5321 = vadd.f32 0.0, %v5320
        %v5322 = vpop.f32.mrb[0].mxu0
        %v5323 = vpop.f32.mrb[0].mxu0
        %v5324 = vadd.f32 0.0, %v5323
        %v5325 = vpop.f32.mrb[0].mxu0
        %5326 = vmatprep.mubr.bf16.mxu0 0
        %5327 = vmatmul.mubr.bf16.gmra.mrb[0].mxu0 %v5144
        %v5328 = vpop.f32.mrb[0].mxu0
        %v5329 = vadd.f32 0.0, %v5328
        %v5330 = vpop.f32.mrb[0].mxu0
        %v5331 = vpop.f32.mrb[0].mxu0
        %v5332 = vadd.f32 0.0, %v5331
        %v5333 = vpop.f32.mrb[0].mxu0
        %5334 = vmatprep.mubr.bf16.mxu0 0
        %5335 = vmatmul.mubr.bf16.gmra.mrb[0].mxu0 %v5145
        %v5336 = vpop.f32.mrb[0].mxu0
        %v5337 = vadd.f32 0.0, %v5336
        %v5338 = vpop.f32.mrb[0].mxu0
        %v5339 = vpop.f32.mrb[0].mxu0
        %v5340 = vadd.f32 0.0, %v5339
        %v5341 = vpop.f32.mrb[0].mxu0
        %5342 = vmatprep.mubr.bf16.mxu0 0
        %5343 = vmatmul.mubr.bf16.gmra.mrb[0].mxu0 %v5146
        %v5344 = vpop.f32.mrb[0].mxu0
        %v5345 = vadd.f32 0.0, %v5344
        %v5346 = vpop.f32.mrb[0].mxu0
        %v5347 = vpop.f32.mrb[0].mxu0
        %v5348 = vadd.f32 0.0, %v5347
        %v5349 = vpop.f32.mrb[0].mxu0
        %5350 = vmatprep.mubr.bf16.mxu0 0
        %5351 = vmatmul.mubr.bf16.gmra.mrb[0].mxu0 %v5147
        %v5352 = vpop.f32.mrb[0].mxu0
        %v5353 = vadd.f32 0.0, %v5352
        %v5354 = vpop.f32.mrb[0].mxu0
        %v5355 = vpop.f32.mrb[0].mxu0
        %v5356 = vadd.f32 0.0, %v5355
        %v5357 = vpop.f32.mrb[0].mxu0
        %5358 = vmatprep.mubr.bf16.mxu0 0
        %5359 = vmatmul.mubr.bf16.gmra.mrb[0].mxu0 %v5148
        %v5360 = vpop.f32.mrb[0].mxu0
        %v5361 = vadd.f32 0.0, %v5360
        %v5362 = vpop.f32.mrb[0].mxu0
        %v5363 = vpop.f32.mrb[0].mxu0
        %v5364 = vadd.f32 0.0, %v5363
        %v5365 = vpop.f32.mrb[0].mxu0
        %5366 = vmatprep.mubr.bf16.mxu0 0
        %5367 = vmatmul.mubr.bf16.gmra.mrb[0].mxu0 %v5149
        %v5368 = vpop.f32.mrb[0].mxu0
        %v5369 = vadd.f32 0.0, %v5368
        %v5370 = vpop.f32.mrb[0].mxu0
        %v5371 = vpop.f32.mrb[0].mxu0
        %v5372 = vadd.f32 0.0, %v5371
        %v5373 = vpop.f32.mrb[0].mxu0
        %5374 = vdwg.mxu0
        %v5375 = vadd.f32 %v4621, %v5249
        %v5376 = vadd.f32 %v4622, %v5252
        %v5377 = vadd.f32 %v4623, %v5257
        %v5378 = vadd.f32 %v4624, %v5260
        %v5379 = vadd.f32 %v4625, %v5265
        %v5380 = vadd.f32 %v4626, %v5268
        %v5381 = vadd.f32 %v4627, %v5273
        %v5382 = vadd.f32 %v4628, %v5276
        %v5383 = vadd.f32 %v4629, %v5281
        %v5384 = vadd.f32 %v4630, %v5284
        %v5385 = vadd.f32 %v4631, %v5289
        %v5386 = vadd.f32 %v4632, %v5292
        %v5387 = vadd.f32 %v4633, %v5297
        %v5388 = vadd.f32 %v4634, %v5300
        %v5389 = vadd.f32 %v4635, %v5305
        %v5390 = vadd.f32 %v4636, %v5308
        %v5391 = vadd.f32 %v4637, %v5313
        %v5392 = vadd.f32 %v4638, %v5316
        %v5393 = vadd.f32 %v4639, %v5321
        %v5394 = vadd.f32 %v4640, %v5324
        %v5395 = vadd.f32 %v4641, %v5329
        %v5396 = vadd.f32 %v4642, %v5332
        %v5397 = vadd.f32 %v4643, %v5337
        %v5398 = vadd.f32 %v4644, %v5340
        %v5399 = vadd.f32 %v4645, %v5345
        %v5400 = vadd.f32 %v4646, %v5348
        %v5401 = vadd.f32 %v4647, %v5353
        %v5402 = vadd.f32 %v4648, %v5356
        %v5403 = vadd.f32 %v4649, %v5361
        %v5404 = vadd.f32 %v4650, %v5364
        %v5405 = vadd.f32 %v4651, %v5369
        %v5406 = vadd.f32 %v4652, %v5372
        %v5407 = vld [vmem:[%s4266] sm:$0xe]
        %v5408 = vld [vmem:[%s4266 + $0xc] sm:$0xe]
        %v5409 = vld [vmem:[%s4266 + $0x18] sm:$0xe]
        %v5410 = vld [vmem:[%s4266 + $0x24] sm:$0xe]
        %v5411 = vld [vmem:[%s4266 + $0x30] sm:$0xe]
        %v5412 = vld [vmem:[%s4266 + $0x3c] sm:$0xe]
        %v5413 = vld [vmem:[%s4266 + $0x48] sm:$0xe]
        %v5414 = vld [vmem:[%s4266 + $0x54] sm:$0xe]
        %v5415 = vld [vmem:[%s4266 + $0x60] sm:$0xe]
        %v5416 = vld [vmem:[%s4266 + $0x6c] sm:$0xe]
        %v5417 = vld [vmem:[%s4266 + $0x78] sm:$0xe]
        %v5418 = vld [vmem:[%s4266 + $0x84] sm:$0xe]
        %v5419 = vld [vmem:[%s4266 + $0x90] sm:$0xe]
        %v5420 = vld [vmem:[%s4266 + $0x9c] sm:$0xe]
        %v5421 = vld [vmem:[%s4266 + $0xa8] sm:$0xe]
        %v5422 = vld [vmem:[%s4266 + $0xb4] sm:$0xe]
        %v5471 = vrot.slane %v5407, 5
        %v5472 = vrot.slane %v5471, 4
        %v5473 = vrot.slane %v4654, 5
        %v5474 = vsel %vm2193, %v5472, %v5473
        %v5475 = vrot.slane %v5473, 4
        %v5476 = vrot.slane %v4655, 5
        %v5477 = vsel %vm2193, %v5475, %v5476
        %v5478 = vrot.slane %v5408, 5
        %v5479 = vrot.slane %v5478, 4
        %v5480 = vrot.slane %v4657, 5
        %v5481 = vsel %vm2193, %v5479, %v5480
        %v5482 = vrot.slane %v5480, 4
        %v5483 = vrot.slane %v4658, 5
        %v5484 = vsel %vm2193, %v5482, %v5483
        %v5485 = vrot.slane %v5409, 5
        %v5486 = vrot.slane %v5485, 4
        %v5487 = vrot.slane %v4660, 5
        %v5488 = vsel %vm2193, %v5486, %v5487
        %v5489 = vrot.slane %v5487, 4
        %v5490 = vrot.slane %v4661, 5
        %v5491 = vsel %vm2193, %v5489, %v5490
        %v5492 = vrot.slane %v5410, 5
        %v5493 = vrot.slane %v5492, 4
        %v5494 = vrot.slane %v4663, 5
        %v5495 = vsel %vm2193, %v5493, %v5494
        %v5496 = vrot.slane %v5494, 4
        %v5497 = vrot.slane %v4664, 5
        %v5498 = vsel %vm2193, %v5496, %v5497
        %v5499 = vrot.slane %v5411, 5
        %v5500 = vrot.slane %v5499, 4
        %v5501 = vrot.slane %v4666, 5
        %v5502 = vsel %vm2193, %v5500, %v5501
        %v5503 = vrot.slane %v5501, 4
        %v5504 = vrot.slane %v4667, 5
        %v5505 = vsel %vm2193, %v5503, %v5504
        %v5506 = vrot.slane %v5412, 5
        %v5507 = vrot.slane %v5506, 4
        %v5508 = vrot.slane %v4669, 5
        %v5509 = vsel %vm2193, %v5507, %v5508
        %v5510 = vrot.slane %v5508, 4
        %v5511 = vrot.slane %v4670, 5
        %v5512 = vsel %vm2193, %v5510, %v5511
        %v5513 = vrot.slane %v5413, 5
        %v5514 = vrot.slane %v5513, 4
        %v5515 = vrot.slane %v4672, 5
        %v5516 = vsel %vm2193, %v5514, %v5515
        %v5517 = vrot.slane %v5515, 4
        %v5518 = vrot.slane %v4673, 5
        %v5519 = vsel %vm2193, %v5517, %v5518
        %v5520 = vrot.slane %v5414, 5
        %v5521 = vrot.slane %v5520, 4
        %v5522 = vrot.slane %v4675, 5
        %v5523 = vsel %vm2193, %v5521, %v5522
        %v5524 = vrot.slane %v5522, 4
        %v5525 = vrot.slane %v4676, 5
        %v5526 = vsel %vm2193, %v5524, %v5525
        %v5527 = vrot.slane %v5415, 5
        %v5528 = vrot.slane %v5527, 4
        %v5529 = vrot.slane %v4678, 5
        %v5530 = vsel %vm2193, %v5528, %v5529
        %v5531 = vrot.slane %v5529, 4
        %v5532 = vrot.slane %v4679, 5
        %v5533 = vsel %vm2193, %v5531, %v5532
        %v5534 = vrot.slane %v5416, 5
        %v5535 = vrot.slane %v5534, 4
        %v5536 = vrot.slane %v4681, 5
        %v5537 = vsel %vm2193, %v5535, %v5536
        %v5538 = vrot.slane %v5536, 4
        %v5539 = vrot.slane %v4682, 5
        %v5540 = vsel %vm2193, %v5538, %v5539
        %v5541 = vrot.slane %v5417, 5
        %v5542 = vrot.slane %v5541, 4
        %v5543 = vrot.slane %v4684, 5
        %v5544 = vsel %vm2193, %v5542, %v5543
        %v5545 = vrot.slane %v5543, 4
        %v5546 = vrot.slane %v4685, 5
        %v5547 = vsel %vm2193, %v5545, %v5546
        %v5548 = vrot.slane %v5418, 5
        %v5549 = vrot.slane %v5548, 4
        %v5550 = vrot.slane %v4687, 5
        %v5551 = vsel %vm2193, %v5549, %v5550
        %v5552 = vrot.slane %v5550, 4
        %v5553 = vrot.slane %v4688, 5
        %v5554 = vsel %vm2193, %v5552, %v5553
        %v5555 = vrot.slane %v5419, 5
        %v5556 = vrot.slane %v5555, 4
        %v5557 = vrot.slane %v4690, 5
        %v5558 = vsel %vm2193, %v5556, %v5557
        %v5559 = vrot.slane %v5557, 4
        %v5560 = vrot.slane %v4691, 5
        %v5561 = vsel %vm2193, %v5559, %v5560
        %v5562 = vrot.slane %v5420, 5
        %v5563 = vrot.slane %v5562, 4
        %v5564 = vrot.slane %v4693, 5
        %v5565 = vsel %vm2193, %v5563, %v5564
        %v5566 = vrot.slane %v5564, 4
        %v5567 = vrot.slane %v4694, 5
        %v5568 = vsel %vm2193, %v5566, %v5567
        %v5569 = vrot.slane %v5421, 5
        %v5570 = vrot.slane %v5569, 4
        %v5571 = vrot.slane %v4696, 5
        %v5572 = vsel %vm2193, %v5570, %v5571
        %v5573 = vrot.slane %v5571, 4
        %v5574 = vrot.slane %v4697, 5
        %v5575 = vsel %vm2193, %v5573, %v5574
        %v5576 = vrot.slane %v5422, 5
        %v5577 = vrot.slane %v5576, 4
        %v5578 = vrot.slane %v4699, 5
        %v5579 = vsel %vm2193, %v5577, %v5578
        %v5580 = vrot.slane %v5578, 4
        %v5581 = vrot.slane %v4700, 5
        %v5582 = vsel %vm2193, %v5580, %v5581
        %s5583 = scalar_lea.vmem %s1, 512
        %v5584 = vld [vmem:[%s5583] sm:$0xf]
        %v5585 = vld [vmem:[%s5583 + $0x4] sm:$0xf]
        %v5586 = vld [vmem:[%s5583 + $0x8] sm:$0xf]
        %v5587 = vld [vmem:[%s5583 + $0xc] sm:$0xf]
        %v5588 = vld [vmem:[%s5583 + $0x10] sm:$0xf]
        %v5589 = vld [vmem:[%s5583 + $0x14] sm:$0xf]
        %v5590 = vld [vmem:[%s5583 + $0x18] sm:$0xf]
        %v5591 = vld [vmem:[%s5583 + $0x1c] sm:$0xf]
        %v5592 = vld [vmem:[%s5583 + $0x20] sm:$0xf]
        %v5593 = vld [vmem:[%s5583 + $0x24] sm:$0xf]
        %v5594 = vld [vmem:[%s5583 + $0x28] sm:$0xf]
        %v5595 = vld [vmem:[%s5583 + $0x2c] sm:$0xf]
        %v5596 = vld [vmem:[%s5583 + $0x30] sm:$0xf]
        %v5597 = vld [vmem:[%s5583 + $0x34] sm:$0xf]
        %v5598 = vld [vmem:[%s5583 + $0x38] sm:$0xf]
        %v5599 = vld [vmem:[%s5583 + $0x3c] sm:$0xf]
        %v5600 = vunpack.c.l.b16 %v5474
        %v5601 = vunpack.c.l.b16 %v5477
        %v5602 = vunpack.c.l.b16 %v5481
        %v5603 = vunpack.c.l.b16 %v5484
        %v5604 = vunpack.c.l.b16 %v5488
        %v5605 = vunpack.c.l.b16 %v5491
        %v5606 = vunpack.c.l.b16 %v5495
        %v5607 = vunpack.c.l.b16 %v5498
        %v5608 = vunpack.c.l.b16 %v5502
        %v5609 = vunpack.c.l.b16 %v5505
        %v5610 = vunpack.c.l.b16 %v5509
        %v5611 = vunpack.c.l.b16 %v5512
        %v5612 = vunpack.c.l.b16 %v5516
        %v5613 = vunpack.c.l.b16 %v5519
        %v5614 = vunpack.c.l.b16 %v5523
        %v5615 = vunpack.c.l.b16 %v5526
        %v5616 = vunpack.c.l.b16 %v5530
        %v5617 = vunpack.c.l.b16 %v5533
        %v5618 = vunpack.c.l.b16 %v5537
        %v5619 = vunpack.c.l.b16 %v5540
        %v5620 = vunpack.c.l.b16 %v5544
        %v5621 = vunpack.c.l.b16 %v5547
        %v5622 = vunpack.c.l.b16 %v5551
        %v5623 = vunpack.c.l.b16 %v5554
        %v5624 = vunpack.c.l.b16 %v5558
        %v5625 = vunpack.c.l.b16 %v5561
        %v5626 = vunpack.c.l.b16 %v5565
        %v5627 = vunpack.c.l.b16 %v5568
        %v5628 = vunpack.c.l.b16 %v5572
        %v5629 = vunpack.c.l.b16 %v5575
        %v5630 = vunpack.c.l.b16 %v5579
        %v5631 = vunpack.c.l.b16 %v5582
        %v5632 = vpack.c.b16 %v5601, %v5600
        %v5633 = vpack.c.b16 %v5603, %v5602
        %v5634 = vpack.c.b16 %v5605, %v5604
        %v5635 = vpack.c.b16 %v5607, %v5606
        %v5636 = vpack.c.b16 %v5609, %v5608
        %v5637 = vpack.c.b16 %v5611, %v5610
        %v5638 = vpack.c.b16 %v5613, %v5612
        %v5639 = vpack.c.b16 %v5615, %v5614
        %v5640 = vpack.c.b16 %v5617, %v5616
        %v5641 = vpack.c.b16 %v5619, %v5618
        %v5642 = vpack.c.b16 %v5621, %v5620
        %v5643 = vpack.c.b16 %v5623, %v5622
        %v5644 = vpack.c.b16 %v5625, %v5624
        %v5645 = vpack.c.b16 %v5627, %v5626
        %v5646 = vpack.c.b16 %v5629, %v5628
        %v5647 = vpack.c.b16 %v5631, %v5630
        %v5680 = vunpack.c.l.b16 %v5584
        %v5681 = vunpack.c.l.b16 %v5585
        %v5682 = vunpack.c.l.b16 %v5586
        %v5683 = vunpack.c.l.b16 %v5587
        %v5684 = vunpack.c.l.b16 %v5588
        %v5685 = vunpack.c.l.b16 %v5589
        %v5686 = vunpack.c.l.b16 %v5590
        %v5687 = vunpack.c.l.b16 %v5591
        %v5688 = vunpack.c.l.b16 %v5592
        %v5689 = vunpack.c.l.b16 %v5593
        %v5690 = vunpack.c.l.b16 %v5594
        %v5691 = vunpack.c.l.b16 %v5595
        %v5692 = vunpack.c.l.b16 %v5596
        %v5693 = vunpack.c.l.b16 %v5597
        %v5694 = vunpack.c.l.b16 %v5598
        %v5695 = vunpack.c.l.b16 %v5599
        %v5696 = vpack.c.b16 %v5681, %v5680
        %v5697 = vpack.c.b16 %v5683, %v5682
        %v5698 = vpack.c.b16 %v5685, %v5684
        %v5699 = vpack.c.b16 %v5687, %v5686
        %v5700 = vpack.c.b16 %v5689, %v5688
        %v5701 = vpack.c.b16 %v5691, %v5690
        %v5702 = vpack.c.b16 %v5693, %v5692
        %v5703 = vpack.c.b16 %v5695, %v5694
        %5712 = vmatprep.subr.bf16.mxu0 0
        %5713 = vmatpush1.bf16.msra.mxu0 %v5696
        %5714 = vmatprep.subr.bf16.mxu0 0
        %5715 = vmatpush1.bf16.msra.mxu0 %v5697
        %5716 = vmatprep.subr.bf16.mxu0 0
        %5717 = vmatpush1.bf16.msra.mxu0 %v5698
        %5718 = vmatprep.subr.bf16.mxu0 0
        %5719 = vmatpush1.bf16.msra.mxu0 %v5699
        %5720 = vmatprep.subr.bf16.mxu0 0
        %5721 = vmatpush1.bf16.msra.mxu0 %v5700
        %5722 = vmatprep.subr.bf16.mxu0 0
        %5723 = vmatpush1.bf16.msra.mxu0 %v5701
        %5724 = vmatprep.subr.bf16.mxu0 0
        %5725 = vmatpush1.bf16.msra.mxu0 %v5702
        %5726 = vmatprep.subr.bf16.mxu0 0
        %5727 = vmatpush1.bf16.msra.mxu0 %v5703
        %5728 = vmatprep.subr.bf16.mxu0 0
        %5729 = vmatpush1.bf16.msra.mxu0 0
        %5730 = vmatprep.subr.bf16.mxu0 0
        %5731 = vmatpush1.bf16.msra.mxu0 0
        %5732 = vmatprep.subr.bf16.mxu0 0
        %5733 = vmatpush1.bf16.msra.mxu0 0
        %5734 = vmatprep.subr.bf16.mxu0 0
        %5735 = vmatpush1.bf16.msra.mxu0 0
        %5736 = vmatprep.subr.bf16.mxu0 0
        %5737 = vmatpush1.bf16.msra.mxu0 0
        %5738 = vmatprep.subr.bf16.mxu0 0
        %5739 = vmatpush1.bf16.msra.mxu0 0
        %5740 = vmatprep.subr.bf16.mxu0 0
        %5741 = vmatpush1.bf16.msra.mxu0 0
        %5742 = vmatprep.subr.bf16.mxu0 0
        %5743 = vmatpush1.bf16.msra.mxu0 0
        %5744 = vmatprep.mubr.bf16.mxu0 0
        %5745 = vmatmul.mubr.bf16.gmra.mrb[0].mxu0 %v5632
        %v5746 = vpop.f32.mrb[0].mxu0
        %v5747 = vadd.f32 0.0, %v5746
        %v5748 = vpop.f32.mrb[0].mxu0
        %v5749 = vpop.f32.mrb[0].mxu0
        %v5750 = vadd.f32 0.0, %v5749
        %v5751 = vpop.f32.mrb[0].mxu0
        %5752 = vmatprep.mubr.bf16.mxu0 0
        %5753 = vmatmul.mubr.bf16.gmra.mrb[0].mxu0 %v5633
        %v5754 = vpop.f32.mrb[0].mxu0
        %v5755 = vadd.f32 0.0, %v5754
        %v5756 = vpop.f32.mrb[0].mxu0
        %v5757 = vpop.f32.mrb[0].mxu0
        %v5758 = vadd.f32 0.0, %v5757
        %v5759 = vpop.f32.mrb[0].mxu0
        %5760 = vmatprep.mubr.bf16.mxu0 0
        %5761 = vmatmul.mubr.bf16.gmra.mrb[0].mxu0 %v5634
        %v5762 = vpop.f32.mrb[0].mxu0
        %v5763 = vadd.f32 0.0, %v5762
        %v5764 = vpop.f32.mrb[0].mxu0
        %v5765 = vpop.f32.mrb[0].mxu0
        %v5766 = vadd.f32 0.0, %v5765
        %v5767 = vpop.f32.mrb[0].mxu0
        %5768 = vmatprep.mubr.bf16.mxu0 0
        %5769 = vmatmul.mubr.bf16.gmra.mrb[0].mxu0 %v5635
        %v5770 = vpop.f32.mrb[0].mxu0
        %v5771 = vadd.f32 0.0, %v5770
        %v5772 = vpop.f32.mrb[0].mxu0
        %v5773 = vpop.f32.mrb[0].mxu0
        %v5774 = vadd.f32 0.0, %v5773
        %v5775 = vpop.f32.mrb[0].mxu0
        %5776 = vmatprep.mubr.bf16.mxu0 0
        %5777 = vmatmul.mubr.bf16.gmra.mrb[0].mxu0 %v5636
        %v5778 = vpop.f32.mrb[0].mxu0
        %v5779 = vadd.f32 0.0, %v5778
        %v5780 = vpop.f32.mrb[0].mxu0
        %v5781 = vpop.f32.mrb[0].mxu0
        %v5782 = vadd.f32 0.0, %v5781
        %v5783 = vpop.f32.mrb[0].mxu0
        %5784 = vmatprep.mubr.bf16.mxu0 0
        %5785 = vmatmul.mubr.bf16.gmra.mrb[0].mxu0 %v5637
        %v5786 = vpop.f32.mrb[0].mxu0
        %v5787 = vadd.f32 0.0, %v5786
        %v5788 = vpop.f32.mrb[0].mxu0
        %v5789 = vpop.f32.mrb[0].mxu0
        %v5790 = vadd.f32 0.0, %v5789
        %v5791 = vpop.f32.mrb[0].mxu0
        %5792 = vmatprep.mubr.bf16.mxu0 0
        %5793 = vmatmul.mubr.bf16.gmra.mrb[0].mxu0 %v5638
        %v5794 = vpop.f32.mrb[0].mxu0
        %v5795 = vadd.f32 0.0, %v5794
        %v5796 = vpop.f32.mrb[0].mxu0
        %v5797 = vpop.f32.mrb[0].mxu0
        %v5798 = vadd.f32 0.0, %v5797
        %v5799 = vpop.f32.mrb[0].mxu0
        %5800 = vmatprep.mubr.bf16.mxu0 0
        %5801 = vmatmul.mubr.bf16.gmra.mrb[0].mxu0 %v5639
        %v5802 = vpop.f32.mrb[0].mxu0
        %v5803 = vadd.f32 0.0, %v5802
        %v5804 = vpop.f32.mrb[0].mxu0
        %v5805 = vpop.f32.mrb[0].mxu0
        %v5806 = vadd.f32 0.0, %v5805
        %v5807 = vpop.f32.mrb[0].mxu0
        %5808 = vmatprep.mubr.bf16.mxu0 0
        %5809 = vmatmul.mubr.bf16.gmra.mrb[0].mxu0 %v5640
        %v5810 = vpop.f32.mrb[0].mxu0
        %v5811 = vadd.f32 0.0, %v5810
        %v5812 = vpop.f32.mrb[0].mxu0
        %v5813 = vpop.f32.mrb[0].mxu0
        %v5814 = vadd.f32 0.0, %v5813
        %v5815 = vpop.f32.mrb[0].mxu0
        %5816 = vmatprep.mubr.bf16.mxu0 0
        %5817 = vmatmul.mubr.bf16.gmra.mrb[0].mxu0 %v5641
        %v5818 = vpop.f32.mrb[0].mxu0
        %v5819 = vadd.f32 0.0, %v5818
        %v5820 = vpop.f32.mrb[0].mxu0
        %v5821 = vpop.f32.mrb[0].mxu0
        %v5822 = vadd.f32 0.0, %v5821
        %v5823 = vpop.f32.mrb[0].mxu0
        %5824 = vmatprep.mubr.bf16.mxu0 0
        %5825 = vmatmul.mubr.bf16.gmra.mrb[0].mxu0 %v5642
        %v5826 = vpop.f32.mrb[0].mxu0
        %v5827 = vadd.f32 0.0, %v5826
        %v5828 = vpop.f32.mrb[0].mxu0
        %v5829 = vpop.f32.mrb[0].mxu0
        %v5830 = vadd.f32 0.0, %v5829
        %v5831 = vpop.f32.mrb[0].mxu0
        %5832 = vmatprep.mubr.bf16.mxu0 0
        %5833 = vmatmul.mubr.bf16.gmra.mrb[0].mxu0 %v5643
        %v5834 = vpop.f32.mrb[0].mxu0
        %v5835 = vadd.f32 0.0, %v5834
        %v5836 = vpop.f32.mrb[0].mxu0
        %v5837 = vpop.f32.mrb[0].mxu0
        %v5838 = vadd.f32 0.0, %v5837
        %v5839 = vpop.f32.mrb[0].mxu0
        %5840 = vmatprep.mubr.bf16.mxu0 0
        %5841 = vmatmul.mubr.bf16.gmra.mrb[0].mxu0 %v5644
        %v5842 = vpop.f32.mrb[0].mxu0
        %v5843 = vadd.f32 0.0, %v5842
        %v5844 = vpop.f32.mrb[0].mxu0
        %v5845 = vpop.f32.mrb[0].mxu0
        %v5846 = vadd.f32 0.0, %v5845
        %v5847 = vpop.f32.mrb[0].mxu0
        %5848 = vmatprep.mubr.bf16.mxu0 0
        %5849 = vmatmul.mubr.bf16.gmra.mrb[0].mxu0 %v5645
        %v5850 = vpop.f32.mrb[0].mxu0
        %v5851 = vadd.f32 0.0, %v5850
        %v5852 = vpop.f32.mrb[0].mxu0
        %v5853 = vpop.f32.mrb[0].mxu0
        %v5854 = vadd.f32 0.0, %v5853
        %v5855 = vpop.f32.mrb[0].mxu0
        %5856 = vmatprep.mubr.bf16.mxu0 0
        %5857 = vmatmul.mubr.bf16.gmra.mrb[0].mxu0 %v5646
        %v5858 = vpop.f32.mrb[0].mxu0
        %v5859 = vadd.f32 0.0, %v5858
        %v5860 = vpop.f32.mrb[0].mxu0
        %v5861 = vpop.f32.mrb[0].mxu0
        %v5862 = vadd.f32 0.0, %v5861
        %v5863 = vpop.f32.mrb[0].mxu0
        %5864 = vmatprep.mubr.bf16.mxu0 0
        %5865 = vmatmul.mubr.bf16.gmra.mrb[0].mxu0 %v5647
        %v5866 = vpop.f32.mrb[0].mxu0
        %v5867 = vadd.f32 0.0, %v5866
        %v5868 = vpop.f32.mrb[0].mxu0
        %v5869 = vpop.f32.mrb[0].mxu0
        %v5870 = vadd.f32 0.0, %v5869
        %v5871 = vpop.f32.mrb[0].mxu0
        %5872 = vdwg.mxu0
        %v5873 = vadd.f32 %v5375, %v5747
        %v5874 = vadd.f32 %v5376, %v5750
        %v5875 = vadd.f32 %v5377, %v5755
        %v5876 = vadd.f32 %v5378, %v5758
        %v5877 = vadd.f32 %v5379, %v5763
        %v5878 = vadd.f32 %v5380, %v5766
        %v5879 = vadd.f32 %v5381, %v5771
        %v5880 = vadd.f32 %v5382, %v5774
        %v5881 = vadd.f32 %v5383, %v5779
        %v5882 = vadd.f32 %v5384, %v5782
        %v5883 = vadd.f32 %v5385, %v5787
        %v5884 = vadd.f32 %v5386, %v5790
        %v5885 = vadd.f32 %v5387, %v5795
        %v5886 = vadd.f32 %v5388, %v5798
        %v5887 = vadd.f32 %v5389, %v5803
        %v5888 = vadd.f32 %v5390, %v5806
        %v5889 = vadd.f32 %v5391, %v5811
        %v5890 = vadd.f32 %v5392, %v5814
        %v5891 = vadd.f32 %v5393, %v5819
        %v5892 = vadd.f32 %v5394, %v5822
        %v5893 = vadd.f32 %v5395, %v5827
        %v5894 = vadd.f32 %v5396, %v5830
        %v5895 = vadd.f32 %v5397, %v5835
        %v5896 = vadd.f32 %v5398, %v5838
        %v5897 = vadd.f32 %v5399, %v5843
        %v5898 = vadd.f32 %v5400, %v5846
        %v5899 = vadd.f32 %v5401, %v5851
        %v5900 = vadd.f32 %v5402, %v5854
        %v5901 = vadd.f32 %v5403, %v5859
        %v5902 = vadd.f32 %v5404, %v5862
        %v5903 = vadd.f32 %v5405, %v5867
        %v5904 = vadd.f32 %v5406, %v5870
        %v5905 = vld [vmem:[%s2] sm:$0x1]
        %v5907 = vlaneseq
        %v5908 = vshrl.u32 %v5907, 7
        %v5909 = vsub.s32 0, %v5908
        %v5910 = vrot.slane %v5905, %v5909
        %v5912 = vadd.f32 %v5873, %v5910
        %v5913 = vadd.f32 %v5874, %v5910
        %v5914 = vadd.f32 %v5875, %v5910
        %v5915 = vadd.f32 %v5876, %v5910
        %v5916 = vadd.f32 %v5877, %v5910
        %v5917 = vadd.f32 %v5878, %v5910
        %v5918 = vadd.f32 %v5879, %v5910
        %v5919 = vadd.f32 %v5880, %v5910
        %v5920 = vadd.f32 %v5881, %v5910
        %v5921 = vadd.f32 %v5882, %v5910
        %v5922 = vadd.f32 %v5883, %v5910
        %v5923 = vadd.f32 %v5884, %v5910
        %v5924 = vadd.f32 %v5885, %v5910
        %v5925 = vadd.f32 %v5886, %v5910
        %v5926 = vadd.f32 %v5887, %v5910
        %v5927 = vadd.f32 %v5888, %v5910
        %v5928 = vadd.f32 %v5889, %v5910
        %v5929 = vadd.f32 %v5890, %v5910
        %v5930 = vadd.f32 %v5891, %v5910
        %v5931 = vadd.f32 %v5892, %v5910
        %v5932 = vadd.f32 %v5893, %v5910
        %v5933 = vadd.f32 %v5894, %v5910
        %v5934 = vadd.f32 %v5895, %v5910
        %v5935 = vadd.f32 %v5896, %v5910
        %v5936 = vadd.f32 %v5897, %v5910
        %v5937 = vadd.f32 %v5898, %v5910
        %v5938 = vadd.f32 %v5899, %v5910
        %v5939 = vadd.f32 %v5900, %v5910
        %v5940 = vadd.f32 %v5901, %v5910
        %v5941 = vadd.f32 %v5902, %v5910
        %v5942 = vadd.f32 %v5903, %v5910
        %v5943 = vadd.f32 %v5904, %v5910
        %v5944 = vmax.f32 %v5912, 0.0
        %v5945 = vmax.f32 %v5913, 0.0
        %v5946 = vmax.f32 %v5914, 0.0
        %v5947 = vmax.f32 %v5915, 0.0
        %v5948 = vmax.f32 %v5916, 0.0
        %v5949 = vmax.f32 %v5917, 0.0
        %v5950 = vmax.f32 %v5918, 0.0
        %v5951 = vmax.f32 %v5919, 0.0
        %v5952 = vmax.f32 %v5920, 0.0
        %v5953 = vmax.f32 %v5921, 0.0
        %v5954 = vmax.f32 %v5922, 0.0
        %v5955 = vmax.f32 %v5923, 0.0
        %v5956 = vmax.f32 %v5924, 0.0
        %v5957 = vmax.f32 %v5925, 0.0
        %v5958 = vmax.f32 %v5926, 0.0
        %v5959 = vmax.f32 %v5927, 0.0
        %v5960 = vmax.f32 %v5928, 0.0
        %v5961 = vmax.f32 %v5929, 0.0
        %v5962 = vmax.f32 %v5930, 0.0
        %v5963 = vmax.f32 %v5931, 0.0
        %v5964 = vmax.f32 %v5932, 0.0
        %v5965 = vmax.f32 %v5933, 0.0
        %v5966 = vmax.f32 %v5934, 0.0
        %v5967 = vmax.f32 %v5935, 0.0
        %v5968 = vmax.f32 %v5936, 0.0
        %v5969 = vmax.f32 %v5937, 0.0
        %v5970 = vmax.f32 %v5938, 0.0
        %v5971 = vmax.f32 %v5939, 0.0
        %v5972 = vmax.f32 %v5940, 0.0
        %v5973 = vmax.f32 %v5941, 0.0
        %v5974 = vmax.f32 %v5942, 0.0
        %v5975 = vmax.f32 %v5943, 0.0
        %v5976 = vpack.c.bf16 %v5945, %v5944
        %v5977 = vpack.c.bf16 %v5947, %v5946
        %v5978 = vpack.c.bf16 %v5949, %v5948
        %v5979 = vpack.c.bf16 %v5951, %v5950
        %v5980 = vpack.c.bf16 %v5953, %v5952
        %v5981 = vpack.c.bf16 %v5955, %v5954
        %v5982 = vpack.c.bf16 %v5957, %v5956
        %v5983 = vpack.c.bf16 %v5959, %v5958
        %v5984 = vpack.c.bf16 %v5961, %v5960
        %v5985 = vpack.c.bf16 %v5963, %v5962
        %v5986 = vpack.c.bf16 %v5965, %v5964
        %v5987 = vpack.c.bf16 %v5967, %v5966
        %v5988 = vpack.c.bf16 %v5969, %v5968
        %v5989 = vpack.c.bf16 %v5971, %v5970
        %v5990 = vpack.c.bf16 %v5973, %v5972
        %v5991 = vpack.c.bf16 %v5975, %v5974
        %v6008 = vunpack.c.l.b16 %v5976
        %v6009 = vunpack.c.h.b16 %v5976
        %v6010 = vunpack.c.l.b16 %v5977
        %v6011 = vunpack.c.h.b16 %v5977
        %v6012 = vunpack.c.l.b16 %v5978
        %v6013 = vunpack.c.h.b16 %v5978
        %v6014 = vunpack.c.l.b16 %v5979
        %v6015 = vunpack.c.h.b16 %v5979
        %v6016 = vunpack.c.l.b16 %v5980
        %v6017 = vunpack.c.h.b16 %v5980
        %v6018 = vunpack.c.l.b16 %v5981
        %v6019 = vunpack.c.h.b16 %v5981
        %v6020 = vunpack.c.l.b16 %v5982
        %v6021 = vunpack.c.h.b16 %v5982
        %v6022 = vunpack.c.l.b16 %v5983
        %v6023 = vunpack.c.h.b16 %v5983
        %v6024 = vunpack.c.l.b16 %v5984
        %v6025 = vunpack.c.h.b16 %v5984
        %v6026 = vunpack.c.l.b16 %v5985
        %v6027 = vunpack.c.h.b16 %v5985
        %v6028 = vunpack.c.l.b16 %v5986
        %v6029 = vunpack.c.h.b16 %v5986
        %v6030 = vunpack.c.l.b16 %v5987
        %v6031 = vunpack.c.h.b16 %v5987
        %v6032 = vunpack.c.l.b16 %v5988
        %v6033 = vunpack.c.h.b16 %v5988
        %v6034 = vunpack.c.l.b16 %v5989
        %v6035 = vunpack.c.h.b16 %v5989
        %v6036 = vunpack.c.l.b16 %v5990
        %v6037 = vunpack.c.h.b16 %v5990
        %v6038 = vunpack.c.l.b16 %v5991
        %v6039 = vunpack.c.h.b16 %v5991
        %v6040 = vpack.c.b16 %v6008, %v6008
        %v6041 = vpack.c.b16 %v6009, %v6009
        %v6042 = vpack.c.b16 %v6010, %v6010
        %v6043 = vpack.c.b16 %v6011, %v6011
        %v6044 = vpack.c.b16 %v6012, %v6012
        %v6045 = vpack.c.b16 %v6013, %v6013
        %v6046 = vpack.c.b16 %v6014, %v6014
        %v6047 = vpack.c.b16 %v6015, %v6015
        %v6048 = vpack.c.b16 %v6016, %v6016
        %v6049 = vpack.c.b16 %v6017, %v6017
        %v6050 = vpack.c.b16 %v6018, %v6018
        %v6051 = vpack.c.b16 %v6019, %v6019
        %v6052 = vpack.c.b16 %v6020, %v6020
        %v6053 = vpack.c.b16 %v6021, %v6021
        %v6054 = vpack.c.b16 %v6022, %v6022
        %v6055 = vpack.c.b16 %v6023, %v6023
        %v6056 = vpack.c.b16 %v6024, %v6024
        %v6057 = vpack.c.b16 %v6025, %v6025
        %v6058 = vpack.c.b16 %v6026, %v6026
        %v6059 = vpack.c.b16 %v6027, %v6027
        %v6060 = vpack.c.b16 %v6028, %v6028
        %v6061 = vpack.c.b16 %v6029, %v6029
        %v6062 = vpack.c.b16 %v6030, %v6030
        %v6063 = vpack.c.b16 %v6031, %v6031
        %v6064 = vpack.c.b16 %v6032, %v6032
        %v6065 = vpack.c.b16 %v6033, %v6033
        %v6066 = vpack.c.b16 %v6034, %v6034
        %v6067 = vpack.c.b16 %v6035, %v6035
        %v6068 = vpack.c.b16 %v6036, %v6036
        %v6069 = vpack.c.b16 %v6037, %v6037
        %v6070 = vpack.c.b16 %v6038, %v6038
        %v6071 = vpack.c.b16 %v6039, %v6039
        %v6073 = vshrl.u32 %v6040, 16
        %v6075 = vrot.slane %v6073, 7
        %v6076 = vshll.u32 %v6040, 16
        %v6078 = vor.u32 %v6075, %v6076
        %v6079 = vrot.slane %v6075, 4
        %v6081 = vshrl.u32 %v6041, 16
        %v6083 = vrot.slane %v6081, 7
        %v6084 = vshll.u32 %v6041, 16
        %v6086 = vor.u32 %v6083, %v6084
        %v6087 = vsel %vm354, %v6079, %v6086
        %v6088 = vrot.slane %v6083, 4
        %v6090 = vshrl.u32 %v6042, 16
        %v6092 = vrot.slane %v6090, 7
        %v6093 = vshll.u32 %v6042, 16
        %v6095 = vor.u32 %v6092, %v6093
        %v6096 = vrot.slane %v6092, 4
        %v6098 = vshrl.u32 %v6043, 16
        %v6100 = vrot.slane %v6098, 7
        %v6101 = vshll.u32 %v6043, 16
        %v6103 = vor.u32 %v6100, %v6101
        %v6104 = vsel %vm354, %v6096, %v6103
        %v6105 = vrot.slane %v6100, 4
        %v6107 = vshrl.u32 %v6044, 16
        %v6109 = vrot.slane %v6107, 7
        %v6110 = vshll.u32 %v6044, 16
        %v6112 = vor.u32 %v6109, %v6110
        %v6113 = vrot.slane %v6109, 4
        %v6115 = vshrl.u32 %v6045, 16
        %v6117 = vrot.slane %v6115, 7
        %v6118 = vshll.u32 %v6045, 16
        %v6120 = vor.u32 %v6117, %v6118
        %v6121 = vsel %vm354, %v6113, %v6120
        %v6122 = vrot.slane %v6117, 4
        %v6124 = vshrl.u32 %v6046, 16
        %v6126 = vrot.slane %v6124, 7
        %v6127 = vshll.u32 %v6046, 16
        %v6129 = vor.u32 %v6126, %v6127
        %v6130 = vrot.slane %v6126, 4
        %v6132 = vshrl.u32 %v6047, 16
        %v6134 = vrot.slane %v6132, 7
        %v6135 = vshll.u32 %v6047, 16
        %v6137 = vor.u32 %v6134, %v6135
        %v6138 = vsel %vm354, %v6130, %v6137
        %v6139 = vrot.slane %v6134, 4
        %v6141 = vshrl.u32 %v6048, 16
        %v6143 = vrot.slane %v6141, 7
        %v6144 = vshll.u32 %v6048, 16
        %v6146 = vor.u32 %v6143, %v6144
        %v6147 = vrot.slane %v6143, 4
        %v6149 = vshrl.u32 %v6049, 16
        %v6151 = vrot.slane %v6149, 7
        %v6152 = vshll.u32 %v6049, 16
        %v6154 = vor.u32 %v6151, %v6152
        %v6155 = vsel %vm354, %v6147, %v6154
        %v6156 = vrot.slane %v6151, 4
        %v6158 = vshrl.u32 %v6050, 16
        %v6160 = vrot.slane %v6158, 7
        %v6161 = vshll.u32 %v6050, 16
        %v6163 = vor.u32 %v6160, %v6161
        %v6164 = vrot.slane %v6160, 4
        %v6166 = vshrl.u32 %v6051, 16
        %v6168 = vrot.slane %v6166, 7
        %v6169 = vshll.u32 %v6051, 16
        %v6171 = vor.u32 %v6168, %v6169
        %v6172 = vsel %vm354, %v6164, %v6171
        %v6173 = vrot.slane %v6168, 4
        %v6175 = vshrl.u32 %v6052, 16
        %v6177 = vrot.slane %v6175, 7
        %v6178 = vshll.u32 %v6052, 16
        %v6180 = vor.u32 %v6177, %v6178
        %v6181 = vrot.slane %v6177, 4
        %v6183 = vshrl.u32 %v6053, 16
        %v6185 = vrot.slane %v6183, 7
        %v6186 = vshll.u32 %v6053, 16
        %v6188 = vor.u32 %v6185, %v6186
        %v6189 = vsel %vm354, %v6181, %v6188
        %v6190 = vrot.slane %v6185, 4
        %v6192 = vshrl.u32 %v6054, 16
        %v6194 = vrot.slane %v6192, 7
        %v6195 = vshll.u32 %v6054, 16
        %v6197 = vor.u32 %v6194, %v6195
        %v6198 = vrot.slane %v6194, 4
        %v6200 = vshrl.u32 %v6055, 16
        %v6202 = vrot.slane %v6200, 7
        %v6203 = vshll.u32 %v6055, 16
        %v6205 = vor.u32 %v6202, %v6203
        %v6206 = vsel %vm354, %v6198, %v6205
        %v6207 = vrot.slane %v6202, 4
        %v6209 = vshrl.u32 %v6056, 16
        %v6211 = vrot.slane %v6209, 7
        %v6212 = vshll.u32 %v6056, 16
        %v6214 = vor.u32 %v6211, %v6212
        %v6215 = vrot.slane %v6211, 4
        %v6217 = vshrl.u32 %v6057, 16
        %v6219 = vrot.slane %v6217, 7
        %v6220 = vshll.u32 %v6057, 16
        %v6222 = vor.u32 %v6219, %v6220
        %v6223 = vsel %vm354, %v6215, %v6222
        %v6224 = vrot.slane %v6219, 4
        %v6226 = vshrl.u32 %v6058, 16
        %v6228 = vrot.slane %v6226, 7
        %v6229 = vshll.u32 %v6058, 16
        %v6231 = vor.u32 %v6228, %v6229
        %v6232 = vrot.slane %v6228, 4
        %v6234 = vshrl.u32 %v6059, 16
        %v6236 = vrot.slane %v6234, 7
        %v6237 = vshll.u32 %v6059, 16
        %v6239 = vor.u32 %v6236, %v6237
        %v6240 = vsel %vm354, %v6232, %v6239
        %v6241 = vrot.slane %v6236, 4
        %v6243 = vshrl.u32 %v6060, 16
        %v6245 = vrot.slane %v6243, 7
        %v6246 = vshll.u32 %v6060, 16
        %v6248 = vor.u32 %v6245, %v6246
        %v6249 = vrot.slane %v6245, 4
        %v6251 = vshrl.u32 %v6061, 16
        %v6253 = vrot.slane %v6251, 7
        %v6254 = vshll.u32 %v6061, 16
        %v6256 = vor.u32 %v6253, %v6254
        %v6257 = vsel %vm354, %v6249, %v6256
        %v6258 = vrot.slane %v6253, 4
        %v6260 = vshrl.u32 %v6062, 16
        %v6262 = vrot.slane %v6260, 7
        %v6263 = vshll.u32 %v6062, 16
        %v6265 = vor.u32 %v6262, %v6263
        %v6266 = vrot.slane %v6262, 4
        %v6268 = vshrl.u32 %v6063, 16
        %v6270 = vrot.slane %v6268, 7
        %v6271 = vshll.u32 %v6063, 16
        %v6273 = vor.u32 %v6270, %v6271
        %v6274 = vsel %vm354, %v6266, %v6273
        %v6275 = vrot.slane %v6270, 4
        %v6277 = vshrl.u32 %v6064, 16
        %v6279 = vrot.slane %v6277, 7
        %v6280 = vshll.u32 %v6064, 16
        %v6282 = vor.u32 %v6279, %v6280
        %v6283 = vrot.slane %v6279, 4
        %v6285 = vshrl.u32 %v6065, 16
        %v6287 = vrot.slane %v6285, 7
        %v6288 = vshll.u32 %v6065, 16
        %v6290 = vor.u32 %v6287, %v6288
        %v6291 = vsel %vm354, %v6283, %v6290
        %v6292 = vrot.slane %v6287, 4
        %v6294 = vshrl.u32 %v6066, 16
        %v6296 = vrot.slane %v6294, 7
        %v6297 = vshll.u32 %v6066, 16
        %v6299 = vor.u32 %v6296, %v6297
        %v6300 = vrot.slane %v6296, 4
        %v6302 = vshrl.u32 %v6067, 16
        %v6304 = vrot.slane %v6302, 7
        %v6305 = vshll.u32 %v6067, 16
        %v6307 = vor.u32 %v6304, %v6305
        %v6308 = vsel %vm354, %v6300, %v6307
        %v6309 = vrot.slane %v6304, 4
        %v6311 = vshrl.u32 %v6068, 16
        %v6313 = vrot.slane %v6311, 7
        %v6314 = vshll.u32 %v6068, 16
        %v6316 = vor.u32 %v6313, %v6314
        %v6317 = vrot.slane %v6313, 4
        %v6319 = vshrl.u32 %v6069, 16
        %v6321 = vrot.slane %v6319, 7
        %v6322 = vshll.u32 %v6069, 16
        %v6324 = vor.u32 %v6321, %v6322
        %v6325 = vsel %vm354, %v6317, %v6324
        %v6326 = vrot.slane %v6321, 4
        %v6328 = vshrl.u32 %v6070, 16
        %v6330 = vrot.slane %v6328, 7
        %v6331 = vshll.u32 %v6070, 16
        %v6333 = vor.u32 %v6330, %v6331
        %v6334 = vrot.slane %v6330, 4
        %v6336 = vshrl.u32 %v6071, 16
        %v6338 = vrot.slane %v6336, 7
        %v6339 = vshll.u32 %v6071, 16
        %v6341 = vor.u32 %v6338, %v6339
        %v6342 = vsel %vm354, %v6334, %v6341
        %v6343 = vrot.slane %v6338, 4
        %s6392 = scalar_lea.vmem [#allocation3], 12
        %v6393 = vld [vmem:[%s6392] sm:$0xf]
        %v6394 = vsel %vm678, %v6078, %v6393
        %6395 = vst [vmem:[%s6392] sm:$0xf] %v6394
        %6396 = vst [vmem:[%s6392 + $0x4] sm:$0xf] %v6087
        %v6397 = vld [vmem:[%s6392 + $0x8] sm:$0x1]
        %v6398 = vsel %vm684, %v6088, %v6397
        %6399 = vst [vmem:[%s6392 + $0x8] sm:$0x1] %v6398
        %v6400 = vld [vmem:[%s6392 + $0xc] sm:$0xf]
        %v6401 = vsel %vm678, %v6095, %v6400
        %6402 = vst [vmem:[%s6392 + $0xc] sm:$0xf] %v6401
        %6403 = vst [vmem:[%s6392 + $0x10] sm:$0xf] %v6104
        %v6404 = vld [vmem:[%s6392 + $0x14] sm:$0x1]
        %v6405 = vsel %vm684, %v6105, %v6404
        %6406 = vst [vmem:[%s6392 + $0x14] sm:$0x1] %v6405
        %v6407 = vld [vmem:[%s6392 + $0x18] sm:$0xf]
        %v6408 = vsel %vm678, %v6112, %v6407
        %6409 = vst [vmem:[%s6392 + $0x18] sm:$0xf] %v6408
        %6410 = vst [vmem:[%s6392 + $0x1c] sm:$0xf] %v6121
        %v6411 = vld [vmem:[%s6392 + $0x20] sm:$0x1]
        %v6412 = vsel %vm684, %v6122, %v6411
        %6413 = vst [vmem:[%s6392 + $0x20] sm:$0x1] %v6412
        %v6414 = vld [vmem:[%s6392 + $0x24] sm:$0xf]
        %v6415 = vsel %vm678, %v6129, %v6414
        %6416 = vst [vmem:[%s6392 + $0x24] sm:$0xf] %v6415
        %6417 = vst [vmem:[%s6392 + $0x28] sm:$0xf] %v6138
        %v6418 = vld [vmem:[%s6392 + $0x2c] sm:$0x1]
        %v6419 = vsel %vm684, %v6139, %v6418
        %6420 = vst [vmem:[%s6392 + $0x2c] sm:$0x1] %v6419
        %v6421 = vld [vmem:[%s6392 + $0x30] sm:$0xf]
        %v6422 = vsel %vm678, %v6146, %v6421
        %6423 = vst [vmem:[%s6392 + $0x30] sm:$0xf] %v6422
        %6424 = vst [vmem:[%s6392 + $0x34] sm:$0xf] %v6155
        %v6425 = vld [vmem:[%s6392 + $0x38] sm:$0x1]
        %v6426 = vsel %vm684, %v6156, %v6425
        %6427 = vst [vmem:[%s6392 + $0x38] sm:$0x1] %v6426
        %v6428 = vld [vmem:[%s6392 + $0x3c] sm:$0xf]
        %v6429 = vsel %vm678, %v6163, %v6428
        %6430 = vst [vmem:[%s6392 + $0x3c] sm:$0xf] %v6429
        %6431 = vst [vmem:[%s6392 + $0x40] sm:$0xf] %v6172
        %v6432 = vld [vmem:[%s6392 + $0x44] sm:$0x1]
        %v6433 = vsel %vm684, %v6173, %v6432
        %6434 = vst [vmem:[%s6392 + $0x44] sm:$0x1] %v6433
        %v6435 = vld [vmem:[%s6392 + $0x48] sm:$0xf]
        %v6436 = vsel %vm678, %v6180, %v6435
        %6437 = vst [vmem:[%s6392 + $0x48] sm:$0xf] %v6436
        %6438 = vst [vmem:[%s6392 + $0x4c] sm:$0xf] %v6189
        %v6439 = vld [vmem:[%s6392 + $0x50] sm:$0x1]
        %v6440 = vsel %vm684, %v6190, %v6439
        %6441 = vst [vmem:[%s6392 + $0x50] sm:$0x1] %v6440
        %v6442 = vld [vmem:[%s6392 + $0x54] sm:$0xf]
        %v6443 = vsel %vm678, %v6197, %v6442
        %6444 = vst [vmem:[%s6392 + $0x54] sm:$0xf] %v6443
        %6445 = vst [vmem:[%s6392 + $0x58] sm:$0xf] %v6206
        %v6446 = vld [vmem:[%s6392 + $0x5c] sm:$0x1]
        %v6447 = vsel %vm684, %v6207, %v6446
        %6448 = vst [vmem:[%s6392 + $0x5c] sm:$0x1] %v6447
        %v6449 = vld [vmem:[%s6392 + $0x60] sm:$0xf]
        %v6450 = vsel %vm678, %v6214, %v6449
        %6451 = vst [vmem:[%s6392 + $0x60] sm:$0xf] %v6450
        %6452 = vst [vmem:[%s6392 + $0x64] sm:$0xf] %v6223
        %v6453 = vld [vmem:[%s6392 + $0x68] sm:$0x1]
        %v6454 = vsel %vm684, %v6224, %v6453
        %6455 = vst [vmem:[%s6392 + $0x68] sm:$0x1] %v6454
        %v6456 = vld [vmem:[%s6392 + $0x6c] sm:$0xf]
        %v6457 = vsel %vm678, %v6231, %v6456
        %6458 = vst [vmem:[%s6392 + $0x6c] sm:$0xf] %v6457
        %6459 = vst [vmem:[%s6392 + $0x70] sm:$0xf] %v6240
        %v6460 = vld [vmem:[%s6392 + $0x74] sm:$0x1]
        %v6461 = vsel %vm684, %v6241, %v6460
        %6462 = vst [vmem:[%s6392 + $0x74] sm:$0x1] %v6461
        %v6463 = vld [vmem:[%s6392 + $0x78] sm:$0xf]
        %v6464 = vsel %vm678, %v6248, %v6463
        %6465 = vst [vmem:[%s6392 + $0x78] sm:$0xf] %v6464
        %6466 = vst [vmem:[%s6392 + $0x7c] sm:$0xf] %v6257
        %v6467 = vld [vmem:[%s6392 + $0x80] sm:$0x1]
        %v6468 = vsel %vm684, %v6258, %v6467
        %6469 = vst [vmem:[%s6392 + $0x80] sm:$0x1] %v6468
        %v6470 = vld [vmem:[%s6392 + $0x84] sm:$0xf]
        %v6471 = vsel %vm678, %v6265, %v6470
        %6472 = vst [vmem:[%s6392 + $0x84] sm:$0xf] %v6471
        %6473 = vst [vmem:[%s6392 + $0x88] sm:$0xf] %v6274
        %v6474 = vld [vmem:[%s6392 + $0x8c] sm:$0x1]
        %v6475 = vsel %vm684, %v6275, %v6474
        %6476 = vst [vmem:[%s6392 + $0x8c] sm:$0x1] %v6475
        %v6477 = vld [vmem:[%s6392 + $0x90] sm:$0xf]
        %v6478 = vsel %vm678, %v6282, %v6477
        %6479 = vst [vmem:[%s6392 + $0x90] sm:$0xf] %v6478
        %6480 = vst [vmem:[%s6392 + $0x94] sm:$0xf] %v6291
        %v6481 = vld [vmem:[%s6392 + $0x98] sm:$0x1]
        %v6482 = vsel %vm684, %v6292, %v6481
        %6483 = vst [vmem:[%s6392 + $0x98] sm:$0x1] %v6482
        %v6484 = vld [vmem:[%s6392 + $0x9c] sm:$0xf]
        %v6485 = vsel %vm678, %v6299, %v6484
        %6486 = vst [vmem:[%s6392 + $0x9c] sm:$0xf] %v6485
        %6487 = vst [vmem:[%s6392 + $0xa0] sm:$0xf] %v6308
        %v6488 = vld [vmem:[%s6392 + $0xa4] sm:$0x1]
        %v6489 = vsel %vm684, %v6309, %v6488
        %6490 = vst [vmem:[%s6392 + $0xa4] sm:$0x1] %v6489
        %v6491 = vld [vmem:[%s6392 + $0xa8] sm:$0xf]
        %v6492 = vsel %vm678, %v6316, %v6491
        %6493 = vst [vmem:[%s6392 + $0xa8] sm:$0xf] %v6492
        %6494 = vst [vmem:[%s6392 + $0xac] sm:$0xf] %v6325
        %v6495 = vld [vmem:[%s6392 + $0xb0] sm:$0x1]
        %v6496 = vsel %vm684, %v6326, %v6495
        %6497 = vst [vmem:[%s6392 + $0xb0] sm:$0x1] %v6496
        %v6498 = vld [vmem:[%s6392 + $0xb4] sm:$0xf]
        %v6499 = vsel %vm678, %v6333, %v6498
        %6500 = vst [vmem:[%s6392 + $0xb4] sm:$0xf] %v6499
        %6501 = vst [vmem:[%s6392 + $0xb8] sm:$0xf] %v6342
        %v6502 = vld [vmem:[%s6392 + $0xbc] sm:$0x1]
        %v6503 = vsel %vm684, %v6343, %v6502
        %6504 = vst [vmem:[%s6392 + $0xbc] sm:$0x1] %v6503
        %v6505 = vld [vmem:[#allocation3] sm:$0xf]
        %v6506 = vsel %vm678, %v6095, %v6505
        %6507 = vst [vmem:[#allocation3] sm:$0xf] %v6506
        %6508 = vst [vmem:[#allocation3 + $0x4] sm:$0xf] %v6104
        %v6509 = vld [vmem:[#allocation3 + $0x8] sm:$0x1]
        %v6510 = vsel %vm684, %v6105, %v6509
        %6511 = vst [vmem:[#allocation3 + $0x8] sm:$0x1] %v6510
        %s6512 = scalar_lea.vmem [#allocation3], 204
        %v6513 = vld [vmem:[%s6512] sm:$0xf]
        %v6514 = vsel %vm678, %v6316, %v6513
        %6515 = vst [vmem:[%s6512] sm:$0xf] %v6514
        %6516 = vst [vmem:[%s6512 + $0x4] sm:$0xf] %v6325
        %v6517 = vld [vmem:[%s6512 + $0x8] sm:$0x1]
        %v6518 = vsel %vm684, %v6326, %v6517
        %6519 = vst [vmem:[%s6512 + $0x8] sm:$0x1] %v6518
        %v6520 = vld [vmem:[#allocation3] sm:$0x2]
        %v6521 = vld [vmem:[#allocation3 + $0xc] sm:$0x2]
        %v6522 = vld [vmem:[#allocation3 + $0x18] sm:$0x2]
        %v6523 = vld [vmem:[#allocation3 + $0x24] sm:$0x2]
        %v6524 = vld [vmem:[#allocation3 + $0x30] sm:$0x2]
        %v6525 = vld [vmem:[#allocation3 + $0x3c] sm:$0x2]
        %v6526 = vld [vmem:[#allocation3 + $0x48] sm:$0x2]
        %v6527 = vld [vmem:[#allocation3 + $0x54] sm:$0x2]
        %v6528 = vld [vmem:[#allocation3 + $0x60] sm:$0x2]
        %v6529 = vld [vmem:[#allocation3 + $0x6c] sm:$0x2]
        %v6530 = vld [vmem:[#allocation3 + $0x78] sm:$0x2]
        %v6531 = vld [vmem:[#allocation3 + $0x84] sm:$0x2]
        %v6532 = vld [vmem:[#allocation3 + $0x90] sm:$0x2]
        %v6533 = vld [vmem:[#allocation3 + $0x9c] sm:$0x2]
        %v6534 = vld [vmem:[#allocation3 + $0xa8] sm:$0x2]
        %v6535 = vld [vmem:[#allocation3 + $0xb4] sm:$0x2]
        %v6536 = vld [vmem:[#allocation3 + $0xc0] sm:$0x2]
        %v6537 = vld [vmem:[#allocation3 + $0xcc] sm:$0x2]
        %v6556 = vrot.slane %v6520, 5
        %v6557 = vrot.slane %v6556, 4
        %v6558 = vrot.slane %v6521, 5
        %v6559 = vrot.slane %v6558, 4
        %v6560 = vrot.slane %v6522, 5
        %v6561 = vrot.slane %v6560, 4
        %v6562 = vrot.slane %v6523, 5
        %v6563 = vrot.slane %v6562, 4
        %v6564 = vrot.slane %v6524, 5
        %v6565 = vrot.slane %v6564, 4
        %v6566 = vrot.slane %v6525, 5
        %v6567 = vrot.slane %v6566, 4
        %v6568 = vrot.slane %v6526, 5
        %v6569 = vrot.slane %v6568, 4
        %v6570 = vrot.slane %v6527, 5
        %v6571 = vrot.slane %v6570, 4
        %v6572 = vrot.slane %v6528, 5
        %v6573 = vrot.slane %v6572, 4
        %v6574 = vrot.slane %v6529, 5
        %v6575 = vrot.slane %v6574, 4
        %v6576 = vrot.slane %v6530, 5
        %v6577 = vrot.slane %v6576, 4
        %v6578 = vrot.slane %v6531, 5
        %v6579 = vrot.slane %v6578, 4
        %v6580 = vrot.slane %v6532, 5
        %v6581 = vrot.slane %v6580, 4
        %v6582 = vrot.slane %v6533, 5
        %v6583 = vrot.slane %v6582, 4
        %v6584 = vrot.slane %v6534, 5
        %v6585 = vrot.slane %v6584, 4
        %v6586 = vrot.slane %v6535, 5
        %v6587 = vrot.slane %v6586, 4
        %v6588 = vrot.slane %v6536, 5
        %v6589 = vrot.slane %v6588, 4
        %v6590 = vrot.slane %v6537, 5
        %v6591 = vrot.slane %v6590, 4
        %v6610 = vld [vmem:[#allocation3] sm:$0x1]
        %v6611 = vsel %vm684, %v6557, %v6610
        %6612 = vst [vmem:[#allocation3] sm:$0x1] %v6611
        %v6613 = vld [vmem:[#allocation3 + $0xc] sm:$0x1]
        %v6614 = vsel %vm684, %v6559, %v6613
        %6615 = vst [vmem:[#allocation3 + $0xc] sm:$0x1] %v6614
        %v6616 = vld [vmem:[#allocation3 + $0x18] sm:$0x1]
        %v6617 = vsel %vm684, %v6561, %v6616
        %6618 = vst [vmem:[#allocation3 + $0x18] sm:$0x1] %v6617
        %v6619 = vld [vmem:[#allocation3 + $0x24] sm:$0x1]
        %v6620 = vsel %vm684, %v6563, %v6619
        %6621 = vst [vmem:[#allocation3 + $0x24] sm:$0x1] %v6620
        %v6622 = vld [vmem:[#allocation3 + $0x30] sm:$0x1]
        %v6623 = vsel %vm684, %v6565, %v6622
        %6624 = vst [vmem:[#allocation3 + $0x30] sm:$0x1] %v6623
        %v6625 = vld [vmem:[#allocation3 + $0x3c] sm:$0x1]
        %v6626 = vsel %vm684, %v6567, %v6625
        %6627 = vst [vmem:[#allocation3 + $0x3c] sm:$0x1] %v6626
        %v6628 = vld [vmem:[#allocation3 + $0x48] sm:$0x1]
        %v6629 = vsel %vm684, %v6569, %v6628
        %6630 = vst [vmem:[#allocation3 + $0x48] sm:$0x1] %v6629
        %v6631 = vld [vmem:[#allocation3 + $0x54] sm:$0x1]
        %v6632 = vsel %vm684, %v6571, %v6631
        %6633 = vst [vmem:[#allocation3 + $0x54] sm:$0x1] %v6632
        %v6634 = vld [vmem:[#allocation3 + $0x60] sm:$0x1]
        %v6635 = vsel %vm684, %v6573, %v6634
        %6636 = vst [vmem:[#allocation3 + $0x60] sm:$0x1] %v6635
        %v6637 = vld [vmem:[#allocation3 + $0x6c] sm:$0x1]
        %v6638 = vsel %vm684, %v6575, %v6637
        %6639 = vst [vmem:[#allocation3 + $0x6c] sm:$0x1] %v6638
        %v6640 = vld [vmem:[#allocation3 + $0x78] sm:$0x1]
        %v6641 = vsel %vm684, %v6577, %v6640
        %6642 = vst [vmem:[#allocation3 + $0x78] sm:$0x1] %v6641
        %v6643 = vld [vmem:[#allocation3 + $0x84] sm:$0x1]
        %v6644 = vsel %vm684, %v6579, %v6643
        %6645 = vst [vmem:[#allocation3 + $0x84] sm:$0x1] %v6644
        %v6646 = vld [vmem:[#allocation3 + $0x90] sm:$0x1]
        %v6647 = vsel %vm684, %v6581, %v6646
        %6648 = vst [vmem:[#allocation3 + $0x90] sm:$0x1] %v6647
        %v6649 = vld [vmem:[#allocation3 + $0x9c] sm:$0x1]
        %v6650 = vsel %vm684, %v6583, %v6649
        %6651 = vst [vmem:[#allocation3 + $0x9c] sm:$0x1] %v6650
        %v6652 = vld [vmem:[#allocation3 + $0xa8] sm:$0x1]
        %v6653 = vsel %vm684, %v6585, %v6652
        %6654 = vst [vmem:[#allocation3 + $0xa8] sm:$0x1] %v6653
        %v6655 = vld [vmem:[#allocation3 + $0xb4] sm:$0x1]
        %v6656 = vsel %vm684, %v6587, %v6655
        %6657 = vst [vmem:[#allocation3 + $0xb4] sm:$0x1] %v6656
        %v6658 = vld [vmem:[#allocation3 + $0xc0] sm:$0x1]
        %v6659 = vsel %vm684, %v6589, %v6658
        %6660 = vst [vmem:[#allocation3 + $0xc0] sm:$0x1] %v6659
        %v6661 = vld [vmem:[#allocation3 + $0xcc] sm:$0x1]
        %v6662 = vsel %vm684, %v6591, %v6661
        %6663 = vst [vmem:[#allocation3 + $0xcc] sm:$0x1] %v6662
        %v6664 = vld [vmem:[#allocation3 + $0x4] sm:$0x8]
        %v6665 = vld [vmem:[#allocation3 + $0x10] sm:$0x8]
        %v6666 = vld [vmem:[#allocation3 + $0x1c] sm:$0x8]
        %v6667 = vld [vmem:[#allocation3 + $0x28] sm:$0x8]
        %v6668 = vld [vmem:[#allocation3 + $0x34] sm:$0x8]
        %v6669 = vld [vmem:[#allocation3 + $0x40] sm:$0x8]
        %v6670 = vld [vmem:[#allocation3 + $0x4c] sm:$0x8]
        %v6671 = vld [vmem:[#allocation3 + $0x58] sm:$0x8]
        %v6672 = vld [vmem:[#allocation3 + $0x64] sm:$0x8]
        %v6673 = vld [vmem:[#allocation3 + $0x70] sm:$0x8]
        %v6674 = vld [vmem:[#allocation3 + $0x7c] sm:$0x8]
        %v6675 = vld [vmem:[#allocation3 + $0x88] sm:$0x8]
        %v6676 = vld [vmem:[#allocation3 + $0x94] sm:$0x8]
        %v6677 = vld [vmem:[#allocation3 + $0xa0] sm:$0x8]
        %v6678 = vld [vmem:[#allocation3 + $0xac] sm:$0x8]
        %v6679 = vld [vmem:[#allocation3 + $0xb8] sm:$0x8]
        %v6680 = vld [vmem:[#allocation3 + $0xc4] sm:$0x8]
        %v6681 = vld [vmem:[#allocation3 + $0xd0] sm:$0x8]
        %v6700 = vrot.slane %v6664, 7
        %v6701 = vrot.slane %v6700, 4
        %v6702 = vrot.slane %v6665, 7
        %v6703 = vrot.slane %v6702, 4
        %v6704 = vrot.slane %v6666, 7
        %v6705 = vrot.slane %v6704, 4
        %v6706 = vrot.slane %v6667, 7
        %v6707 = vrot.slane %v6706, 4
        %v6708 = vrot.slane %v6668, 7
        %v6709 = vrot.slane %v6708, 4
        %v6710 = vrot.slane %v6669, 7
        %v6711 = vrot.slane %v6710, 4
        %v6712 = vrot.slane %v6670, 7
        %v6713 = vrot.slane %v6712, 4
        %v6714 = vrot.slane %v6671, 7
        %v6715 = vrot.slane %v6714, 4
        %v6716 = vrot.slane %v6672, 7
        %v6717 = vrot.slane %v6716, 4
        %v6718 = vrot.slane %v6673, 7
        %v6719 = vrot.slane %v6718, 4
        %v6720 = vrot.slane %v6674, 7
        %v6721 = vrot.slane %v6720, 4
        %v6722 = vrot.slane %v6675, 7
        %v6723 = vrot.slane %v6722, 4
        %v6724 = vrot.slane %v6676, 7
        %v6725 = vrot.slane %v6724, 4
        %v6726 = vrot.slane %v6677, 7
        %v6727 = vrot.slane %v6726, 4
        %v6728 = vrot.slane %v6678, 7
        %v6729 = vrot.slane %v6728, 4
        %v6730 = vrot.slane %v6679, 7
        %v6731 = vrot.slane %v6730, 4
        %v6732 = vrot.slane %v6680, 7
        %v6733 = vrot.slane %v6732, 4
        %v6734 = vrot.slane %v6681, 7
        %v6735 = vrot.slane %v6734, 4
        %v6754 = vld [vmem:[#allocation3 + $0x8] sm:$0x1]
        %v6755 = vsel %vm1042, %v6701, %v6754
        %6756 = vst [vmem:[#allocation3 + $0x8] sm:$0x1] %v6755
        %v6757 = vld [vmem:[#allocation3 + $0x14] sm:$0x1]
        %v6758 = vsel %vm1042, %v6703, %v6757
        %6759 = vst [vmem:[#allocation3 + $0x14] sm:$0x1] %v6758
        %v6760 = vld [vmem:[#allocation3 + $0x20] sm:$0x1]
        %v6761 = vsel %vm1042, %v6705, %v6760
        %6762 = vst [vmem:[#allocation3 + $0x20] sm:$0x1] %v6761
        %v6763 = vld [vmem:[#allocation3 + $0x2c] sm:$0x1]
        %v6764 = vsel %vm1042, %v6707, %v6763
        %6765 = vst [vmem:[#allocation3 + $0x2c] sm:$0x1] %v6764
        %v6766 = vld [vmem:[#allocation3 + $0x38] sm:$0x1]
        %v6767 = vsel %vm1042, %v6709, %v6766
        %6768 = vst [vmem:[#allocation3 + $0x38] sm:$0x1] %v6767
        %v6769 = vld [vmem:[#allocation3 + $0x44] sm:$0x1]
        %v6770 = vsel %vm1042, %v6711, %v6769
        %6771 = vst [vmem:[#allocation3 + $0x44] sm:$0x1] %v6770
        %v6772 = vld [vmem:[#allocation3 + $0x50] sm:$0x1]
        %v6773 = vsel %vm1042, %v6713, %v6772
        %6774 = vst [vmem:[#allocation3 + $0x50] sm:$0x1] %v6773
        %v6775 = vld [vmem:[#allocation3 + $0x5c] sm:$0x1]
        %v6776 = vsel %vm1042, %v6715, %v6775
        %6777 = vst [vmem:[#allocation3 + $0x5c] sm:$0x1] %v6776
        %v6778 = vld [vmem:[#allocation3 + $0x68] sm:$0x1]
        %v6779 = vsel %vm1042, %v6717, %v6778
        %6780 = vst [vmem:[#allocation3 + $0x68] sm:$0x1] %v6779
        %v6781 = vld [vmem:[#allocation3 + $0x74] sm:$0x1]
        %v6782 = vsel %vm1042, %v6719, %v6781
        %6783 = vst [vmem:[#allocation3 + $0x74] sm:$0x1] %v6782
        %v6784 = vld [vmem:[#allocation3 + $0x80] sm:$0x1]
        %v6785 = vsel %vm1042, %v6721, %v6784
        %6786 = vst [vmem:[#allocation3 + $0x80] sm:$0x1] %v6785
        %v6787 = vld [vmem:[#allocation3 + $0x8c] sm:$0x1]
        %v6788 = vsel %vm1042, %v6723, %v6787
        %6789 = vst [vmem:[#allocation3 + $0x8c] sm:$0x1] %v6788
        %v6790 = vld [vmem:[#allocation3 + $0x98] sm:$0x1]
        %v6791 = vsel %vm1042, %v6725, %v6790
        %6792 = vst [vmem:[#allocation3 + $0x98] sm:$0x1] %v6791
        %v6793 = vld [vmem:[#allocation3 + $0xa4] sm:$0x1]
        %v6794 = vsel %vm1042, %v6727, %v6793
        %6795 = vst [vmem:[#allocation3 + $0xa4] sm:$0x1] %v6794
        %v6796 = vld [vmem:[#allocation3 + $0xb0] sm:$0x1]
        %v6797 = vsel %vm1042, %v6729, %v6796
        %6798 = vst [vmem:[#allocation3 + $0xb0] sm:$0x1] %v6797
        %v6799 = vld [vmem:[#allocation3 + $0xbc] sm:$0x1]
        %v6800 = vsel %vm1042, %v6731, %v6799
        %6801 = vst [vmem:[#allocation3 + $0xbc] sm:$0x1] %v6800
        %v6802 = vld [vmem:[#allocation3 + $0xc8] sm:$0x1]
        %v6803 = vsel %vm1042, %v6733, %v6802
        %6804 = vst [vmem:[#allocation3 + $0xc8] sm:$0x1] %v6803
        %v6805 = vld [vmem:[#allocation3 + $0xd4] sm:$0x1]
        %v6806 = vsel %vm1042, %v6735, %v6805
        %6807 = vst [vmem:[#allocation3 + $0xd4] sm:$0x1] %v6806
        %v6808 = vld [vmem:[#allocation3] sm:$0xf]
        %v6809 = vld [vmem:[#allocation3 + $0x4] sm:$0xf]
        %v6810 = vld [vmem:[#allocation3 + $0xc] sm:$0xf]
        %v6811 = vld [vmem:[#allocation3 + $0x10] sm:$0xf]
        %v6812 = vld [vmem:[#allocation3 + $0x18] sm:$0xf]
        %v6813 = vld [vmem:[#allocation3 + $0x1c] sm:$0xf]
        %v6814 = vld [vmem:[#allocation3 + $0x24] sm:$0xf]
        %v6815 = vld [vmem:[#allocation3 + $0x28] sm:$0xf]
        %v6816 = vld [vmem:[#allocation3 + $0x30] sm:$0xf]
        %v6817 = vld [vmem:[#allocation3 + $0x34] sm:$0xf]
        %v6818 = vld [vmem:[#allocation3 + $0x3c] sm:$0xf]
        %v6819 = vld [vmem:[#allocation3 + $0x40] sm:$0xf]
        %v6820 = vld [vmem:[#allocation3 + $0x48] sm:$0xf]
        %v6821 = vld [vmem:[#allocation3 + $0x4c] sm:$0xf]
        %v6822 = vld [vmem:[#allocation3 + $0x54] sm:$0xf]
        %v6823 = vld [vmem:[#allocation3 + $0x58] sm:$0xf]
        %v6824 = vld [vmem:[#allocation3 + $0x60] sm:$0xf]
        %v6825 = vld [vmem:[#allocation3 + $0x64] sm:$0xf]
        %v6826 = vld [vmem:[#allocation3 + $0x6c] sm:$0xf]
        %v6827 = vld [vmem:[#allocation3 + $0x70] sm:$0xf]
        %v6828 = vld [vmem:[#allocation3 + $0x78] sm:$0xf]
        %v6829 = vld [vmem:[#allocation3 + $0x7c] sm:$0xf]
        %v6830 = vld [vmem:[#allocation3 + $0x84] sm:$0xf]
        %v6831 = vld [vmem:[#allocation3 + $0x88] sm:$0xf]
        %v6832 = vld [vmem:[#allocation3 + $0x90] sm:$0xf]
        %v6833 = vld [vmem:[#allocation3 + $0x94] sm:$0xf]
        %v6834 = vld [vmem:[#allocation3 + $0x9c] sm:$0xf]
        %v6835 = vld [vmem:[#allocation3 + $0xa0] sm:$0xf]
        %v6836 = vld [vmem:[#allocation3 + $0xa8] sm:$0xf]
        %v6837 = vld [vmem:[#allocation3 + $0xac] sm:$0xf]
        %v6838 = vld [vmem:[#allocation3 + $0xb4] sm:$0xf]
        %v6839 = vld [vmem:[#allocation3 + $0xb8] sm:$0xf]
        %v6840 = vld [vmem:[%s3] sm:$0xf]
        %v6841 = vld [vmem:[%s3 + $0x4] sm:$0xf]
        %v6842 = vld [vmem:[%s3 + $0x8] sm:$0xf]
        %v6843 = vld [vmem:[%s3 + $0xc] sm:$0xf]
        %v6844 = vld [vmem:[%s3 + $0x10] sm:$0xf]
        %v6845 = vld [vmem:[%s3 + $0x14] sm:$0xf]
        %v6846 = vld [vmem:[%s3 + $0x18] sm:$0xf]
        %v6847 = vld [vmem:[%s3 + $0x1c] sm:$0xf]
        %v6848 = vld [vmem:[%s3 + $0x20] sm:$0xf]
        %v6849 = vld [vmem:[%s3 + $0x24] sm:$0xf]
        %v6850 = vld [vmem:[%s3 + $0x28] sm:$0xf]
        %v6851 = vld [vmem:[%s3 + $0x2c] sm:$0xf]
        %v6852 = vld [vmem:[%s3 + $0x30] sm:$0xf]
        %v6853 = vld [vmem:[%s3 + $0x34] sm:$0xf]
        %v6854 = vld [vmem:[%s3 + $0x38] sm:$0xf]
        %v6855 = vld [vmem:[%s3 + $0x3c] sm:$0xf]
        %v6856 = vld [vmem:[#allocation3 + $0x8] sm:$0x1]
        %v6857 = vld [vmem:[#allocation3 + $0x14] sm:$0x1]
        %v6858 = vld [vmem:[#allocation3 + $0x20] sm:$0x1]
        %v6859 = vld [vmem:[#allocation3 + $0x2c] sm:$0x1]
        %v6860 = vld [vmem:[#allocation3 + $0x38] sm:$0x1]
        %v6861 = vld [vmem:[#allocation3 + $0x44] sm:$0x1]
        %v6862 = vld [vmem:[#allocation3 + $0x50] sm:$0x1]
        %v6863 = vld [vmem:[#allocation3 + $0x5c] sm:$0x1]
        %v6864 = vld [vmem:[#allocation3 + $0x68] sm:$0x1]
        %v6865 = vld [vmem:[#allocation3 + $0x74] sm:$0x1]
        %v6866 = vld [vmem:[#allocation3 + $0x80] sm:$0x1]
        %v6867 = vld [vmem:[#allocation3 + $0x8c] sm:$0x1]
        %v6868 = vld [vmem:[#allocation3 + $0x98] sm:$0x1]
        %v6869 = vld [vmem:[#allocation3 + $0xa4] sm:$0x1]
        %v6870 = vld [vmem:[#allocation3 + $0xb0] sm:$0x1]
        %v6871 = vld [vmem:[#allocation3 + $0xbc] sm:$0x1]
        %v6873 = vshrl.u32 %v6808, 16
        %v6875 = vrot.slane %v6873, 4
        %v6876 = vshll.u32 %v6808, 16
        %v6878 = vrot.slane %v6876, 5
        %v6879 = vor.u32 %v6875, %v6878
        %v6880 = vrot.slane %v6879, 4
        %v6882 = vshll.u32 %v6809, 16
        %v6884 = vrot.slane %v6882, 5
        %v6885 = vsel %vm1163, %v6880, %v6884
        %v6886 = vshrl.u32 %v6809, 16
        %v6888 = vrot.slane %v6886, 4
        %v6889 = vor.u32 %v6888, %v6884
        %v6890 = vrot.slane %v6889, 4
        %v6892 = vshll.u32 %v6856, 16
        %v6894 = vrot.slane %v6892, 5
        %v6895 = vsel %vm1163, %v6890, %v6894
        %v6897 = vshrl.u32 %v6810, 16
        %v6899 = vrot.slane %v6897, 4
        %v6900 = vshll.u32 %v6810, 16
        %v6902 = vrot.slane %v6900, 5
        %v6903 = vor.u32 %v6899, %v6902
        %v6904 = vrot.slane %v6903, 4
        %v6906 = vshll.u32 %v6811, 16
        %v6908 = vrot.slane %v6906, 5
        %v6909 = vsel %vm1163, %v6904, %v6908
        %v6910 = vshrl.u32 %v6811, 16
        %v6912 = vrot.slane %v6910, 4
        %v6913 = vor.u32 %v6912, %v6908
        %v6914 = vrot.slane %v6913, 4
        %v6916 = vshll.u32 %v6857, 16
        %v6918 = vrot.slane %v6916, 5
        %v6919 = vsel %vm1163, %v6914, %v6918
        %v6921 = vshrl.u32 %v6812, 16
        %v6923 = vrot.slane %v6921, 4
        %v6924 = vshll.u32 %v6812, 16
        %v6926 = vrot.slane %v6924, 5
        %v6927 = vor.u32 %v6923, %v6926
        %v6928 = vrot.slane %v6927, 4
        %v6930 = vshll.u32 %v6813, 16
        %v6932 = vrot.slane %v6930, 5
        %v6933 = vsel %vm1163, %v6928, %v6932
        %v6934 = vshrl.u32 %v6813, 16
        %v6936 = vrot.slane %v6934, 4
        %v6937 = vor.u32 %v6936, %v6932
        %v6938 = vrot.slane %v6937, 4
        %v6940 = vshll.u32 %v6858, 16
        %v6942 = vrot.slane %v6940, 5
        %v6943 = vsel %vm1163, %v6938, %v6942
        %v6945 = vshrl.u32 %v6814, 16
        %v6947 = vrot.slane %v6945, 4
        %v6948 = vshll.u32 %v6814, 16
        %v6950 = vrot.slane %v6948, 5
        %v6951 = vor.u32 %v6947, %v6950
        %v6952 = vrot.slane %v6951, 4
        %v6954 = vshll.u32 %v6815, 16
        %v6956 = vrot.slane %v6954, 5
        %v6957 = vsel %vm1163, %v6952, %v6956
        %v6958 = vshrl.u32 %v6815, 16
        %v6960 = vrot.slane %v6958, 4
        %v6961 = vor.u32 %v6960, %v6956
        %v6962 = vrot.slane %v6961, 4
        %v6964 = vshll.u32 %v6859, 16
        %v6966 = vrot.slane %v6964, 5
        %v6967 = vsel %vm1163, %v6962, %v6966
        %v6969 = vshrl.u32 %v6816, 16
        %v6971 = vrot.slane %v6969, 4
        %v6972 = vshll.u32 %v6816, 16
        %v6974 = vrot.slane %v6972, 5
        %v6975 = vor.u32 %v6971, %v6974
        %v6976 = vrot.slane %v6975, 4
        %v6978 = vshll.u32 %v6817, 16
        %v6980 = vrot.slane %v6978, 5
        %v6981 = vsel %vm1163, %v6976, %v6980
        %v6982 = vshrl.u32 %v6817, 16
        %v6984 = vrot.slane %v6982, 4
        %v6985 = vor.u32 %v6984, %v6980
        %v6986 = vrot.slane %v6985, 4
        %v6988 = vshll.u32 %v6860, 16
        %v6990 = vrot.slane %v6988, 5
        %v6991 = vsel %vm1163, %v6986, %v6990
        %v6993 = vshrl.u32 %v6818, 16
        %v6995 = vrot.slane %v6993, 4
        %v6996 = vshll.u32 %v6818, 16
        %v6998 = vrot.slane %v6996, 5
        %v6999 = vor.u32 %v6995, %v6998
        %v7000 = vrot.slane %v6999, 4
        %v7002 = vshll.u32 %v6819, 16
        %v7004 = vrot.slane %v7002, 5
        %v7005 = vsel %vm1163, %v7000, %v7004
        %v7006 = vshrl.u32 %v6819, 16
        %v7008 = vrot.slane %v7006, 4
        %v7009 = vor.u32 %v7008, %v7004
        %v7010 = vrot.slane %v7009, 4
        %v7012 = vshll.u32 %v6861, 16
        %v7014 = vrot.slane %v7012, 5
        %v7015 = vsel %vm1163, %v7010, %v7014
        %v7017 = vshrl.u32 %v6820, 16
        %v7019 = vrot.slane %v7017, 4
        %v7020 = vshll.u32 %v6820, 16
        %v7022 = vrot.slane %v7020, 5
        %v7023 = vor.u32 %v7019, %v7022
        %v7024 = vrot.slane %v7023, 4
        %v7026 = vshll.u32 %v6821, 16
        %v7028 = vrot.slane %v7026, 5
        %v7029 = vsel %vm1163, %v7024, %v7028
        %v7030 = vshrl.u32 %v6821, 16
        %v7032 = vrot.slane %v7030, 4
        %v7033 = vor.u32 %v7032, %v7028
        %v7034 = vrot.slane %v7033, 4
        %v7036 = vshll.u32 %v6862, 16
        %v7038 = vrot.slane %v7036, 5
        %v7039 = vsel %vm1163, %v7034, %v7038
        %v7041 = vshrl.u32 %v6822, 16
        %v7043 = vrot.slane %v7041, 4
        %v7044 = vshll.u32 %v6822, 16
        %v7046 = vrot.slane %v7044, 5
        %v7047 = vor.u32 %v7043, %v7046
        %v7048 = vrot.slane %v7047, 4
        %v7050 = vshll.u32 %v6823, 16
        %v7052 = vrot.slane %v7050, 5
        %v7053 = vsel %vm1163, %v7048, %v7052
        %v7054 = vshrl.u32 %v6823, 16
        %v7056 = vrot.slane %v7054, 4
        %v7057 = vor.u32 %v7056, %v7052
        %v7058 = vrot.slane %v7057, 4
        %v7060 = vshll.u32 %v6863, 16
        %v7062 = vrot.slane %v7060, 5
        %v7063 = vsel %vm1163, %v7058, %v7062
        %v7065 = vshrl.u32 %v6824, 16
        %v7067 = vrot.slane %v7065, 4
        %v7068 = vshll.u32 %v6824, 16
        %v7070 = vrot.slane %v7068, 5
        %v7071 = vor.u32 %v7067, %v7070
        %v7072 = vrot.slane %v7071, 4
        %v7074 = vshll.u32 %v6825, 16
        %v7076 = vrot.slane %v7074, 5
        %v7077 = vsel %vm1163, %v7072, %v7076
        %v7078 = vshrl.u32 %v6825, 16
        %v7080 = vrot.slane %v7078, 4
        %v7081 = vor.u32 %v7080, %v7076
        %v7082 = vrot.slane %v7081, 4
        %v7084 = vshll.u32 %v6864, 16
        %v7086 = vrot.slane %v7084, 5
        %v7087 = vsel %vm1163, %v7082, %v7086
        %v7089 = vshrl.u32 %v6826, 16
        %v7091 = vrot.slane %v7089, 4
        %v7092 = vshll.u32 %v6826, 16
        %v7094 = vrot.slane %v7092, 5
        %v7095 = vor.u32 %v7091, %v7094
        %v7096 = vrot.slane %v7095, 4
        %v7098 = vshll.u32 %v6827, 16
        %v7100 = vrot.slane %v7098, 5
        %v7101 = vsel %vm1163, %v7096, %v7100
        %v7102 = vshrl.u32 %v6827, 16
        %v7104 = vrot.slane %v7102, 4
        %v7105 = vor.u32 %v7104, %v7100
        %v7106 = vrot.slane %v7105, 4
        %v7108 = vshll.u32 %v6865, 16
        %v7110 = vrot.slane %v7108, 5
        %v7111 = vsel %vm1163, %v7106, %v7110
        %v7113 = vshrl.u32 %v6828, 16
        %v7115 = vrot.slane %v7113, 4
        %v7116 = vshll.u32 %v6828, 16
        %v7118 = vrot.slane %v7116, 5
        %v7119 = vor.u32 %v7115, %v7118
        %v7120 = vrot.slane %v7119, 4
        %v7122 = vshll.u32 %v6829, 16
        %v7124 = vrot.slane %v7122, 5
        %v7125 = vsel %vm1163, %v7120, %v7124
        %v7126 = vshrl.u32 %v6829, 16
        %v7128 = vrot.slane %v7126, 4
        %v7129 = vor.u32 %v7128, %v7124
        %v7130 = vrot.slane %v7129, 4
        %v7132 = vshll.u32 %v6866, 16
        %v7134 = vrot.slane %v7132, 5
        %v7135 = vsel %vm1163, %v7130, %v7134
        %v7137 = vshrl.u32 %v6830, 16
        %v7139 = vrot.slane %v7137, 4
        %v7140 = vshll.u32 %v6830, 16
        %v7142 = vrot.slane %v7140, 5
        %v7143 = vor.u32 %v7139, %v7142
        %v7144 = vrot.slane %v7143, 4
        %v7146 = vshll.u32 %v6831, 16
        %v7148 = vrot.slane %v7146, 5
        %v7149 = vsel %vm1163, %v7144, %v7148
        %v7150 = vshrl.u32 %v6831, 16
        %v7152 = vrot.slane %v7150, 4
        %v7153 = vor.u32 %v7152, %v7148
        %v7154 = vrot.slane %v7153, 4
        %v7156 = vshll.u32 %v6867, 16
        %v7158 = vrot.slane %v7156, 5
        %v7159 = vsel %vm1163, %v7154, %v7158
        %v7161 = vshrl.u32 %v6832, 16
        %v7163 = vrot.slane %v7161, 4
        %v7164 = vshll.u32 %v6832, 16
        %v7166 = vrot.slane %v7164, 5
        %v7167 = vor.u32 %v7163, %v7166
        %v7168 = vrot.slane %v7167, 4
        %v7170 = vshll.u32 %v6833, 16
        %v7172 = vrot.slane %v7170, 5
        %v7173 = vsel %vm1163, %v7168, %v7172
        %v7174 = vshrl.u32 %v6833, 16
        %v7176 = vrot.slane %v7174, 4
        %v7177 = vor.u32 %v7176, %v7172
        %v7178 = vrot.slane %v7177, 4
        %v7180 = vshll.u32 %v6868, 16
        %v7182 = vrot.slane %v7180, 5
        %v7183 = vsel %vm1163, %v7178, %v7182
        %v7185 = vshrl.u32 %v6834, 16
        %v7187 = vrot.slane %v7185, 4
        %v7188 = vshll.u32 %v6834, 16
        %v7190 = vrot.slane %v7188, 5
        %v7191 = vor.u32 %v7187, %v7190
        %v7192 = vrot.slane %v7191, 4
        %v7194 = vshll.u32 %v6835, 16
        %v7196 = vrot.slane %v7194, 5
        %v7197 = vsel %vm1163, %v7192, %v7196
        %v7198 = vshrl.u32 %v6835, 16
        %v7200 = vrot.slane %v7198, 4
        %v7201 = vor.u32 %v7200, %v7196
        %v7202 = vrot.slane %v7201, 4
        %v7204 = vshll.u32 %v6869, 16
        %v7206 = vrot.slane %v7204, 5
        %v7207 = vsel %vm1163, %v7202, %v7206
        %v7209 = vshrl.u32 %v6836, 16
        %v7211 = vrot.slane %v7209, 4
        %v7212 = vshll.u32 %v6836, 16
        %v7214 = vrot.slane %v7212, 5
        %v7215 = vor.u32 %v7211, %v7214
        %v7216 = vrot.slane %v7215, 4
        %v7218 = vshll.u32 %v6837, 16
        %v7220 = vrot.slane %v7218, 5
        %v7221 = vsel %vm1163, %v7216, %v7220
        %v7222 = vshrl.u32 %v6837, 16
        %v7224 = vrot.slane %v7222, 4
        %v7225 = vor.u32 %v7224, %v7220
        %v7226 = vrot.slane %v7225, 4
        %v7228 = vshll.u32 %v6870, 16
        %v7230 = vrot.slane %v7228, 5
        %v7231 = vsel %vm1163, %v7226, %v7230
        %v7233 = vshrl.u32 %v6838, 16
        %v7235 = vrot.slane %v7233, 4
        %v7236 = vshll.u32 %v6838, 16
        %v7238 = vrot.slane %v7236, 5
        %v7239 = vor.u32 %v7235, %v7238
        %v7240 = vrot.slane %v7239, 4
        %v7242 = vshll.u32 %v6839, 16
        %v7244 = vrot.slane %v7242, 5
        %v7245 = vsel %vm1163, %v7240, %v7244
        %v7246 = vshrl.u32 %v6839, 16
        %v7248 = vrot.slane %v7246, 4
        %v7249 = vor.u32 %v7248, %v7244
        %v7250 = vrot.slane %v7249, 4
        %v7252 = vshll.u32 %v6871, 16
        %v7254 = vrot.slane %v7252, 5
        %v7255 = vsel %vm1163, %v7250, %v7254
        %s7256 = scalar_lea.vmem %s3, 64
        %v7257 = vld [vmem:[%s7256] sm:$0xf]
        %v7258 = vld [vmem:[%s7256 + $0x4] sm:$0xf]
        %v7259 = vld [vmem:[%s7256 + $0x8] sm:$0xf]
        %v7260 = vld [vmem:[%s7256 + $0xc] sm:$0xf]
        %v7261 = vld [vmem:[%s7256 + $0x10] sm:$0xf]
        %v7262 = vld [vmem:[%s7256 + $0x14] sm:$0xf]
        %v7263 = vld [vmem:[%s7256 + $0x18] sm:$0xf]
        %v7264 = vld [vmem:[%s7256 + $0x1c] sm:$0xf]
        %v7265 = vld [vmem:[%s7256 + $0x20] sm:$0xf]
        %v7266 = vld [vmem:[%s7256 + $0x24] sm:$0xf]
        %v7267 = vld [vmem:[%s7256 + $0x28] sm:$0xf]
        %v7268 = vld [vmem:[%s7256 + $0x2c] sm:$0xf]
        %v7269 = vld [vmem:[%s7256 + $0x30] sm:$0xf]
        %v7270 = vld [vmem:[%s7256 + $0x34] sm:$0xf]
        %v7271 = vld [vmem:[%s7256 + $0x38] sm:$0xf]
        %v7272 = vld [vmem:[%s7256 + $0x3c] sm:$0xf]
        %v7273 = vunpack.c.l.b16 %v6885
        %v7274 = vunpack.c.l.b16 %v6895
        %v7275 = vunpack.c.l.b16 %v6909
        %v7276 = vunpack.c.l.b16 %v6919
        %v7277 = vunpack.c.l.b16 %v6933
        %v7278 = vunpack.c.l.b16 %v6943
        %v7279 = vunpack.c.l.b16 %v6957
        %v7280 = vunpack.c.l.b16 %v6967
        %v7281 = vunpack.c.l.b16 %v6981
        %v7282 = vunpack.c.l.b16 %v6991
        %v7283 = vunpack.c.l.b16 %v7005
        %v7284 = vunpack.c.l.b16 %v7015
        %v7285 = vunpack.c.l.b16 %v7029
        %v7286 = vunpack.c.l.b16 %v7039
        %v7287 = vunpack.c.l.b16 %v7053
        %v7288 = vunpack.c.l.b16 %v7063
        %v7289 = vunpack.c.l.b16 %v7077
        %v7290 = vunpack.c.l.b16 %v7087
        %v7291 = vunpack.c.l.b16 %v7101
        %v7292 = vunpack.c.l.b16 %v7111
        %v7293 = vunpack.c.l.b16 %v7125
        %v7294 = vunpack.c.l.b16 %v7135
        %v7295 = vunpack.c.l.b16 %v7149
        %v7296 = vunpack.c.l.b16 %v7159
        %v7297 = vunpack.c.l.b16 %v7173
        %v7298 = vunpack.c.l.b16 %v7183
        %v7299 = vunpack.c.l.b16 %v7197
        %v7300 = vunpack.c.l.b16 %v7207
        %v7301 = vunpack.c.l.b16 %v7221
        %v7302 = vunpack.c.l.b16 %v7231
        %v7303 = vunpack.c.l.b16 %v7245
        %v7304 = vunpack.c.l.b16 %v7255
        %v7305 = vpack.c.b16 %v7274, %v7273
        %v7306 = vpack.c.b16 %v7276, %v7275
        %v7307 = vpack.c.b16 %v7278, %v7277
        %v7308 = vpack.c.b16 %v7280, %v7279
        %v7309 = vpack.c.b16 %v7282, %v7281
        %v7310 = vpack.c.b16 %v7284, %v7283
        %v7311 = vpack.c.b16 %v7286, %v7285
        %v7312 = vpack.c.b16 %v7288, %v7287
        %v7313 = vpack.c.b16 %v7290, %v7289
        %v7314 = vpack.c.b16 %v7292, %v7291
        %v7315 = vpack.c.b16 %v7294, %v7293
        %v7316 = vpack.c.b16 %v7296, %v7295
        %v7317 = vpack.c.b16 %v7298, %v7297
        %v7318 = vpack.c.b16 %v7300, %v7299
        %v7319 = vpack.c.b16 %v7302, %v7301
        %v7320 = vpack.c.b16 %v7304, %v7303
        %v7353 = vunpack.c.l.b16 %v7257
        %v7354 = vunpack.c.l.b16 %v7258
        %v7355 = vunpack.c.l.b16 %v7259
        %v7356 = vunpack.c.l.b16 %v7260
        %v7357 = vunpack.c.l.b16 %v7261
        %v7358 = vunpack.c.l.b16 %v7262
        %v7359 = vunpack.c.l.b16 %v7263
        %v7360 = vunpack.c.l.b16 %v7264
        %v7361 = vunpack.c.l.b16 %v7265
        %v7362 = vunpack.c.l.b16 %v7266
        %v7363 = vunpack.c.l.b16 %v7267
        %v7364 = vunpack.c.l.b16 %v7268
        %v7365 = vunpack.c.l.b16 %v7269
        %v7366 = vunpack.c.l.b16 %v7270
        %v7367 = vunpack.c.l.b16 %v7271
        %v7368 = vunpack.c.l.b16 %v7272
        %v7369 = vpack.c.b16 %v7354, %v7353
        %v7370 = vpack.c.b16 %v7356, %v7355
        %v7371 = vpack.c.b16 %v7358, %v7357
        %v7372 = vpack.c.b16 %v7360, %v7359
        %v7373 = vpack.c.b16 %v7362, %v7361
        %v7374 = vpack.c.b16 %v7364, %v7363
        %v7375 = vpack.c.b16 %v7366, %v7365
        %v7376 = vpack.c.b16 %v7368, %v7367
        %7385 = vmatprep.subr.bf16.mxu0 0
        %7386 = vmatpush1.bf16.msra.mxu0 %v7369
        %7387 = vmatprep.subr.bf16.mxu0 0
        %7388 = vmatpush1.bf16.msra.mxu0 %v7370
        %7389 = vmatprep.subr.bf16.mxu0 0
        %7390 = vmatpush1.bf16.msra.mxu0 %v7371
        %7391 = vmatprep.subr.bf16.mxu0 0
        %7392 = vmatpush1.bf16.msra.mxu0 %v7372
        %7393 = vmatprep.subr.bf16.mxu0 0
        %7394 = vmatpush1.bf16.msra.mxu0 %v7373
        %7395 = vmatprep.subr.bf16.mxu0 0
        %7396 = vmatpush1.bf16.msra.mxu0 %v7374
        %7397 = vmatprep.subr.bf16.mxu0 0
        %7398 = vmatpush1.bf16.msra.mxu0 %v7375
        %7399 = vmatprep.subr.bf16.mxu0 0
        %7400 = vmatpush1.bf16.msra.mxu0 %v7376
        %7401 = vmatprep.subr.bf16.mxu0 0
        %7402 = vmatpush1.bf16.msra.mxu0 0
        %7403 = vmatprep.subr.bf16.mxu0 0
        %7404 = vmatpush1.bf16.msra.mxu0 0
        %7405 = vmatprep.subr.bf16.mxu0 0
        %7406 = vmatpush1.bf16.msra.mxu0 0
        %7407 = vmatprep.subr.bf16.mxu0 0
        %7408 = vmatpush1.bf16.msra.mxu0 0
        %7409 = vmatprep.subr.bf16.mxu0 0
        %7410 = vmatpush1.bf16.msra.mxu0 0
        %7411 = vmatprep.subr.bf16.mxu0 0
        %7412 = vmatpush1.bf16.msra.mxu0 0
        %7413 = vmatprep.subr.bf16.mxu0 0
        %7414 = vmatpush1.bf16.msra.mxu0 0
        %7415 = vmatprep.subr.bf16.mxu0 0
        %7416 = vmatpush1.bf16.msra.mxu0 0
        %7417 = vmatprep.mubr.bf16.mxu0 0
        %7418 = vmatmul.mubr.bf16.gmra.mrb[0].mxu0 %v7305
        %v7419 = vpop.f32.mrb[0].mxu0
        %v7420 = vadd.f32 0.0, %v7419
        %v7421 = vpop.f32.mrb[0].mxu0
        %v7422 = vpop.f32.mrb[0].mxu0
        %v7423 = vadd.f32 0.0, %v7422
        %v7424 = vpop.f32.mrb[0].mxu0
        %7425 = vmatprep.mubr.bf16.mxu0 0
        %7426 = vmatmul.mubr.bf16.gmra.mrb[0].mxu0 %v7306
        %v7427 = vpop.f32.mrb[0].mxu0
        %v7428 = vadd.f32 0.0, %v7427
        %v7429 = vpop.f32.mrb[0].mxu0
        %v7430 = vpop.f32.mrb[0].mxu0
        %v7431 = vadd.f32 0.0, %v7430
        %v7432 = vpop.f32.mrb[0].mxu0
        %7433 = vmatprep.mubr.bf16.mxu0 0
        %7434 = vmatmul.mubr.bf16.gmra.mrb[0].mxu0 %v7307
        %v7435 = vpop.f32.mrb[0].mxu0
        %v7436 = vadd.f32 0.0, %v7435
        %v7437 = vpop.f32.mrb[0].mxu0
        %v7438 = vpop.f32.mrb[0].mxu0
        %v7439 = vadd.f32 0.0, %v7438
        %v7440 = vpop.f32.mrb[0].mxu0
        %7441 = vmatprep.mubr.bf16.mxu0 0
        %7442 = vmatmul.mubr.bf16.gmra.mrb[0].mxu0 %v7308
        %v7443 = vpop.f32.mrb[0].mxu0
        %v7444 = vadd.f32 0.0, %v7443
        %v7445 = vpop.f32.mrb[0].mxu0
        %v7446 = vpop.f32.mrb[0].mxu0
        %v7447 = vadd.f32 0.0, %v7446
        %v7448 = vpop.f32.mrb[0].mxu0
        %7449 = vmatprep.mubr.bf16.mxu0 0
        %7450 = vmatmul.mubr.bf16.gmra.mrb[0].mxu0 %v7309
        %v7451 = vpop.f32.mrb[0].mxu0
        %v7452 = vadd.f32 0.0, %v7451
        %v7453 = vpop.f32.mrb[0].mxu0
        %v7454 = vpop.f32.mrb[0].mxu0
        %v7455 = vadd.f32 0.0, %v7454
        %v7456 = vpop.f32.mrb[0].mxu0
        %7457 = vmatprep.mubr.bf16.mxu0 0
        %7458 = vmatmul.mubr.bf16.gmra.mrb[0].mxu0 %v7310
        %v7459 = vpop.f32.mrb[0].mxu0
        %v7460 = vadd.f32 0.0, %v7459
        %v7461 = vpop.f32.mrb[0].mxu0
        %v7462 = vpop.f32.mrb[0].mxu0
        %v7463 = vadd.f32 0.0, %v7462
        %v7464 = vpop.f32.mrb[0].mxu0
        %7465 = vmatprep.mubr.bf16.mxu0 0
        %7466 = vmatmul.mubr.bf16.gmra.mrb[0].mxu0 %v7311
        %v7467 = vpop.f32.mrb[0].mxu0
        %v7468 = vadd.f32 0.0, %v7467
        %v7469 = vpop.f32.mrb[0].mxu0
        %v7470 = vpop.f32.mrb[0].mxu0
        %v7471 = vadd.f32 0.0, %v7470
        %v7472 = vpop.f32.mrb[0].mxu0
        %7473 = vmatprep.mubr.bf16.mxu0 0
        %7474 = vmatmul.mubr.bf16.gmra.mrb[0].mxu0 %v7312
        %v7475 = vpop.f32.mrb[0].mxu0
        %v7476 = vadd.f32 0.0, %v7475
        %v7477 = vpop.f32.mrb[0].mxu0
        %v7478 = vpop.f32.mrb[0].mxu0
        %v7479 = vadd.f32 0.0, %v7478
        %v7480 = vpop.f32.mrb[0].mxu0
        %7481 = vmatprep.mubr.bf16.mxu0 0
        %7482 = vmatmul.mubr.bf16.gmra.mrb[0].mxu0 %v7313
        %v7483 = vpop.f32.mrb[0].mxu0
        %v7484 = vadd.f32 0.0, %v7483
        %v7485 = vpop.f32.mrb[0].mxu0
        %v7486 = vpop.f32.mrb[0].mxu0
        %v7487 = vadd.f32 0.0, %v7486
        %v7488 = vpop.f32.mrb[0].mxu0
        %7489 = vmatprep.mubr.bf16.mxu0 0
        %7490 = vmatmul.mubr.bf16.gmra.mrb[0].mxu0 %v7314
        %v7491 = vpop.f32.mrb[0].mxu0
        %v7492 = vadd.f32 0.0, %v7491
        %v7493 = vpop.f32.mrb[0].mxu0
        %v7494 = vpop.f32.mrb[0].mxu0
        %v7495 = vadd.f32 0.0, %v7494
        %v7496 = vpop.f32.mrb[0].mxu0
        %7497 = vmatprep.mubr.bf16.mxu0 0
        %7498 = vmatmul.mubr.bf16.gmra.mrb[0].mxu0 %v7315
        %v7499 = vpop.f32.mrb[0].mxu0
        %v7500 = vadd.f32 0.0, %v7499
        %v7501 = vpop.f32.mrb[0].mxu0
        %v7502 = vpop.f32.mrb[0].mxu0
        %v7503 = vadd.f32 0.0, %v7502
        %v7504 = vpop.f32.mrb[0].mxu0
        %7505 = vmatprep.mubr.bf16.mxu0 0
        %7506 = vmatmul.mubr.bf16.gmra.mrb[0].mxu0 %v7316
        %v7507 = vpop.f32.mrb[0].mxu0
        %v7508 = vadd.f32 0.0, %v7507
        %v7509 = vpop.f32.mrb[0].mxu0
        %v7510 = vpop.f32.mrb[0].mxu0
        %v7511 = vadd.f32 0.0, %v7510
        %v7512 = vpop.f32.mrb[0].mxu0
        %7513 = vmatprep.mubr.bf16.mxu0 0
        %7514 = vmatmul.mubr.bf16.gmra.mrb[0].mxu0 %v7317
        %v7515 = vpop.f32.mrb[0].mxu0
        %v7516 = vadd.f32 0.0, %v7515
        %v7517 = vpop.f32.mrb[0].mxu0
        %v7518 = vpop.f32.mrb[0].mxu0
        %v7519 = vadd.f32 0.0, %v7518
        %v7520 = vpop.f32.mrb[0].mxu0
        %7521 = vmatprep.mubr.bf16.mxu0 0
        %7522 = vmatmul.mubr.bf16.gmra.mrb[0].mxu0 %v7318
        %v7523 = vpop.f32.mrb[0].mxu0
        %v7524 = vadd.f32 0.0, %v7523
        %v7525 = vpop.f32.mrb[0].mxu0
        %v7526 = vpop.f32.mrb[0].mxu0
        %v7527 = vadd.f32 0.0, %v7526
        %v7528 = vpop.f32.mrb[0].mxu0
        %7529 = vmatprep.mubr.bf16.mxu0 0
        %7530 = vmatmul.mubr.bf16.gmra.mrb[0].mxu0 %v7319
        %v7531 = vpop.f32.mrb[0].mxu0
        %v7532 = vadd.f32 0.0, %v7531
        %v7533 = vpop.f32.mrb[0].mxu0
        %v7534 = vpop.f32.mrb[0].mxu0
        %v7535 = vadd.f32 0.0, %v7534
        %v7536 = vpop.f32.mrb[0].mxu0
        %7537 = vmatprep.mubr.bf16.mxu0 0
        %7538 = vmatmul.mubr.bf16.gmra.mrb[0].mxu0 %v7320
        %v7539 = vpop.f32.mrb[0].mxu0
        %v7540 = vadd.f32 0.0, %v7539
        %v7541 = vpop.f32.mrb[0].mxu0
        %v7542 = vpop.f32.mrb[0].mxu0
        %v7543 = vadd.f32 0.0, %v7542
        %v7544 = vpop.f32.mrb[0].mxu0
        %7545 = vdwg.mxu0
        %v7578 = vunpack.c.l.b16 %v6808
        %v7579 = vunpack.c.l.b16 %v6809
        %v7580 = vunpack.c.l.b16 %v6810
        %v7581 = vunpack.c.l.b16 %v6811
        %v7582 = vunpack.c.l.b16 %v6812
        %v7583 = vunpack.c.l.b16 %v6813
        %v7584 = vunpack.c.l.b16 %v6814
        %v7585 = vunpack.c.l.b16 %v6815
        %v7586 = vunpack.c.l.b16 %v6816
        %v7587 = vunpack.c.l.b16 %v6817
        %v7588 = vunpack.c.l.b16 %v6818
        %v7589 = vunpack.c.l.b16 %v6819
        %v7590 = vunpack.c.l.b16 %v6820
        %v7591 = vunpack.c.l.b16 %v6821
        %v7592 = vunpack.c.l.b16 %v6822
        %v7593 = vunpack.c.l.b16 %v6823
        %v7594 = vunpack.c.l.b16 %v6824
        %v7595 = vunpack.c.l.b16 %v6825
        %v7596 = vunpack.c.l.b16 %v6826
        %v7597 = vunpack.c.l.b16 %v6827
        %v7598 = vunpack.c.l.b16 %v6828
        %v7599 = vunpack.c.l.b16 %v6829
        %v7600 = vunpack.c.l.b16 %v6830
        %v7601 = vunpack.c.l.b16 %v6831
        %v7602 = vunpack.c.l.b16 %v6832
        %v7603 = vunpack.c.l.b16 %v6833
        %v7604 = vunpack.c.l.b16 %v6834
        %v7605 = vunpack.c.l.b16 %v6835
        %v7606 = vunpack.c.l.b16 %v6836
        %v7607 = vunpack.c.l.b16 %v6837
        %v7608 = vunpack.c.l.b16 %v6838
        %v7609 = vunpack.c.l.b16 %v6839
        %v7610 = vpack.c.b16 %v7579, %v7578
        %v7611 = vpack.c.b16 %v7581, %v7580
        %v7612 = vpack.c.b16 %v7583, %v7582
        %v7613 = vpack.c.b16 %v7585, %v7584
        %v7614 = vpack.c.b16 %v7587, %v7586
        %v7615 = vpack.c.b16 %v7589, %v7588
        %v7616 = vpack.c.b16 %v7591, %v7590
        %v7617 = vpack.c.b16 %v7593, %v7592
        %v7618 = vpack.c.b16 %v7595, %v7594
        %v7619 = vpack.c.b16 %v7597, %v7596
        %v7620 = vpack.c.b16 %v7599, %v7598
        %v7621 = vpack.c.b16 %v7601, %v7600
        %v7622 = vpack.c.b16 %v7603, %v7602
        %v7623 = vpack.c.b16 %v7605, %v7604
        %v7624 = vpack.c.b16 %v7607, %v7606
        %v7625 = vpack.c.b16 %v7609, %v7608
        %v7658 = vunpack.c.l.b16 %v6840
        %v7659 = vunpack.c.l.b16 %v6841
        %v7660 = vunpack.c.l.b16 %v6842
        %v7661 = vunpack.c.l.b16 %v6843
        %v7662 = vunpack.c.l.b16 %v6844
        %v7663 = vunpack.c.l.b16 %v6845
        %v7664 = vunpack.c.l.b16 %v6846
        %v7665 = vunpack.c.l.b16 %v6847
        %v7666 = vunpack.c.l.b16 %v6848
        %v7667 = vunpack.c.l.b16 %v6849
        %v7668 = vunpack.c.l.b16 %v6850
        %v7669 = vunpack.c.l.b16 %v6851
        %v7670 = vunpack.c.l.b16 %v6852
        %v7671 = vunpack.c.l.b16 %v6853
        %v7672 = vunpack.c.l.b16 %v6854
        %v7673 = vunpack.c.l.b16 %v6855
        %v7674 = vpack.c.b16 %v7659, %v7658
        %v7675 = vpack.c.b16 %v7661, %v7660
        %v7676 = vpack.c.b16 %v7663, %v7662
        %v7677 = vpack.c.b16 %v7665, %v7664
        %v7678 = vpack.c.b16 %v7667, %v7666
        %v7679 = vpack.c.b16 %v7669, %v7668
        %v7680 = vpack.c.b16 %v7671, %v7670
        %v7681 = vpack.c.b16 %v7673, %v7672
        %7690 = vmatprep.subr.bf16.mxu0 0
        %7691 = vmatpush1.bf16.msra.mxu0 %v7674
        %7692 = vmatprep.subr.bf16.mxu0 0
        %7693 = vmatpush1.bf16.msra.mxu0 %v7675
        %7694 = vmatprep.subr.bf16.mxu0 0
        %7695 = vmatpush1.bf16.msra.mxu0 %v7676
        %7696 = vmatprep.subr.bf16.mxu0 0
        %7697 = vmatpush1.bf16.msra.mxu0 %v7677
        %7698 = vmatprep.subr.bf16.mxu0 0
        %7699 = vmatpush1.bf16.msra.mxu0 %v7678
        %7700 = vmatprep.subr.bf16.mxu0 0
        %7701 = vmatpush1.bf16.msra.mxu0 %v7679
        %7702 = vmatprep.subr.bf16.mxu0 0
        %7703 = vmatpush1.bf16.msra.mxu0 %v7680
        %7704 = vmatprep.subr.bf16.mxu0 0
        %7705 = vmatpush1.bf16.msra.mxu0 %v7681
        %7706 = vmatprep.subr.bf16.mxu0 0
        %7707 = vmatpush1.bf16.msra.mxu0 0
        %7708 = vmatprep.subr.bf16.mxu0 0
        %7709 = vmatpush1.bf16.msra.mxu0 0
        %7710 = vmatprep.subr.bf16.mxu0 0
        %7711 = vmatpush1.bf16.msra.mxu0 0
        %7712 = vmatprep.subr.bf16.mxu0 0
        %7713 = vmatpush1.bf16.msra.mxu0 0
        %7714 = vmatprep.subr.bf16.mxu0 0
        %7715 = vmatpush1.bf16.msra.mxu0 0
        %7716 = vmatprep.subr.bf16.mxu0 0
        %7717 = vmatpush1.bf16.msra.mxu0 0
        %7718 = vmatprep.subr.bf16.mxu0 0
        %7719 = vmatpush1.bf16.msra.mxu0 0
        %7720 = vmatprep.subr.bf16.mxu0 0
        %7721 = vmatpush1.bf16.msra.mxu0 0
        %7722 = vmatprep.mubr.bf16.mxu0 0
        %7723 = vmatmul.mubr.bf16.gmra.mrb[0].mxu0 %v7610
        %v7724 = vpop.f32.mrb[0].mxu0
        %v7725 = vadd.f32 %v7420, %v7724
        %v7726 = vpop.f32.mrb[0].mxu0
        %v7727 = vpop.f32.mrb[0].mxu0
        %v7728 = vadd.f32 %v7423, %v7727
        %v7729 = vpop.f32.mrb[0].mxu0
        %7730 = vmatprep.mubr.bf16.mxu0 0
        %7731 = vmatmul.mubr.bf16.gmra.mrb[0].mxu0 %v7611
        %v7732 = vpop.f32.mrb[0].mxu0
        %v7733 = vadd.f32 %v7428, %v7732
        %v7734 = vpop.f32.mrb[0].mxu0
        %v7735 = vpop.f32.mrb[0].mxu0
        %v7736 = vadd.f32 %v7431, %v7735
        %v7737 = vpop.f32.mrb[0].mxu0
        %7738 = vmatprep.mubr.bf16.mxu0 0
        %7739 = vmatmul.mubr.bf16.gmra.mrb[0].mxu0 %v7612
        %v7740 = vpop.f32.mrb[0].mxu0
        %v7741 = vadd.f32 %v7436, %v7740
        %v7742 = vpop.f32.mrb[0].mxu0
        %v7743 = vpop.f32.mrb[0].mxu0
        %v7744 = vadd.f32 %v7439, %v7743
        %v7745 = vpop.f32.mrb[0].mxu0
        %7746 = vmatprep.mubr.bf16.mxu0 0
        %7747 = vmatmul.mubr.bf16.gmra.mrb[0].mxu0 %v7613
        %v7748 = vpop.f32.mrb[0].mxu0
        %v7749 = vadd.f32 %v7444, %v7748
        %v7750 = vpop.f32.mrb[0].mxu0
        %v7751 = vpop.f32.mrb[0].mxu0
        %v7752 = vadd.f32 %v7447, %v7751
        %v7753 = vpop.f32.mrb[0].mxu0
        %7754 = vmatprep.mubr.bf16.mxu0 0
        %7755 = vmatmul.mubr.bf16.gmra.mrb[0].mxu0 %v7614
        %v7756 = vpop.f32.mrb[0].mxu0
        %v7757 = vadd.f32 %v7452, %v7756
        %v7758 = vpop.f32.mrb[0].mxu0
        %v7759 = vpop.f32.mrb[0].mxu0
        %v7760 = vadd.f32 %v7455, %v7759
        %v7761 = vpop.f32.mrb[0].mxu0
        %7762 = vmatprep.mubr.bf16.mxu0 0
        %7763 = vmatmul.mubr.bf16.gmra.mrb[0].mxu0 %v7615
        %v7764 = vpop.f32.mrb[0].mxu0
        %v7765 = vadd.f32 %v7460, %v7764
        %v7766 = vpop.f32.mrb[0].mxu0
        %v7767 = vpop.f32.mrb[0].mxu0
        %v7768 = vadd.f32 %v7463, %v7767
        %v7769 = vpop.f32.mrb[0].mxu0
        %7770 = vmatprep.mubr.bf16.mxu0 0
        %7771 = vmatmul.mubr.bf16.gmra.mrb[0].mxu0 %v7616
        %v7772 = vpop.f32.mrb[0].mxu0
        %v7773 = vadd.f32 %v7468, %v7772
        %v7774 = vpop.f32.mrb[0].mxu0
        %v7775 = vpop.f32.mrb[0].mxu0
        %v7776 = vadd.f32 %v7471, %v7775
        %v7777 = vpop.f32.mrb[0].mxu0
        %7778 = vmatprep.mubr.bf16.mxu0 0
        %7779 = vmatmul.mubr.bf16.gmra.mrb[0].mxu0 %v7617
        %v7780 = vpop.f32.mrb[0].mxu0
        %v7781 = vadd.f32 %v7476, %v7780
        %v7782 = vpop.f32.mrb[0].mxu0
        %v7783 = vpop.f32.mrb[0].mxu0
        %v7784 = vadd.f32 %v7479, %v7783
        %v7785 = vpop.f32.mrb[0].mxu0
        %7786 = vmatprep.mubr.bf16.mxu0 0
        %7787 = vmatmul.mubr.bf16.gmra.mrb[0].mxu0 %v7618
        %v7788 = vpop.f32.mrb[0].mxu0
        %v7789 = vadd.f32 %v7484, %v7788
        %v7790 = vpop.f32.mrb[0].mxu0
        %v7791 = vpop.f32.mrb[0].mxu0
        %v7792 = vadd.f32 %v7487, %v7791
        %v7793 = vpop.f32.mrb[0].mxu0
        %7794 = vmatprep.mubr.bf16.mxu0 0
        %7795 = vmatmul.mubr.bf16.gmra.mrb[0].mxu0 %v7619
        %v7796 = vpop.f32.mrb[0].mxu0
        %v7797 = vadd.f32 %v7492, %v7796
        %v7798 = vpop.f32.mrb[0].mxu0
        %v7799 = vpop.f32.mrb[0].mxu0
        %v7800 = vadd.f32 %v7495, %v7799
        %v7801 = vpop.f32.mrb[0].mxu0
        %7802 = vmatprep.mubr.bf16.mxu0 0
        %7803 = vmatmul.mubr.bf16.gmra.mrb[0].mxu0 %v7620
        %v7804 = vpop.f32.mrb[0].mxu0
        %v7805 = vadd.f32 %v7500, %v7804
        %v7806 = vpop.f32.mrb[0].mxu0
        %v7807 = vpop.f32.mrb[0].mxu0
        %v7808 = vadd.f32 %v7503, %v7807
        %v7809 = vpop.f32.mrb[0].mxu0
        %7810 = vmatprep.mubr.bf16.mxu0 0
        %7811 = vmatmul.mubr.bf16.gmra.mrb[0].mxu0 %v7621
        %v7812 = vpop.f32.mrb[0].mxu0
        %v7813 = vadd.f32 %v7508, %v7812
        %v7814 = vpop.f32.mrb[0].mxu0
        %v7815 = vpop.f32.mrb[0].mxu0
        %v7816 = vadd.f32 %v7511, %v7815
        %v7817 = vpop.f32.mrb[0].mxu0
        %7818 = vmatprep.mubr.bf16.mxu0 0
        %7819 = vmatmul.mubr.bf16.gmra.mrb[0].mxu0 %v7622
        %v7820 = vpop.f32.mrb[0].mxu0
        %v7821 = vadd.f32 %v7516, %v7820
        %v7822 = vpop.f32.mrb[0].mxu0
        %v7823 = vpop.f32.mrb[0].mxu0
        %v7824 = vadd.f32 %v7519, %v7823
        %v7825 = vpop.f32.mrb[0].mxu0
        %7826 = vmatprep.mubr.bf16.mxu0 0
        %7827 = vmatmul.mubr.bf16.gmra.mrb[0].mxu0 %v7623
        %v7828 = vpop.f32.mrb[0].mxu0
        %v7829 = vadd.f32 %v7524, %v7828
        %v7830 = vpop.f32.mrb[0].mxu0
        %v7831 = vpop.f32.mrb[0].mxu0
        %v7832 = vadd.f32 %v7527, %v7831
        %v7833 = vpop.f32.mrb[0].mxu0
        %7834 = vmatprep.mubr.bf16.mxu0 0
        %7835 = vmatmul.mubr.bf16.gmra.mrb[0].mxu0 %v7624
        %v7836 = vpop.f32.mrb[0].mxu0
        %v7837 = vadd.f32 %v7532, %v7836
        %v7838 = vpop.f32.mrb[0].mxu0
        %v7839 = vpop.f32.mrb[0].mxu0
        %v7840 = vadd.f32 %v7535, %v7839
        %v7841 = vpop.f32.mrb[0].mxu0
        %7842 = vmatprep.mubr.bf16.mxu0 0
        %7843 = vmatmul.mubr.bf16.gmra.mrb[0].mxu0 %v7625
        %v7844 = vpop.f32.mrb[0].mxu0
        %v7845 = vadd.f32 %v7540, %v7844
        %v7846 = vpop.f32.mrb[0].mxu0
        %v7847 = vpop.f32.mrb[0].mxu0
        %v7848 = vadd.f32 %v7543, %v7847
        %v7849 = vpop.f32.mrb[0].mxu0
        %7850 = vdwg.mxu0
        %v7851 = vld [vmem:[#allocation3] sm:$0xe]
        %v7852 = vld [vmem:[#allocation3 + $0xc] sm:$0xe]
        %v7853 = vld [vmem:[#allocation3 + $0x18] sm:$0xe]
        %v7854 = vld [vmem:[#allocation3 + $0x24] sm:$0xe]
        %v7855 = vld [vmem:[#allocation3 + $0x30] sm:$0xe]
        %v7856 = vld [vmem:[#allocation3 + $0x3c] sm:$0xe]
        %v7857 = vld [vmem:[#allocation3 + $0x48] sm:$0xe]
        %v7858 = vld [vmem:[#allocation3 + $0x54] sm:$0xe]
        %v7859 = vld [vmem:[#allocation3 + $0x60] sm:$0xe]
        %v7860 = vld [vmem:[#allocation3 + $0x6c] sm:$0xe]
        %v7861 = vld [vmem:[#allocation3 + $0x78] sm:$0xe]
        %v7862 = vld [vmem:[#allocation3 + $0x84] sm:$0xe]
        %v7863 = vld [vmem:[#allocation3 + $0x90] sm:$0xe]
        %v7864 = vld [vmem:[#allocation3 + $0x9c] sm:$0xe]
        %v7865 = vld [vmem:[#allocation3 + $0xa8] sm:$0xe]
        %v7866 = vld [vmem:[#allocation3 + $0xb4] sm:$0xe]
        %v7899 = vrot.slane %v7851, 5
        %v7900 = vrot.slane %v7899, 4
        %v7901 = vrot.slane %v6809, 5
        %v7902 = vsel %vm2193, %v7900, %v7901
        %v7903 = vrot.slane %v7901, 4
        %v7904 = vrot.slane %v6856, 5
        %v7905 = vsel %vm2193, %v7903, %v7904
        %v7906 = vrot.slane %v7852, 5
        %v7907 = vrot.slane %v7906, 4
        %v7908 = vrot.slane %v6811, 5
        %v7909 = vsel %vm2193, %v7907, %v7908
        %v7910 = vrot.slane %v7908, 4
        %v7911 = vrot.slane %v6857, 5
        %v7912 = vsel %vm2193, %v7910, %v7911
        %v7913 = vrot.slane %v7853, 5
        %v7914 = vrot.slane %v7913, 4
        %v7915 = vrot.slane %v6813, 5
        %v7916 = vsel %vm2193, %v7914, %v7915
        %v7917 = vrot.slane %v7915, 4
        %v7918 = vrot.slane %v6858, 5
        %v7919 = vsel %vm2193, %v7917, %v7918
        %v7920 = vrot.slane %v7854, 5
        %v7921 = vrot.slane %v7920, 4
        %v7922 = vrot.slane %v6815, 5
        %v7923 = vsel %vm2193, %v7921, %v7922
        %v7924 = vrot.slane %v7922, 4
        %v7925 = vrot.slane %v6859, 5
        %v7926 = vsel %vm2193, %v7924, %v7925
        %v7927 = vrot.slane %v7855, 5
        %v7928 = vrot.slane %v7927, 4
        %v7929 = vrot.slane %v6817, 5
        %v7930 = vsel %vm2193, %v7928, %v7929
        %v7931 = vrot.slane %v7929, 4
        %v7932 = vrot.slane %v6860, 5
        %v7933 = vsel %vm2193, %v7931, %v7932
        %v7934 = vrot.slane %v7856, 5
        %v7935 = vrot.slane %v7934, 4
        %v7936 = vrot.slane %v6819, 5
        %v7937 = vsel %vm2193, %v7935, %v7936
        %v7938 = vrot.slane %v7936, 4
        %v7939 = vrot.slane %v6861, 5
        %v7940 = vsel %vm2193, %v7938, %v7939
        %v7941 = vrot.slane %v7857, 5
        %v7942 = vrot.slane %v7941, 4
        %v7943 = vrot.slane %v6821, 5
        %v7944 = vsel %vm2193, %v7942, %v7943
        %v7945 = vrot.slane %v7943, 4
        %v7946 = vrot.slane %v6862, 5
        %v7947 = vsel %vm2193, %v7945, %v7946
        %v7948 = vrot.slane %v7858, 5
        %v7949 = vrot.slane %v7948, 4
        %v7950 = vrot.slane %v6823, 5
        %v7951 = vsel %vm2193, %v7949, %v7950
        %v7952 = vrot.slane %v7950, 4
        %v7953 = vrot.slane %v6863, 5
        %v7954 = vsel %vm2193, %v7952, %v7953
        %v7955 = vrot.slane %v7859, 5
        %v7956 = vrot.slane %v7955, 4
        %v7957 = vrot.slane %v6825, 5
        %v7958 = vsel %vm2193, %v7956, %v7957
        %v7959 = vrot.slane %v7957, 4
        %v7960 = vrot.slane %v6864, 5
        %v7961 = vsel %vm2193, %v7959, %v7960
        %v7962 = vrot.slane %v7860, 5
        %v7963 = vrot.slane %v7962, 4
        %v7964 = vrot.slane %v6827, 5
        %v7965 = vsel %vm2193, %v7963, %v7964
        %v7966 = vrot.slane %v7964, 4
        %v7967 = vrot.slane %v6865, 5
        %v7968 = vsel %vm2193, %v7966, %v7967
        %v7969 = vrot.slane %v7861, 5
        %v7970 = vrot.slane %v7969, 4
        %v7971 = vrot.slane %v6829, 5
        %v7972 = vsel %vm2193, %v7970, %v7971
        %v7973 = vrot.slane %v7971, 4
        %v7974 = vrot.slane %v6866, 5
        %v7975 = vsel %vm2193, %v7973, %v7974
        %v7976 = vrot.slane %v7862, 5
        %v7977 = vrot.slane %v7976, 4
        %v7978 = vrot.slane %v6831, 5
        %v7979 = vsel %vm2193, %v7977, %v7978
        %v7980 = vrot.slane %v7978, 4
        %v7981 = vrot.slane %v6867, 5
        %v7982 = vsel %vm2193, %v7980, %v7981
        %v7983 = vrot.slane %v7863, 5
        %v7984 = vrot.slane %v7983, 4
        %v7985 = vrot.slane %v6833, 5
        %v7986 = vsel %vm2193, %v7984, %v7985
        %v7987 = vrot.slane %v7985, 4
        %v7988 = vrot.slane %v6868, 5
        %v7989 = vsel %vm2193, %v7987, %v7988
        %v7990 = vrot.slane %v7864, 5
        %v7991 = vrot.slane %v7990, 4
        %v7992 = vrot.slane %v6835, 5
        %v7993 = vsel %vm2193, %v7991, %v7992
        %v7994 = vrot.slane %v7992, 4
        %v7995 = vrot.slane %v6869, 5
        %v7996 = vsel %vm2193, %v7994, %v7995
        %v7997 = vrot.slane %v7865, 5
        %v7998 = vrot.slane %v7997, 4
        %v7999 = vrot.slane %v6837, 5
        %v8000 = vsel %vm2193, %v7998, %v7999
        %v8001 = vrot.slane %v7999, 4
        %v8002 = vrot.slane %v6870, 5
        %v8003 = vsel %vm2193, %v8001, %v8002
        %v8004 = vrot.slane %v7866, 5
        %v8005 = vrot.slane %v8004, 4
        %v8006 = vrot.slane %v6839, 5
        %v8007 = vsel %vm2193, %v8005, %v8006
        %v8008 = vrot.slane %v8006, 4
        %v8009 = vrot.slane %v6871, 5
        %v8010 = vsel %vm2193, %v8008, %v8009
        %s8011 = scalar_lea.vmem %s3, 128
        %v8012 = vld [vmem:[%s8011] sm:$0xf]
        %v8013 = vld [vmem:[%s8011 + $0x4] sm:$0xf]
        %v8014 = vld [vmem:[%s8011 + $0x8] sm:$0xf]
        %v8015 = vld [vmem:[%s8011 + $0xc] sm:$0xf]
        %v8016 = vld [vmem:[%s8011 + $0x10] sm:$0xf]
        %v8017 = vld [vmem:[%s8011 + $0x14] sm:$0xf]
        %v8018 = vld [vmem:[%s8011 + $0x18] sm:$0xf]
        %v8019 = vld [vmem:[%s8011 + $0x1c] sm:$0xf]
        %v8020 = vld [vmem:[%s8011 + $0x20] sm:$0xf]
        %v8021 = vld [vmem:[%s8011 + $0x24] sm:$0xf]
        %v8022 = vld [vmem:[%s8011 + $0x28] sm:$0xf]
        %v8023 = vld [vmem:[%s8011 + $0x2c] sm:$0xf]
        %v8024 = vld [vmem:[%s8011 + $0x30] sm:$0xf]
        %v8025 = vld [vmem:[%s8011 + $0x34] sm:$0xf]
        %v8026 = vld [vmem:[%s8011 + $0x38] sm:$0xf]
        %v8027 = vld [vmem:[%s8011 + $0x3c] sm:$0xf]
        %v8028 = vunpack.c.l.b16 %v7902
        %v8029 = vunpack.c.l.b16 %v7905
        %v8030 = vunpack.c.l.b16 %v7909
        %v8031 = vunpack.c.l.b16 %v7912
        %v8032 = vunpack.c.l.b16 %v7916
        %v8033 = vunpack.c.l.b16 %v7919
        %v8034 = vunpack.c.l.b16 %v7923
        %v8035 = vunpack.c.l.b16 %v7926
        %v8036 = vunpack.c.l.b16 %v7930
        %v8037 = vunpack.c.l.b16 %v7933
        %v8038 = vunpack.c.l.b16 %v7937
        %v8039 = vunpack.c.l.b16 %v7940
        %v8040 = vunpack.c.l.b16 %v7944
        %v8041 = vunpack.c.l.b16 %v7947
        %v8042 = vunpack.c.l.b16 %v7951
        %v8043 = vunpack.c.l.b16 %v7954
        %v8044 = vunpack.c.l.b16 %v7958
        %v8045 = vunpack.c.l.b16 %v7961
        %v8046 = vunpack.c.l.b16 %v7965
        %v8047 = vunpack.c.l.b16 %v7968
        %v8048 = vunpack.c.l.b16 %v7972
        %v8049 = vunpack.c.l.b16 %v7975
        %v8050 = vunpack.c.l.b16 %v7979
        %v8051 = vunpack.c.l.b16 %v7982
        %v8052 = vunpack.c.l.b16 %v7986
        %v8053 = vunpack.c.l.b16 %v7989
        %v8054 = vunpack.c.l.b16 %v7993
        %v8055 = vunpack.c.l.b16 %v7996
        %v8056 = vunpack.c.l.b16 %v8000
        %v8057 = vunpack.c.l.b16 %v8003
        %v8058 = vunpack.c.l.b16 %v8007
        %v8059 = vunpack.c.l.b16 %v8010
        %v8060 = vpack.c.b16 %v8029, %v8028
        %v8061 = vpack.c.b16 %v8031, %v8030
        %v8062 = vpack.c.b16 %v8033, %v8032
        %v8063 = vpack.c.b16 %v8035, %v8034
        %v8064 = vpack.c.b16 %v8037, %v8036
        %v8065 = vpack.c.b16 %v8039, %v8038
        %v8066 = vpack.c.b16 %v8041, %v8040
        %v8067 = vpack.c.b16 %v8043, %v8042
        %v8068 = vpack.c.b16 %v8045, %v8044
        %v8069 = vpack.c.b16 %v8047, %v8046
        %v8070 = vpack.c.b16 %v8049, %v8048
        %v8071 = vpack.c.b16 %v8051, %v8050
        %v8072 = vpack.c.b16 %v8053, %v8052
        %v8073 = vpack.c.b16 %v8055, %v8054
        %v8074 = vpack.c.b16 %v8057, %v8056
        %v8075 = vpack.c.b16 %v8059, %v8058
        %v8108 = vunpack.c.l.b16 %v8012
        %v8109 = vunpack.c.l.b16 %v8013
        %v8110 = vunpack.c.l.b16 %v8014
        %v8111 = vunpack.c.l.b16 %v8015
        %v8112 = vunpack.c.l.b16 %v8016
        %v8113 = vunpack.c.l.b16 %v8017
        %v8114 = vunpack.c.l.b16 %v8018
        %v8115 = vunpack.c.l.b16 %v8019
        %v8116 = vunpack.c.l.b16 %v8020
        %v8117 = vunpack.c.l.b16 %v8021
        %v8118 = vunpack.c.l.b16 %v8022
        %v8119 = vunpack.c.l.b16 %v8023
        %v8120 = vunpack.c.l.b16 %v8024
        %v8121 = vunpack.c.l.b16 %v8025
        %v8122 = vunpack.c.l.b16 %v8026
        %v8123 = vunpack.c.l.b16 %v8027
        %v8124 = vpack.c.b16 %v8109, %v8108
        %v8125 = vpack.c.b16 %v8111, %v8110
        %v8126 = vpack.c.b16 %v8113, %v8112
        %v8127 = vpack.c.b16 %v8115, %v8114
        %v8128 = vpack.c.b16 %v8117, %v8116
        %v8129 = vpack.c.b16 %v8119, %v8118
        %v8130 = vpack.c.b16 %v8121, %v8120
        %v8131 = vpack.c.b16 %v8123, %v8122
        %8140 = vmatprep.subr.bf16.mxu0 0
        %8141 = vmatpush1.bf16.msra.mxu0 %v8124
        %8142 = vmatprep.subr.bf16.mxu0 0
        %8143 = vmatpush1.bf16.msra.mxu0 %v8125
        %8144 = vmatprep.subr.bf16.mxu0 0
        %8145 = vmatpush1.bf16.msra.mxu0 %v8126
        %8146 = vmatprep.subr.bf16.mxu0 0
        %8147 = vmatpush1.bf16.msra.mxu0 %v8127
        %8148 = vmatprep.subr.bf16.mxu0 0
        %8149 = vmatpush1.bf16.msra.mxu0 %v8128
        %8150 = vmatprep.subr.bf16.mxu0 0
        %8151 = vmatpush1.bf16.msra.mxu0 %v8129
        %8152 = vmatprep.subr.bf16.mxu0 0
        %8153 = vmatpush1.bf16.msra.mxu0 %v8130
        %8154 = vmatprep.subr.bf16.mxu0 0
        %8155 = vmatpush1.bf16.msra.mxu0 %v8131
        %8156 = vmatprep.subr.bf16.mxu0 0
        %8157 = vmatpush1.bf16.msra.mxu0 0
        %8158 = vmatprep.subr.bf16.mxu0 0
        %8159 = vmatpush1.bf16.msra.mxu0 0
        %8160 = vmatprep.subr.bf16.mxu0 0
        %8161 = vmatpush1.bf16.msra.mxu0 0
        %8162 = vmatprep.subr.bf16.mxu0 0
        %8163 = vmatpush1.bf16.msra.mxu0 0
        %8164 = vmatprep.subr.bf16.mxu0 0
        %8165 = vmatpush1.bf16.msra.mxu0 0
        %8166 = vmatprep.subr.bf16.mxu0 0
        %8167 = vmatpush1.bf16.msra.mxu0 0
        %8168 = vmatprep.subr.bf16.mxu0 0
        %8169 = vmatpush1.bf16.msra.mxu0 0
        %8170 = vmatprep.subr.bf16.mxu0 0
        %8171 = vmatpush1.bf16.msra.mxu0 0
        %8172 = vmatprep.mubr.bf16.mxu0 0
        %8173 = vmatmul.mubr.bf16.gmra.mrb[0].mxu0 %v8060
        %v8174 = vpop.f32.mrb[0].mxu0
        %v8175 = vadd.f32 0.0, %v8174
        %v8176 = vpop.f32.mrb[0].mxu0
        %v8177 = vpop.f32.mrb[0].mxu0
        %v8178 = vadd.f32 0.0, %v8177
        %v8179 = vpop.f32.mrb[0].mxu0
        %8180 = vmatprep.mubr.bf16.mxu0 0
        %8181 = vmatmul.mubr.bf16.gmra.mrb[0].mxu0 %v8061
        %v8182 = vpop.f32.mrb[0].mxu0
        %v8183 = vadd.f32 0.0, %v8182
        %v8184 = vpop.f32.mrb[0].mxu0
        %v8185 = vpop.f32.mrb[0].mxu0
        %v8186 = vadd.f32 0.0, %v8185
        %v8187 = vpop.f32.mrb[0].mxu0
        %8188 = vmatprep.mubr.bf16.mxu0 0
        %8189 = vmatmul.mubr.bf16.gmra.mrb[0].mxu0 %v8062
        %v8190 = vpop.f32.mrb[0].mxu0
        %v8191 = vadd.f32 0.0, %v8190
        %v8192 = vpop.f32.mrb[0].mxu0
        %v8193 = vpop.f32.mrb[0].mxu0
        %v8194 = vadd.f32 0.0, %v8193
        %v8195 = vpop.f32.mrb[0].mxu0
        %8196 = vmatprep.mubr.bf16.mxu0 0
        %8197 = vmatmul.mubr.bf16.gmra.mrb[0].mxu0 %v8063
        %v8198 = vpop.f32.mrb[0].mxu0
        %v8199 = vadd.f32 0.0, %v8198
        %v8200 = vpop.f32.mrb[0].mxu0
        %v8201 = vpop.f32.mrb[0].mxu0
        %v8202 = vadd.f32 0.0, %v8201
        %v8203 = vpop.f32.mrb[0].mxu0
        %8204 = vmatprep.mubr.bf16.mxu0 0
        %8205 = vmatmul.mubr.bf16.gmra.mrb[0].mxu0 %v8064
        %v8206 = vpop.f32.mrb[0].mxu0
        %v8207 = vadd.f32 0.0, %v8206
        %v8208 = vpop.f32.mrb[0].mxu0
        %v8209 = vpop.f32.mrb[0].mxu0
        %v8210 = vadd.f32 0.0, %v8209
        %v8211 = vpop.f32.mrb[0].mxu0
        %8212 = vmatprep.mubr.bf16.mxu0 0
        %8213 = vmatmul.mubr.bf16.gmra.mrb[0].mxu0 %v8065
        %v8214 = vpop.f32.mrb[0].mxu0
        %v8215 = vadd.f32 0.0, %v8214
        %v8216 = vpop.f32.mrb[0].mxu0
        %v8217 = vpop.f32.mrb[0].mxu0
        %v8218 = vadd.f32 0.0, %v8217
        %v8219 = vpop.f32.mrb[0].mxu0
        %8220 = vmatprep.mubr.bf16.mxu0 0
        %8221 = vmatmul.mubr.bf16.gmra.mrb[0].mxu0 %v8066
        %v8222 = vpop.f32.mrb[0].mxu0
        %v8223 = vadd.f32 0.0, %v8222
        %v8224 = vpop.f32.mrb[0].mxu0
        %v8225 = vpop.f32.mrb[0].mxu0
        %v8226 = vadd.f32 0.0, %v8225
        %v8227 = vpop.f32.mrb[0].mxu0
        %8228 = vmatprep.mubr.bf16.mxu0 0
        %8229 = vmatmul.mubr.bf16.gmra.mrb[0].mxu0 %v8067
        %v8230 = vpop.f32.mrb[0].mxu0
        %v8231 = vadd.f32 0.0, %v8230
        %v8232 = vpop.f32.mrb[0].mxu0
        %v8233 = vpop.f32.mrb[0].mxu0
        %v8234 = vadd.f32 0.0, %v8233
        %v8235 = vpop.f32.mrb[0].mxu0
        %8236 = vmatprep.mubr.bf16.mxu0 0
        %8237 = vmatmul.mubr.bf16.gmra.mrb[0].mxu0 %v8068
        %v8238 = vpop.f32.mrb[0].mxu0
        %v8239 = vadd.f32 0.0, %v8238
        %v8240 = vpop.f32.mrb[0].mxu0
        %v8241 = vpop.f32.mrb[0].mxu0
        %v8242 = vadd.f32 0.0, %v8241
        %v8243 = vpop.f32.mrb[0].mxu0
        %8244 = vmatprep.mubr.bf16.mxu0 0
        %8245 = vmatmul.mubr.bf16.gmra.mrb[0].mxu0 %v8069
        %v8246 = vpop.f32.mrb[0].mxu0
        %v8247 = vadd.f32 0.0, %v8246
        %v8248 = vpop.f32.mrb[0].mxu0
        %v8249 = vpop.f32.mrb[0].mxu0
        %v8250 = vadd.f32 0.0, %v8249
        %v8251 = vpop.f32.mrb[0].mxu0
        %8252 = vmatprep.mubr.bf16.mxu0 0
        %8253 = vmatmul.mubr.bf16.gmra.mrb[0].mxu0 %v8070
        %v8254 = vpop.f32.mrb[0].mxu0
        %v8255 = vadd.f32 0.0, %v8254
        %v8256 = vpop.f32.mrb[0].mxu0
        %v8257 = vpop.f32.mrb[0].mxu0
        %v8258 = vadd.f32 0.0, %v8257
        %v8259 = vpop.f32.mrb[0].mxu0
        %8260 = vmatprep.mubr.bf16.mxu0 0
        %8261 = vmatmul.mubr.bf16.gmra.mrb[0].mxu0 %v8071
        %v8262 = vpop.f32.mrb[0].mxu0
        %v8263 = vadd.f32 0.0, %v8262
        %v8264 = vpop.f32.mrb[0].mxu0
        %v8265 = vpop.f32.mrb[0].mxu0
        %v8266 = vadd.f32 0.0, %v8265
        %v8267 = vpop.f32.mrb[0].mxu0
        %8268 = vmatprep.mubr.bf16.mxu0 0
        %8269 = vmatmul.mubr.bf16.gmra.mrb[0].mxu0 %v8072
        %v8270 = vpop.f32.mrb[0].mxu0
        %v8271 = vadd.f32 0.0, %v8270
        %v8272 = vpop.f32.mrb[0].mxu0
        %v8273 = vpop.f32.mrb[0].mxu0
        %v8274 = vadd.f32 0.0, %v8273
        %v8275 = vpop.f32.mrb[0].mxu0
        %8276 = vmatprep.mubr.bf16.mxu0 0
        %8277 = vmatmul.mubr.bf16.gmra.mrb[0].mxu0 %v8073
        %v8278 = vpop.f32.mrb[0].mxu0
        %v8279 = vadd.f32 0.0, %v8278
        %v8280 = vpop.f32.mrb[0].mxu0
        %v8281 = vpop.f32.mrb[0].mxu0
        %v8282 = vadd.f32 0.0, %v8281
        %v8283 = vpop.f32.mrb[0].mxu0
        %8284 = vmatprep.mubr.bf16.mxu0 0
        %8285 = vmatmul.mubr.bf16.gmra.mrb[0].mxu0 %v8074
        %v8286 = vpop.f32.mrb[0].mxu0
        %v8287 = vadd.f32 0.0, %v8286
        %v8288 = vpop.f32.mrb[0].mxu0
        %v8289 = vpop.f32.mrb[0].mxu0
        %v8290 = vadd.f32 0.0, %v8289
        %v8291 = vpop.f32.mrb[0].mxu0
        %8292 = vmatprep.mubr.bf16.mxu0 0
        %8293 = vmatmul.mubr.bf16.gmra.mrb[0].mxu0 %v8075
        %v8294 = vpop.f32.mrb[0].mxu0
        %v8295 = vadd.f32 0.0, %v8294
        %v8296 = vpop.f32.mrb[0].mxu0
        %v8297 = vpop.f32.mrb[0].mxu0
        %v8298 = vadd.f32 0.0, %v8297
        %v8299 = vpop.f32.mrb[0].mxu0
        %8300 = vdwg.mxu0
        %v8301 = vadd.f32 %v7725, %v8175
        %v8302 = vadd.f32 %v7728, %v8178
        %v8303 = vadd.f32 %v7733, %v8183
        %v8304 = vadd.f32 %v7736, %v8186
        %v8305 = vadd.f32 %v7741, %v8191
        %v8306 = vadd.f32 %v7744, %v8194
        %v8307 = vadd.f32 %v7749, %v8199
        %v8308 = vadd.f32 %v7752, %v8202
        %v8309 = vadd.f32 %v7757, %v8207
        %v8310 = vadd.f32 %v7760, %v8210
        %v8311 = vadd.f32 %v7765, %v8215
        %v8312 = vadd.f32 %v7768, %v8218
        %v8313 = vadd.f32 %v7773, %v8223
        %v8314 = vadd.f32 %v7776, %v8226
        %v8315 = vadd.f32 %v7781, %v8231
        %v8316 = vadd.f32 %v7784, %v8234
        %v8317 = vadd.f32 %v7789, %v8239
        %v8318 = vadd.f32 %v7792, %v8242
        %v8319 = vadd.f32 %v7797, %v8247
        %v8320 = vadd.f32 %v7800, %v8250
        %v8321 = vadd.f32 %v7805, %v8255
        %v8322 = vadd.f32 %v7808, %v8258
        %v8323 = vadd.f32 %v7813, %v8263
        %v8324 = vadd.f32 %v7816, %v8266
        %v8325 = vadd.f32 %v7821, %v8271
        %v8326 = vadd.f32 %v7824, %v8274
        %v8327 = vadd.f32 %v7829, %v8279
        %v8328 = vadd.f32 %v7832, %v8282
        %v8329 = vadd.f32 %v7837, %v8287
        %v8330 = vadd.f32 %v7840, %v8290
        %v8331 = vadd.f32 %v7845, %v8295
        %v8332 = vadd.f32 %v7848, %v8298
        %v8333 = vld [vmem:[%s6392] sm:$0xf]
        %v8334 = vld [vmem:[%s6392 + $0x4] sm:$0xf]
        %v8335 = vld [vmem:[%s6392 + $0xc] sm:$0xf]
        %v8336 = vld [vmem:[%s6392 + $0x10] sm:$0xf]
        %v8337 = vld [vmem:[%s6392 + $0x18] sm:$0xf]
        %v8338 = vld [vmem:[%s6392 + $0x1c] sm:$0xf]
        %v8339 = vld [vmem:[%s6392 + $0x24] sm:$0xf]
        %v8340 = vld [vmem:[%s6392 + $0x28] sm:$0xf]
        %v8341 = vld [vmem:[%s6392 + $0x30] sm:$0xf]
        %v8342 = vld [vmem:[%s6392 + $0x34] sm:$0xf]
        %v8343 = vld [vmem:[%s6392 + $0x3c] sm:$0xf]
        %v8344 = vld [vmem:[%s6392 + $0x40] sm:$0xf]
        %v8345 = vld [vmem:[%s6392 + $0x48] sm:$0xf]
        %v8346 = vld [vmem:[%s6392 + $0x4c] sm:$0xf]
        %v8347 = vld [vmem:[%s6392 + $0x54] sm:$0xf]
        %v8348 = vld [vmem:[%s6392 + $0x58] sm:$0xf]
        %v8349 = vld [vmem:[%s6392 + $0x60] sm:$0xf]
        %v8350 = vld [vmem:[%s6392 + $0x64] sm:$0xf]
        %v8351 = vld [vmem:[%s6392 + $0x6c] sm:$0xf]
        %v8352 = vld [vmem:[%s6392 + $0x70] sm:$0xf]
        %v8353 = vld [vmem:[%s6392 + $0x78] sm:$0xf]
        %v8354 = vld [vmem:[%s6392 + $0x7c] sm:$0xf]
        %v8355 = vld [vmem:[%s6392 + $0x84] sm:$0xf]
        %v8356 = vld [vmem:[%s6392 + $0x88] sm:$0xf]
        %v8357 = vld [vmem:[%s6392 + $0x90] sm:$0xf]
        %v8358 = vld [vmem:[%s6392 + $0x94] sm:$0xf]
        %v8359 = vld [vmem:[%s6392 + $0x9c] sm:$0xf]
        %v8360 = vld [vmem:[%s6392 + $0xa0] sm:$0xf]
        %v8361 = vld [vmem:[%s6392 + $0xa8] sm:$0xf]
        %v8362 = vld [vmem:[%s6392 + $0xac] sm:$0xf]
        %v8363 = vld [vmem:[%s6392 + $0xb4] sm:$0xf]
        %v8364 = vld [vmem:[%s6392 + $0xb8] sm:$0xf]
        %s8365 = scalar_lea.vmem %s3, 192
        %v8366 = vld [vmem:[%s8365] sm:$0xf]
        %v8367 = vld [vmem:[%s8365 + $0x4] sm:$0xf]
        %v8368 = vld [vmem:[%s8365 + $0x8] sm:$0xf]
        %v8369 = vld [vmem:[%s8365 + $0xc] sm:$0xf]
        %v8370 = vld [vmem:[%s8365 + $0x10] sm:$0xf]
        %v8371 = vld [vmem:[%s8365 + $0x14] sm:$0xf]
        %v8372 = vld [vmem:[%s8365 + $0x18] sm:$0xf]
        %v8373 = vld [vmem:[%s8365 + $0x1c] sm:$0xf]
        %v8374 = vld [vmem:[%s8365 + $0x20] sm:$0xf]
        %v8375 = vld [vmem:[%s8365 + $0x24] sm:$0xf]
        %v8376 = vld [vmem:[%s8365 + $0x28] sm:$0xf]
        %v8377 = vld [vmem:[%s8365 + $0x2c] sm:$0xf]
        %v8378 = vld [vmem:[%s8365 + $0x30] sm:$0xf]
        %v8379 = vld [vmem:[%s8365 + $0x34] sm:$0xf]
        %v8380 = vld [vmem:[%s8365 + $0x38] sm:$0xf]
        %v8381 = vld [vmem:[%s8365 + $0x3c] sm:$0xf]
        %v8414 = vunpack.c.l.b16 %v8333
        %v8415 = vunpack.c.l.b16 %v8334
        %v8416 = vunpack.c.l.b16 %v8335
        %v8417 = vunpack.c.l.b16 %v8336
        %v8418 = vunpack.c.l.b16 %v8337
        %v8419 = vunpack.c.l.b16 %v8338
        %v8420 = vunpack.c.l.b16 %v8339
        %v8421 = vunpack.c.l.b16 %v8340
        %v8422 = vunpack.c.l.b16 %v8341
        %v8423 = vunpack.c.l.b16 %v8342
        %v8424 = vunpack.c.l.b16 %v8343
        %v8425 = vunpack.c.l.b16 %v8344
        %v8426 = vunpack.c.l.b16 %v8345
        %v8427 = vunpack.c.l.b16 %v8346
        %v8428 = vunpack.c.l.b16 %v8347
        %v8429 = vunpack.c.l.b16 %v8348
        %v8430 = vunpack.c.l.b16 %v8349
        %v8431 = vunpack.c.l.b16 %v8350
        %v8432 = vunpack.c.l.b16 %v8351
        %v8433 = vunpack.c.l.b16 %v8352
        %v8434 = vunpack.c.l.b16 %v8353
        %v8435 = vunpack.c.l.b16 %v8354
        %v8436 = vunpack.c.l.b16 %v8355
        %v8437 = vunpack.c.l.b16 %v8356
        %v8438 = vunpack.c.l.b16 %v8357
        %v8439 = vunpack.c.l.b16 %v8358
        %v8440 = vunpack.c.l.b16 %v8359
        %v8441 = vunpack.c.l.b16 %v8360
        %v8442 = vunpack.c.l.b16 %v8361
        %v8443 = vunpack.c.l.b16 %v8362
        %v8444 = vunpack.c.l.b16 %v8363
        %v8445 = vunpack.c.l.b16 %v8364
        %v8446 = vpack.c.b16 %v8415, %v8414
        %v8447 = vpack.c.b16 %v8417, %v8416
        %v8448 = vpack.c.b16 %v8419, %v8418
        %v8449 = vpack.c.b16 %v8421, %v8420
        %v8450 = vpack.c.b16 %v8423, %v8422
        %v8451 = vpack.c.b16 %v8425, %v8424
        %v8452 = vpack.c.b16 %v8427, %v8426
        %v8453 = vpack.c.b16 %v8429, %v8428
        %v8454 = vpack.c.b16 %v8431, %v8430
        %v8455 = vpack.c.b16 %v8433, %v8432
        %v8456 = vpack.c.b16 %v8435, %v8434
        %v8457 = vpack.c.b16 %v8437, %v8436
        %v8458 = vpack.c.b16 %v8439, %v8438
        %v8459 = vpack.c.b16 %v8441, %v8440
        %v8460 = vpack.c.b16 %v8443, %v8442
        %v8461 = vpack.c.b16 %v8445, %v8444
        %v8494 = vunpack.c.l.b16 %v8366
        %v8495 = vunpack.c.l.b16 %v8367
        %v8496 = vunpack.c.l.b16 %v8368
        %v8497 = vunpack.c.l.b16 %v8369
        %v8498 = vunpack.c.l.b16 %v8370
        %v8499 = vunpack.c.l.b16 %v8371
        %v8500 = vunpack.c.l.b16 %v8372
        %v8501 = vunpack.c.l.b16 %v8373
        %v8502 = vunpack.c.l.b16 %v8374
        %v8503 = vunpack.c.l.b16 %v8375
        %v8504 = vunpack.c.l.b16 %v8376
        %v8505 = vunpack.c.l.b16 %v8377
        %v8506 = vunpack.c.l.b16 %v8378
        %v8507 = vunpack.c.l.b16 %v8379
        %v8508 = vunpack.c.l.b16 %v8380
        %v8509 = vunpack.c.l.b16 %v8381
        %v8510 = vpack.c.b16 %v8495, %v8494
        %v8511 = vpack.c.b16 %v8497, %v8496
        %v8512 = vpack.c.b16 %v8499, %v8498
        %v8513 = vpack.c.b16 %v8501, %v8500
        %v8514 = vpack.c.b16 %v8503, %v8502
        %v8515 = vpack.c.b16 %v8505, %v8504
        %v8516 = vpack.c.b16 %v8507, %v8506
        %v8517 = vpack.c.b16 %v8509, %v8508
        %8526 = vmatprep.subr.bf16.mxu0 0
        %8527 = vmatpush1.bf16.msra.mxu0 %v8510
        %8528 = vmatprep.subr.bf16.mxu0 0
        %8529 = vmatpush1.bf16.msra.mxu0 %v8511
        %8530 = vmatprep.subr.bf16.mxu0 0
        %8531 = vmatpush1.bf16.msra.mxu0 %v8512
        %8532 = vmatprep.subr.bf16.mxu0 0
        %8533 = vmatpush1.bf16.msra.mxu0 %v8513
        %8534 = vmatprep.subr.bf16.mxu0 0
        %8535 = vmatpush1.bf16.msra.mxu0 %v8514
        %8536 = vmatprep.subr.bf16.mxu0 0
        %8537 = vmatpush1.bf16.msra.mxu0 %v8515
        %8538 = vmatprep.subr.bf16.mxu0 0
        %8539 = vmatpush1.bf16.msra.mxu0 %v8516
        %8540 = vmatprep.subr.bf16.mxu0 0
        %8541 = vmatpush1.bf16.msra.mxu0 %v8517
        %8542 = vmatprep.subr.bf16.mxu0 0
        %8543 = vmatpush1.bf16.msra.mxu0 0
        %8544 = vmatprep.subr.bf16.mxu0 0
        %8545 = vmatpush1.bf16.msra.mxu0 0
        %8546 = vmatprep.subr.bf16.mxu0 0
        %8547 = vmatpush1.bf16.msra.mxu0 0
        %8548 = vmatprep.subr.bf16.mxu0 0
        %8549 = vmatpush1.bf16.msra.mxu0 0
        %8550 = vmatprep.subr.bf16.mxu0 0
        %8551 = vmatpush1.bf16.msra.mxu0 0
        %8552 = vmatprep.subr.bf16.mxu0 0
        %8553 = vmatpush1.bf16.msra.mxu0 0
        %8554 = vmatprep.subr.bf16.mxu0 0
        %8555 = vmatpush1.bf16.msra.mxu0 0
        %8556 = vmatprep.subr.bf16.mxu0 0
        %8557 = vmatpush1.bf16.msra.mxu0 0
        %8558 = vmatprep.mubr.bf16.mxu0 0
        %8559 = vmatmul.mubr.bf16.gmra.mrb[0].mxu0 %v8446
        %v8560 = vpop.f32.mrb[0].mxu0
        %v8561 = vadd.f32 0.0, %v8560
        %v8562 = vpop.f32.mrb[0].mxu0
        %v8563 = vpop.f32.mrb[0].mxu0
        %v8564 = vadd.f32 0.0, %v8563
        %v8565 = vpop.f32.mrb[0].mxu0
        %8566 = vmatprep.mubr.bf16.mxu0 0
        %8567 = vmatmul.mubr.bf16.gmra.mrb[0].mxu0 %v8447
        %v8568 = vpop.f32.mrb[0].mxu0
        %v8569 = vadd.f32 0.0, %v8568
        %v8570 = vpop.f32.mrb[0].mxu0
        %v8571 = vpop.f32.mrb[0].mxu0
        %v8572 = vadd.f32 0.0, %v8571
        %v8573 = vpop.f32.mrb[0].mxu0
        %8574 = vmatprep.mubr.bf16.mxu0 0
        %8575 = vmatmul.mubr.bf16.gmra.mrb[0].mxu0 %v8448
        %v8576 = vpop.f32.mrb[0].mxu0
        %v8577 = vadd.f32 0.0, %v8576
        %v8578 = vpop.f32.mrb[0].mxu0
        %v8579 = vpop.f32.mrb[0].mxu0
        %v8580 = vadd.f32 0.0, %v8579
        %v8581 = vpop.f32.mrb[0].mxu0
        %8582 = vmatprep.mubr.bf16.mxu0 0
        %8583 = vmatmul.mubr.bf16.gmra.mrb[0].mxu0 %v8449
        %v8584 = vpop.f32.mrb[0].mxu0
        %v8585 = vadd.f32 0.0, %v8584
        %v8586 = vpop.f32.mrb[0].mxu0
        %v8587 = vpop.f32.mrb[0].mxu0
        %v8588 = vadd.f32 0.0, %v8587
        %v8589 = vpop.f32.mrb[0].mxu0
        %8590 = vmatprep.mubr.bf16.mxu0 0
        %8591 = vmatmul.mubr.bf16.gmra.mrb[0].mxu0 %v8450
        %v8592 = vpop.f32.mrb[0].mxu0
        %v8593 = vadd.f32 0.0, %v8592
        %v8594 = vpop.f32.mrb[0].mxu0
        %v8595 = vpop.f32.mrb[0].mxu0
        %v8596 = vadd.f32 0.0, %v8595
        %v8597 = vpop.f32.mrb[0].mxu0
        %8598 = vmatprep.mubr.bf16.mxu0 0
        %8599 = vmatmul.mubr.bf16.gmra.mrb[0].mxu0 %v8451
        %v8600 = vpop.f32.mrb[0].mxu0
        %v8601 = vadd.f32 0.0, %v8600
        %v8602 = vpop.f32.mrb[0].mxu0
        %v8603 = vpop.f32.mrb[0].mxu0
        %v8604 = vadd.f32 0.0, %v8603
        %v8605 = vpop.f32.mrb[0].mxu0
        %8606 = vmatprep.mubr.bf16.mxu0 0
        %8607 = vmatmul.mubr.bf16.gmra.mrb[0].mxu0 %v8452
        %v8608 = vpop.f32.mrb[0].mxu0
        %v8609 = vadd.f32 0.0, %v8608
        %v8610 = vpop.f32.mrb[0].mxu0
        %v8611 = vpop.f32.mrb[0].mxu0
        %v8612 = vadd.f32 0.0, %v8611
        %v8613 = vpop.f32.mrb[0].mxu0
        %8614 = vmatprep.mubr.bf16.mxu0 0
        %8615 = vmatmul.mubr.bf16.gmra.mrb[0].mxu0 %v8453
        %v8616 = vpop.f32.mrb[0].mxu0
        %v8617 = vadd.f32 0.0, %v8616
        %v8618 = vpop.f32.mrb[0].mxu0
        %v8619 = vpop.f32.mrb[0].mxu0
        %v8620 = vadd.f32 0.0, %v8619
        %v8621 = vpop.f32.mrb[0].mxu0
        %8622 = vmatprep.mubr.bf16.mxu0 0
        %8623 = vmatmul.mubr.bf16.gmra.mrb[0].mxu0 %v8454
        %v8624 = vpop.f32.mrb[0].mxu0
        %v8625 = vadd.f32 0.0, %v8624
        %v8626 = vpop.f32.mrb[0].mxu0
        %v8627 = vpop.f32.mrb[0].mxu0
        %v8628 = vadd.f32 0.0, %v8627
        %v8629 = vpop.f32.mrb[0].mxu0
        %8630 = vmatprep.mubr.bf16.mxu0 0
        %8631 = vmatmul.mubr.bf16.gmra.mrb[0].mxu0 %v8455
        %v8632 = vpop.f32.mrb[0].mxu0
        %v8633 = vadd.f32 0.0, %v8632
        %v8634 = vpop.f32.mrb[0].mxu0
        %v8635 = vpop.f32.mrb[0].mxu0
        %v8636 = vadd.f32 0.0, %v8635
        %v8637 = vpop.f32.mrb[0].mxu0
        %8638 = vmatprep.mubr.bf16.mxu0 0
        %8639 = vmatmul.mubr.bf16.gmra.mrb[0].mxu0 %v8456
        %v8640 = vpop.f32.mrb[0].mxu0
        %v8641 = vadd.f32 0.0, %v8640
        %v8642 = vpop.f32.mrb[0].mxu0
        %v8643 = vpop.f32.mrb[0].mxu0
        %v8644 = vadd.f32 0.0, %v8643
        %v8645 = vpop.f32.mrb[0].mxu0
        %8646 = vmatprep.mubr.bf16.mxu0 0
        %8647 = vmatmul.mubr.bf16.gmra.mrb[0].mxu0 %v8457
        %v8648 = vpop.f32.mrb[0].mxu0
        %v8649 = vadd.f32 0.0, %v8648
        %v8650 = vpop.f32.mrb[0].mxu0
        %v8651 = vpop.f32.mrb[0].mxu0
        %v8652 = vadd.f32 0.0, %v8651
        %v8653 = vpop.f32.mrb[0].mxu0
        %8654 = vmatprep.mubr.bf16.mxu0 0
        %8655 = vmatmul.mubr.bf16.gmra.mrb[0].mxu0 %v8458
        %v8656 = vpop.f32.mrb[0].mxu0
        %v8657 = vadd.f32 0.0, %v8656
        %v8658 = vpop.f32.mrb[0].mxu0
        %v8659 = vpop.f32.mrb[0].mxu0
        %v8660 = vadd.f32 0.0, %v8659
        %v8661 = vpop.f32.mrb[0].mxu0
        %8662 = vmatprep.mubr.bf16.mxu0 0
        %8663 = vmatmul.mubr.bf16.gmra.mrb[0].mxu0 %v8459
        %v8664 = vpop.f32.mrb[0].mxu0
        %v8665 = vadd.f32 0.0, %v8664
        %v8666 = vpop.f32.mrb[0].mxu0
        %v8667 = vpop.f32.mrb[0].mxu0
        %v8668 = vadd.f32 0.0, %v8667
        %v8669 = vpop.f32.mrb[0].mxu0
        %8670 = vmatprep.mubr.bf16.mxu0 0
        %8671 = vmatmul.mubr.bf16.gmra.mrb[0].mxu0 %v8460
        %v8672 = vpop.f32.mrb[0].mxu0
        %v8673 = vadd.f32 0.0, %v8672
        %v8674 = vpop.f32.mrb[0].mxu0
        %v8675 = vpop.f32.mrb[0].mxu0
        %v8676 = vadd.f32 0.0, %v8675
        %v8677 = vpop.f32.mrb[0].mxu0
        %8678 = vmatprep.mubr.bf16.mxu0 0
        %8679 = vmatmul.mubr.bf16.gmra.mrb[0].mxu0 %v8461
        %v8680 = vpop.f32.mrb[0].mxu0
        %v8681 = vadd.f32 0.0, %v8680
        %v8682 = vpop.f32.mrb[0].mxu0
        %v8683 = vpop.f32.mrb[0].mxu0
        %v8684 = vadd.f32 0.0, %v8683
        %v8685 = vpop.f32.mrb[0].mxu0
        %8686 = vdwg.mxu0
        %v8687 = vadd.f32 %v8301, %v8561
        %v8688 = vadd.f32 %v8302, %v8564
        %v8689 = vadd.f32 %v8303, %v8569
        %v8690 = vadd.f32 %v8304, %v8572
        %v8691 = vadd.f32 %v8305, %v8577
        %v8692 = vadd.f32 %v8306, %v8580
        %v8693 = vadd.f32 %v8307, %v8585
        %v8694 = vadd.f32 %v8308, %v8588
        %v8695 = vadd.f32 %v8309, %v8593
        %v8696 = vadd.f32 %v8310, %v8596
        %v8697 = vadd.f32 %v8311, %v8601
        %v8698 = vadd.f32 %v8312, %v8604
        %v8699 = vadd.f32 %v8313, %v8609
        %v8700 = vadd.f32 %v8314, %v8612
        %v8701 = vadd.f32 %v8315, %v8617
        %v8702 = vadd.f32 %v8316, %v8620
        %v8703 = vadd.f32 %v8317, %v8625
        %v8704 = vadd.f32 %v8318, %v8628
        %v8705 = vadd.f32 %v8319, %v8633
        %v8706 = vadd.f32 %v8320, %v8636
        %v8707 = vadd.f32 %v8321, %v8641
        %v8708 = vadd.f32 %v8322, %v8644
        %v8709 = vadd.f32 %v8323, %v8649
        %v8710 = vadd.f32 %v8324, %v8652
        %v8711 = vadd.f32 %v8325, %v8657
        %v8712 = vadd.f32 %v8326, %v8660
        %v8713 = vadd.f32 %v8327, %v8665
        %v8714 = vadd.f32 %v8328, %v8668
        %v8715 = vadd.f32 %v8329, %v8673
        %v8716 = vadd.f32 %v8330, %v8676
        %v8717 = vadd.f32 %v8331, %v8681
        %v8718 = vadd.f32 %v8332, %v8684
        %v8719 = vld [vmem:[%s6392] sm:$0xf]
        %v8720 = vld [vmem:[%s6392 + $0x4] sm:$0xf]
        %v8721 = vld [vmem:[%s6392 + $0x8] sm:$0x1]
        %v8722 = vld [vmem:[%s6392 + $0xc] sm:$0xf]
        %v8723 = vld [vmem:[%s6392 + $0x10] sm:$0xf]
        %v8724 = vld [vmem:[%s6392 + $0x14] sm:$0x1]
        %v8725 = vld [vmem:[%s6392 + $0x18] sm:$0xf]
        %v8726 = vld [vmem:[%s6392 + $0x1c] sm:$0xf]
        %v8727 = vld [vmem:[%s6392 + $0x20] sm:$0x1]
        %v8728 = vld [vmem:[%s6392 + $0x24] sm:$0xf]
        %v8729 = vld [vmem:[%s6392 + $0x28] sm:$0xf]
        %v8730 = vld [vmem:[%s6392 + $0x2c] sm:$0x1]
        %v8731 = vld [vmem:[%s6392 + $0x30] sm:$0xf]
        %v8732 = vld [vmem:[%s6392 + $0x34] sm:$0xf]
        %v8733 = vld [vmem:[%s6392 + $0x38] sm:$0x1]
        %v8734 = vld [vmem:[%s6392 + $0x3c] sm:$0xf]
        %v8735 = vld [vmem:[%s6392 + $0x40] sm:$0xf]
        %v8736 = vld [vmem:[%s6392 + $0x44] sm:$0x1]
        %v8737 = vld [vmem:[%s6392 + $0x48] sm:$0xf]
        %v8738 = vld [vmem:[%s6392 + $0x4c] sm:$0xf]
        %v8739 = vld [vmem:[%s6392 + $0x50] sm:$0x1]
        %v8740 = vld [vmem:[%s6392 + $0x54] sm:$0xf]
        %v8741 = vld [vmem:[%s6392 + $0x58] sm:$0xf]
        %v8742 = vld [vmem:[%s6392 + $0x5c] sm:$0x1]
        %v8743 = vld [vmem:[%s6392 + $0x60] sm:$0xf]
        %v8744 = vld [vmem:[%s6392 + $0x64] sm:$0xf]
        %v8745 = vld [vmem:[%s6392 + $0x68] sm:$0x1]
        %v8746 = vld [vmem:[%s6392 + $0x6c] sm:$0xf]
        %v8747 = vld [vmem:[%s6392 + $0x70] sm:$0xf]
        %v8748 = vld [vmem:[%s6392 + $0x74] sm:$0x1]
        %v8749 = vld [vmem:[%s6392 + $0x78] sm:$0xf]
        %v8750 = vld [vmem:[%s6392 + $0x7c] sm:$0xf]
        %v8751 = vld [vmem:[%s6392 + $0x80] sm:$0x1]
        %v8752 = vld [vmem:[%s6392 + $0x84] sm:$0xf]
        %v8753 = vld [vmem:[%s6392 + $0x88] sm:$0xf]
        %v8754 = vld [vmem:[%s6392 + $0x8c] sm:$0x1]
        %v8755 = vld [vmem:[%s6392 + $0x90] sm:$0xf]
        %v8756 = vld [vmem:[%s6392 + $0x94] sm:$0xf]
        %v8757 = vld [vmem:[%s6392 + $0x98] sm:$0x1]
        %v8758 = vld [vmem:[%s6392 + $0x9c] sm:$0xf]
        %v8759 = vld [vmem:[%s6392 + $0xa0] sm:$0xf]
        %v8760 = vld [vmem:[%s6392 + $0xa4] sm:$0x1]
        %v8761 = vld [vmem:[%s6392 + $0xa8] sm:$0xf]
        %v8762 = vld [vmem:[%s6392 + $0xac] sm:$0xf]
        %v8763 = vld [vmem:[%s6392 + $0xb0] sm:$0x1]
        %v8764 = vld [vmem:[%s6392 + $0xb4] sm:$0xf]
        %v8765 = vld [vmem:[%s6392 + $0xb8] sm:$0xf]
        %v8766 = vld [vmem:[%s6392 + $0xbc] sm:$0x1]
        %v8768 = vshrl.u32 %v8719, 16
        %v8770 = vrot.slane %v8768, 4
        %v8771 = vshll.u32 %v8719, 16
        %v8773 = vrot.slane %v8771, 5
        %v8774 = vor.u32 %v8770, %v8773
        %v8775 = vrot.slane %v8774, 4
        %v8777 = vshll.u32 %v8720, 16
        %v8779 = vrot.slane %v8777, 5
        %v8780 = vsel %vm1163, %v8775, %v8779
        %v8781 = vshrl.u32 %v8720, 16
        %v8783 = vrot.slane %v8781, 4
        %v8784 = vor.u32 %v8783, %v8779
        %v8785 = vrot.slane %v8784, 4
        %v8787 = vshll.u32 %v8721, 16
        %v8789 = vrot.slane %v8787, 5
        %v8790 = vsel %vm1163, %v8785, %v8789
        %v8792 = vshrl.u32 %v8722, 16
        %v8794 = vrot.slane %v8792, 4
        %v8795 = vshll.u32 %v8722, 16
        %v8797 = vrot.slane %v8795, 5
        %v8798 = vor.u32 %v8794, %v8797
        %v8799 = vrot.slane %v8798, 4
        %v8801 = vshll.u32 %v8723, 16
        %v8803 = vrot.slane %v8801, 5
        %v8804 = vsel %vm1163, %v8799, %v8803
        %v8805 = vshrl.u32 %v8723, 16
        %v8807 = vrot.slane %v8805, 4
        %v8808 = vor.u32 %v8807, %v8803
        %v8809 = vrot.slane %v8808, 4
        %v8811 = vshll.u32 %v8724, 16
        %v8813 = vrot.slane %v8811, 5
        %v8814 = vsel %vm1163, %v8809, %v8813
        %v8816 = vshrl.u32 %v8725, 16
        %v8818 = vrot.slane %v8816, 4
        %v8819 = vshll.u32 %v8725, 16
        %v8821 = vrot.slane %v8819, 5
        %v8822 = vor.u32 %v8818, %v8821
        %v8823 = vrot.slane %v8822, 4
        %v8825 = vshll.u32 %v8726, 16
        %v8827 = vrot.slane %v8825, 5
        %v8828 = vsel %vm1163, %v8823, %v8827
        %v8829 = vshrl.u32 %v8726, 16
        %v8831 = vrot.slane %v8829, 4
        %v8832 = vor.u32 %v8831, %v8827
        %v8833 = vrot.slane %v8832, 4
        %v8835 = vshll.u32 %v8727, 16
        %v8837 = vrot.slane %v8835, 5
        %v8838 = vsel %vm1163, %v8833, %v8837
        %v8840 = vshrl.u32 %v8728, 16
        %v8842 = vrot.slane %v8840, 4
        %v8843 = vshll.u32 %v8728, 16
        %v8845 = vrot.slane %v8843, 5
        %v8846 = vor.u32 %v8842, %v8845
        %v8847 = vrot.slane %v8846, 4
        %v8849 = vshll.u32 %v8729, 16
        %v8851 = vrot.slane %v8849, 5
        %v8852 = vsel %vm1163, %v8847, %v8851
        %v8853 = vshrl.u32 %v8729, 16
        %v8855 = vrot.slane %v8853, 4
        %v8856 = vor.u32 %v8855, %v8851
        %v8857 = vrot.slane %v8856, 4
        %v8859 = vshll.u32 %v8730, 16
        %v8861 = vrot.slane %v8859, 5
        %v8862 = vsel %vm1163, %v8857, %v8861
        %v8864 = vshrl.u32 %v8731, 16
        %v8866 = vrot.slane %v8864, 4
        %v8867 = vshll.u32 %v8731, 16
        %v8869 = vrot.slane %v8867, 5
        %v8870 = vor.u32 %v8866, %v8869
        %v8871 = vrot.slane %v8870, 4
        %v8873 = vshll.u32 %v8732, 16
        %v8875 = vrot.slane %v8873, 5
        %v8876 = vsel %vm1163, %v8871, %v8875
        %v8877 = vshrl.u32 %v8732, 16
        %v8879 = vrot.slane %v8877, 4
        %v8880 = vor.u32 %v8879, %v8875
        %v8881 = vrot.slane %v8880, 4
        %v8883 = vshll.u32 %v8733, 16
        %v8885 = vrot.slane %v8883, 5
        %v8886 = vsel %vm1163, %v8881, %v8885
        %v8888 = vshrl.u32 %v8734, 16
        %v8890 = vrot.slane %v8888, 4
        %v8891 = vshll.u32 %v8734, 16
        %v8893 = vrot.slane %v8891, 5
        %v8894 = vor.u32 %v8890, %v8893
        %v8895 = vrot.slane %v8894, 4
        %v8897 = vshll.u32 %v8735, 16
        %v8899 = vrot.slane %v8897, 5
        %v8900 = vsel %vm1163, %v8895, %v8899
        %v8901 = vshrl.u32 %v8735, 16
        %v8903 = vrot.slane %v8901, 4
        %v8904 = vor.u32 %v8903, %v8899
        %v8905 = vrot.slane %v8904, 4
        %v8907 = vshll.u32 %v8736, 16
        %v8909 = vrot.slane %v8907, 5
        %v8910 = vsel %vm1163, %v8905, %v8909
        %v8912 = vshrl.u32 %v8737, 16
        %v8914 = vrot.slane %v8912, 4
        %v8915 = vshll.u32 %v8737, 16
        %v8917 = vrot.slane %v8915, 5
        %v8918 = vor.u32 %v8914, %v8917
        %v8919 = vrot.slane %v8918, 4
        %v8921 = vshll.u32 %v8738, 16
        %v8923 = vrot.slane %v8921, 5
        %v8924 = vsel %vm1163, %v8919, %v8923
        %v8925 = vshrl.u32 %v8738, 16
        %v8927 = vrot.slane %v8925, 4
        %v8928 = vor.u32 %v8927, %v8923
        %v8929 = vrot.slane %v8928, 4
        %v8931 = vshll.u32 %v8739, 16
        %v8933 = vrot.slane %v8931, 5
        %v8934 = vsel %vm1163, %v8929, %v8933
        %v8936 = vshrl.u32 %v8740, 16
        %v8938 = vrot.slane %v8936, 4
        %v8939 = vshll.u32 %v8740, 16
        %v8941 = vrot.slane %v8939, 5
        %v8942 = vor.u32 %v8938, %v8941
        %v8943 = vrot.slane %v8942, 4
        %v8945 = vshll.u32 %v8741, 16
        %v8947 = vrot.slane %v8945, 5
        %v8948 = vsel %vm1163, %v8943, %v8947
        %v8949 = vshrl.u32 %v8741, 16
        %v8951 = vrot.slane %v8949, 4
        %v8952 = vor.u32 %v8951, %v8947
        %v8953 = vrot.slane %v8952, 4
        %v8955 = vshll.u32 %v8742, 16
        %v8957 = vrot.slane %v8955, 5
        %v8958 = vsel %vm1163, %v8953, %v8957
        %v8960 = vshrl.u32 %v8743, 16
        %v8962 = vrot.slane %v8960, 4
        %v8963 = vshll.u32 %v8743, 16
        %v8965 = vrot.slane %v8963, 5
        %v8966 = vor.u32 %v8962, %v8965
        %v8967 = vrot.slane %v8966, 4
        %v8969 = vshll.u32 %v8744, 16
        %v8971 = vrot.slane %v8969, 5
        %v8972 = vsel %vm1163, %v8967, %v8971
        %v8973 = vshrl.u32 %v8744, 16
        %v8975 = vrot.slane %v8973, 4
        %v8976 = vor.u32 %v8975, %v8971
        %v8977 = vrot.slane %v8976, 4
        %v8979 = vshll.u32 %v8745, 16
        %v8981 = vrot.slane %v8979, 5
        %v8982 = vsel %vm1163, %v8977, %v8981
        %v8984 = vshrl.u32 %v8746, 16
        %v8986 = vrot.slane %v8984, 4
        %v8987 = vshll.u32 %v8746, 16
        %v8989 = vrot.slane %v8987, 5
        %v8990 = vor.u32 %v8986, %v8989
        %v8991 = vrot.slane %v8990, 4
        %v8993 = vshll.u32 %v8747, 16
        %v8995 = vrot.slane %v8993, 5
        %v8996 = vsel %vm1163, %v8991, %v8995
        %v8997 = vshrl.u32 %v8747, 16
        %v8999 = vrot.slane %v8997, 4
        %v9000 = vor.u32 %v8999, %v8995
        %v9001 = vrot.slane %v9000, 4
        %v9003 = vshll.u32 %v8748, 16
        %v9005 = vrot.slane %v9003, 5
        %v9006 = vsel %vm1163, %v9001, %v9005
        %v9008 = vshrl.u32 %v8749, 16
        %v9010 = vrot.slane %v9008, 4
        %v9011 = vshll.u32 %v8749, 16
        %v9013 = vrot.slane %v9011, 5
        %v9014 = vor.u32 %v9010, %v9013
        %v9015 = vrot.slane %v9014, 4
        %v9017 = vshll.u32 %v8750, 16
        %v9019 = vrot.slane %v9017, 5
        %v9020 = vsel %vm1163, %v9015, %v9019
        %v9021 = vshrl.u32 %v8750, 16
        %v9023 = vrot.slane %v9021, 4
        %v9024 = vor.u32 %v9023, %v9019
        %v9025 = vrot.slane %v9024, 4
        %v9027 = vshll.u32 %v8751, 16
        %v9029 = vrot.slane %v9027, 5
        %v9030 = vsel %vm1163, %v9025, %v9029
        %v9032 = vshrl.u32 %v8752, 16
        %v9034 = vrot.slane %v9032, 4
        %v9035 = vshll.u32 %v8752, 16
        %v9037 = vrot.slane %v9035, 5
        %v9038 = vor.u32 %v9034, %v9037
        %v9039 = vrot.slane %v9038, 4
        %v9041 = vshll.u32 %v8753, 16
        %v9043 = vrot.slane %v9041, 5
        %v9044 = vsel %vm1163, %v9039, %v9043
        %v9045 = vshrl.u32 %v8753, 16
        %v9047 = vrot.slane %v9045, 4
        %v9048 = vor.u32 %v9047, %v9043
        %v9049 = vrot.slane %v9048, 4
        %v9051 = vshll.u32 %v8754, 16
        %v9053 = vrot.slane %v9051, 5
        %v9054 = vsel %vm1163, %v9049, %v9053
        %v9056 = vshrl.u32 %v8755, 16
        %v9058 = vrot.slane %v9056, 4
        %v9059 = vshll.u32 %v8755, 16
        %v9061 = vrot.slane %v9059, 5
        %v9062 = vor.u32 %v9058, %v9061
        %v9063 = vrot.slane %v9062, 4
        %v9065 = vshll.u32 %v8756, 16
        %v9067 = vrot.slane %v9065, 5
        %v9068 = vsel %vm1163, %v9063, %v9067
        %v9069 = vshrl.u32 %v8756, 16
        %v9071 = vrot.slane %v9069, 4
        %v9072 = vor.u32 %v9071, %v9067
        %v9073 = vrot.slane %v9072, 4
        %v9075 = vshll.u32 %v8757, 16
        %v9077 = vrot.slane %v9075, 5
        %v9078 = vsel %vm1163, %v9073, %v9077
        %v9080 = vshrl.u32 %v8758, 16
        %v9082 = vrot.slane %v9080, 4
        %v9083 = vshll.u32 %v8758, 16
        %v9085 = vrot.slane %v9083, 5
        %v9086 = vor.u32 %v9082, %v9085
        %v9087 = vrot.slane %v9086, 4
        %v9089 = vshll.u32 %v8759, 16
        %v9091 = vrot.slane %v9089, 5
        %v9092 = vsel %vm1163, %v9087, %v9091
        %v9093 = vshrl.u32 %v8759, 16
        %v9095 = vrot.slane %v9093, 4
        %v9096 = vor.u32 %v9095, %v9091
        %v9097 = vrot.slane %v9096, 4
        %v9099 = vshll.u32 %v8760, 16
        %v9101 = vrot.slane %v9099, 5
        %v9102 = vsel %vm1163, %v9097, %v9101
        %v9104 = vshrl.u32 %v8761, 16
        %v9106 = vrot.slane %v9104, 4
        %v9107 = vshll.u32 %v8761, 16
        %v9109 = vrot.slane %v9107, 5
        %v9110 = vor.u32 %v9106, %v9109
        %v9111 = vrot.slane %v9110, 4
        %v9113 = vshll.u32 %v8762, 16
        %v9115 = vrot.slane %v9113, 5
        %v9116 = vsel %vm1163, %v9111, %v9115
        %v9117 = vshrl.u32 %v8762, 16
        %v9119 = vrot.slane %v9117, 4
        %v9120 = vor.u32 %v9119, %v9115
        %v9121 = vrot.slane %v9120, 4
        %v9123 = vshll.u32 %v8763, 16
        %v9125 = vrot.slane %v9123, 5
        %v9126 = vsel %vm1163, %v9121, %v9125
        %v9128 = vshrl.u32 %v8764, 16
        %v9130 = vrot.slane %v9128, 4
        %v9131 = vshll.u32 %v8764, 16
        %v9133 = vrot.slane %v9131, 5
        %v9134 = vor.u32 %v9130, %v9133
        %v9135 = vrot.slane %v9134, 4
        %v9137 = vshll.u32 %v8765, 16
        %v9139 = vrot.slane %v9137, 5
        %v9140 = vsel %vm1163, %v9135, %v9139
        %v9141 = vshrl.u32 %v8765, 16
        %v9143 = vrot.slane %v9141, 4
        %v9144 = vor.u32 %v9143, %v9139
        %v9145 = vrot.slane %v9144, 4
        %v9147 = vshll.u32 %v8766, 16
        %v9149 = vrot.slane %v9147, 5
        %v9150 = vsel %vm1163, %v9145, %v9149
        %s9151 = scalar_lea.vmem %s3, 256
        %v9152 = vld [vmem:[%s9151] sm:$0xf]
        %v9153 = vld [vmem:[%s9151 + $0x4] sm:$0xf]
        %v9154 = vld [vmem:[%s9151 + $0x8] sm:$0xf]
        %v9155 = vld [vmem:[%s9151 + $0xc] sm:$0xf]
        %v9156 = vld [vmem:[%s9151 + $0x10] sm:$0xf]
        %v9157 = vld [vmem:[%s9151 + $0x14] sm:$0xf]
        %v9158 = vld [vmem:[%s9151 + $0x18] sm:$0xf]
        %v9159 = vld [vmem:[%s9151 + $0x1c] sm:$0xf]
        %v9160 = vld [vmem:[%s9151 + $0x20] sm:$0xf]
        %v9161 = vld [vmem:[%s9151 + $0x24] sm:$0xf]
        %v9162 = vld [vmem:[%s9151 + $0x28] sm:$0xf]
        %v9163 = vld [vmem:[%s9151 + $0x2c] sm:$0xf]
        %v9164 = vld [vmem:[%s9151 + $0x30] sm:$0xf]
        %v9165 = vld [vmem:[%s9151 + $0x34] sm:$0xf]
        %v9166 = vld [vmem:[%s9151 + $0x38] sm:$0xf]
        %v9167 = vld [vmem:[%s9151 + $0x3c] sm:$0xf]
        %v9168 = vunpack.c.l.b16 %v8780
        %v9169 = vunpack.c.l.b16 %v8790
        %v9170 = vunpack.c.l.b16 %v8804
        %v9171 = vunpack.c.l.b16 %v8814
        %v9172 = vunpack.c.l.b16 %v8828
        %v9173 = vunpack.c.l.b16 %v8838
        %v9174 = vunpack.c.l.b16 %v8852
        %v9175 = vunpack.c.l.b16 %v8862
        %v9176 = vunpack.c.l.b16 %v8876
        %v9177 = vunpack.c.l.b16 %v8886
        %v9178 = vunpack.c.l.b16 %v8900
        %v9179 = vunpack.c.l.b16 %v8910
        %v9180 = vunpack.c.l.b16 %v8924
        %v9181 = vunpack.c.l.b16 %v8934
        %v9182 = vunpack.c.l.b16 %v8948
        %v9183 = vunpack.c.l.b16 %v8958
        %v9184 = vunpack.c.l.b16 %v8972
        %v9185 = vunpack.c.l.b16 %v8982
        %v9186 = vunpack.c.l.b16 %v8996
        %v9187 = vunpack.c.l.b16 %v9006
        %v9188 = vunpack.c.l.b16 %v9020
        %v9189 = vunpack.c.l.b16 %v9030
        %v9190 = vunpack.c.l.b16 %v9044
        %v9191 = vunpack.c.l.b16 %v9054
        %v9192 = vunpack.c.l.b16 %v9068
        %v9193 = vunpack.c.l.b16 %v9078
        %v9194 = vunpack.c.l.b16 %v9092
        %v9195 = vunpack.c.l.b16 %v9102
        %v9196 = vunpack.c.l.b16 %v9116
        %v9197 = vunpack.c.l.b16 %v9126
        %v9198 = vunpack.c.l.b16 %v9140
        %v9199 = vunpack.c.l.b16 %v9150
        %v9200 = vpack.c.b16 %v9169, %v9168
        %v9201 = vpack.c.b16 %v9171, %v9170
        %v9202 = vpack.c.b16 %v9173, %v9172
        %v9203 = vpack.c.b16 %v9175, %v9174
        %v9204 = vpack.c.b16 %v9177, %v9176
        %v9205 = vpack.c.b16 %v9179, %v9178
        %v9206 = vpack.c.b16 %v9181, %v9180
        %v9207 = vpack.c.b16 %v9183, %v9182
        %v9208 = vpack.c.b16 %v9185, %v9184
        %v9209 = vpack.c.b16 %v9187, %v9186
        %v9210 = vpack.c.b16 %v9189, %v9188
        %v9211 = vpack.c.b16 %v9191, %v9190
        %v9212 = vpack.c.b16 %v9193, %v9192
        %v9213 = vpack.c.b16 %v9195, %v9194
        %v9214 = vpack.c.b16 %v9197, %v9196
        %v9215 = vpack.c.b16 %v9199, %v9198
        %v9248 = vunpack.c.l.b16 %v9152
        %v9249 = vunpack.c.l.b16 %v9153
        %v9250 = vunpack.c.l.b16 %v9154
        %v9251 = vunpack.c.l.b16 %v9155
        %v9252 = vunpack.c.l.b16 %v9156
        %v9253 = vunpack.c.l.b16 %v9157
        %v9254 = vunpack.c.l.b16 %v9158
        %v9255 = vunpack.c.l.b16 %v9159
        %v9256 = vunpack.c.l.b16 %v9160
        %v9257 = vunpack.c.l.b16 %v9161
        %v9258 = vunpack.c.l.b16 %v9162
        %v9259 = vunpack.c.l.b16 %v9163
        %v9260 = vunpack.c.l.b16 %v9164
        %v9261 = vunpack.c.l.b16 %v9165
        %v9262 = vunpack.c.l.b16 %v9166
        %v9263 = vunpack.c.l.b16 %v9167
        %v9264 = vpack.c.b16 %v9249, %v9248
        %v9265 = vpack.c.b16 %v9251, %v9250
        %v9266 = vpack.c.b16 %v9253, %v9252
        %v9267 = vpack.c.b16 %v9255, %v9254
        %v9268 = vpack.c.b16 %v9257, %v9256
        %v9269 = vpack.c.b16 %v9259, %v9258
        %v9270 = vpack.c.b16 %v9261, %v9260
        %v9271 = vpack.c.b16 %v9263, %v9262
        %9280 = vmatprep.subr.bf16.mxu0 0
        %9281 = vmatpush1.bf16.msra.mxu0 %v9264
        %9282 = vmatprep.subr.bf16.mxu0 0
        %9283 = vmatpush1.bf16.msra.mxu0 %v9265
        %9284 = vmatprep.subr.bf16.mxu0 0
        %9285 = vmatpush1.bf16.msra.mxu0 %v9266
        %9286 = vmatprep.subr.bf16.mxu0 0
        %9287 = vmatpush1.bf16.msra.mxu0 %v9267
        %9288 = vmatprep.subr.bf16.mxu0 0
        %9289 = vmatpush1.bf16.msra.mxu0 %v9268
        %9290 = vmatprep.subr.bf16.mxu0 0
        %9291 = vmatpush1.bf16.msra.mxu0 %v9269
        %9292 = vmatprep.subr.bf16.mxu0 0
        %9293 = vmatpush1.bf16.msra.mxu0 %v9270
        %9294 = vmatprep.subr.bf16.mxu0 0
        %9295 = vmatpush1.bf16.msra.mxu0 %v9271
        %9296 = vmatprep.subr.bf16.mxu0 0
        %9297 = vmatpush1.bf16.msra.mxu0 0
        %9298 = vmatprep.subr.bf16.mxu0 0
        %9299 = vmatpush1.bf16.msra.mxu0 0
        %9300 = vmatprep.subr.bf16.mxu0 0
        %9301 = vmatpush1.bf16.msra.mxu0 0
        %9302 = vmatprep.subr.bf16.mxu0 0
        %9303 = vmatpush1.bf16.msra.mxu0 0
        %9304 = vmatprep.subr.bf16.mxu0 0
        %9305 = vmatpush1.bf16.msra.mxu0 0
        %9306 = vmatprep.subr.bf16.mxu0 0
        %9307 = vmatpush1.bf16.msra.mxu0 0
        %9308 = vmatprep.subr.bf16.mxu0 0
        %9309 = vmatpush1.bf16.msra.mxu0 0
        %9310 = vmatprep.subr.bf16.mxu0 0
        %9311 = vmatpush1.bf16.msra.mxu0 0
        %9312 = vmatprep.mubr.bf16.mxu0 0
        %9313 = vmatmul.mubr.bf16.gmra.mrb[0].mxu0 %v9200
        %v9314 = vpop.f32.mrb[0].mxu0
        %v9315 = vadd.f32 0.0, %v9314
        %v9316 = vpop.f32.mrb[0].mxu0
        %v9317 = vpop.f32.mrb[0].mxu0
        %v9318 = vadd.f32 0.0, %v9317
        %v9319 = vpop.f32.mrb[0].mxu0
        %9320 = vmatprep.mubr.bf16.mxu0 0
        %9321 = vmatmul.mubr.bf16.gmra.mrb[0].mxu0 %v9201
        %v9322 = vpop.f32.mrb[0].mxu0
        %v9323 = vadd.f32 0.0, %v9322
        %v9324 = vpop.f32.mrb[0].mxu0
        %v9325 = vpop.f32.mrb[0].mxu0
        %v9326 = vadd.f32 0.0, %v9325
        %v9327 = vpop.f32.mrb[0].mxu0
        %9328 = vmatprep.mubr.bf16.mxu0 0
        %9329 = vmatmul.mubr.bf16.gmra.mrb[0].mxu0 %v9202
        %v9330 = vpop.f32.mrb[0].mxu0
        %v9331 = vadd.f32 0.0, %v9330
        %v9332 = vpop.f32.mrb[0].mxu0
        %v9333 = vpop.f32.mrb[0].mxu0
        %v9334 = vadd.f32 0.0, %v9333
        %v9335 = vpop.f32.mrb[0].mxu0
        %9336 = vmatprep.mubr.bf16.mxu0 0
        %9337 = vmatmul.mubr.bf16.gmra.mrb[0].mxu0 %v9203
        %v9338 = vpop.f32.mrb[0].mxu0
        %v9339 = vadd.f32 0.0, %v9338
        %v9340 = vpop.f32.mrb[0].mxu0
        %v9341 = vpop.f32.mrb[0].mxu0
        %v9342 = vadd.f32 0.0, %v9341
        %v9343 = vpop.f32.mrb[0].mxu0
        %9344 = vmatprep.mubr.bf16.mxu0 0
        %9345 = vmatmul.mubr.bf16.gmra.mrb[0].mxu0 %v9204
        %v9346 = vpop.f32.mrb[0].mxu0
        %v9347 = vadd.f32 0.0, %v9346
        %v9348 = vpop.f32.mrb[0].mxu0
        %v9349 = vpop.f32.mrb[0].mxu0
        %v9350 = vadd.f32 0.0, %v9349
        %v9351 = vpop.f32.mrb[0].mxu0
        %9352 = vmatprep.mubr.bf16.mxu0 0
        %9353 = vmatmul.mubr.bf16.gmra.mrb[0].mxu0 %v9205
        %v9354 = vpop.f32.mrb[0].mxu0
        %v9355 = vadd.f32 0.0, %v9354
        %v9356 = vpop.f32.mrb[0].mxu0
        %v9357 = vpop.f32.mrb[0].mxu0
        %v9358 = vadd.f32 0.0, %v9357
        %v9359 = vpop.f32.mrb[0].mxu0
        %9360 = vmatprep.mubr.bf16.mxu0 0
        %9361 = vmatmul.mubr.bf16.gmra.mrb[0].mxu0 %v9206
        %v9362 = vpop.f32.mrb[0].mxu0
        %v9363 = vadd.f32 0.0, %v9362
        %v9364 = vpop.f32.mrb[0].mxu0
        %v9365 = vpop.f32.mrb[0].mxu0
        %v9366 = vadd.f32 0.0, %v9365
        %v9367 = vpop.f32.mrb[0].mxu0
        %9368 = vmatprep.mubr.bf16.mxu0 0
        %9369 = vmatmul.mubr.bf16.gmra.mrb[0].mxu0 %v9207
        %v9370 = vpop.f32.mrb[0].mxu0
        %v9371 = vadd.f32 0.0, %v9370
        %v9372 = vpop.f32.mrb[0].mxu0
        %v9373 = vpop.f32.mrb[0].mxu0
        %v9374 = vadd.f32 0.0, %v9373
        %v9375 = vpop.f32.mrb[0].mxu0
        %9376 = vmatprep.mubr.bf16.mxu0 0
        %9377 = vmatmul.mubr.bf16.gmra.mrb[0].mxu0 %v9208
        %v9378 = vpop.f32.mrb[0].mxu0
        %v9379 = vadd.f32 0.0, %v9378
        %v9380 = vpop.f32.mrb[0].mxu0
        %v9381 = vpop.f32.mrb[0].mxu0
        %v9382 = vadd.f32 0.0, %v9381
        %v9383 = vpop.f32.mrb[0].mxu0
        %9384 = vmatprep.mubr.bf16.mxu0 0
        %9385 = vmatmul.mubr.bf16.gmra.mrb[0].mxu0 %v9209
        %v9386 = vpop.f32.mrb[0].mxu0
        %v9387 = vadd.f32 0.0, %v9386
        %v9388 = vpop.f32.mrb[0].mxu0
        %v9389 = vpop.f32.mrb[0].mxu0
        %v9390 = vadd.f32 0.0, %v9389
        %v9391 = vpop.f32.mrb[0].mxu0
        %9392 = vmatprep.mubr.bf16.mxu0 0
        %9393 = vmatmul.mubr.bf16.gmra.mrb[0].mxu0 %v9210
        %v9394 = vpop.f32.mrb[0].mxu0
        %v9395 = vadd.f32 0.0, %v9394
        %v9396 = vpop.f32.mrb[0].mxu0
        %v9397 = vpop.f32.mrb[0].mxu0
        %v9398 = vadd.f32 0.0, %v9397
        %v9399 = vpop.f32.mrb[0].mxu0
        %9400 = vmatprep.mubr.bf16.mxu0 0
        %9401 = vmatmul.mubr.bf16.gmra.mrb[0].mxu0 %v9211
        %v9402 = vpop.f32.mrb[0].mxu0
        %v9403 = vadd.f32 0.0, %v9402
        %v9404 = vpop.f32.mrb[0].mxu0
        %v9405 = vpop.f32.mrb[0].mxu0
        %v9406 = vadd.f32 0.0, %v9405
        %v9407 = vpop.f32.mrb[0].mxu0
        %9408 = vmatprep.mubr.bf16.mxu0 0
        %9409 = vmatmul.mubr.bf16.gmra.mrb[0].mxu0 %v9212
        %v9410 = vpop.f32.mrb[0].mxu0
        %v9411 = vadd.f32 0.0, %v9410
        %v9412 = vpop.f32.mrb[0].mxu0
        %v9413 = vpop.f32.mrb[0].mxu0
        %v9414 = vadd.f32 0.0, %v9413
        %v9415 = vpop.f32.mrb[0].mxu0
        %9416 = vmatprep.mubr.bf16.mxu0 0
        %9417 = vmatmul.mubr.bf16.gmra.mrb[0].mxu0 %v9213
        %v9418 = vpop.f32.mrb[0].mxu0
        %v9419 = vadd.f32 0.0, %v9418
        %v9420 = vpop.f32.mrb[0].mxu0
        %v9421 = vpop.f32.mrb[0].mxu0
        %v9422 = vadd.f32 0.0, %v9421
        %v9423 = vpop.f32.mrb[0].mxu0
        %9424 = vmatprep.mubr.bf16.mxu0 0
        %9425 = vmatmul.mubr.bf16.gmra.mrb[0].mxu0 %v9214
        %v9426 = vpop.f32.mrb[0].mxu0
        %v9427 = vadd.f32 0.0, %v9426
        %v9428 = vpop.f32.mrb[0].mxu0
        %v9429 = vpop.f32.mrb[0].mxu0
        %v9430 = vadd.f32 0.0, %v9429
        %v9431 = vpop.f32.mrb[0].mxu0
        %9432 = vmatprep.mubr.bf16.mxu0 0
        %9433 = vmatmul.mubr.bf16.gmra.mrb[0].mxu0 %v9215
        %v9434 = vpop.f32.mrb[0].mxu0
        %v9435 = vadd.f32 0.0, %v9434
        %v9436 = vpop.f32.mrb[0].mxu0
        %v9437 = vpop.f32.mrb[0].mxu0
        %v9438 = vadd.f32 0.0, %v9437
        %v9439 = vpop.f32.mrb[0].mxu0
        %9440 = vdwg.mxu0
        %v9441 = vadd.f32 %v8687, %v9315
        %v9442 = vadd.f32 %v8688, %v9318
        %v9443 = vadd.f32 %v8689, %v9323
        %v9444 = vadd.f32 %v8690, %v9326
        %v9445 = vadd.f32 %v8691, %v9331
        %v9446 = vadd.f32 %v8692, %v9334
        %v9447 = vadd.f32 %v8693, %v9339
        %v9448 = vadd.f32 %v8694, %v9342
        %v9449 = vadd.f32 %v8695, %v9347
        %v9450 = vadd.f32 %v8696, %v9350
        %v9451 = vadd.f32 %v8697, %v9355
        %v9452 = vadd.f32 %v8698, %v9358
        %v9453 = vadd.f32 %v8699, %v9363
        %v9454 = vadd.f32 %v8700, %v9366
        %v9455 = vadd.f32 %v8701, %v9371
        %v9456 = vadd.f32 %v8702, %v9374
        %v9457 = vadd.f32 %v8703, %v9379
        %v9458 = vadd.f32 %v8704, %v9382
        %v9459 = vadd.f32 %v8705, %v9387
        %v9460 = vadd.f32 %v8706, %v9390
        %v9461 = vadd.f32 %v8707, %v9395
        %v9462 = vadd.f32 %v8708, %v9398
        %v9463 = vadd.f32 %v8709, %v9403
        %v9464 = vadd.f32 %v8710, %v9406
        %v9465 = vadd.f32 %v8711, %v9411
        %v9466 = vadd.f32 %v8712, %v9414
        %v9467 = vadd.f32 %v8713, %v9419
        %v9468 = vadd.f32 %v8714, %v9422
        %v9469 = vadd.f32 %v8715, %v9427
        %v9470 = vadd.f32 %v8716, %v9430
        %v9471 = vadd.f32 %v8717, %v9435
        %v9472 = vadd.f32 %v8718, %v9438
        %v9473 = vld [vmem:[%s6392] sm:$0xe]
        %v9474 = vld [vmem:[%s6392 + $0xc] sm:$0xe]
        %v9475 = vld [vmem:[%s6392 + $0x18] sm:$0xe]
        %v9476 = vld [vmem:[%s6392 + $0x24] sm:$0xe]
        %v9477 = vld [vmem:[%s6392 + $0x30] sm:$0xe]
        %v9478 = vld [vmem:[%s6392 + $0x3c] sm:$0xe]
        %v9479 = vld [vmem:[%s6392 + $0x48] sm:$0xe]
        %v9480 = vld [vmem:[%s6392 + $0x54] sm:$0xe]
        %v9481 = vld [vmem:[%s6392 + $0x60] sm:$0xe]
        %v9482 = vld [vmem:[%s6392 + $0x6c] sm:$0xe]
        %v9483 = vld [vmem:[%s6392 + $0x78] sm:$0xe]
        %v9484 = vld [vmem:[%s6392 + $0x84] sm:$0xe]
        %v9485 = vld [vmem:[%s6392 + $0x90] sm:$0xe]
        %v9486 = vld [vmem:[%s6392 + $0x9c] sm:$0xe]
        %v9487 = vld [vmem:[%s6392 + $0xa8] sm:$0xe]
        %v9488 = vld [vmem:[%s6392 + $0xb4] sm:$0xe]
        %v9537 = vrot.slane %v9473, 5
        %v9538 = vrot.slane %v9537, 4
        %v9539 = vrot.slane %v8720, 5
        %v9540 = vsel %vm2193, %v9538, %v9539
        %v9541 = vrot.slane %v9539, 4
        %v9542 = vrot.slane %v8721, 5
        %v9543 = vsel %vm2193, %v9541, %v9542
        %v9544 = vrot.slane %v9474, 5
        %v9545 = vrot.slane %v9544, 4
        %v9546 = vrot.slane %v8723, 5
        %v9547 = vsel %vm2193, %v9545, %v9546
        %v9548 = vrot.slane %v9546, 4
        %v9549 = vrot.slane %v8724, 5
        %v9550 = vsel %vm2193, %v9548, %v9549
        %v9551 = vrot.slane %v9475, 5
        %v9552 = vrot.slane %v9551, 4
        %v9553 = vrot.slane %v8726, 5
        %v9554 = vsel %vm2193, %v9552, %v9553
        %v9555 = vrot.slane %v9553, 4
        %v9556 = vrot.slane %v8727, 5
        %v9557 = vsel %vm2193, %v9555, %v9556
        %v9558 = vrot.slane %v9476, 5
        %v9559 = vrot.slane %v9558, 4
        %v9560 = vrot.slane %v8729, 5
        %v9561 = vsel %vm2193, %v9559, %v9560
        %v9562 = vrot.slane %v9560, 4
        %v9563 = vrot.slane %v8730, 5
        %v9564 = vsel %vm2193, %v9562, %v9563
        %v9565 = vrot.slane %v9477, 5
        %v9566 = vrot.slane %v9565, 4
        %v9567 = vrot.slane %v8732, 5
        %v9568 = vsel %vm2193, %v9566, %v9567
        %v9569 = vrot.slane %v9567, 4
        %v9570 = vrot.slane %v8733, 5
        %v9571 = vsel %vm2193, %v9569, %v9570
        %v9572 = vrot.slane %v9478, 5
        %v9573 = vrot.slane %v9572, 4
        %v9574 = vrot.slane %v8735, 5
        %v9575 = vsel %vm2193, %v9573, %v9574
        %v9576 = vrot.slane %v9574, 4
        %v9577 = vrot.slane %v8736, 5
        %v9578 = vsel %vm2193, %v9576, %v9577
        %v9579 = vrot.slane %v9479, 5
        %v9580 = vrot.slane %v9579, 4
        %v9581 = vrot.slane %v8738, 5
        %v9582 = vsel %vm2193, %v9580, %v9581
        %v9583 = vrot.slane %v9581, 4
        %v9584 = vrot.slane %v8739, 5
        %v9585 = vsel %vm2193, %v9583, %v9584
        %v9586 = vrot.slane %v9480, 5
        %v9587 = vrot.slane %v9586, 4
        %v9588 = vrot.slane %v8741, 5
        %v9589 = vsel %vm2193, %v9587, %v9588
        %v9590 = vrot.slane %v9588, 4
        %v9591 = vrot.slane %v8742, 5
        %v9592 = vsel %vm2193, %v9590, %v9591
        %v9593 = vrot.slane %v9481, 5
        %v9594 = vrot.slane %v9593, 4
        %v9595 = vrot.slane %v8744, 5
        %v9596 = vsel %vm2193, %v9594, %v9595
        %v9597 = vrot.slane %v9595, 4
        %v9598 = vrot.slane %v8745, 5
        %v9599 = vsel %vm2193, %v9597, %v9598
        %v9600 = vrot.slane %v9482, 5
        %v9601 = vrot.slane %v9600, 4
        %v9602 = vrot.slane %v8747, 5
        %v9603 = vsel %vm2193, %v9601, %v9602
        %v9604 = vrot.slane %v9602, 4
        %v9605 = vrot.slane %v8748, 5
        %v9606 = vsel %vm2193, %v9604, %v9605
        %v9607 = vrot.slane %v9483, 5
        %v9608 = vrot.slane %v9607, 4
        %v9609 = vrot.slane %v8750, 5
        %v9610 = vsel %vm2193, %v9608, %v9609
        %v9611 = vrot.slane %v9609, 4
        %v9612 = vrot.slane %v8751, 5
        %v9613 = vsel %vm2193, %v9611, %v9612
        %v9614 = vrot.slane %v9484, 5
        %v9615 = vrot.slane %v9614, 4
        %v9616 = vrot.slane %v8753, 5
        %v9617 = vsel %vm2193, %v9615, %v9616
        %v9618 = vrot.slane %v9616, 4
        %v9619 = vrot.slane %v8754, 5
        %v9620 = vsel %vm2193, %v9618, %v9619
        %v9621 = vrot.slane %v9485, 5
        %v9622 = vrot.slane %v9621, 4
        %v9623 = vrot.slane %v8756, 5
        %v9624 = vsel %vm2193, %v9622, %v9623
        %v9625 = vrot.slane %v9623, 4
        %v9626 = vrot.slane %v8757, 5
        %v9627 = vsel %vm2193, %v9625, %v9626
        %v9628 = vrot.slane %v9486, 5
        %v9629 = vrot.slane %v9628, 4
        %v9630 = vrot.slane %v8759, 5
        %v9631 = vsel %vm2193, %v9629, %v9630
        %v9632 = vrot.slane %v9630, 4
        %v9633 = vrot.slane %v8760, 5
        %v9634 = vsel %vm2193, %v9632, %v9633
        %v9635 = vrot.slane %v9487, 5
        %v9636 = vrot.slane %v9635, 4
        %v9637 = vrot.slane %v8762, 5
        %v9638 = vsel %vm2193, %v9636, %v9637
        %v9639 = vrot.slane %v9637, 4
        %v9640 = vrot.slane %v8763, 5
        %v9641 = vsel %vm2193, %v9639, %v9640
        %v9642 = vrot.slane %v9488, 5
        %v9643 = vrot.slane %v9642, 4
        %v9644 = vrot.slane %v8765, 5
        %v9645 = vsel %vm2193, %v9643, %v9644
        %v9646 = vrot.slane %v9644, 4
        %v9647 = vrot.slane %v8766, 5
        %v9648 = vsel %vm2193, %v9646, %v9647
        %s9649 = scalar_lea.vmem %s3, 320
        %v9650 = vld [vmem:[%s9649] sm:$0xf]
        %v9651 = vld [vmem:[%s9649 + $0x4] sm:$0xf]
        %v9652 = vld [vmem:[%s9649 + $0x8] sm:$0xf]
        %v9653 = vld [vmem:[%s9649 + $0xc] sm:$0xf]
        %v9654 = vld [vmem:[%s9649 + $0x10] sm:$0xf]
        %v9655 = vld [vmem:[%s9649 + $0x14] sm:$0xf]
        %v9656 = vld [vmem:[%s9649 + $0x18] sm:$0xf]
        %v9657 = vld [vmem:[%s9649 + $0x1c] sm:$0xf]
        %v9658 = vld [vmem:[%s9649 + $0x20] sm:$0xf]
        %v9659 = vld [vmem:[%s9649 + $0x24] sm:$0xf]
        %v9660 = vld [vmem:[%s9649 + $0x28] sm:$0xf]
        %v9661 = vld [vmem:[%s9649 + $0x2c] sm:$0xf]
        %v9662 = vld [vmem:[%s9649 + $0x30] sm:$0xf]
        %v9663 = vld [vmem:[%s9649 + $0x34] sm:$0xf]
        %v9664 = vld [vmem:[%s9649 + $0x38] sm:$0xf]
        %v9665 = vld [vmem:[%s9649 + $0x3c] sm:$0xf]
        %v9666 = vunpack.c.l.b16 %v9540
        %v9667 = vunpack.c.l.b16 %v9543
        %v9668 = vunpack.c.l.b16 %v9547
        %v9669 = vunpack.c.l.b16 %v9550
        %v9670 = vunpack.c.l.b16 %v9554
        %v9671 = vunpack.c.l.b16 %v9557
        %v9672 = vunpack.c.l.b16 %v9561
        %v9673 = vunpack.c.l.b16 %v9564
        %v9674 = vunpack.c.l.b16 %v9568
        %v9675 = vunpack.c.l.b16 %v9571
        %v9676 = vunpack.c.l.b16 %v9575
        %v9677 = vunpack.c.l.b16 %v9578
        %v9678 = vunpack.c.l.b16 %v9582
        %v9679 = vunpack.c.l.b16 %v9585
        %v9680 = vunpack.c.l.b16 %v9589
        %v9681 = vunpack.c.l.b16 %v9592
        %v9682 = vunpack.c.l.b16 %v9596
        %v9683 = vunpack.c.l.b16 %v9599
        %v9684 = vunpack.c.l.b16 %v9603
        %v9685 = vunpack.c.l.b16 %v9606
        %v9686 = vunpack.c.l.b16 %v9610
        %v9687 = vunpack.c.l.b16 %v9613
        %v9688 = vunpack.c.l.b16 %v9617
        %v9689 = vunpack.c.l.b16 %v9620
        %v9690 = vunpack.c.l.b16 %v9624
        %v9691 = vunpack.c.l.b16 %v9627
        %v9692 = vunpack.c.l.b16 %v9631
        %v9693 = vunpack.c.l.b16 %v9634
        %v9694 = vunpack.c.l.b16 %v9638
        %v9695 = vunpack.c.l.b16 %v9641
        %v9696 = vunpack.c.l.b16 %v9645
        %v9697 = vunpack.c.l.b16 %v9648
        %v9698 = vpack.c.b16 %v9667, %v9666
        %v9699 = vpack.c.b16 %v9669, %v9668
        %v9700 = vpack.c.b16 %v9671, %v9670
        %v9701 = vpack.c.b16 %v9673, %v9672
        %v9702 = vpack.c.b16 %v9675, %v9674
        %v9703 = vpack.c.b16 %v9677, %v9676
        %v9704 = vpack.c.b16 %v9679, %v9678
        %v9705 = vpack.c.b16 %v9681, %v9680
        %v9706 = vpack.c.b16 %v9683, %v9682
        %v9707 = vpack.c.b16 %v9685, %v9684
        %v9708 = vpack.c.b16 %v9687, %v9686
        %v9709 = vpack.c.b16 %v9689, %v9688
        %v9710 = vpack.c.b16 %v9691, %v9690
        %v9711 = vpack.c.b16 %v9693, %v9692
        %v9712 = vpack.c.b16 %v9695, %v9694
        %v9713 = vpack.c.b16 %v9697, %v9696
        %v9746 = vunpack.c.l.b16 %v9650
        %v9747 = vunpack.c.l.b16 %v9651
        %v9748 = vunpack.c.l.b16 %v9652
        %v9749 = vunpack.c.l.b16 %v9653
        %v9750 = vunpack.c.l.b16 %v9654
        %v9751 = vunpack.c.l.b16 %v9655
        %v9752 = vunpack.c.l.b16 %v9656
        %v9753 = vunpack.c.l.b16 %v9657
        %v9754 = vunpack.c.l.b16 %v9658
        %v9755 = vunpack.c.l.b16 %v9659
        %v9756 = vunpack.c.l.b16 %v9660
        %v9757 = vunpack.c.l.b16 %v9661
        %v9758 = vunpack.c.l.b16 %v9662
        %v9759 = vunpack.c.l.b16 %v9663
        %v9760 = vunpack.c.l.b16 %v9664
        %v9761 = vunpack.c.l.b16 %v9665
        %v9762 = vpack.c.b16 %v9747, %v9746
        %v9763 = vpack.c.b16 %v9749, %v9748
        %v9764 = vpack.c.b16 %v9751, %v9750
        %v9765 = vpack.c.b16 %v9753, %v9752
        %v9766 = vpack.c.b16 %v9755, %v9754
        %v9767 = vpack.c.b16 %v9757, %v9756
        %v9768 = vpack.c.b16 %v9759, %v9758
        %v9769 = vpack.c.b16 %v9761, %v9760
        %9778 = vmatprep.subr.bf16.mxu0 0
        %9779 = vmatpush1.bf16.msra.mxu0 %v9762
        %9780 = vmatprep.subr.bf16.mxu0 0
        %9781 = vmatpush1.bf16.msra.mxu0 %v9763
        %9782 = vmatprep.subr.bf16.mxu0 0
        %9783 = vmatpush1.bf16.msra.mxu0 %v9764
        %9784 = vmatprep.subr.bf16.mxu0 0
        %9785 = vmatpush1.bf16.msra.mxu0 %v9765
        %9786 = vmatprep.subr.bf16.mxu0 0
        %9787 = vmatpush1.bf16.msra.mxu0 %v9766
        %9788 = vmatprep.subr.bf16.mxu0 0
        %9789 = vmatpush1.bf16.msra.mxu0 %v9767
        %9790 = vmatprep.subr.bf16.mxu0 0
        %9791 = vmatpush1.bf16.msra.mxu0 %v9768
        %9792 = vmatprep.subr.bf16.mxu0 0
        %9793 = vmatpush1.bf16.msra.mxu0 %v9769
        %9794 = vmatprep.subr.bf16.mxu0 0
        %9795 = vmatpush1.bf16.msra.mxu0 0
        %9796 = vmatprep.subr.bf16.mxu0 0
        %9797 = vmatpush1.bf16.msra.mxu0 0
        %9798 = vmatprep.subr.bf16.mxu0 0
        %9799 = vmatpush1.bf16.msra.mxu0 0
        %9800 = vmatprep.subr.bf16.mxu0 0
        %9801 = vmatpush1.bf16.msra.mxu0 0
        %9802 = vmatprep.subr.bf16.mxu0 0
        %9803 = vmatpush1.bf16.msra.mxu0 0
        %9804 = vmatprep.subr.bf16.mxu0 0
        %9805 = vmatpush1.bf16.msra.mxu0 0
        %9806 = vmatprep.subr.bf16.mxu0 0
        %9807 = vmatpush1.bf16.msra.mxu0 0
        %9808 = vmatprep.subr.bf16.mxu0 0
        %9809 = vmatpush1.bf16.msra.mxu0 0
        %9810 = vmatprep.mubr.bf16.mxu0 0
        %9811 = vmatmul.mubr.bf16.gmra.mrb[0].mxu0 %v9698
        %v9812 = vpop.f32.mrb[0].mxu0
        %v9813 = vadd.f32 0.0, %v9812
        %v9814 = vpop.f32.mrb[0].mxu0
        %v9815 = vpop.f32.mrb[0].mxu0
        %v9816 = vadd.f32 0.0, %v9815
        %v9817 = vpop.f32.mrb[0].mxu0
        %9818 = vmatprep.mubr.bf16.mxu0 0
        %9819 = vmatmul.mubr.bf16.gmra.mrb[0].mxu0 %v9699
        %v9820 = vpop.f32.mrb[0].mxu0
        %v9821 = vadd.f32 0.0, %v9820
        %v9822 = vpop.f32.mrb[0].mxu0
        %v9823 = vpop.f32.mrb[0].mxu0
        %v9824 = vadd.f32 0.0, %v9823
        %v9825 = vpop.f32.mrb[0].mxu0
        %9826 = vmatprep.mubr.bf16.mxu0 0
        %9827 = vmatmul.mubr.bf16.gmra.mrb[0].mxu0 %v9700
        %v9828 = vpop.f32.mrb[0].mxu0
        %v9829 = vadd.f32 0.0, %v9828
        %v9830 = vpop.f32.mrb[0].mxu0
        %v9831 = vpop.f32.mrb[0].mxu0
        %v9832 = vadd.f32 0.0, %v9831
        %v9833 = vpop.f32.mrb[0].mxu0
        %9834 = vmatprep.mubr.bf16.mxu0 0
        %9835 = vmatmul.mubr.bf16.gmra.mrb[0].mxu0 %v9701
        %v9836 = vpop.f32.mrb[0].mxu0
        %v9837 = vadd.f32 0.0, %v9836
        %v9838 = vpop.f32.mrb[0].mxu0
        %v9839 = vpop.f32.mrb[0].mxu0
        %v9840 = vadd.f32 0.0, %v9839
        %v9841 = vpop.f32.mrb[0].mxu0
        %9842 = vmatprep.mubr.bf16.mxu0 0
        %9843 = vmatmul.mubr.bf16.gmra.mrb[0].mxu0 %v9702
        %v9844 = vpop.f32.mrb[0].mxu0
        %v9845 = vadd.f32 0.0, %v9844
        %v9846 = vpop.f32.mrb[0].mxu0
        %v9847 = vpop.f32.mrb[0].mxu0
        %v9848 = vadd.f32 0.0, %v9847
        %v9849 = vpop.f32.mrb[0].mxu0
        %9850 = vmatprep.mubr.bf16.mxu0 0
        %9851 = vmatmul.mubr.bf16.gmra.mrb[0].mxu0 %v9703
        %v9852 = vpop.f32.mrb[0].mxu0
        %v9853 = vadd.f32 0.0, %v9852
        %v9854 = vpop.f32.mrb[0].mxu0
        %v9855 = vpop.f32.mrb[0].mxu0
        %v9856 = vadd.f32 0.0, %v9855
        %v9857 = vpop.f32.mrb[0].mxu0
        %9858 = vmatprep.mubr.bf16.mxu0 0
        %9859 = vmatmul.mubr.bf16.gmra.mrb[0].mxu0 %v9704
        %v9860 = vpop.f32.mrb[0].mxu0
        %v9861 = vadd.f32 0.0, %v9860
        %v9862 = vpop.f32.mrb[0].mxu0
        %v9863 = vpop.f32.mrb[0].mxu0
        %v9864 = vadd.f32 0.0, %v9863
        %v9865 = vpop.f32.mrb[0].mxu0
        %9866 = vmatprep.mubr.bf16.mxu0 0
        %9867 = vmatmul.mubr.bf16.gmra.mrb[0].mxu0 %v9705
        %v9868 = vpop.f32.mrb[0].mxu0
        %v9869 = vadd.f32 0.0, %v9868
        %v9870 = vpop.f32.mrb[0].mxu0
        %v9871 = vpop.f32.mrb[0].mxu0
        %v9872 = vadd.f32 0.0, %v9871
        %v9873 = vpop.f32.mrb[0].mxu0
        %9874 = vmatprep.mubr.bf16.mxu0 0
        %9875 = vmatmul.mubr.bf16.gmra.mrb[0].mxu0 %v9706
        %v9876 = vpop.f32.mrb[0].mxu0
        %v9877 = vadd.f32 0.0, %v9876
        %v9878 = vpop.f32.mrb[0].mxu0
        %v9879 = vpop.f32.mrb[0].mxu0
        %v9880 = vadd.f32 0.0, %v9879
        %v9881 = vpop.f32.mrb[0].mxu0
        %9882 = vmatprep.mubr.bf16.mxu0 0
        %9883 = vmatmul.mubr.bf16.gmra.mrb[0].mxu0 %v9707
        %v9884 = vpop.f32.mrb[0].mxu0
        %v9885 = vadd.f32 0.0, %v9884
        %v9886 = vpop.f32.mrb[0].mxu0
        %v9887 = vpop.f32.mrb[0].mxu0
        %v9888 = vadd.f32 0.0, %v9887
        %v9889 = vpop.f32.mrb[0].mxu0
        %9890 = vmatprep.mubr.bf16.mxu0 0
        %9891 = vmatmul.mubr.bf16.gmra.mrb[0].mxu0 %v9708
        %v9892 = vpop.f32.mrb[0].mxu0
        %v9893 = vadd.f32 0.0, %v9892
        %v9894 = vpop.f32.mrb[0].mxu0
        %v9895 = vpop.f32.mrb[0].mxu0
        %v9896 = vadd.f32 0.0, %v9895
        %v9897 = vpop.f32.mrb[0].mxu0
        %9898 = vmatprep.mubr.bf16.mxu0 0
        %9899 = vmatmul.mubr.bf16.gmra.mrb[0].mxu0 %v9709
        %v9900 = vpop.f32.mrb[0].mxu0
        %v9901 = vadd.f32 0.0, %v9900
        %v9902 = vpop.f32.mrb[0].mxu0
        %v9903 = vpop.f32.mrb[0].mxu0
        %v9904 = vadd.f32 0.0, %v9903
        %v9905 = vpop.f32.mrb[0].mxu0
        %9906 = vmatprep.mubr.bf16.mxu0 0
        %9907 = vmatmul.mubr.bf16.gmra.mrb[0].mxu0 %v9710
        %v9908 = vpop.f32.mrb[0].mxu0
        %v9909 = vadd.f32 0.0, %v9908
        %v9910 = vpop.f32.mrb[0].mxu0
        %v9911 = vpop.f32.mrb[0].mxu0
        %v9912 = vadd.f32 0.0, %v9911
        %v9913 = vpop.f32.mrb[0].mxu0
        %9914 = vmatprep.mubr.bf16.mxu0 0
        %9915 = vmatmul.mubr.bf16.gmra.mrb[0].mxu0 %v9711
        %v9916 = vpop.f32.mrb[0].mxu0
        %v9917 = vadd.f32 0.0, %v9916
        %v9918 = vpop.f32.mrb[0].mxu0
        %v9919 = vpop.f32.mrb[0].mxu0
        %v9920 = vadd.f32 0.0, %v9919
        %v9921 = vpop.f32.mrb[0].mxu0
        %9922 = vmatprep.mubr.bf16.mxu0 0
        %9923 = vmatmul.mubr.bf16.gmra.mrb[0].mxu0 %v9712
        %v9924 = vpop.f32.mrb[0].mxu0
        %v9925 = vadd.f32 0.0, %v9924
        %v9926 = vpop.f32.mrb[0].mxu0
        %v9927 = vpop.f32.mrb[0].mxu0
        %v9928 = vadd.f32 0.0, %v9927
        %v9929 = vpop.f32.mrb[0].mxu0
        %9930 = vmatprep.mubr.bf16.mxu0 0
        %9931 = vmatmul.mubr.bf16.gmra.mrb[0].mxu0 %v9713
        %v9932 = vpop.f32.mrb[0].mxu0
        %v9933 = vadd.f32 0.0, %v9932
        %v9934 = vpop.f32.mrb[0].mxu0
        %v9935 = vpop.f32.mrb[0].mxu0
        %v9936 = vadd.f32 0.0, %v9935
        %v9937 = vpop.f32.mrb[0].mxu0
        %9938 = vdwg.mxu0
        %v9939 = vadd.f32 %v9441, %v9813
        %v9940 = vadd.f32 %v9442, %v9816
        %v9941 = vadd.f32 %v9443, %v9821
        %v9942 = vadd.f32 %v9444, %v9824
        %v9943 = vadd.f32 %v9445, %v9829
        %v9944 = vadd.f32 %v9446, %v9832
        %v9945 = vadd.f32 %v9447, %v9837
        %v9946 = vadd.f32 %v9448, %v9840
        %v9947 = vadd.f32 %v9449, %v9845
        %v9948 = vadd.f32 %v9450, %v9848
        %v9949 = vadd.f32 %v9451, %v9853
        %v9950 = vadd.f32 %v9452, %v9856
        %v9951 = vadd.f32 %v9453, %v9861
        %v9952 = vadd.f32 %v9454, %v9864
        %v9953 = vadd.f32 %v9455, %v9869
        %v9954 = vadd.f32 %v9456, %v9872
        %v9955 = vadd.f32 %v9457, %v9877
        %v9956 = vadd.f32 %v9458, %v9880
        %v9957 = vadd.f32 %v9459, %v9885
        %v9958 = vadd.f32 %v9460, %v9888
        %v9959 = vadd.f32 %v9461, %v9893
        %v9960 = vadd.f32 %v9462, %v9896
        %v9961 = vadd.f32 %v9463, %v9901
        %v9962 = vadd.f32 %v9464, %v9904
        %v9963 = vadd.f32 %v9465, %v9909
        %v9964 = vadd.f32 %v9466, %v9912
        %v9965 = vadd.f32 %v9467, %v9917
        %v9966 = vadd.f32 %v9468, %v9920
        %v9967 = vadd.f32 %v9469, %v9925
        %v9968 = vadd.f32 %v9470, %v9928
        %v9969 = vadd.f32 %v9471, %v9933
        %v9970 = vadd.f32 %v9472, %v9936
        %s9971 = scalar_lea.vmem [#allocation3], 24
        %v9972 = vld [vmem:[%s9971] sm:$0xf]
        %v9973 = vld [vmem:[%s9971 + $0x4] sm:$0xf]
        %v9974 = vld [vmem:[%s9971 + $0xc] sm:$0xf]
        %v9975 = vld [vmem:[%s9971 + $0x10] sm:$0xf]
        %v9976 = vld [vmem:[%s9971 + $0x18] sm:$0xf]
        %v9977 = vld [vmem:[%s9971 + $0x1c] sm:$0xf]
        %v9978 = vld [vmem:[%s9971 + $0x24] sm:$0xf]
        %v9979 = vld [vmem:[%s9971 + $0x28] sm:$0xf]
        %v9980 = vld [vmem:[%s9971 + $0x30] sm:$0xf]
        %v9981 = vld [vmem:[%s9971 + $0x34] sm:$0xf]
        %v9982 = vld [vmem:[%s9971 + $0x3c] sm:$0xf]
        %v9983 = vld [vmem:[%s9971 + $0x40] sm:$0xf]
        %v9984 = vld [vmem:[%s9971 + $0x48] sm:$0xf]
        %v9985 = vld [vmem:[%s9971 + $0x4c] sm:$0xf]
        %v9986 = vld [vmem:[%s9971 + $0x54] sm:$0xf]
        %v9987 = vld [vmem:[%s9971 + $0x58] sm:$0xf]
        %v9988 = vld [vmem:[%s9971 + $0x60] sm:$0xf]
        %v9989 = vld [vmem:[%s9971 + $0x64] sm:$0xf]
        %v9990 = vld [vmem:[%s9971 + $0x6c] sm:$0xf]
        %v9991 = vld [vmem:[%s9971 + $0x70] sm:$0xf]
        %v9992 = vld [vmem:[%s9971 + $0x78] sm:$0xf]
        %v9993 = vld [vmem:[%s9971 + $0x7c] sm:$0xf]
        %v9994 = vld [vmem:[%s9971 + $0x84] sm:$0xf]
        %v9995 = vld [vmem:[%s9971 + $0x88] sm:$0xf]
        %v9996 = vld [vmem:[%s9971 + $0x90] sm:$0xf]
        %v9997 = vld [vmem:[%s9971 + $0x94] sm:$0xf]
        %v9998 = vld [vmem:[%s9971 + $0x9c] sm:$0xf]
        %v9999 = vld [vmem:[%s9971 + $0xa0] sm:$0xf]
        %v10000 = vld [vmem:[%s9971 + $0xa8] sm:$0xf]
        %v10001 = vld [vmem:[%s9971 + $0xac] sm:$0xf]
        %v10002 = vld [vmem:[%s9971 + $0xb4] sm:$0xf]
        %v10003 = vld [vmem:[%s9971 + $0xb8] sm:$0xf]
        %s10004 = scalar_lea.vmem %s3, 384
        %v10005 = vld [vmem:[%s10004] sm:$0xf]
        %v10006 = vld [vmem:[%s10004 + $0x4] sm:$0xf]
        %v10007 = vld [vmem:[%s10004 + $0x8] sm:$0xf]
        %v10008 = vld [vmem:[%s10004 + $0xc] sm:$0xf]
        %v10009 = vld [vmem:[%s10004 + $0x10] sm:$0xf]
        %v10010 = vld [vmem:[%s10004 + $0x14] sm:$0xf]
        %v10011 = vld [vmem:[%s10004 + $0x18] sm:$0xf]
        %v10012 = vld [vmem:[%s10004 + $0x1c] sm:$0xf]
        %v10013 = vld [vmem:[%s10004 + $0x20] sm:$0xf]
        %v10014 = vld [vmem:[%s10004 + $0x24] sm:$0xf]
        %v10015 = vld [vmem:[%s10004 + $0x28] sm:$0xf]
        %v10016 = vld [vmem:[%s10004 + $0x2c] sm:$0xf]
        %v10017 = vld [vmem:[%s10004 + $0x30] sm:$0xf]
        %v10018 = vld [vmem:[%s10004 + $0x34] sm:$0xf]
        %v10019 = vld [vmem:[%s10004 + $0x38] sm:$0xf]
        %v10020 = vld [vmem:[%s10004 + $0x3c] sm:$0xf]
        %v10053 = vunpack.c.l.b16 %v9972
        %v10054 = vunpack.c.l.b16 %v9973
        %v10055 = vunpack.c.l.b16 %v9974
        %v10056 = vunpack.c.l.b16 %v9975
        %v10057 = vunpack.c.l.b16 %v9976
        %v10058 = vunpack.c.l.b16 %v9977
        %v10059 = vunpack.c.l.b16 %v9978
        %v10060 = vunpack.c.l.b16 %v9979
        %v10061 = vunpack.c.l.b16 %v9980
        %v10062 = vunpack.c.l.b16 %v9981
        %v10063 = vunpack.c.l.b16 %v9982
        %v10064 = vunpack.c.l.b16 %v9983
        %v10065 = vunpack.c.l.b16 %v9984
        %v10066 = vunpack.c.l.b16 %v9985
        %v10067 = vunpack.c.l.b16 %v9986
        %v10068 = vunpack.c.l.b16 %v9987
        %v10069 = vunpack.c.l.b16 %v9988
        %v10070 = vunpack.c.l.b16 %v9989
        %v10071 = vunpack.c.l.b16 %v9990
        %v10072 = vunpack.c.l.b16 %v9991
        %v10073 = vunpack.c.l.b16 %v9992
        %v10074 = vunpack.c.l.b16 %v9993
        %v10075 = vunpack.c.l.b16 %v9994
        %v10076 = vunpack.c.l.b16 %v9995
        %v10077 = vunpack.c.l.b16 %v9996
        %v10078 = vunpack.c.l.b16 %v9997
        %v10079 = vunpack.c.l.b16 %v9998
        %v10080 = vunpack.c.l.b16 %v9999
        %v10081 = vunpack.c.l.b16 %v10000
        %v10082 = vunpack.c.l.b16 %v10001
        %v10083 = vunpack.c.l.b16 %v10002
        %v10084 = vunpack.c.l.b16 %v10003
        %v10085 = vpack.c.b16 %v10054, %v10053
        %v10086 = vpack.c.b16 %v10056, %v10055
        %v10087 = vpack.c.b16 %v10058, %v10057
        %v10088 = vpack.c.b16 %v10060, %v10059
        %v10089 = vpack.c.b16 %v10062, %v10061
        %v10090 = vpack.c.b16 %v10064, %v10063
        %v10091 = vpack.c.b16 %v10066, %v10065
        %v10092 = vpack.c.b16 %v10068, %v10067
        %v10093 = vpack.c.b16 %v10070, %v10069
        %v10094 = vpack.c.b16 %v10072, %v10071
        %v10095 = vpack.c.b16 %v10074, %v10073
        %v10096 = vpack.c.b16 %v10076, %v10075
        %v10097 = vpack.c.b16 %v10078, %v10077
        %v10098 = vpack.c.b16 %v10080, %v10079
        %v10099 = vpack.c.b16 %v10082, %v10081
        %v10100 = vpack.c.b16 %v10084, %v10083
        %v10133 = vunpack.c.l.b16 %v10005
        %v10134 = vunpack.c.l.b16 %v10006
        %v10135 = vunpack.c.l.b16 %v10007
        %v10136 = vunpack.c.l.b16 %v10008
        %v10137 = vunpack.c.l.b16 %v10009
        %v10138 = vunpack.c.l.b16 %v10010
        %v10139 = vunpack.c.l.b16 %v10011
        %v10140 = vunpack.c.l.b16 %v10012
        %v10141 = vunpack.c.l.b16 %v10013
        %v10142 = vunpack.c.l.b16 %v10014
        %v10143 = vunpack.c.l.b16 %v10015
        %v10144 = vunpack.c.l.b16 %v10016
        %v10145 = vunpack.c.l.b16 %v10017
        %v10146 = vunpack.c.l.b16 %v10018
        %v10147 = vunpack.c.l.b16 %v10019
        %v10148 = vunpack.c.l.b16 %v10020
        %v10149 = vpack.c.b16 %v10134, %v10133
        %v10150 = vpack.c.b16 %v10136, %v10135
        %v10151 = vpack.c.b16 %v10138, %v10137
        %v10152 = vpack.c.b16 %v10140, %v10139
        %v10153 = vpack.c.b16 %v10142, %v10141
        %v10154 = vpack.c.b16 %v10144, %v10143
        %v10155 = vpack.c.b16 %v10146, %v10145
        %v10156 = vpack.c.b16 %v10148, %v10147
        %10165 = vmatprep.subr.bf16.mxu0 0
        %10166 = vmatpush1.bf16.msra.mxu0 %v10149
        %10167 = vmatprep.subr.bf16.mxu0 0
        %10168 = vmatpush1.bf16.msra.mxu0 %v10150
        %10169 = vmatprep.subr.bf16.mxu0 0
        %10170 = vmatpush1.bf16.msra.mxu0 %v10151
        %10171 = vmatprep.subr.bf16.mxu0 0
        %10172 = vmatpush1.bf16.msra.mxu0 %v10152
        %10173 = vmatprep.subr.bf16.mxu0 0
        %10174 = vmatpush1.bf16.msra.mxu0 %v10153
        %10175 = vmatprep.subr.bf16.mxu0 0
        %10176 = vmatpush1.bf16.msra.mxu0 %v10154
        %10177 = vmatprep.subr.bf16.mxu0 0
        %10178 = vmatpush1.bf16.msra.mxu0 %v10155
        %10179 = vmatprep.subr.bf16.mxu0 0
        %10180 = vmatpush1.bf16.msra.mxu0 %v10156
        %10181 = vmatprep.subr.bf16.mxu0 0
        %10182 = vmatpush1.bf16.msra.mxu0 0
        %10183 = vmatprep.subr.bf16.mxu0 0
        %10184 = vmatpush1.bf16.msra.mxu0 0
        %10185 = vmatprep.subr.bf16.mxu0 0
        %10186 = vmatpush1.bf16.msra.mxu0 0
        %10187 = vmatprep.subr.bf16.mxu0 0
        %10188 = vmatpush1.bf16.msra.mxu0 0
        %10189 = vmatprep.subr.bf16.mxu0 0
        %10190 = vmatpush1.bf16.msra.mxu0 0
        %10191 = vmatprep.subr.bf16.mxu0 0
        %10192 = vmatpush1.bf16.msra.mxu0 0
        %10193 = vmatprep.subr.bf16.mxu0 0
        %10194 = vmatpush1.bf16.msra.mxu0 0
        %10195 = vmatprep.subr.bf16.mxu0 0
        %10196 = vmatpush1.bf16.msra.mxu0 0
        %10197 = vmatprep.mubr.bf16.mxu0 0
        %10198 = vmatmul.mubr.bf16.gmra.mrb[0].mxu0 %v10085
        %v10199 = vpop.f32.mrb[0].mxu0
        %v10200 = vadd.f32 0.0, %v10199
        %v10201 = vpop.f32.mrb[0].mxu0
        %v10202 = vpop.f32.mrb[0].mxu0
        %v10203 = vadd.f32 0.0, %v10202
        %v10204 = vpop.f32.mrb[0].mxu0
        %10205 = vmatprep.mubr.bf16.mxu0 0
        %10206 = vmatmul.mubr.bf16.gmra.mrb[0].mxu0 %v10086
        %v10207 = vpop.f32.mrb[0].mxu0
        %v10208 = vadd.f32 0.0, %v10207
        %v10209 = vpop.f32.mrb[0].mxu0
        %v10210 = vpop.f32.mrb[0].mxu0
        %v10211 = vadd.f32 0.0, %v10210
        %v10212 = vpop.f32.mrb[0].mxu0
        %10213 = vmatprep.mubr.bf16.mxu0 0
        %10214 = vmatmul.mubr.bf16.gmra.mrb[0].mxu0 %v10087
        %v10215 = vpop.f32.mrb[0].mxu0
        %v10216 = vadd.f32 0.0, %v10215
        %v10217 = vpop.f32.mrb[0].mxu0
        %v10218 = vpop.f32.mrb[0].mxu0
        %v10219 = vadd.f32 0.0, %v10218
        %v10220 = vpop.f32.mrb[0].mxu0
        %10221 = vmatprep.mubr.bf16.mxu0 0
        %10222 = vmatmul.mubr.bf16.gmra.mrb[0].mxu0 %v10088
        %v10223 = vpop.f32.mrb[0].mxu0
        %v10224 = vadd.f32 0.0, %v10223
        %v10225 = vpop.f32.mrb[0].mxu0
        %v10226 = vpop.f32.mrb[0].mxu0
        %v10227 = vadd.f32 0.0, %v10226
        %v10228 = vpop.f32.mrb[0].mxu0
        %10229 = vmatprep.mubr.bf16.mxu0 0
        %10230 = vmatmul.mubr.bf16.gmra.mrb[0].mxu0 %v10089
        %v10231 = vpop.f32.mrb[0].mxu0
        %v10232 = vadd.f32 0.0, %v10231
        %v10233 = vpop.f32.mrb[0].mxu0
        %v10234 = vpop.f32.mrb[0].mxu0
        %v10235 = vadd.f32 0.0, %v10234
        %v10236 = vpop.f32.mrb[0].mxu0
        %10237 = vmatprep.mubr.bf16.mxu0 0
        %10238 = vmatmul.mubr.bf16.gmra.mrb[0].mxu0 %v10090
        %v10239 = vpop.f32.mrb[0].mxu0
        %v10240 = vadd.f32 0.0, %v10239
        %v10241 = vpop.f32.mrb[0].mxu0
        %v10242 = vpop.f32.mrb[0].mxu0
        %v10243 = vadd.f32 0.0, %v10242
        %v10244 = vpop.f32.mrb[0].mxu0
        %10245 = vmatprep.mubr.bf16.mxu0 0
        %10246 = vmatmul.mubr.bf16.gmra.mrb[0].mxu0 %v10091
        %v10247 = vpop.f32.mrb[0].mxu0
        %v10248 = vadd.f32 0.0, %v10247
        %v10249 = vpop.f32.mrb[0].mxu0
        %v10250 = vpop.f32.mrb[0].mxu0
        %v10251 = vadd.f32 0.0, %v10250
        %v10252 = vpop.f32.mrb[0].mxu0
        %10253 = vmatprep.mubr.bf16.mxu0 0
        %10254 = vmatmul.mubr.bf16.gmra.mrb[0].mxu0 %v10092
        %v10255 = vpop.f32.mrb[0].mxu0
        %v10256 = vadd.f32 0.0, %v10255
        %v10257 = vpop.f32.mrb[0].mxu0
        %v10258 = vpop.f32.mrb[0].mxu0
        %v10259 = vadd.f32 0.0, %v10258
        %v10260 = vpop.f32.mrb[0].mxu0
        %10261 = vmatprep.mubr.bf16.mxu0 0
        %10262 = vmatmul.mubr.bf16.gmra.mrb[0].mxu0 %v10093
        %v10263 = vpop.f32.mrb[0].mxu0
        %v10264 = vadd.f32 0.0, %v10263
        %v10265 = vpop.f32.mrb[0].mxu0
        %v10266 = vpop.f32.mrb[0].mxu0
        %v10267 = vadd.f32 0.0, %v10266
        %v10268 = vpop.f32.mrb[0].mxu0
        %10269 = vmatprep.mubr.bf16.mxu0 0
        %10270 = vmatmul.mubr.bf16.gmra.mrb[0].mxu0 %v10094
        %v10271 = vpop.f32.mrb[0].mxu0
        %v10272 = vadd.f32 0.0, %v10271
        %v10273 = vpop.f32.mrb[0].mxu0
        %v10274 = vpop.f32.mrb[0].mxu0
        %v10275 = vadd.f32 0.0, %v10274
        %v10276 = vpop.f32.mrb[0].mxu0
        %10277 = vmatprep.mubr.bf16.mxu0 0
        %10278 = vmatmul.mubr.bf16.gmra.mrb[0].mxu0 %v10095
        %v10279 = vpop.f32.mrb[0].mxu0
        %v10280 = vadd.f32 0.0, %v10279
        %v10281 = vpop.f32.mrb[0].mxu0
        %v10282 = vpop.f32.mrb[0].mxu0
        %v10283 = vadd.f32 0.0, %v10282
        %v10284 = vpop.f32.mrb[0].mxu0
        %10285 = vmatprep.mubr.bf16.mxu0 0
        %10286 = vmatmul.mubr.bf16.gmra.mrb[0].mxu0 %v10096
        %v10287 = vpop.f32.mrb[0].mxu0
        %v10288 = vadd.f32 0.0, %v10287
        %v10289 = vpop.f32.mrb[0].mxu0
        %v10290 = vpop.f32.mrb[0].mxu0
        %v10291 = vadd.f32 0.0, %v10290
        %v10292 = vpop.f32.mrb[0].mxu0
        %10293 = vmatprep.mubr.bf16.mxu0 0
        %10294 = vmatmul.mubr.bf16.gmra.mrb[0].mxu0 %v10097
        %v10295 = vpop.f32.mrb[0].mxu0
        %v10296 = vadd.f32 0.0, %v10295
        %v10297 = vpop.f32.mrb[0].mxu0
        %v10298 = vpop.f32.mrb[0].mxu0
        %v10299 = vadd.f32 0.0, %v10298
        %v10300 = vpop.f32.mrb[0].mxu0
        %10301 = vmatprep.mubr.bf16.mxu0 0
        %10302 = vmatmul.mubr.bf16.gmra.mrb[0].mxu0 %v10098
        %v10303 = vpop.f32.mrb[0].mxu0
        %v10304 = vadd.f32 0.0, %v10303
        %v10305 = vpop.f32.mrb[0].mxu0
        %v10306 = vpop.f32.mrb[0].mxu0
        %v10307 = vadd.f32 0.0, %v10306
        %v10308 = vpop.f32.mrb[0].mxu0
        %10309 = vmatprep.mubr.bf16.mxu0 0
        %10310 = vmatmul.mubr.bf16.gmra.mrb[0].mxu0 %v10099
        %v10311 = vpop.f32.mrb[0].mxu0
        %v10312 = vadd.f32 0.0, %v10311
        %v10313 = vpop.f32.mrb[0].mxu0
        %v10314 = vpop.f32.mrb[0].mxu0
        %v10315 = vadd.f32 0.0, %v10314
        %v10316 = vpop.f32.mrb[0].mxu0
        %10317 = vmatprep.mubr.bf16.mxu0 0
        %10318 = vmatmul.mubr.bf16.gmra.mrb[0].mxu0 %v10100
        %v10319 = vpop.f32.mrb[0].mxu0
        %v10320 = vadd.f32 0.0, %v10319
        %v10321 = vpop.f32.mrb[0].mxu0
        %v10322 = vpop.f32.mrb[0].mxu0
        %v10323 = vadd.f32 0.0, %v10322
        %v10324 = vpop.f32.mrb[0].mxu0
        %10325 = vdwg.mxu0
        %v10326 = vadd.f32 %v9939, %v10200
        %v10327 = vadd.f32 %v9940, %v10203
        %v10328 = vadd.f32 %v9941, %v10208
        %v10329 = vadd.f32 %v9942, %v10211
        %v10330 = vadd.f32 %v9943, %v10216
        %v10331 = vadd.f32 %v9944, %v10219
        %v10332 = vadd.f32 %v9945, %v10224
        %v10333 = vadd.f32 %v9946, %v10227
        %v10334 = vadd.f32 %v9947, %v10232
        %v10335 = vadd.f32 %v9948, %v10235
        %v10336 = vadd.f32 %v9949, %v10240
        %v10337 = vadd.f32 %v9950, %v10243
        %v10338 = vadd.f32 %v9951, %v10248
        %v10339 = vadd.f32 %v9952, %v10251
        %v10340 = vadd.f32 %v9953, %v10256
        %v10341 = vadd.f32 %v9954, %v10259
        %v10342 = vadd.f32 %v9955, %v10264
        %v10343 = vadd.f32 %v9956, %v10267
        %v10344 = vadd.f32 %v9957, %v10272
        %v10345 = vadd.f32 %v9958, %v10275
        %v10346 = vadd.f32 %v9959, %v10280
        %v10347 = vadd.f32 %v9960, %v10283
        %v10348 = vadd.f32 %v9961, %v10288
        %v10349 = vadd.f32 %v9962, %v10291
        %v10350 = vadd.f32 %v9963, %v10296
        %v10351 = vadd.f32 %v9964, %v10299
        %v10352 = vadd.f32 %v9965, %v10304
        %v10353 = vadd.f32 %v9966, %v10307
        %v10354 = vadd.f32 %v9967, %v10312
        %v10355 = vadd.f32 %v9968, %v10315
        %v10356 = vadd.f32 %v9969, %v10320
        %v10357 = vadd.f32 %v9970, %v10323
        %v10358 = vld [vmem:[%s9971] sm:$0xf]
        %v10359 = vld [vmem:[%s9971 + $0x4] sm:$0xf]
        %v10360 = vld [vmem:[%s9971 + $0x8] sm:$0x1]
        %v10361 = vld [vmem:[%s9971 + $0xc] sm:$0xf]
        %v10362 = vld [vmem:[%s9971 + $0x10] sm:$0xf]
        %v10363 = vld [vmem:[%s9971 + $0x14] sm:$0x1]
        %v10364 = vld [vmem:[%s9971 + $0x18] sm:$0xf]
        %v10365 = vld [vmem:[%s9971 + $0x1c] sm:$0xf]
        %v10366 = vld [vmem:[%s9971 + $0x20] sm:$0x1]
        %v10367 = vld [vmem:[%s9971 + $0x24] sm:$0xf]
        %v10368 = vld [vmem:[%s9971 + $0x28] sm:$0xf]
        %v10369 = vld [vmem:[%s9971 + $0x2c] sm:$0x1]
        %v10370 = vld [vmem:[%s9971 + $0x30] sm:$0xf]
        %v10371 = vld [vmem:[%s9971 + $0x34] sm:$0xf]
        %v10372 = vld [vmem:[%s9971 + $0x38] sm:$0x1]
        %v10373 = vld [vmem:[%s9971 + $0x3c] sm:$0xf]
        %v10374 = vld [vmem:[%s9971 + $0x40] sm:$0xf]
        %v10375 = vld [vmem:[%s9971 + $0x44] sm:$0x1]
        %v10376 = vld [vmem:[%s9971 + $0x48] sm:$0xf]
        %v10377 = vld [vmem:[%s9971 + $0x4c] sm:$0xf]
        %v10378 = vld [vmem:[%s9971 + $0x50] sm:$0x1]
        %v10379 = vld [vmem:[%s9971 + $0x54] sm:$0xf]
        %v10380 = vld [vmem:[%s9971 + $0x58] sm:$0xf]
        %v10381 = vld [vmem:[%s9971 + $0x5c] sm:$0x1]
        %v10382 = vld [vmem:[%s9971 + $0x60] sm:$0xf]
        %v10383 = vld [vmem:[%s9971 + $0x64] sm:$0xf]
        %v10384 = vld [vmem:[%s9971 + $0x68] sm:$0x1]
        %v10385 = vld [vmem:[%s9971 + $0x6c] sm:$0xf]
        %v10386 = vld [vmem:[%s9971 + $0x70] sm:$0xf]
        %v10387 = vld [vmem:[%s9971 + $0x74] sm:$0x1]
        %v10388 = vld [vmem:[%s9971 + $0x78] sm:$0xf]
        %v10389 = vld [vmem:[%s9971 + $0x7c] sm:$0xf]
        %v10390 = vld [vmem:[%s9971 + $0x80] sm:$0x1]
        %v10391 = vld [vmem:[%s9971 + $0x84] sm:$0xf]
        %v10392 = vld [vmem:[%s9971 + $0x88] sm:$0xf]
        %v10393 = vld [vmem:[%s9971 + $0x8c] sm:$0x1]
        %v10394 = vld [vmem:[%s9971 + $0x90] sm:$0xf]
        %v10395 = vld [vmem:[%s9971 + $0x94] sm:$0xf]
        %v10396 = vld [vmem:[%s9971 + $0x98] sm:$0x1]
        %v10397 = vld [vmem:[%s9971 + $0x9c] sm:$0xf]
        %v10398 = vld [vmem:[%s9971 + $0xa0] sm:$0xf]
        %v10399 = vld [vmem:[%s9971 + $0xa4] sm:$0x1]
        %v10400 = vld [vmem:[%s9971 + $0xa8] sm:$0xf]
        %v10401 = vld [vmem:[%s9971 + $0xac] sm:$0xf]
        %v10402 = vld [vmem:[%s9971 + $0xb0] sm:$0x1]
        %v10403 = vld [vmem:[%s9971 + $0xb4] sm:$0xf]
        %v10404 = vld [vmem:[%s9971 + $0xb8] sm:$0xf]
        %v10405 = vld [vmem:[%s9971 + $0xbc] sm:$0x1]
        %v10407 = vshrl.u32 %v10358, 16
        %v10409 = vrot.slane %v10407, 4
        %v10410 = vshll.u32 %v10358, 16
        %v10412 = vrot.slane %v10410, 5
        %v10413 = vor.u32 %v10409, %v10412
        %v10414 = vrot.slane %v10413, 4
        %v10416 = vshll.u32 %v10359, 16
        %v10418 = vrot.slane %v10416, 5
        %v10419 = vsel %vm1163, %v10414, %v10418
        %v10420 = vshrl.u32 %v10359, 16
        %v10422 = vrot.slane %v10420, 4
        %v10423 = vor.u32 %v10422, %v10418
        %v10424 = vrot.slane %v10423, 4
        %v10426 = vshll.u32 %v10360, 16
        %v10428 = vrot.slane %v10426, 5
        %v10429 = vsel %vm1163, %v10424, %v10428
        %v10431 = vshrl.u32 %v10361, 16
        %v10433 = vrot.slane %v10431, 4
        %v10434 = vshll.u32 %v10361, 16
        %v10436 = vrot.slane %v10434, 5
        %v10437 = vor.u32 %v10433, %v10436
        %v10438 = vrot.slane %v10437, 4
        %v10440 = vshll.u32 %v10362, 16
        %v10442 = vrot.slane %v10440, 5
        %v10443 = vsel %vm1163, %v10438, %v10442
        %v10444 = vshrl.u32 %v10362, 16
        %v10446 = vrot.slane %v10444, 4
        %v10447 = vor.u32 %v10446, %v10442
        %v10448 = vrot.slane %v10447, 4
        %v10450 = vshll.u32 %v10363, 16
        %v10452 = vrot.slane %v10450, 5
        %v10453 = vsel %vm1163, %v10448, %v10452
        %v10455 = vshrl.u32 %v10364, 16
        %v10457 = vrot.slane %v10455, 4
        %v10458 = vshll.u32 %v10364, 16
        %v10460 = vrot.slane %v10458, 5
        %v10461 = vor.u32 %v10457, %v10460
        %v10462 = vrot.slane %v10461, 4
        %v10464 = vshll.u32 %v10365, 16
        %v10466 = vrot.slane %v10464, 5
        %v10467 = vsel %vm1163, %v10462, %v10466
        %v10468 = vshrl.u32 %v10365, 16
        %v10470 = vrot.slane %v10468, 4
        %v10471 = vor.u32 %v10470, %v10466
        %v10472 = vrot.slane %v10471, 4
        %v10474 = vshll.u32 %v10366, 16
        %v10476 = vrot.slane %v10474, 5
        %v10477 = vsel %vm1163, %v10472, %v10476
        %v10479 = vshrl.u32 %v10367, 16
        %v10481 = vrot.slane %v10479, 4
        %v10482 = vshll.u32 %v10367, 16
        %v10484 = vrot.slane %v10482, 5
        %v10485 = vor.u32 %v10481, %v10484
        %v10486 = vrot.slane %v10485, 4
        %v10488 = vshll.u32 %v10368, 16
        %v10490 = vrot.slane %v10488, 5
        %v10491 = vsel %vm1163, %v10486, %v10490
        %v10492 = vshrl.u32 %v10368, 16
        %v10494 = vrot.slane %v10492, 4
        %v10495 = vor.u32 %v10494, %v10490
        %v10496 = vrot.slane %v10495, 4
        %v10498 = vshll.u32 %v10369, 16
        %v10500 = vrot.slane %v10498, 5
        %v10501 = vsel %vm1163, %v10496, %v10500
        %v10503 = vshrl.u32 %v10370, 16
        %v10505 = vrot.slane %v10503, 4
        %v10506 = vshll.u32 %v10370, 16
        %v10508 = vrot.slane %v10506, 5
        %v10509 = vor.u32 %v10505, %v10508
        %v10510 = vrot.slane %v10509, 4
        %v10512 = vshll.u32 %v10371, 16
        %v10514 = vrot.slane %v10512, 5
        %v10515 = vsel %vm1163, %v10510, %v10514
        %v10516 = vshrl.u32 %v10371, 16
        %v10518 = vrot.slane %v10516, 4
        %v10519 = vor.u32 %v10518, %v10514
        %v10520 = vrot.slane %v10519, 4
        %v10522 = vshll.u32 %v10372, 16
        %v10524 = vrot.slane %v10522, 5
        %v10525 = vsel %vm1163, %v10520, %v10524
        %v10527 = vshrl.u32 %v10373, 16
        %v10529 = vrot.slane %v10527, 4
        %v10530 = vshll.u32 %v10373, 16
        %v10532 = vrot.slane %v10530, 5
        %v10533 = vor.u32 %v10529, %v10532
        %v10534 = vrot.slane %v10533, 4
        %v10536 = vshll.u32 %v10374, 16
        %v10538 = vrot.slane %v10536, 5
        %v10539 = vsel %vm1163, %v10534, %v10538
        %v10540 = vshrl.u32 %v10374, 16
        %v10542 = vrot.slane %v10540, 4
        %v10543 = vor.u32 %v10542, %v10538
        %v10544 = vrot.slane %v10543, 4
        %v10546 = vshll.u32 %v10375, 16
        %v10548 = vrot.slane %v10546, 5
        %v10549 = vsel %vm1163, %v10544, %v10548
        %v10551 = vshrl.u32 %v10376, 16
        %v10553 = vrot.slane %v10551, 4
        %v10554 = vshll.u32 %v10376, 16
        %v10556 = vrot.slane %v10554, 5
        %v10557 = vor.u32 %v10553, %v10556
        %v10558 = vrot.slane %v10557, 4
        %v10560 = vshll.u32 %v10377, 16
        %v10562 = vrot.slane %v10560, 5
        %v10563 = vsel %vm1163, %v10558, %v10562
        %v10564 = vshrl.u32 %v10377, 16
        %v10566 = vrot.slane %v10564, 4
        %v10567 = vor.u32 %v10566, %v10562
        %v10568 = vrot.slane %v10567, 4
        %v10570 = vshll.u32 %v10378, 16
        %v10572 = vrot.slane %v10570, 5
        %v10573 = vsel %vm1163, %v10568, %v10572
        %v10575 = vshrl.u32 %v10379, 16
        %v10577 = vrot.slane %v10575, 4
        %v10578 = vshll.u32 %v10379, 16
        %v10580 = vrot.slane %v10578, 5
        %v10581 = vor.u32 %v10577, %v10580
        %v10582 = vrot.slane %v10581, 4
        %v10584 = vshll.u32 %v10380, 16
        %v10586 = vrot.slane %v10584, 5
        %v10587 = vsel %vm1163, %v10582, %v10586
        %v10588 = vshrl.u32 %v10380, 16
        %v10590 = vrot.slane %v10588, 4
        %v10591 = vor.u32 %v10590, %v10586
        %v10592 = vrot.slane %v10591, 4
        %v10594 = vshll.u32 %v10381, 16
        %v10596 = vrot.slane %v10594, 5
        %v10597 = vsel %vm1163, %v10592, %v10596
        %v10599 = vshrl.u32 %v10382, 16
        %v10601 = vrot.slane %v10599, 4
        %v10602 = vshll.u32 %v10382, 16
        %v10604 = vrot.slane %v10602, 5
        %v10605 = vor.u32 %v10601, %v10604
        %v10606 = vrot.slane %v10605, 4
        %v10608 = vshll.u32 %v10383, 16
        %v10610 = vrot.slane %v10608, 5
        %v10611 = vsel %vm1163, %v10606, %v10610
        %v10612 = vshrl.u32 %v10383, 16
        %v10614 = vrot.slane %v10612, 4
        %v10615 = vor.u32 %v10614, %v10610
        %v10616 = vrot.slane %v10615, 4
        %v10618 = vshll.u32 %v10384, 16
        %v10620 = vrot.slane %v10618, 5
        %v10621 = vsel %vm1163, %v10616, %v10620
        %v10623 = vshrl.u32 %v10385, 16
        %v10625 = vrot.slane %v10623, 4
        %v10626 = vshll.u32 %v10385, 16
        %v10628 = vrot.slane %v10626, 5
        %v10629 = vor.u32 %v10625, %v10628
        %v10630 = vrot.slane %v10629, 4
        %v10632 = vshll.u32 %v10386, 16
        %v10634 = vrot.slane %v10632, 5
        %v10635 = vsel %vm1163, %v10630, %v10634
        %v10636 = vshrl.u32 %v10386, 16
        %v10638 = vrot.slane %v10636, 4
        %v10639 = vor.u32 %v10638, %v10634
        %v10640 = vrot.slane %v10639, 4
        %v10642 = vshll.u32 %v10387, 16
        %v10644 = vrot.slane %v10642, 5
        %v10645 = vsel %vm1163, %v10640, %v10644
        %v10647 = vshrl.u32 %v10388, 16
        %v10649 = vrot.slane %v10647, 4
        %v10650 = vshll.u32 %v10388, 16
        %v10652 = vrot.slane %v10650, 5
        %v10653 = vor.u32 %v10649, %v10652
        %v10654 = vrot.slane %v10653, 4
        %v10656 = vshll.u32 %v10389, 16
        %v10658 = vrot.slane %v10656, 5
        %v10659 = vsel %vm1163, %v10654, %v10658
        %v10660 = vshrl.u32 %v10389, 16
        %v10662 = vrot.slane %v10660, 4
        %v10663 = vor.u32 %v10662, %v10658
        %v10664 = vrot.slane %v10663, 4
        %v10666 = vshll.u32 %v10390, 16
        %v10668 = vrot.slane %v10666, 5
        %v10669 = vsel %vm1163, %v10664, %v10668
        %v10671 = vshrl.u32 %v10391, 16
        %v10673 = vrot.slane %v10671, 4
        %v10674 = vshll.u32 %v10391, 16
        %v10676 = vrot.slane %v10674, 5
        %v10677 = vor.u32 %v10673, %v10676
        %v10678 = vrot.slane %v10677, 4
        %v10680 = vshll.u32 %v10392, 16
        %v10682 = vrot.slane %v10680, 5
        %v10683 = vsel %vm1163, %v10678, %v10682
        %v10684 = vshrl.u32 %v10392, 16
        %v10686 = vrot.slane %v10684, 4
        %v10687 = vor.u32 %v10686, %v10682
        %v10688 = vrot.slane %v10687, 4
        %v10690 = vshll.u32 %v10393, 16
        %v10692 = vrot.slane %v10690, 5
        %v10693 = vsel %vm1163, %v10688, %v10692
        %v10695 = vshrl.u32 %v10394, 16
        %v10697 = vrot.slane %v10695, 4
        %v10698 = vshll.u32 %v10394, 16
        %v10700 = vrot.slane %v10698, 5
        %v10701 = vor.u32 %v10697, %v10700
        %v10702 = vrot.slane %v10701, 4
        %v10704 = vshll.u32 %v10395, 16
        %v10706 = vrot.slane %v10704, 5
        %v10707 = vsel %vm1163, %v10702, %v10706
        %v10708 = vshrl.u32 %v10395, 16
        %v10710 = vrot.slane %v10708, 4
        %v10711 = vor.u32 %v10710, %v10706
        %v10712 = vrot.slane %v10711, 4
        %v10714 = vshll.u32 %v10396, 16
        %v10716 = vrot.slane %v10714, 5
        %v10717 = vsel %vm1163, %v10712, %v10716
        %v10719 = vshrl.u32 %v10397, 16
        %v10721 = vrot.slane %v10719, 4
        %v10722 = vshll.u32 %v10397, 16
        %v10724 = vrot.slane %v10722, 5
        %v10725 = vor.u32 %v10721, %v10724
        %v10726 = vrot.slane %v10725, 4
        %v10728 = vshll.u32 %v10398, 16
        %v10730 = vrot.slane %v10728, 5
        %v10731 = vsel %vm1163, %v10726, %v10730
        %v10732 = vshrl.u32 %v10398, 16
        %v10734 = vrot.slane %v10732, 4
        %v10735 = vor.u32 %v10734, %v10730
        %v10736 = vrot.slane %v10735, 4
        %v10738 = vshll.u32 %v10399, 16
        %v10740 = vrot.slane %v10738, 5
        %v10741 = vsel %vm1163, %v10736, %v10740
        %v10743 = vshrl.u32 %v10400, 16
        %v10745 = vrot.slane %v10743, 4
        %v10746 = vshll.u32 %v10400, 16
        %v10748 = vrot.slane %v10746, 5
        %v10749 = vor.u32 %v10745, %v10748
        %v10750 = vrot.slane %v10749, 4
        %v10752 = vshll.u32 %v10401, 16
        %v10754 = vrot.slane %v10752, 5
        %v10755 = vsel %vm1163, %v10750, %v10754
        %v10756 = vshrl.u32 %v10401, 16
        %v10758 = vrot.slane %v10756, 4
        %v10759 = vor.u32 %v10758, %v10754
        %v10760 = vrot.slane %v10759, 4
        %v10762 = vshll.u32 %v10402, 16
        %v10764 = vrot.slane %v10762, 5
        %v10765 = vsel %vm1163, %v10760, %v10764
        %v10767 = vshrl.u32 %v10403, 16
        %v10769 = vrot.slane %v10767, 4
        %v10770 = vshll.u32 %v10403, 16
        %v10772 = vrot.slane %v10770, 5
        %v10773 = vor.u32 %v10769, %v10772
        %v10774 = vrot.slane %v10773, 4
        %v10776 = vshll.u32 %v10404, 16
        %v10778 = vrot.slane %v10776, 5
        %v10779 = vsel %vm1163, %v10774, %v10778
        %v10780 = vshrl.u32 %v10404, 16
        %v10782 = vrot.slane %v10780, 4
        %v10783 = vor.u32 %v10782, %v10778
        %v10784 = vrot.slane %v10783, 4
        %v10786 = vshll.u32 %v10405, 16
        %v10788 = vrot.slane %v10786, 5
        %v10789 = vsel %vm1163, %v10784, %v10788
        %s10790 = scalar_lea.vmem %s3, 448
        %v10791 = vld [vmem:[%s10790] sm:$0xf]
        %v10792 = vld [vmem:[%s10790 + $0x4] sm:$0xf]
        %v10793 = vld [vmem:[%s10790 + $0x8] sm:$0xf]
        %v10794 = vld [vmem:[%s10790 + $0xc] sm:$0xf]
        %v10795 = vld [vmem:[%s10790 + $0x10] sm:$0xf]
        %v10796 = vld [vmem:[%s10790 + $0x14] sm:$0xf]
        %v10797 = vld [vmem:[%s10790 + $0x18] sm:$0xf]
        %v10798 = vld [vmem:[%s10790 + $0x1c] sm:$0xf]
        %v10799 = vld [vmem:[%s10790 + $0x20] sm:$0xf]
        %v10800 = vld [vmem:[%s10790 + $0x24] sm:$0xf]
        %v10801 = vld [vmem:[%s10790 + $0x28] sm:$0xf]
        %v10802 = vld [vmem:[%s10790 + $0x2c] sm:$0xf]
        %v10803 = vld [vmem:[%s10790 + $0x30] sm:$0xf]
        %v10804 = vld [vmem:[%s10790 + $0x34] sm:$0xf]
        %v10805 = vld [vmem:[%s10790 + $0x38] sm:$0xf]
        %v10806 = vld [vmem:[%s10790 + $0x3c] sm:$0xf]
        %v10807 = vunpack.c.l.b16 %v10419
        %v10808 = vunpack.c.l.b16 %v10429
        %v10809 = vunpack.c.l.b16 %v10443
        %v10810 = vunpack.c.l.b16 %v10453
        %v10811 = vunpack.c.l.b16 %v10467
        %v10812 = vunpack.c.l.b16 %v10477
        %v10813 = vunpack.c.l.b16 %v10491
        %v10814 = vunpack.c.l.b16 %v10501
        %v10815 = vunpack.c.l.b16 %v10515
        %v10816 = vunpack.c.l.b16 %v10525
        %v10817 = vunpack.c.l.b16 %v10539
        %v10818 = vunpack.c.l.b16 %v10549
        %v10819 = vunpack.c.l.b16 %v10563
        %v10820 = vunpack.c.l.b16 %v10573
        %v10821 = vunpack.c.l.b16 %v10587
        %v10822 = vunpack.c.l.b16 %v10597
        %v10823 = vunpack.c.l.b16 %v10611
        %v10824 = vunpack.c.l.b16 %v10621
        %v10825 = vunpack.c.l.b16 %v10635
        %v10826 = vunpack.c.l.b16 %v10645
        %v10827 = vunpack.c.l.b16 %v10659
        %v10828 = vunpack.c.l.b16 %v10669
        %v10829 = vunpack.c.l.b16 %v10683
        %v10830 = vunpack.c.l.b16 %v10693
        %v10831 = vunpack.c.l.b16 %v10707
        %v10832 = vunpack.c.l.b16 %v10717
        %v10833 = vunpack.c.l.b16 %v10731
        %v10834 = vunpack.c.l.b16 %v10741
        %v10835 = vunpack.c.l.b16 %v10755
        %v10836 = vunpack.c.l.b16 %v10765
        %v10837 = vunpack.c.l.b16 %v10779
        %v10838 = vunpack.c.l.b16 %v10789
        %v10839 = vpack.c.b16 %v10808, %v10807
        %v10840 = vpack.c.b16 %v10810, %v10809
        %v10841 = vpack.c.b16 %v10812, %v10811
        %v10842 = vpack.c.b16 %v10814, %v10813
        %v10843 = vpack.c.b16 %v10816, %v10815
        %v10844 = vpack.c.b16 %v10818, %v10817
        %v10845 = vpack.c.b16 %v10820, %v10819
        %v10846 = vpack.c.b16 %v10822, %v10821
        %v10847 = vpack.c.b16 %v10824, %v10823
        %v10848 = vpack.c.b16 %v10826, %v10825
        %v10849 = vpack.c.b16 %v10828, %v10827
        %v10850 = vpack.c.b16 %v10830, %v10829
        %v10851 = vpack.c.b16 %v10832, %v10831
        %v10852 = vpack.c.b16 %v10834, %v10833
        %v10853 = vpack.c.b16 %v10836, %v10835
        %v10854 = vpack.c.b16 %v10838, %v10837
        %v10887 = vunpack.c.l.b16 %v10791
        %v10888 = vunpack.c.l.b16 %v10792
        %v10889 = vunpack.c.l.b16 %v10793
        %v10890 = vunpack.c.l.b16 %v10794
        %v10891 = vunpack.c.l.b16 %v10795
        %v10892 = vunpack.c.l.b16 %v10796
        %v10893 = vunpack.c.l.b16 %v10797
        %v10894 = vunpack.c.l.b16 %v10798
        %v10895 = vunpack.c.l.b16 %v10799
        %v10896 = vunpack.c.l.b16 %v10800
        %v10897 = vunpack.c.l.b16 %v10801
        %v10898 = vunpack.c.l.b16 %v10802
        %v10899 = vunpack.c.l.b16 %v10803
        %v10900 = vunpack.c.l.b16 %v10804
        %v10901 = vunpack.c.l.b16 %v10805
        %v10902 = vunpack.c.l.b16 %v10806
        %v10903 = vpack.c.b16 %v10888, %v10887
        %v10904 = vpack.c.b16 %v10890, %v10889
        %v10905 = vpack.c.b16 %v10892, %v10891
        %v10906 = vpack.c.b16 %v10894, %v10893
        %v10907 = vpack.c.b16 %v10896, %v10895
        %v10908 = vpack.c.b16 %v10898, %v10897
        %v10909 = vpack.c.b16 %v10900, %v10899
        %v10910 = vpack.c.b16 %v10902, %v10901
        %10919 = vmatprep.subr.bf16.mxu0 0
        %10920 = vmatpush1.bf16.msra.mxu0 %v10903
        %10921 = vmatprep.subr.bf16.mxu0 0
        %10922 = vmatpush1.bf16.msra.mxu0 %v10904
        %10923 = vmatprep.subr.bf16.mxu0 0
        %10924 = vmatpush1.bf16.msra.mxu0 %v10905
        %10925 = vmatprep.subr.bf16.mxu0 0
        %10926 = vmatpush1.bf16.msra.mxu0 %v10906
        %10927 = vmatprep.subr.bf16.mxu0 0
        %10928 = vmatpush1.bf16.msra.mxu0 %v10907
        %10929 = vmatprep.subr.bf16.mxu0 0
        %10930 = vmatpush1.bf16.msra.mxu0 %v10908
        %10931 = vmatprep.subr.bf16.mxu0 0
        %10932 = vmatpush1.bf16.msra.mxu0 %v10909
        %10933 = vmatprep.subr.bf16.mxu0 0
        %10934 = vmatpush1.bf16.msra.mxu0 %v10910
        %10935 = vmatprep.subr.bf16.mxu0 0
        %10936 = vmatpush1.bf16.msra.mxu0 0
        %10937 = vmatprep.subr.bf16.mxu0 0
        %10938 = vmatpush1.bf16.msra.mxu0 0
        %10939 = vmatprep.subr.bf16.mxu0 0
        %10940 = vmatpush1.bf16.msra.mxu0 0
        %10941 = vmatprep.subr.bf16.mxu0 0
        %10942 = vmatpush1.bf16.msra.mxu0 0
        %10943 = vmatprep.subr.bf16.mxu0 0
        %10944 = vmatpush1.bf16.msra.mxu0 0
        %10945 = vmatprep.subr.bf16.mxu0 0
        %10946 = vmatpush1.bf16.msra.mxu0 0
        %10947 = vmatprep.subr.bf16.mxu0 0
        %10948 = vmatpush1.bf16.msra.mxu0 0
        %10949 = vmatprep.subr.bf16.mxu0 0
        %10950 = vmatpush1.bf16.msra.mxu0 0
        %10951 = vmatprep.mubr.bf16.mxu0 0
        %10952 = vmatmul.mubr.bf16.gmra.mrb[0].mxu0 %v10839
        %v10953 = vpop.f32.mrb[0].mxu0
        %v10954 = vadd.f32 0.0, %v10953
        %v10955 = vpop.f32.mrb[0].mxu0
        %v10956 = vpop.f32.mrb[0].mxu0
        %v10957 = vadd.f32 0.0, %v10956
        %v10958 = vpop.f32.mrb[0].mxu0
        %10959 = vmatprep.mubr.bf16.mxu0 0
        %10960 = vmatmul.mubr.bf16.gmra.mrb[0].mxu0 %v10840
        %v10961 = vpop.f32.mrb[0].mxu0
        %v10962 = vadd.f32 0.0, %v10961
        %v10963 = vpop.f32.mrb[0].mxu0
        %v10964 = vpop.f32.mrb[0].mxu0
        %v10965 = vadd.f32 0.0, %v10964
        %v10966 = vpop.f32.mrb[0].mxu0
        %10967 = vmatprep.mubr.bf16.mxu0 0
        %10968 = vmatmul.mubr.bf16.gmra.mrb[0].mxu0 %v10841
        %v10969 = vpop.f32.mrb[0].mxu0
        %v10970 = vadd.f32 0.0, %v10969
        %v10971 = vpop.f32.mrb[0].mxu0
        %v10972 = vpop.f32.mrb[0].mxu0
        %v10973 = vadd.f32 0.0, %v10972
        %v10974 = vpop.f32.mrb[0].mxu0
        %10975 = vmatprep.mubr.bf16.mxu0 0
        %10976 = vmatmul.mubr.bf16.gmra.mrb[0].mxu0 %v10842
        %v10977 = vpop.f32.mrb[0].mxu0
        %v10978 = vadd.f32 0.0, %v10977
        %v10979 = vpop.f32.mrb[0].mxu0
        %v10980 = vpop.f32.mrb[0].mxu0
        %v10981 = vadd.f32 0.0, %v10980
        %v10982 = vpop.f32.mrb[0].mxu0
        %10983 = vmatprep.mubr.bf16.mxu0 0
        %10984 = vmatmul.mubr.bf16.gmra.mrb[0].mxu0 %v10843
        %v10985 = vpop.f32.mrb[0].mxu0
        %v10986 = vadd.f32 0.0, %v10985
        %v10987 = vpop.f32.mrb[0].mxu0
        %v10988 = vpop.f32.mrb[0].mxu0
        %v10989 = vadd.f32 0.0, %v10988
        %v10990 = vpop.f32.mrb[0].mxu0
        %10991 = vmatprep.mubr.bf16.mxu0 0
        %10992 = vmatmul.mubr.bf16.gmra.mrb[0].mxu0 %v10844
        %v10993 = vpop.f32.mrb[0].mxu0
        %v10994 = vadd.f32 0.0, %v10993
        %v10995 = vpop.f32.mrb[0].mxu0
        %v10996 = vpop.f32.mrb[0].mxu0
        %v10997 = vadd.f32 0.0, %v10996
        %v10998 = vpop.f32.mrb[0].mxu0
        %10999 = vmatprep.mubr.bf16.mxu0 0
        %11000 = vmatmul.mubr.bf16.gmra.mrb[0].mxu0 %v10845
        %v11001 = vpop.f32.mrb[0].mxu0
        %v11002 = vadd.f32 0.0, %v11001
        %v11003 = vpop.f32.mrb[0].mxu0
        %v11004 = vpop.f32.mrb[0].mxu0
        %v11005 = vadd.f32 0.0, %v11004
        %v11006 = vpop.f32.mrb[0].mxu0
        %11007 = vmatprep.mubr.bf16.mxu0 0
        %11008 = vmatmul.mubr.bf16.gmra.mrb[0].mxu0 %v10846
        %v11009 = vpop.f32.mrb[0].mxu0
        %v11010 = vadd.f32 0.0, %v11009
        %v11011 = vpop.f32.mrb[0].mxu0
        %v11012 = vpop.f32.mrb[0].mxu0
        %v11013 = vadd.f32 0.0, %v11012
        %v11014 = vpop.f32.mrb[0].mxu0
        %11015 = vmatprep.mubr.bf16.mxu0 0
        %11016 = vmatmul.mubr.bf16.gmra.mrb[0].mxu0 %v10847
        %v11017 = vpop.f32.mrb[0].mxu0
        %v11018 = vadd.f32 0.0, %v11017
        %v11019 = vpop.f32.mrb[0].mxu0
        %v11020 = vpop.f32.mrb[0].mxu0
        %v11021 = vadd.f32 0.0, %v11020
        %v11022 = vpop.f32.mrb[0].mxu0
        %11023 = vmatprep.mubr.bf16.mxu0 0
        %11024 = vmatmul.mubr.bf16.gmra.mrb[0].mxu0 %v10848
        %v11025 = vpop.f32.mrb[0].mxu0
        %v11026 = vadd.f32 0.0, %v11025
        %v11027 = vpop.f32.mrb[0].mxu0
        %v11028 = vpop.f32.mrb[0].mxu0
        %v11029 = vadd.f32 0.0, %v11028
        %v11030 = vpop.f32.mrb[0].mxu0
        %11031 = vmatprep.mubr.bf16.mxu0 0
        %11032 = vmatmul.mubr.bf16.gmra.mrb[0].mxu0 %v10849
        %v11033 = vpop.f32.mrb[0].mxu0
        %v11034 = vadd.f32 0.0, %v11033
        %v11035 = vpop.f32.mrb[0].mxu0
        %v11036 = vpop.f32.mrb[0].mxu0
        %v11037 = vadd.f32 0.0, %v11036
        %v11038 = vpop.f32.mrb[0].mxu0
        %11039 = vmatprep.mubr.bf16.mxu0 0
        %11040 = vmatmul.mubr.bf16.gmra.mrb[0].mxu0 %v10850
        %v11041 = vpop.f32.mrb[0].mxu0
        %v11042 = vadd.f32 0.0, %v11041
        %v11043 = vpop.f32.mrb[0].mxu0
        %v11044 = vpop.f32.mrb[0].mxu0
        %v11045 = vadd.f32 0.0, %v11044
        %v11046 = vpop.f32.mrb[0].mxu0
        %11047 = vmatprep.mubr.bf16.mxu0 0
        %11048 = vmatmul.mubr.bf16.gmra.mrb[0].mxu0 %v10851
        %v11049 = vpop.f32.mrb[0].mxu0
        %v11050 = vadd.f32 0.0, %v11049
        %v11051 = vpop.f32.mrb[0].mxu0
        %v11052 = vpop.f32.mrb[0].mxu0
        %v11053 = vadd.f32 0.0, %v11052
        %v11054 = vpop.f32.mrb[0].mxu0
        %11055 = vmatprep.mubr.bf16.mxu0 0
        %11056 = vmatmul.mubr.bf16.gmra.mrb[0].mxu0 %v10852
        %v11057 = vpop.f32.mrb[0].mxu0
        %v11058 = vadd.f32 0.0, %v11057
        %v11059 = vpop.f32.mrb[0].mxu0
        %v11060 = vpop.f32.mrb[0].mxu0
        %v11061 = vadd.f32 0.0, %v11060
        %v11062 = vpop.f32.mrb[0].mxu0
        %11063 = vmatprep.mubr.bf16.mxu0 0
        %11064 = vmatmul.mubr.bf16.gmra.mrb[0].mxu0 %v10853
        %v11065 = vpop.f32.mrb[0].mxu0
        %v11066 = vadd.f32 0.0, %v11065
        %v11067 = vpop.f32.mrb[0].mxu0
        %v11068 = vpop.f32.mrb[0].mxu0
        %v11069 = vadd.f32 0.0, %v11068
        %v11070 = vpop.f32.mrb[0].mxu0
        %11071 = vmatprep.mubr.bf16.mxu0 0
        %11072 = vmatmul.mubr.bf16.gmra.mrb[0].mxu0 %v10854
        %v11073 = vpop.f32.mrb[0].mxu0
        %v11074 = vadd.f32 0.0, %v11073
        %v11075 = vpop.f32.mrb[0].mxu0
        %v11076 = vpop.f32.mrb[0].mxu0
        %v11077 = vadd.f32 0.0, %v11076
        %v11078 = vpop.f32.mrb[0].mxu0
        %11079 = vdwg.mxu0
        %v11080 = vadd.f32 %v10326, %v10954
        %v11081 = vadd.f32 %v10327, %v10957
        %v11082 = vadd.f32 %v10328, %v10962
        %v11083 = vadd.f32 %v10329, %v10965
        %v11084 = vadd.f32 %v10330, %v10970
        %v11085 = vadd.f32 %v10331, %v10973
        %v11086 = vadd.f32 %v10332, %v10978
        %v11087 = vadd.f32 %v10333, %v10981
        %v11088 = vadd.f32 %v10334, %v10986
        %v11089 = vadd.f32 %v10335, %v10989
        %v11090 = vadd.f32 %v10336, %v10994
        %v11091 = vadd.f32 %v10337, %v10997
        %v11092 = vadd.f32 %v10338, %v11002
        %v11093 = vadd.f32 %v10339, %v11005
        %v11094 = vadd.f32 %v10340, %v11010
        %v11095 = vadd.f32 %v10341, %v11013
        %v11096 = vadd.f32 %v10342, %v11018
        %v11097 = vadd.f32 %v10343, %v11021
        %v11098 = vadd.f32 %v10344, %v11026
        %v11099 = vadd.f32 %v10345, %v11029
        %v11100 = vadd.f32 %v10346, %v11034
        %v11101 = vadd.f32 %v10347, %v11037
        %v11102 = vadd.f32 %v10348, %v11042
        %v11103 = vadd.f32 %v10349, %v11045
        %v11104 = vadd.f32 %v10350, %v11050
        %v11105 = vadd.f32 %v10351, %v11053
        %v11106 = vadd.f32 %v10352, %v11058
        %v11107 = vadd.f32 %v10353, %v11061
        %v11108 = vadd.f32 %v10354, %v11066
        %v11109 = vadd.f32 %v10355, %v11069
        %v11110 = vadd.f32 %v10356, %v11074
        %v11111 = vadd.f32 %v10357, %v11077
        %v11112 = vld [vmem:[%s9971] sm:$0xe]
        %v11113 = vld [vmem:[%s9971 + $0xc] sm:$0xe]
        %v11114 = vld [vmem:[%s9971 + $0x18] sm:$0xe]
        %v11115 = vld [vmem:[%s9971 + $0x24] sm:$0xe]
        %v11116 = vld [vmem:[%s9971 + $0x30] sm:$0xe]
        %v11117 = vld [vmem:[%s9971 + $0x3c] sm:$0xe]
        %v11118 = vld [vmem:[%s9971 + $0x48] sm:$0xe]
        %v11119 = vld [vmem:[%s9971 + $0x54] sm:$0xe]
        %v11120 = vld [vmem:[%s9971 + $0x60] sm:$0xe]
        %v11121 = vld [vmem:[%s9971 + $0x6c] sm:$0xe]
        %v11122 = vld [vmem:[%s9971 + $0x78] sm:$0xe]
        %v11123 = vld [vmem:[%s9971 + $0x84] sm:$0xe]
        %v11124 = vld [vmem:[%s9971 + $0x90] sm:$0xe]
        %v11125 = vld [vmem:[%s9971 + $0x9c] sm:$0xe]
        %v11126 = vld [vmem:[%s9971 + $0xa8] sm:$0xe]
        %v11127 = vld [vmem:[%s9971 + $0xb4] sm:$0xe]
        %v11176 = vrot.slane %v11112, 5
        %v11177 = vrot.slane %v11176, 4
        %v11178 = vrot.slane %v10359, 5
        %v11179 = vsel %vm2193, %v11177, %v11178
        %v11180 = vrot.slane %v11178, 4
        %v11181 = vrot.slane %v10360, 5
        %v11182 = vsel %vm2193, %v11180, %v11181
        %v11183 = vrot.slane %v11113, 5
        %v11184 = vrot.slane %v11183, 4
        %v11185 = vrot.slane %v10362, 5
        %v11186 = vsel %vm2193, %v11184, %v11185
        %v11187 = vrot.slane %v11185, 4
        %v11188 = vrot.slane %v10363, 5
        %v11189 = vsel %vm2193, %v11187, %v11188
        %v11190 = vrot.slane %v11114, 5
        %v11191 = vrot.slane %v11190, 4
        %v11192 = vrot.slane %v10365, 5
        %v11193 = vsel %vm2193, %v11191, %v11192
        %v11194 = vrot.slane %v11192, 4
        %v11195 = vrot.slane %v10366, 5
        %v11196 = vsel %vm2193, %v11194, %v11195
        %v11197 = vrot.slane %v11115, 5
        %v11198 = vrot.slane %v11197, 4
        %v11199 = vrot.slane %v10368, 5
        %v11200 = vsel %vm2193, %v11198, %v11199
        %v11201 = vrot.slane %v11199, 4
        %v11202 = vrot.slane %v10369, 5
        %v11203 = vsel %vm2193, %v11201, %v11202
        %v11204 = vrot.slane %v11116, 5
        %v11205 = vrot.slane %v11204, 4
        %v11206 = vrot.slane %v10371, 5
        %v11207 = vsel %vm2193, %v11205, %v11206
        %v11208 = vrot.slane %v11206, 4
        %v11209 = vrot.slane %v10372, 5
        %v11210 = vsel %vm2193, %v11208, %v11209
        %v11211 = vrot.slane %v11117, 5
        %v11212 = vrot.slane %v11211, 4
        %v11213 = vrot.slane %v10374, 5
        %v11214 = vsel %vm2193, %v11212, %v11213
        %v11215 = vrot.slane %v11213, 4
        %v11216 = vrot.slane %v10375, 5
        %v11217 = vsel %vm2193, %v11215, %v11216
        %v11218 = vrot.slane %v11118, 5
        %v11219 = vrot.slane %v11218, 4
        %v11220 = vrot.slane %v10377, 5
        %v11221 = vsel %vm2193, %v11219, %v11220
        %v11222 = vrot.slane %v11220, 4
        %v11223 = vrot.slane %v10378, 5
        %v11224 = vsel %vm2193, %v11222, %v11223
        %v11225 = vrot.slane %v11119, 5
        %v11226 = vrot.slane %v11225, 4
        %v11227 = vrot.slane %v10380, 5
        %v11228 = vsel %vm2193, %v11226, %v11227
        %v11229 = vrot.slane %v11227, 4
        %v11230 = vrot.slane %v10381, 5
        %v11231 = vsel %vm2193, %v11229, %v11230
        %v11232 = vrot.slane %v11120, 5
        %v11233 = vrot.slane %v11232, 4
        %v11234 = vrot.slane %v10383, 5
        %v11235 = vsel %vm2193, %v11233, %v11234
        %v11236 = vrot.slane %v11234, 4
        %v11237 = vrot.slane %v10384, 5
        %v11238 = vsel %vm2193, %v11236, %v11237
        %v11239 = vrot.slane %v11121, 5
        %v11240 = vrot.slane %v11239, 4
        %v11241 = vrot.slane %v10386, 5
        %v11242 = vsel %vm2193, %v11240, %v11241
        %v11243 = vrot.slane %v11241, 4
        %v11244 = vrot.slane %v10387, 5
        %v11245 = vsel %vm2193, %v11243, %v11244
        %v11246 = vrot.slane %v11122, 5
        %v11247 = vrot.slane %v11246, 4
        %v11248 = vrot.slane %v10389, 5
        %v11249 = vsel %vm2193, %v11247, %v11248
        %v11250 = vrot.slane %v11248, 4
        %v11251 = vrot.slane %v10390, 5
        %v11252 = vsel %vm2193, %v11250, %v11251
        %v11253 = vrot.slane %v11123, 5
        %v11254 = vrot.slane %v11253, 4
        %v11255 = vrot.slane %v10392, 5
        %v11256 = vsel %vm2193, %v11254, %v11255
        %v11257 = vrot.slane %v11255, 4
        %v11258 = vrot.slane %v10393, 5
        %v11259 = vsel %vm2193, %v11257, %v11258
        %v11260 = vrot.slane %v11124, 5
        %v11261 = vrot.slane %v11260, 4
        %v11262 = vrot.slane %v10395, 5
        %v11263 = vsel %vm2193, %v11261, %v11262
        %v11264 = vrot.slane %v11262, 4
        %v11265 = vrot.slane %v10396, 5
        %v11266 = vsel %vm2193, %v11264, %v11265
        %v11267 = vrot.slane %v11125, 5
        %v11268 = vrot.slane %v11267, 4
        %v11269 = vrot.slane %v10398, 5
        %v11270 = vsel %vm2193, %v11268, %v11269
        %v11271 = vrot.slane %v11269, 4
        %v11272 = vrot.slane %v10399, 5
        %v11273 = vsel %vm2193, %v11271, %v11272
        %v11274 = vrot.slane %v11126, 5
        %v11275 = vrot.slane %v11274, 4
        %v11276 = vrot.slane %v10401, 5
        %v11277 = vsel %vm2193, %v11275, %v11276
        %v11278 = vrot.slane %v11276, 4
        %v11279 = vrot.slane %v10402, 5
        %v11280 = vsel %vm2193, %v11278, %v11279
        %v11281 = vrot.slane %v11127, 5
        %v11282 = vrot.slane %v11281, 4
        %v11283 = vrot.slane %v10404, 5
        %v11284 = vsel %vm2193, %v11282, %v11283
        %v11285 = vrot.slane %v11283, 4
        %v11286 = vrot.slane %v10405, 5
        %v11287 = vsel %vm2193, %v11285, %v11286
        %s11288 = scalar_lea.vmem %s3, 512
        %v11289 = vld [vmem:[%s11288] sm:$0xf]
        %v11290 = vld [vmem:[%s11288 + $0x4] sm:$0xf]
        %v11291 = vld [vmem:[%s11288 + $0x8] sm:$0xf]
        %v11292 = vld [vmem:[%s11288 + $0xc] sm:$0xf]
        %v11293 = vld [vmem:[%s11288 + $0x10] sm:$0xf]
        %v11294 = vld [vmem:[%s11288 + $0x14] sm:$0xf]
        %v11295 = vld [vmem:[%s11288 + $0x18] sm:$0xf]
        %v11296 = vld [vmem:[%s11288 + $0x1c] sm:$0xf]
        %v11297 = vld [vmem:[%s11288 + $0x20] sm:$0xf]
        %v11298 = vld [vmem:[%s11288 + $0x24] sm:$0xf]
        %v11299 = vld [vmem:[%s11288 + $0x28] sm:$0xf]
        %v11300 = vld [vmem:[%s11288 + $0x2c] sm:$0xf]
        %v11301 = vld [vmem:[%s11288 + $0x30] sm:$0xf]
        %v11302 = vld [vmem:[%s11288 + $0x34] sm:$0xf]
        %v11303 = vld [vmem:[%s11288 + $0x38] sm:$0xf]
        %v11304 = vld [vmem:[%s11288 + $0x3c] sm:$0xf]
        %v11305 = vunpack.c.l.b16 %v11179
        %v11306 = vunpack.c.l.b16 %v11182
        %v11307 = vunpack.c.l.b16 %v11186
        %v11308 = vunpack.c.l.b16 %v11189
        %v11309 = vunpack.c.l.b16 %v11193
        %v11310 = vunpack.c.l.b16 %v11196
        %v11311 = vunpack.c.l.b16 %v11200
        %v11312 = vunpack.c.l.b16 %v11203
        %v11313 = vunpack.c.l.b16 %v11207
        %v11314 = vunpack.c.l.b16 %v11210
        %v11315 = vunpack.c.l.b16 %v11214
        %v11316 = vunpack.c.l.b16 %v11217
        %v11317 = vunpack.c.l.b16 %v11221
        %v11318 = vunpack.c.l.b16 %v11224
        %v11319 = vunpack.c.l.b16 %v11228
        %v11320 = vunpack.c.l.b16 %v11231
        %v11321 = vunpack.c.l.b16 %v11235
        %v11322 = vunpack.c.l.b16 %v11238
        %v11323 = vunpack.c.l.b16 %v11242
        %v11324 = vunpack.c.l.b16 %v11245
        %v11325 = vunpack.c.l.b16 %v11249
        %v11326 = vunpack.c.l.b16 %v11252
        %v11327 = vunpack.c.l.b16 %v11256
        %v11328 = vunpack.c.l.b16 %v11259
        %v11329 = vunpack.c.l.b16 %v11263
        %v11330 = vunpack.c.l.b16 %v11266
        %v11331 = vunpack.c.l.b16 %v11270
        %v11332 = vunpack.c.l.b16 %v11273
        %v11333 = vunpack.c.l.b16 %v11277
        %v11334 = vunpack.c.l.b16 %v11280
        %v11335 = vunpack.c.l.b16 %v11284
        %v11336 = vunpack.c.l.b16 %v11287
        %v11337 = vpack.c.b16 %v11306, %v11305
        %v11338 = vpack.c.b16 %v11308, %v11307
        %v11339 = vpack.c.b16 %v11310, %v11309
        %v11340 = vpack.c.b16 %v11312, %v11311
        %v11341 = vpack.c.b16 %v11314, %v11313
        %v11342 = vpack.c.b16 %v11316, %v11315
        %v11343 = vpack.c.b16 %v11318, %v11317
        %v11344 = vpack.c.b16 %v11320, %v11319
        %v11345 = vpack.c.b16 %v11322, %v11321
        %v11346 = vpack.c.b16 %v11324, %v11323
        %v11347 = vpack.c.b16 %v11326, %v11325
        %v11348 = vpack.c.b16 %v11328, %v11327
        %v11349 = vpack.c.b16 %v11330, %v11329
        %v11350 = vpack.c.b16 %v11332, %v11331
        %v11351 = vpack.c.b16 %v11334, %v11333
        %v11352 = vpack.c.b16 %v11336, %v11335
        %v11385 = vunpack.c.l.b16 %v11289
        %v11386 = vunpack.c.l.b16 %v11290
        %v11387 = vunpack.c.l.b16 %v11291
        %v11388 = vunpack.c.l.b16 %v11292
        %v11389 = vunpack.c.l.b16 %v11293
        %v11390 = vunpack.c.l.b16 %v11294
        %v11391 = vunpack.c.l.b16 %v11295
        %v11392 = vunpack.c.l.b16 %v11296
        %v11393 = vunpack.c.l.b16 %v11297
        %v11394 = vunpack.c.l.b16 %v11298
        %v11395 = vunpack.c.l.b16 %v11299
        %v11396 = vunpack.c.l.b16 %v11300
        %v11397 = vunpack.c.l.b16 %v11301
        %v11398 = vunpack.c.l.b16 %v11302
        %v11399 = vunpack.c.l.b16 %v11303
        %v11400 = vunpack.c.l.b16 %v11304
        %v11401 = vpack.c.b16 %v11386, %v11385
        %v11402 = vpack.c.b16 %v11388, %v11387
        %v11403 = vpack.c.b16 %v11390, %v11389
        %v11404 = vpack.c.b16 %v11392, %v11391
        %v11405 = vpack.c.b16 %v11394, %v11393
        %v11406 = vpack.c.b16 %v11396, %v11395
        %v11407 = vpack.c.b16 %v11398, %v11397
        %v11408 = vpack.c.b16 %v11400, %v11399
        %11417 = vmatprep.subr.bf16.mxu0 0
        %11418 = vmatpush1.bf16.msra.mxu0 %v11401
        %11419 = vmatprep.subr.bf16.mxu0 0
        %11420 = vmatpush1.bf16.msra.mxu0 %v11402
        %11421 = vmatprep.subr.bf16.mxu0 0
        %11422 = vmatpush1.bf16.msra.mxu0 %v11403
        %11423 = vmatprep.subr.bf16.mxu0 0
        %11424 = vmatpush1.bf16.msra.mxu0 %v11404
        %11425 = vmatprep.subr.bf16.mxu0 0
        %11426 = vmatpush1.bf16.msra.mxu0 %v11405
        %11427 = vmatprep.subr.bf16.mxu0 0
        %11428 = vmatpush1.bf16.msra.mxu0 %v11406
        %11429 = vmatprep.subr.bf16.mxu0 0
        %11430 = vmatpush1.bf16.msra.mxu0 %v11407
        %11431 = vmatprep.subr.bf16.mxu0 0
        %11432 = vmatpush1.bf16.msra.mxu0 %v11408
        %11433 = vmatprep.subr.bf16.mxu0 0
        %11434 = vmatpush1.bf16.msra.mxu0 0
        %11435 = vmatprep.subr.bf16.mxu0 0
        %11436 = vmatpush1.bf16.msra.mxu0 0
        %11437 = vmatprep.subr.bf16.mxu0 0
        %11438 = vmatpush1.bf16.msra.mxu0 0
        %11439 = vmatprep.subr.bf16.mxu0 0
        %11440 = vmatpush1.bf16.msra.mxu0 0
        %11441 = vmatprep.subr.bf16.mxu0 0
        %11442 = vmatpush1.bf16.msra.mxu0 0
        %11443 = vmatprep.subr.bf16.mxu0 0
        %11444 = vmatpush1.bf16.msra.mxu0 0
        %11445 = vmatprep.subr.bf16.mxu0 0
        %11446 = vmatpush1.bf16.msra.mxu0 0
        %11447 = vmatprep.subr.bf16.mxu0 0
        %11448 = vmatpush1.bf16.msra.mxu0 0
        %11449 = vmatprep.mubr.bf16.mxu0 0
        %11450 = vmatmul.mubr.bf16.gmra.mrb[0].mxu0 %v11337
        %v11451 = vpop.f32.mrb[0].mxu0
        %v11452 = vadd.f32 0.0, %v11451
        %v11453 = vpop.f32.mrb[0].mxu0
        %v11454 = vpop.f32.mrb[0].mxu0
        %v11455 = vadd.f32 0.0, %v11454
        %v11456 = vpop.f32.mrb[0].mxu0
        %11457 = vmatprep.mubr.bf16.mxu0 0
        %11458 = vmatmul.mubr.bf16.gmra.mrb[0].mxu0 %v11338
        %v11459 = vpop.f32.mrb[0].mxu0
        %v11460 = vadd.f32 0.0, %v11459
        %v11461 = vpop.f32.mrb[0].mxu0
        %v11462 = vpop.f32.mrb[0].mxu0
        %v11463 = vadd.f32 0.0, %v11462
        %v11464 = vpop.f32.mrb[0].mxu0
        %11465 = vmatprep.mubr.bf16.mxu0 0
        %11466 = vmatmul.mubr.bf16.gmra.mrb[0].mxu0 %v11339
        %v11467 = vpop.f32.mrb[0].mxu0
        %v11468 = vadd.f32 0.0, %v11467
        %v11469 = vpop.f32.mrb[0].mxu0
        %v11470 = vpop.f32.mrb[0].mxu0
        %v11471 = vadd.f32 0.0, %v11470
        %v11472 = vpop.f32.mrb[0].mxu0
        %11473 = vmatprep.mubr.bf16.mxu0 0
        %11474 = vmatmul.mubr.bf16.gmra.mrb[0].mxu0 %v11340
        %v11475 = vpop.f32.mrb[0].mxu0
        %v11476 = vadd.f32 0.0, %v11475
        %v11477 = vpop.f32.mrb[0].mxu0
        %v11478 = vpop.f32.mrb[0].mxu0
        %v11479 = vadd.f32 0.0, %v11478
        %v11480 = vpop.f32.mrb[0].mxu0
        %11481 = vmatprep.mubr.bf16.mxu0 0
        %11482 = vmatmul.mubr.bf16.gmra.mrb[0].mxu0 %v11341
        %v11483 = vpop.f32.mrb[0].mxu0
        %v11484 = vadd.f32 0.0, %v11483
        %v11485 = vpop.f32.mrb[0].mxu0
        %v11486 = vpop.f32.mrb[0].mxu0
        %v11487 = vadd.f32 0.0, %v11486
        %v11488 = vpop.f32.mrb[0].mxu0
        %11489 = vmatprep.mubr.bf16.mxu0 0
        %11490 = vmatmul.mubr.bf16.gmra.mrb[0].mxu0 %v11342
        %v11491 = vpop.f32.mrb[0].mxu0
        %v11492 = vadd.f32 0.0, %v11491
        %v11493 = vpop.f32.mrb[0].mxu0
        %v11494 = vpop.f32.mrb[0].mxu0
        %v11495 = vadd.f32 0.0, %v11494
        %v11496 = vpop.f32.mrb[0].mxu0
        %11497 = vmatprep.mubr.bf16.mxu0 0
        %11498 = vmatmul.mubr.bf16.gmra.mrb[0].mxu0 %v11343
        %v11499 = vpop.f32.mrb[0].mxu0
        %v11500 = vadd.f32 0.0, %v11499
        %v11501 = vpop.f32.mrb[0].mxu0
        %v11502 = vpop.f32.mrb[0].mxu0
        %v11503 = vadd.f32 0.0, %v11502
        %v11504 = vpop.f32.mrb[0].mxu0
        %11505 = vmatprep.mubr.bf16.mxu0 0
        %11506 = vmatmul.mubr.bf16.gmra.mrb[0].mxu0 %v11344
        %v11507 = vpop.f32.mrb[0].mxu0
        %v11508 = vadd.f32 0.0, %v11507
        %v11509 = vpop.f32.mrb[0].mxu0
        %v11510 = vpop.f32.mrb[0].mxu0
        %v11511 = vadd.f32 0.0, %v11510
        %v11512 = vpop.f32.mrb[0].mxu0
        %11513 = vmatprep.mubr.bf16.mxu0 0
        %11514 = vmatmul.mubr.bf16.gmra.mrb[0].mxu0 %v11345
        %v11515 = vpop.f32.mrb[0].mxu0
        %v11516 = vadd.f32 0.0, %v11515
        %v11517 = vpop.f32.mrb[0].mxu0
        %v11518 = vpop.f32.mrb[0].mxu0
        %v11519 = vadd.f32 0.0, %v11518
        %v11520 = vpop.f32.mrb[0].mxu0
        %11521 = vmatprep.mubr.bf16.mxu0 0
        %11522 = vmatmul.mubr.bf16.gmra.mrb[0].mxu0 %v11346
        %v11523 = vpop.f32.mrb[0].mxu0
        %v11524 = vadd.f32 0.0, %v11523
        %v11525 = vpop.f32.mrb[0].mxu0
        %v11526 = vpop.f32.mrb[0].mxu0
        %v11527 = vadd.f32 0.0, %v11526
        %v11528 = vpop.f32.mrb[0].mxu0
        %11529 = vmatprep.mubr.bf16.mxu0 0
        %11530 = vmatmul.mubr.bf16.gmra.mrb[0].mxu0 %v11347
        %v11531 = vpop.f32.mrb[0].mxu0
        %v11532 = vadd.f32 0.0, %v11531
        %v11533 = vpop.f32.mrb[0].mxu0
        %v11534 = vpop.f32.mrb[0].mxu0
        %v11535 = vadd.f32 0.0, %v11534
        %v11536 = vpop.f32.mrb[0].mxu0
        %11537 = vmatprep.mubr.bf16.mxu0 0
        %11538 = vmatmul.mubr.bf16.gmra.mrb[0].mxu0 %v11348
        %v11539 = vpop.f32.mrb[0].mxu0
        %v11540 = vadd.f32 0.0, %v11539
        %v11541 = vpop.f32.mrb[0].mxu0
        %v11542 = vpop.f32.mrb[0].mxu0
        %v11543 = vadd.f32 0.0, %v11542
        %v11544 = vpop.f32.mrb[0].mxu0
        %11545 = vmatprep.mubr.bf16.mxu0 0
        %11546 = vmatmul.mubr.bf16.gmra.mrb[0].mxu0 %v11349
        %v11547 = vpop.f32.mrb[0].mxu0
        %v11548 = vadd.f32 0.0, %v11547
        %v11549 = vpop.f32.mrb[0].mxu0
        %v11550 = vpop.f32.mrb[0].mxu0
        %v11551 = vadd.f32 0.0, %v11550
        %v11552 = vpop.f32.mrb[0].mxu0
        %11553 = vmatprep.mubr.bf16.mxu0 0
        %11554 = vmatmul.mubr.bf16.gmra.mrb[0].mxu0 %v11350
        %v11555 = vpop.f32.mrb[0].mxu0
        %v11556 = vadd.f32 0.0, %v11555
        %v11557 = vpop.f32.mrb[0].mxu0
        %v11558 = vpop.f32.mrb[0].mxu0
        %v11559 = vadd.f32 0.0, %v11558
        %v11560 = vpop.f32.mrb[0].mxu0
        %11561 = vmatprep.mubr.bf16.mxu0 0
        %11562 = vmatmul.mubr.bf16.gmra.mrb[0].mxu0 %v11351
        %v11563 = vpop.f32.mrb[0].mxu0
        %v11564 = vadd.f32 0.0, %v11563
        %v11565 = vpop.f32.mrb[0].mxu0
        %v11566 = vpop.f32.mrb[0].mxu0
        %v11567 = vadd.f32 0.0, %v11566
        %v11568 = vpop.f32.mrb[0].mxu0
        %11569 = vmatprep.mubr.bf16.mxu0 0
        %11570 = vmatmul.mubr.bf16.gmra.mrb[0].mxu0 %v11352
        %v11571 = vpop.f32.mrb[0].mxu0
        %v11572 = vadd.f32 0.0, %v11571
        %v11573 = vpop.f32.mrb[0].mxu0
        %v11574 = vpop.f32.mrb[0].mxu0
        %v11575 = vadd.f32 0.0, %v11574
        %v11576 = vpop.f32.mrb[0].mxu0
        %11577 = vdwg.mxu0
        %v11578 = vadd.f32 %v11080, %v11452
        %v11579 = vadd.f32 %v11081, %v11455
        %v11580 = vadd.f32 %v11082, %v11460
        %v11581 = vadd.f32 %v11083, %v11463
        %v11582 = vadd.f32 %v11084, %v11468
        %v11583 = vadd.f32 %v11085, %v11471
        %v11584 = vadd.f32 %v11086, %v11476
        %v11585 = vadd.f32 %v11087, %v11479
        %v11586 = vadd.f32 %v11088, %v11484
        %v11587 = vadd.f32 %v11089, %v11487
        %v11588 = vadd.f32 %v11090, %v11492
        %v11589 = vadd.f32 %v11091, %v11495
        %v11590 = vadd.f32 %v11092, %v11500
        %v11591 = vadd.f32 %v11093, %v11503
        %v11592 = vadd.f32 %v11094, %v11508
        %v11593 = vadd.f32 %v11095, %v11511
        %v11594 = vadd.f32 %v11096, %v11516
        %v11595 = vadd.f32 %v11097, %v11519
        %v11596 = vadd.f32 %v11098, %v11524
        %v11597 = vadd.f32 %v11099, %v11527
        %v11598 = vadd.f32 %v11100, %v11532
        %v11599 = vadd.f32 %v11101, %v11535
        %v11600 = vadd.f32 %v11102, %v11540
        %v11601 = vadd.f32 %v11103, %v11543
        %v11602 = vadd.f32 %v11104, %v11548
        %v11603 = vadd.f32 %v11105, %v11551
        %v11604 = vadd.f32 %v11106, %v11556
        %v11605 = vadd.f32 %v11107, %v11559
        %v11606 = vadd.f32 %v11108, %v11564
        %v11607 = vadd.f32 %v11109, %v11567
        %v11608 = vadd.f32 %v11110, %v11572
        %v11609 = vadd.f32 %v11111, %v11575
        %v11610 = vld [vmem:[%s4] sm:$0x1]
        %v11612 = vlaneseq
        %v11613 = vshrl.u32 %v11612, 7
        %v11614 = vsub.s32 0, %v11613
        %v11615 = vrot.slane %v11610, %v11614
        %v11617 = vadd.f32 %v11578, %v11615
        %v11618 = vadd.f32 %v11579, %v11615
        %v11619 = vadd.f32 %v11580, %v11615
        %v11620 = vadd.f32 %v11581, %v11615
        %v11621 = vadd.f32 %v11582, %v11615
        %v11622 = vadd.f32 %v11583, %v11615
        %v11623 = vadd.f32 %v11584, %v11615
        %v11624 = vadd.f32 %v11585, %v11615
        %v11625 = vadd.f32 %v11586, %v11615
        %v11626 = vadd.f32 %v11587, %v11615
        %v11627 = vadd.f32 %v11588, %v11615
        %v11628 = vadd.f32 %v11589, %v11615
        %v11629 = vadd.f32 %v11590, %v11615
        %v11630 = vadd.f32 %v11591, %v11615
        %v11631 = vadd.f32 %v11592, %v11615
        %v11632 = vadd.f32 %v11593, %v11615
        %v11633 = vadd.f32 %v11594, %v11615
        %v11634 = vadd.f32 %v11595, %v11615
        %v11635 = vadd.f32 %v11596, %v11615
        %v11636 = vadd.f32 %v11597, %v11615
        %v11637 = vadd.f32 %v11598, %v11615
        %v11638 = vadd.f32 %v11599, %v11615
        %v11639 = vadd.f32 %v11600, %v11615
        %v11640 = vadd.f32 %v11601, %v11615
        %v11641 = vadd.f32 %v11602, %v11615
        %v11642 = vadd.f32 %v11603, %v11615
        %v11643 = vadd.f32 %v11604, %v11615
        %v11644 = vadd.f32 %v11605, %v11615
        %v11645 = vadd.f32 %v11606, %v11615
        %v11646 = vadd.f32 %v11607, %v11615
        %v11647 = vadd.f32 %v11608, %v11615
        %v11648 = vadd.f32 %v11609, %v11615
        %v11649 = vld [vmem:[%s222] sm:$0xff]
        %v11650 = vld [vmem:[%s222 + $0x8] sm:$0xff]
        %v11651 = vld [vmem:[%s222 + $0x10] sm:$0xff]
        %v11652 = vld [vmem:[%s222 + $0x18] sm:$0xff]
        %v11653 = vld [vmem:[%s222 + $0x20] sm:$0xff]
        %v11654 = vld [vmem:[%s222 + $0x28] sm:$0xff]
        %v11655 = vld [vmem:[%s222 + $0x30] sm:$0xff]
        %v11656 = vld [vmem:[%s222 + $0x38] sm:$0xff]
        %v11657 = vld [vmem:[%s222 + $0x40] sm:$0xff]
        %v11658 = vld [vmem:[%s222 + $0x48] sm:$0xff]
        %v11659 = vld [vmem:[%s222 + $0x50] sm:$0xff]
        %v11660 = vld [vmem:[%s222 + $0x58] sm:$0xff]
        %v11661 = vld [vmem:[%s222 + $0x60] sm:$0xff]
        %v11662 = vld [vmem:[%s222 + $0x68] sm:$0xff]
        %v11663 = vld [vmem:[%s222 + $0x70] sm:$0xff]
        %v11664 = vld [vmem:[%s222 + $0x78] sm:$0xff]
        %v11665 = vld [vmem:[%s222 + $0x80] sm:$0xff]
        %v11666 = vld [vmem:[%s222 + $0x88] sm:$0xff]
        %v11667 = vld [vmem:[%s222 + $0x90] sm:$0xff]
        %v11668 = vld [vmem:[%s222 + $0x98] sm:$0xff]
        %v11669 = vld [vmem:[%s222 + $0xa0] sm:$0xff]
        %v11670 = vld [vmem:[%s222 + $0xa8] sm:$0xff]
        %v11671 = vld [vmem:[%s222 + $0xb0] sm:$0xff]
        %v11672 = vld [vmem:[%s222 + $0xb8] sm:$0xff]
        %v11673 = vld [vmem:[%s222 + $0xc0] sm:$0xff]
        %v11674 = vld [vmem:[%s222 + $0xc8] sm:$0xff]
        %v11675 = vld [vmem:[%s222 + $0xd0] sm:$0xff]
        %v11676 = vld [vmem:[%s222 + $0xd8] sm:$0xff]
        %v11677 = vld [vmem:[%s222 + $0xe0] sm:$0xff]
        %v11678 = vld [vmem:[%s222 + $0xe8] sm:$0xff]
        %v11679 = vld [vmem:[%s222 + $0xf0] sm:$0xff]
        %v11680 = vld [vmem:[%s222 + $0xf8] sm:$0xff]
        %v11681 = vadd.f32 %v11617, %v11649
        %v11682 = vadd.f32 %v11618, %v11650
        %v11683 = vadd.f32 %v11619, %v11651
        %v11684 = vadd.f32 %v11620, %v11652
        %v11685 = vadd.f32 %v11621, %v11653
        %v11686 = vadd.f32 %v11622, %v11654
        %v11687 = vadd.f32 %v11623, %v11655
        %v11688 = vadd.f32 %v11624, %v11656
        %v11689 = vadd.f32 %v11625, %v11657
        %v11690 = vadd.f32 %v11626, %v11658
        %v11691 = vadd.f32 %v11627, %v11659
        %v11692 = vadd.f32 %v11628, %v11660
        %v11693 = vadd.f32 %v11629, %v11661
        %v11694 = vadd.f32 %v11630, %v11662
        %v11695 = vadd.f32 %v11631, %v11663
        %v11696 = vadd.f32 %v11632, %v11664
        %v11697 = vadd.f32 %v11633, %v11665
        %v11698 = vadd.f32 %v11634, %v11666
        %v11699 = vadd.f32 %v11635, %v11667
        %v11700 = vadd.f32 %v11636, %v11668
        %v11701 = vadd.f32 %v11637, %v11669
        %v11702 = vadd.f32 %v11638, %v11670
        %v11703 = vadd.f32 %v11639, %v11671
        %v11704 = vadd.f32 %v11640, %v11672
        %v11705 = vadd.f32 %v11641, %v11673
        %v11706 = vadd.f32 %v11642, %v11674
        %v11707 = vadd.f32 %v11643, %v11675
        %v11708 = vadd.f32 %v11644, %v11676
        %v11709 = vadd.f32 %v11645, %v11677
        %v11710 = vadd.f32 %v11646, %v11678
        %v11711 = vadd.f32 %v11647, %v11679
        %v11712 = vadd.f32 %v11648, %v11680
        %11713 = vst [vmem:[%s217] sm:$0xff] %v11681
        %11714 = vst [vmem:[%s217 + $0x8] sm:$0xff] %v11682
        %11715 = vst [vmem:[%s217 + $0x10] sm:$0xff] %v11683
        %11716 = vst [vmem:[%s217 + $0x18] sm:$0xff] %v11684
        %11717 = vst [vmem:[%s217 + $0x20] sm:$0xff] %v11685
        %11718 = vst [vmem:[%s217 + $0x28] sm:$0xff] %v11686
        %11719 = vst [vmem:[%s217 + $0x30] sm:$0xff] %v11687
        %11720 = vst [vmem:[%s217 + $0x38] sm:$0xff] %v11688
        %11721 = vst [vmem:[%s217 + $0x40] sm:$0xff] %v11689
        %11722 = vst [vmem:[%s217 + $0x48] sm:$0xff] %v11690
        %11723 = vst [vmem:[%s217 + $0x50] sm:$0xff] %v11691
        %11724 = vst [vmem:[%s217 + $0x58] sm:$0xff] %v11692
        %11725 = vst [vmem:[%s217 + $0x60] sm:$0xff] %v11693
        %11726 = vst [vmem:[%s217 + $0x68] sm:$0xff] %v11694
        %11727 = vst [vmem:[%s217 + $0x70] sm:$0xff] %v11695
        %11728 = vst [vmem:[%s217 + $0x78] sm:$0xff] %v11696
        %11729 = vst [vmem:[%s217 + $0x80] sm:$0xff] %v11697
        %11730 = vst [vmem:[%s217 + $0x88] sm:$0xff] %v11698
        %11731 = vst [vmem:[%s217 + $0x90] sm:$0xff] %v11699
        %11732 = vst [vmem:[%s217 + $0x98] sm:$0xff] %v11700
        %11733 = vst [vmem:[%s217 + $0xa0] sm:$0xff] %v11701
        %11734 = vst [vmem:[%s217 + $0xa8] sm:$0xff] %v11702
        %11735 = vst [vmem:[%s217 + $0xb0] sm:$0xff] %v11703
        %11736 = vst [vmem:[%s217 + $0xb8] sm:$0xff] %v11704
        %11737 = vst [vmem:[%s217 + $0xc0] sm:$0xff] %v11705
        %11738 = vst [vmem:[%s217 + $0xc8] sm:$0xff] %v11706
        %11739 = vst [vmem:[%s217 + $0xd0] sm:$0xff] %v11707
        %11740 = vst [vmem:[%s217 + $0xd8] sm:$0xff] %v11708
        %11741 = vst [vmem:[%s217 + $0xe0] sm:$0xff] %v11709
        %11742 = vst [vmem:[%s217 + $0xe8] sm:$0xff] %v11710
        %11743 = vst [vmem:[%s217 + $0xf0] sm:$0xff] %v11711
        %11744 = vst [vmem:[%s217 + $0xf8] sm:$0xff] %v11712
        %s11745 = sand.u32 %s137, 1
        %s11746 = scalar_lea.sflag [#allocation5], %s11745
        %s11747 = sand.u32 %s137, 1
        %s11748 = smul.addr %s11747, 256
        %s11749 = scalar_lea.vmem [#allocation4], %s11748
        // Predicated region
        $region41: #{resnet_block_nonorm_forward.1} parent=39 // pred_check
          %p11750 = pneg %p147
        $region42: #{resnet_block_nonorm_forward.1} parent=39 // pred_check_branch
          %11752 = sbr.rel (%p11750) target = $region44
        $region43: #{resnet_block_nonorm_forward.1} parent=39 // pred_region
          %s11754 = ssub.s32 4096, 4096
          %11755 = vsyncadd %s11746, %s11754
          %s11756 = smul.addr %s19, 32
          %s11757 = smul.addr %s11756, 128
          %s11758 = scalar_lea.hbm %s5, %s11757
          %s11759 = sshll.u32 %s11749, 4
          %s11760 = int_to_ptr.vmem [resolvable:$true] %s11759
          %11765 = dma.vmem_to_hbm [thread:$0]  %s11760, 4096, %s11758, %s11746, 128, 128, 8
        $region44: #{resnet_block_nonorm_forward.1} parent=39 // pred_fallthru
          _
      $region40: #{resnet_block_nonorm_forward.1} parent=5 // pred_fallthru
        _
      %p11766 = scmp.le.s32.totalorder 2, %s14
      // Predicated region
      $region45: #{resnet_block_nonorm_forward.1} parent=5 // pred_check
        %p11767 = pneg %p11766
      $region46: #{resnet_block_nonorm_forward.1} parent=5 // pred_check_branch
        %11769 = sbr.rel (%p11767) target = $region48
      $region47: #{resnet_block_nonorm_forward.1} parent=5 // pred_region
        %s11770 = ssub.s32 %s14, 2
        // Predicated region
        $region49: #{resnet_block_nonorm_forward.1} parent=47 // pred_check
          %p11771 = pneg %p153
        $region50: #{resnet_block_nonorm_forward.1} parent=47 // pred_check_branch
          %11773 = sbr.rel (%p11771) target = $region52
        $region51: #{resnet_block_nonorm_forward.1} parent=47 // pred_region
          %s11774 = sand.u32 %s138, 1
          %s11775 = scalar_lea.sflag [#allocation5], %s11774
          %s11776 = sand.u32 %s138, 1
          %s11777 = smul.addr %s11776, 256
          %s11778 = scalar_lea.vmem [#allocation4], %s11777
          %11779 = dma.done %s11775, 4096
        $region52: #{resnet_block_nonorm_forward.1} parent=47 // pred_fallthru
          _
      $region48: #{resnet_block_nonorm_forward.1} parent=5 // pred_fallthru
        _
    $region6: #{resnet_block_nonorm_forward.1} parent=1 // loop_footer
      %s18 = sadd.s32 1, %s14
    $region7: #{resnet_block_nonorm_forward.1} parent=1 // loop_footer_branch
      %13 = sbr.rel target = $region3
    $region8: #{resnet_block_nonorm_forward.1} parent=1 // loop_exit
      _
    %11780 = vsyncpa [#allocation5], 1
    %s11781 = scalar_lea.sflag [#allocation5], 1
    %11782 = vsyncpa %s11781, 1

</llo_original>
